<compile_context>
chip_gen: v7x
topology: tpu7x:2x2x1
jax: 0.10.0
libtpu: 0.0.40
codegen_flags: <defaults>
</compile_context>

<pallas_src>
import jax
import jax.numpy as jnp
from jax.experimental import pallas as pl
from jax.experimental.pallas import tpu as pltpu


C1P = 128        # conv1 out channels 20  -> padded to 128 lanes
C2P = 128        # conv2 out channels 50  -> padded to 128 lanes
C3P = 512        # conv3 out channels 500 -> padded to 512 lanes
C4P = 128        # conv4 out channels 10  -> padded to 128 lanes
K1P = 32         # conv1 im2col depth 25  -> padded to 32
NUM_CLASSES = 10


# ------------------------------ fused kernel --------------------------------

def fused_net_kernel(p1_ref, w1_ref, b1_ref, w2_ref, b2_ref, w3_ref, b3_ref,
                     w4_ref, b4_ref, o_ref, h1_ref, h2_ref):
    nb = o_ref.shape[0]                       # batch size
    f32 = jnp.float32
    bf16 = jnp.bfloat16

    # ---- conv1 (matmul over prebuilt patches) + 2x2 max-pool ----------------
    # p1_ref[e] holds, for pool element e = (alpha, beta), the patch of every
    # pooled output position; rows ordered (py, px, uy, ux, n) where the pooled
    # 12x12 grid position is (Y, X) = (2*uy + py, 2*ux + px).
    w1 = w1_ref[...]
    y1 = [jnp.dot(p1_ref[e], w1, preferred_element_type=f32) for e in range(4)]
    pooled1 = jnp.maximum(jnp.maximum(y1[0], y1[1]),
                          jnp.maximum(y1[2], y1[3])) + b1_ref[...]
    h1_ref[...] = pooled1                     # (144*nb, C1P) f32, VMEM resident

    # ---- conv2 (in-kernel im2col from VMEM scratch) + 2x2 max-pool ----------
    # conv2 output position (oh, ow) = (2*qh + a, 2*qw + b); kernel offset
    # (i, j) needs h1[n, 2*qh + a + i, 2*qw + b + j, :].  With a+i = 2*ci + pi
    # and b+j = 2*cj + pj the required rows of the (py,px,uy,ux,n)-ordered h1
    # scratch are 4 contiguous chunks of 4*nb rows each.
    w2 = w2_ref[...]                          # (25*C1P, C2P) bf16
    slab_cache = {}

    def conv2_slab(pi, ci, pj, cj):
        key = (pi, ci, pj, cj)
        if key not in slab_cache:
            e2 = pi * 2 + pj
            rows = [h1_ref[pl.ds(e2 * 36 * nb + (ci + q) * 6 * nb + cj * nb,
                                 4 * nb), :]
                    for q in range(4)]
            slab_cache[key] = jnp.concatenate(rows, axis=0).astype(bf16)
        return slab_cache[key]                # (16*nb, C1P), rows (qh, qw, n)

    y2 = []
    for a in range(2):
        for b in range(2):
            pieces = [conv2_slab((a + i) % 2, (a + i) // 2,
                                 (b + j) % 2, (b + j) // 2)
                      for i in range(5) for j in range(5)]
            patch = jnp.concatenate(pieces, axis=-1)      # (16*nb, 25*C1P)
            y2.append(jnp.dot(patch, w2, preferred_element_type=f32))
    pooled2 = jnp.maximum(jnp.maximum(y2[0], y2[1]),
                          jnp.maximum(y2[2], y2[3])) + b2_ref[...]
    h2_ref[...] = pooled2                     # (16*nb, C2P), rows (qh, qw, n)

    # ---- conv3 (4x4 valid -> 1x1 spatial, i.e. fully connected) + ReLU ------
    pieces3 = [h2_ref[pl.ds(s * nb, nb), :] for s in range(16)]
    x3p = jnp.concatenate(pieces3, axis=-1).astype(bf16)  # (nb, 16*C2P)
    x3 = jnp.dot(x3p, w3_ref[...], preferred_element_type=f32) + b3_ref[...]
    x3 = jnp.maximum(x3, 0.0)                 # (nb, C3P) f32

    # ---- conv4 (1x1) + masked log-softmax over the 10 valid classes ---------
    y4 = jnp.dot(x3.astype(bf16), w4_ref[...],
                 preferred_element_type=f32) + b4_ref[...]    # (nb, C4P)
    lane = jax.lax.broadcasted_iota(jnp.int32, y4.shape, 1)
    logits = jnp.where(lane < NUM_CLASSES, y4, -1e30)
    m = jnp.max(logits, axis=-1, keepdims=True)
    e = jnp.exp(logits - m)
    s = jnp.sum(e, axis=-1, keepdims=True)
    o_ref[...] = logits - m - jnp.log(s)


# -------------------------------- JAX glue -----------------------------------

def _build_conv1_patches(x_nhwc):
    """(N, 28, 28, 1) f32 -> (4, 144*N, K1P) bf16 conv1 im2col patches,
    grouped by 2x2 pool element, rows ordered (py, px, uy, ux, n)."""
    n = x_nhwc.shape[0]
    cols = [x_nhwc[:, i:i + 24, j:j + 24, 0] for i in range(5) for j in range(5)]
    pat = jnp.stack(cols, axis=-1)                        # (N, 24, 24, 25)
    pat = pat.reshape(n, 6, 2, 2, 6, 2, 2, 25)            # (n, uy, py, a, ux, px, b, k)
    pat = jnp.transpose(pat, (3, 6, 2, 5, 1, 4, 0, 7))    # (a, b, py, px, uy, ux, n, k)
    pat = pat.reshape(4, 144 * n, 25)
    pat = jnp.pad(pat, ((0, 0), (0, 0), (0, K1P - 25)))
    return pat.astype(jnp.bfloat16)


def _prep_params(params):
    """Pad / re-layout PyTorch-style conv params for the fused kernel."""
    (w1, b1), (w2, b2), (w3, b3), (w4, b4) = params

    w1m = jnp.transpose(w1, (2, 3, 1, 0)).reshape(25, 20)            # (i*5+j, o)
    w1p = jnp.zeros((K1P, C1P), jnp.float32).at[:25, :20].set(w1m).astype(jnp.bfloat16)
    b1p = jnp.zeros((1, C1P), jnp.float32).at[0, :20].set(b1)

    w2m = jnp.transpose(w2, (2, 3, 1, 0))                            # (5,5,20,50)
    w2p = jnp.zeros((5, 5, C1P, C2P), jnp.float32).at[:, :, :20, :50].set(w2m)
    w2p = w2p.reshape(25 * C1P, C2P).astype(jnp.bfloat16)            # k=(i*5+j)*128+c
    b2p = jnp.zeros((1, C2P), jnp.float32).at[0, :50].set(b2)

    w3m = jnp.transpose(w3, (2, 3, 1, 0))                            # (4,4,50,500)
    w3p = jnp.zeros((4, 4, C2P, C3P), jnp.float32).at[:, :, :50, :500].set(w3m)
    w3p = w3p.reshape(16 * C2P, C3P).astype(jnp.bfloat16)            # k=(qh*4+qw)*128+c
    b3p = jnp.zeros((1, C3P), jnp.float32).at[0, :500].set(b3)

    w4m = jnp.transpose(w4, (2, 3, 1, 0)).reshape(500, 10)
    w4p = jnp.zeros((C3P, C4P), jnp.float32).at[:500, :10].set(w4m).astype(jnp.bfloat16)
    b4p = jnp.zeros((1, C4P), jnp.float32).at[0, :10].set(b4)
    return (w1p, b1p, w2p, b2p, w3p, b3p, w4p, b4p)


def net_forward(x_nchw, params):
    n = x_nchw.shape[0]
    x = jnp.transpose(x_nchw, (0, 2, 3, 1)).astype(jnp.float32)
    p1 = _build_conv1_patches(x)
    ops = (p1,) + _prep_params(params)

    flops = 2 * (4 * 144 * n * K1P * C1P            # conv1 (4 pool slabs)
                 + 4 * 16 * n * 25 * C1P * C2P      # conv2 (4 pool slabs)
                 + n * 16 * C2P * C3P               # conv3
                 + n * C3P * C4P)                   # conv4
    bytes_accessed = sum(int(a.size) * a.dtype.itemsize for a in ops) + n * C4P * 4

    out = pl.pallas_call(
        fused_net_kernel,
        out_shape=jax.ShapeDtypeStruct((n, C4P), jnp.float32),
        in_specs=[pl.BlockSpec(memory_space=pltpu.MemorySpace.VMEM)] * len(ops),
        out_specs=pl.BlockSpec(memory_space=pltpu.MemorySpace.VMEM),
        scratch_shapes=[
            pltpu.VMEM((144 * n, C1P), jnp.float32),   # pooled conv1 activations
            pltpu.VMEM((16 * n, C2P), jnp.float32),    # pooled conv2 activations
        ],
        compiler_params=pltpu.CompilerParams(vmem_limit_bytes=32 * 1024 * 1024),
        cost_estimate=pl.CostEstimate(flops=flops,
                                      transcendentals=2 * n * C4P,
                                      bytes_accessed=bytes_accessed),
    )(*ops)
    return out[:, :NUM_CLASSES]


# --------------------------- pure-JAX reference -------------------------------

def net_reference(x_nchw, params):
    (w1, b1), (w2, b2), (w3, b3), (w4, b4) = params
    dn = ('NCHW', 'OIHW', 'NCHW')
    hp = jax.lax.Precision.HIGHEST

    def conv(x, w, b):
        y = jax.lax.conv_general_dilated(x, w, (1, 1), 'VALID',
                                         dimension_numbers=dn, precision=hp)
        return y + b.reshape(1, -1, 1, 1)

    def pool(x):
        return jax.lax.reduce_window(x, -jnp.inf, jax.lax.max,
                                     (1, 1, 2, 2), (1, 1, 2, 2), 'VALID')

    x = pool(conv(x_nchw, w1, b1))
    x = pool(conv(x, w2, b2))
    x = jax.nn.relu(conv(x, w3, b3))
    x = conv(x, w4, b4)
    x = x.reshape(x.shape[0], NUM_CLASSES)
    return jax.nn.log_softmax(x, axis=-1)


# ------------------------------ parameter init --------------------------------

def init_conv(key, o, c, kh, kw):
    k1, k2 = jax.random.split(key)
    fan_in = c * kh * kw
    bound = 1.0 / (fan_in ** 0.5)
    w = jax.random.uniform(k1, (o, c, kh, kw), jnp.float32, -bound, bound)
    b = jax.random.uniform(k2, (o,), jnp.float32, -bound, bound)
    return w, b


if __name__ == "__main__":
    root = jax.random.PRNGKey(0)
    kx, k1, k2, k3, k4 = jax.random.split(root, 5)
    params = (
        init_conv(k1, 20, 1, 5, 5),     # conv1
        init_conv(k2, 50, 20, 5, 5),    # conv2
        init_conv(k3, 500, 50, 4, 4),   # conv3
        init_conv(k4, 10, 500, 1, 1),   # conv4
    )
    # 28x28 single-channel images, as implied by the forward pass.
    x = jax.random.normal(kx, (2, 1, 28, 28), jnp.float32)

    out = jax.block_until_ready(jax.jit(net_forward)(x, params))
    ref = jax.block_until_ready(jax.jit(net_reference)(x, params))

    assert out.shape == (2, NUM_CLASSES), out.shape
    assert bool(jnp.all(jnp.isfinite(out)))
    row_sums = jnp.sum(jnp.exp(out), axis=-1)
    assert bool(jnp.all(jnp.abs(row_sums - 1.0) < 1e-3)), row_sums
    max_err = float(jnp.max(jnp.abs(out - ref)))
    assert max_err < 0.1, max_err

    print("KERNEL_OK")
</pallas_src>

<mosaic_0001>
module attributes {stable_mosaic.version = 11 : i64} {
  func.func @fused_net_kernel(%arg0: memref<4x288x32xbf16, #tpu.memory_space<vmem>>, %arg1: memref<32x128xbf16, #tpu.memory_space<vmem>>, %arg2: memref<1x128xf32, #tpu.memory_space<vmem>>, %arg3: memref<3200x128xbf16, #tpu.memory_space<vmem>>, %arg4: memref<1x128xf32, #tpu.memory_space<vmem>>, %arg5: memref<2048x512xbf16, #tpu.memory_space<vmem>>, %arg6: memref<1x512xf32, #tpu.memory_space<vmem>>, %arg7: memref<512x128xbf16, #tpu.memory_space<vmem>>, %arg8: memref<1x128xf32, #tpu.memory_space<vmem>>, %arg9: memref<2x128xf32, #tpu.memory_space<vmem>>, %arg10: memref<288x128xf32, #tpu.memory_space<vmem>>, %arg11: memref<32x128xf32, #tpu.memory_space<vmem>>) attributes {dimension_semantics = [], scalar_prefetch = 0 : i64, scratch_operands = 2 : i64, tpu.core_type = #tpu.core_type<tc>} {
    %c0 = arith.constant 0 : index
    %c0_0 = arith.constant 0 : index
    %0 = vector.load %arg1[%c0, %c0_0] : memref<32x128xbf16, #tpu.memory_space<vmem>>, vector<32x128xbf16>
    %c0_1 = arith.constant 0 : index
    %c0_2 = arith.constant 0 : index
    %c0_3 = arith.constant 0 : index
    %1 = vector.load %arg0[%c0_1, %c0_2, %c0_3] : memref<4x288x32xbf16, #tpu.memory_space<vmem>>, vector<1x288x32xbf16>
    %2 = vector.shape_cast %1 : vector<1x288x32xbf16> to vector<288x32xbf16>
    %cst = arith.constant dense<0.000000e+00> : vector<288x128xf32>
    %3 = tpu.matmul %2, %0, %cst {dimension_numbers = #tpu.dot_dimension_numbers<[1], [0], [0], [1], [0, 0, 1, 1], [], []>} : vector<288x32xbf16>, vector<32x128xbf16>, vector<288x128xf32> -> vector<288x128xf32>
    %c1 = arith.constant 1 : index
    %c0_4 = arith.constant 0 : index
    %c0_5 = arith.constant 0 : index
    %4 = vector.load %arg0[%c1, %c0_4, %c0_5] : memref<4x288x32xbf16, #tpu.memory_space<vmem>>, vector<1x288x32xbf16>
    %5 = vector.shape_cast %4 : vector<1x288x32xbf16> to vector<288x32xbf16>
    %cst_6 = arith.constant dense<0.000000e+00> : vector<288x128xf32>
    %6 = tpu.matmul %5, %0, %cst_6 {dimension_numbers = #tpu.dot_dimension_numbers<[1], [0], [0], [1], [0, 0, 1, 1], [], []>} : vector<288x32xbf16>, vector<32x128xbf16>, vector<288x128xf32> -> vector<288x128xf32>
    %c2 = arith.constant 2 : index
    %c0_7 = arith.constant 0 : index
    %c0_8 = arith.constant 0 : index
    %7 = vector.load %arg0[%c2, %c0_7, %c0_8] : memref<4x288x32xbf16, #tpu.memory_space<vmem>>, vector<1x288x32xbf16>
    %8 = vector.shape_cast %7 : vector<1x288x32xbf16> to vector<288x32xbf16>
    %cst_9 = arith.constant dense<0.000000e+00> : vector<288x128xf32>
    %9 = tpu.matmul %8, %0, %cst_9 {dimension_numbers = #tpu.dot_dimension_numbers<[1], [0], [0], [1], [0, 0, 1, 1], [], []>} : vector<288x32xbf16>, vector<32x128xbf16>, vector<288x128xf32> -> vector<288x128xf32>
    %c3 = arith.constant 3 : index
    %c0_10 = arith.constant 0 : index
    %c0_11 = arith.constant 0 : index
    %10 = vector.load %arg0[%c3, %c0_10, %c0_11] : memref<4x288x32xbf16, #tpu.memory_space<vmem>>, vector<1x288x32xbf16>
    %11 = vector.shape_cast %10 : vector<1x288x32xbf16> to vector<288x32xbf16>
    %cst_12 = arith.constant dense<0.000000e+00> : vector<288x128xf32>
    %12 = tpu.matmul %11, %0, %cst_12 {dimension_numbers = #tpu.dot_dimension_numbers<[1], [0], [0], [1], [0, 0, 1, 1], [], []>} : vector<288x32xbf16>, vector<32x128xbf16>, vector<288x128xf32> -> vector<288x128xf32>
    %13 = arith.maximumf %3, %6 : vector<288x128xf32>
    %14 = arith.maximumf %9, %12 : vector<288x128xf32>
    %15 = arith.maximumf %13, %14 : vector<288x128xf32>
    %c0_13 = arith.constant 0 : index
    %c0_14 = arith.constant 0 : index
    %16 = vector.load %arg2[%c0_13, %c0_14] : memref<1x128xf32, #tpu.memory_space<vmem>>, vector<1x128xf32>
    %17 = vector.broadcast %16 : vector<1x128xf32> to vector<288x128xf32>
    %18 = arith.addf %15, %17 : vector<288x128xf32>
    %c0_15 = arith.constant 0 : index
    %c0_16 = arith.constant 0 : index
    %19 = vector.load %arg10[%c0_15, %c0_16] : memref<288x128xf32, #tpu.memory_space<vmem>>, vector<288x128xf32>
    tpu.vector_store %arg10[%c0_15, %c0_16], %18 {strides = array<i32>} : memref<288x128xf32, #tpu.memory_space<vmem>>, vector<288x128xf32>,
    %c0_17 = arith.constant 0 : index
    %c0_18 = arith.constant 0 : index
    %20 = vector.load %arg3[%c0_17, %c0_18] : memref<3200x128xbf16, #tpu.memory_space<vmem>>, vector<3200x128xbf16>
    %c0_19 = arith.constant 0 : index
    %c0_20 = arith.constant 0 : index
    %21 = vector.load %arg10[%c0_19, %c0_20] : memref<288x128xf32, #tpu.memory_space<vmem>>, vector<8x128xf32>
    %c12 = arith.constant 12 : index
    %c0_21 = arith.constant 0 : index
    %22 = vector.load %arg10[%c12, %c0_21] : memref<288x128xf32, #tpu.memory_space<vmem>>, vector<8x128xf32>
    %c24 = arith.constant 24 : index
    %c0_22 = arith.constant 0 : index
    %23 = vector.load %arg10[%c24, %c0_22] : memref<288x128xf32, #tpu.memory_space<vmem>>, vector<8x128xf32>
    %c36 = arith.constant 36 : index
    %c0_23 = arith.constant 0 : index
    %24 = vector.load %arg10[%c36, %c0_23] : memref<288x128xf32, #tpu.memory_space<vmem>>, vector<8x128xf32>
    %25 = tpu.concatenate %21, %22, %23, %24 in 0 : vector<8x128xf32>, vector<8x128xf32>, vector<8x128xf32>, vector<8x128xf32> -> vector<32x128xf32>
    %26 = arith.truncf %25 : vector<32x128xf32> to vector<32x128xbf16>
    %c72 = arith.constant 72 : index
    %c0_24 = arith.constant 0 : index
    %27 = vector.load %arg10[%c72, %c0_24] : memref<288x128xf32, #tpu.memory_space<vmem>>, vector<8x128xf32>
    %c84 = arith.constant 84 : index
    %c0_25 = arith.constant 0 : index
    %28 = vector.load %arg10[%c84, %c0_25] : memref<288x128xf32, #tpu.memory_space<vmem>>, vector<8x128xf32>
    %c96 = arith.constant 96 : index
    %c0_26 = arith.constant 0 : index
    %29 = vector.load %arg10[%c96, %c0_26] : memref<288x128xf32, #tpu.memory_space<vmem>>, vector<8x128xf32>
    %c108 = arith.constant 108 : index
    %c0_27 = arith.constant 0 : index
    %30 = vector.load %arg10[%c108, %c0_27] : memref<288x128xf32, #tpu.memory_space<vmem>>, vector<8x128xf32>
    %31 = tpu.concatenate %27, %28, %29, %30 in 0 : vector<8x128xf32>, vector<8x128xf32>, vector<8x128xf32>, vector<8x128xf32> -> vector<32x128xf32>
    %32 = arith.truncf %31 : vector<32x128xf32> to vector<32x128xbf16>
    %c2_28 = arith.constant 2 : index
    %c0_29 = arith.constant 0 : index
    %33 = vector.load %arg10[%c2_28, %c0_29] : memref<288x128xf32, #tpu.memory_space<vmem>>, vector<8x128xf32>
    %c14 = arith.constant 14 : index
    %c0_30 = arith.constant 0 : index
    %34 = vector.load %arg10[%c14, %c0_30] : memref<288x128xf32, #tpu.memory_space<vmem>>, vector<8x128xf32>
    %c26 = arith.constant 26 : index
    %c0_31 = arith.constant 0 : index
    %35 = vector.load %arg10[%c26, %c0_31] : memref<288x128xf32, #tpu.memory_space<vmem>>, vector<8x128xf32>
    %c38 = arith.constant 38 : index
    %c0_32 = arith.constant 0 : index
    %36 = vector.load %arg10[%c38, %c0_32] : memref<288x128xf32, #tpu.memory_space<vmem>>, vector<8x128xf32>
    %37 = tpu.concatenate %33, %34, %35, %36 in 0 : vector<8x128xf32>, vector<8x128xf32>, vector<8x128xf32>, vector<8x128xf32> -> vector<32x128xf32>
    %38 = arith.truncf %37 : vector<32x128xf32> to vector<32x128xbf16>
    %c74 = arith.constant 74 : index
    %c0_33 = arith.constant 0 : index
    %39 = vector.load %arg10[%c74, %c0_33] : memref<288x128xf32, #tpu.memory_space<vmem>>, vector<8x128xf32>
    %c86 = arith.constant 86 : index
    %c0_34 = arith.constant 0 : index
    %40 = vector.load %arg10[%c86, %c0_34] : memref<288x128xf32, #tpu.memory_space<vmem>>, vector<8x128xf32>
    %c98 = arith.constant 98 : index
    %c0_35 = arith.constant 0 : index
    %41 = vector.load %arg10[%c98, %c0_35] : memref<288x128xf32, #tpu.memory_space<vmem>>, vector<8x128xf32>
    %c110 = arith.constant 110 : index
    %c0_36 = arith.constant 0 : index
    %42 = vector.load %arg10[%c110, %c0_36] : memref<288x128xf32, #tpu.memory_space<vmem>>, vector<8x128xf32>
    %43 = tpu.concatenate %39, %40, %41, %42 in 0 : vector<8x128xf32>, vector<8x128xf32>, vector<8x128xf32>, vector<8x128xf32> -> vector<32x128xf32>
    %44 = arith.truncf %43 : vector<32x128xf32> to vector<32x128xbf16>
    %c4 = arith.constant 4 : index
    %c0_37 = arith.constant 0 : index
    %45 = vector.load %arg10[%c4, %c0_37] : memref<288x128xf32, #tpu.memory_space<vmem>>, vector<8x128xf32>
    %c16 = arith.constant 16 : index
    %c0_38 = arith.constant 0 : index
    %46 = vector.load %arg10[%c16, %c0_38] : memref<288x128xf32, #tpu.memory_space<vmem>>, vector<8x128xf32>
    %c28 = arith.constant 28 : index
    %c0_39 = arith.constant 0 : index
    %47 = vector.load %arg10[%c28, %c0_39] : memref<288x128xf32, #tpu.memory_space<vmem>>, vector<8x128xf32>
    %c40 = arith.constant 40 : index
    %c0_40 = arith.constant 0 : index
    %48 = vector.load %arg10[%c40, %c0_40] : memref<288x128xf32, #tpu.memory_space<vmem>>, vector<8x128xf32>
    %49 = tpu.concatenate %45, %46, %47, %48 in 0 : vector<8x128xf32>, vector<8x128xf32>, vector<8x128xf32>, vector<8x128xf32> -> vector<32x128xf32>
    %50 = arith.truncf %49 : vector<32x128xf32> to vector<32x128xbf16>
    %c144 = arith.constant 144 : index
    %c0_41 = arith.constant 0 : index
    %51 = vector.load %arg10[%c144, %c0_41] : memref<288x128xf32, #tpu.memory_space<vmem>>, vector<8x128xf32>
    %c156 = arith.constant 156 : index
    %c0_42 = arith.constant 0 : index
    %52 = vector.load %arg10[%c156, %c0_42] : memref<288x128xf32, #tpu.memory_space<vmem>>, vector<8x128xf32>
    %c168 = arith.constant 168 : index
    %c0_43 = arith.constant 0 : index
    %53 = vector.load %arg10[%c168, %c0_43] : memref<288x128xf32, #tpu.memory_space<vmem>>, vector<8x128xf32>
    %c180 = arith.constant 180 : index
    %c0_44 = arith.constant 0 : index
    %54 = vector.load %arg10[%c180, %c0_44] : memref<288x128xf32, #tpu.memory_space<vmem>>, vector<8x128xf32>
    %55 = tpu.concatenate %51, %52, %53, %54 in 0 : vector<8x128xf32>, vector<8x128xf32>, vector<8x128xf32>, vector<8x128xf32> -> vector<32x128xf32>
    %56 = arith.truncf %55 : vector<32x128xf32> to vector<32x128xbf16>
    %c216 = arith.constant 216 : index
    %c0_45 = arith.constant 0 : index
    %57 = vector.load %arg10[%c216, %c0_45] : memref<288x128xf32, #tpu.memory_space<vmem>>, vector<8x128xf32>
    %c228 = arith.constant 228 : index
    %c0_46 = arith.constant 0 : index
    %58 = vector.load %arg10[%c228, %c0_46] : memref<288x128xf32, #tpu.memory_space<vmem>>, vector<8x128xf32>
    %c240 = arith.constant 240 : index
    %c0_47 = arith.constant 0 : index
    %59 = vector.load %arg10[%c240, %c0_47] : memref<288x128xf32, #tpu.memory_space<vmem>>, vector<8x128xf32>
    %c252 = arith.constant 252 : index
    %c0_48 = arith.constant 0 : index
    %60 = vector.load %arg10[%c252, %c0_48] : memref<288x128xf32, #tpu.memory_space<vmem>>, vector<8x128xf32>
    %61 = tpu.concatenate %57, %58, %59, %60 in 0 : vector<8x128xf32>, vector<8x128xf32>, vector<8x128xf32>, vector<8x128xf32> -> vector<32x128xf32>
    %62 = arith.truncf %61 : vector<32x128xf32> to vector<32x128xbf16>
    %c146 = arith.constant 146 : index
    %c0_49 = arith.constant 0 : index
    %63 = vector.load %arg10[%c146, %c0_49] : memref<288x128xf32, #tpu.memory_space<vmem>>, vector<8x128xf32>
    %c158 = arith.constant 158 : index
    %c0_50 = arith.constant 0 : index
    %64 = vector.load %arg10[%c158, %c0_50] : memref<288x128xf32, #tpu.memory_space<vmem>>, vector<8x128xf32>
    %c170 = arith.constant 170 : index
    %c0_51 = arith.constant 0 : index
    %65 = vector.load %arg10[%c170, %c0_51] : memref<288x128xf32, #tpu.memory_space<vmem>>, vector<8x128xf32>
    %c182 = arith.constant 182 : index
    %c0_52 = arith.constant 0 : index
    %66 = vector.load %arg10[%c182, %c0_52] : memref<288x128xf32, #tpu.memory_space<vmem>>, vector<8x128xf32>
    %67 = tpu.concatenate %63, %64, %65, %66 in 0 : vector<8x128xf32>, vector<8x128xf32>, vector<8x128xf32>, vector<8x128xf32> -> vector<32x128xf32>
    %68 = arith.truncf %67 : vector<32x128xf32> to vector<32x128xbf16>
    %c218 = arith.constant 218 : index
    %c0_53 = arith.constant 0 : index
    %69 = vector.load %arg10[%c218, %c0_53] : memref<288x128xf32, #tpu.memory_space<vmem>>, vector<8x128xf32>
    %c230 = arith.constant 230 : index
    %c0_54 = arith.constant 0 : index
    %70 = vector.load %arg10[%c230, %c0_54] : memref<288x128xf32, #tpu.memory_space<vmem>>, vector<8x128xf32>
    %c242 = arith.constant 242 : index
    %c0_55 = arith.constant 0 : index
    %71 = vector.load %arg10[%c242, %c0_55] : memref<288x128xf32, #tpu.memory_space<vmem>>, vector<8x128xf32>
    %c254 = arith.constant 254 : index
    %c0_56 = arith.constant 0 : index
    %72 = vector.load %arg10[%c254, %c0_56] : memref<288x128xf32, #tpu.memory_space<vmem>>, vector<8x128xf32>
    %73 = tpu.concatenate %69, %70, %71, %72 in 0 : vector<8x128xf32>, vector<8x128xf32>, vector<8x128xf32>, vector<8x128xf32> -> vector<32x128xf32>
    %74 = arith.truncf %73 : vector<32x128xf32> to vector<32x128xbf16>
    %c148 = arith.constant 148 : index
    %c0_57 = arith.constant 0 : index
    %75 = vector.load %arg10[%c148, %c0_57] : memref<288x128xf32, #tpu.memory_space<vmem>>, vector<8x128xf32>
    %c160 = arith.constant 160 : index
    %c0_58 = arith.constant 0 : index
    %76 = vector.load %arg10[%c160, %c0_58] : memref<288x128xf32, #tpu.memory_space<vmem>>, vector<8x128xf32>
    %c172 = arith.constant 172 : index
    %c0_59 = arith.constant 0 : index
    %77 = vector.load %arg10[%c172, %c0_59] : memref<288x128xf32, #tpu.memory_space<vmem>>, vector<8x128xf32>
    %c184 = arith.constant 184 : index
    %c0_60 = arith.constant 0 : index
    %78 = vector.load %arg10[%c184, %c0_60] : memref<288x128xf32, #tpu.memory_space<vmem>>, vector<8x128xf32>
    %79 = tpu.concatenate %75, %76, %77, %78 in 0 : vector<8x128xf32>, vector<8x128xf32>, vector<8x128xf32>, vector<8x128xf32> -> vector<32x128xf32>
    %80 = arith.truncf %79 : vector<32x128xf32> to vector<32x128xbf16>
    %c12_61 = arith.constant 12 : index
    %c0_62 = arith.constant 0 : index
    %81 = vector.load %arg10[%c12_61, %c0_62] : memref<288x128xf32, #tpu.memory_space<vmem>>, vector<8x128xf32>
    %c24_63 = arith.constant 24 : index
    %c0_64 = arith.constant 0 : index
    %82 = vector.load %arg10[%c24_63, %c0_64] : memref<288x128xf32, #tpu.memory_space<vmem>>, vector<8x128xf32>
    %c36_65 = arith.constant 36 : index
    %c0_66 = arith.constant 0 : index
    %83 = vector.load %arg10[%c36_65, %c0_66] : memref<288x128xf32, #tpu.memory_space<vmem>>, vector<8x128xf32>
    %c48 = arith.constant 48 : index
    %c0_67 = arith.constant 0 : index
    %84 = vector.load %arg10[%c48, %c0_67] : memref<288x128xf32, #tpu.memory_space<vmem>>, vector<8x128xf32>
    %85 = tpu.concatenate %81, %82, %83, %84 in 0 : vector<8x128xf32>, vector<8x128xf32>, vector<8x128xf32>, vector<8x128xf32> -> vector<32x128xf32>
    %86 = arith.truncf %85 : vector<32x128xf32> to vector<32x128xbf16>
    %c84_68 = arith.constant 84 : index
    %c0_69 = arith.constant 0 : index
    %87 = vector.load %arg10[%c84_68, %c0_69] : memref<288x128xf32, #tpu.memory_space<vmem>>, vector<8x128xf32>
    %c96_70 = arith.constant 96 : index
    %c0_71 = arith.constant 0 : index
    %88 = vector.load %arg10[%c96_70, %c0_71] : memref<288x128xf32, #tpu.memory_space<vmem>>, vector<8x128xf32>
    %c108_72 = arith.constant 108 : index
    %c0_73 = arith.constant 0 : index
    %89 = vector.load %arg10[%c108_72, %c0_73] : memref<288x128xf32, #tpu.memory_space<vmem>>, vector<8x128xf32>
    %c120 = arith.constant 120 : index
    %c0_74 = arith.constant 0 : index
    %90 = vector.load %arg10[%c120, %c0_74] : memref<288x128xf32, #tpu.memory_space<vmem>>, vector<8x128xf32>
    %91 = tpu.concatenate %87, %88, %89, %90 in 0 : vector<8x128xf32>, vector<8x128xf32>, vector<8x128xf32>, vector<8x128xf32> -> vector<32x128xf32>
    %92 = arith.truncf %91 : vector<32x128xf32> to vector<32x128xbf16>
    %c14_75 = arith.constant 14 : index
    %c0_76 = arith.constant 0 : index
    %93 = vector.load %arg10[%c14_75, %c0_76] : memref<288x128xf32, #tpu.memory_space<vmem>>, vector<8x128xf32>
    %c26_77 = arith.constant 26 : index
    %c0_78 = arith.constant 0 : index
    %94 = vector.load %arg10[%c26_77, %c0_78] : memref<288x128xf32, #tpu.memory_space<vmem>>, vector<8x128xf32>
    %c38_79 = arith.constant 38 : index
    %c0_80 = arith.constant 0 : index
    %95 = vector.load %arg10[%c38_79, %c0_80] : memref<288x128xf32, #tpu.memory_space<vmem>>, vector<8x128xf32>
    %c50 = arith.constant 50 : index
    %c0_81 = arith.constant 0 : index
    %96 = vector.load %arg10[%c50, %c0_81] : memref<288x128xf32, #tpu.memory_space<vmem>>, vector<8x128xf32>
    %97 = tpu.concatenate %93, %94, %95, %96 in 0 : vector<8x128xf32>, vector<8x128xf32>, vector<8x128xf32>, vector<8x128xf32> -> vector<32x128xf32>
    %98 = arith.truncf %97 : vector<32x128xf32> to vector<32x128xbf16>
    %c86_82 = arith.constant 86 : index
    %c0_83 = arith.constant 0 : index
    %99 = vector.load %arg10[%c86_82, %c0_83] : memref<288x128xf32, #tpu.memory_space<vmem>>, vector<8x128xf32>
    %c98_84 = arith.constant 98 : index
    %c0_85 = arith.constant 0 : index
    %100 = vector.load %arg10[%c98_84, %c0_85] : memref<288x128xf32, #tpu.memory_space<vmem>>, vector<8x128xf32>
    %c110_86 = arith.constant 110 : index
    %c0_87 = arith.constant 0 : index
    %101 = vector.load %arg10[%c110_86, %c0_87] : memref<288x128xf32, #tpu.memory_space<vmem>>, vector<8x128xf32>
    %c122 = arith.constant 122 : index
    %c0_88 = arith.constant 0 : index
    %102 = vector.load %arg10[%c122, %c0_88] : memref<288x128xf32, #tpu.memory_space<vmem>>, vector<8x128xf32>
    %103 = tpu.concatenate %99, %100, %101, %102 in 0 : vector<8x128xf32>, vector<8x128xf32>, vector<8x128xf32>, vector<8x128xf32> -> vector<32x128xf32>
    %104 = arith.truncf %103 : vector<32x128xf32> to vector<32x128xbf16>
    %c16_89 = arith.constant 16 : index
    %c0_90 = arith.constant 0 : index
    %105 = vector.load %arg10[%c16_89, %c0_90] : memref<288x128xf32, #tpu.memory_space<vmem>>, vector<8x128xf32>
    %c28_91 = arith.constant 28 : index
    %c0_92 = arith.constant 0 : index
    %106 = vector.load %arg10[%c28_91, %c0_92] : memref<288x128xf32, #tpu.memory_space<vmem>>, vector<8x128xf32>
    %c40_93 = arith.constant 40 : index
    %c0_94 = arith.constant 0 : index
    %107 = vector.load %arg10[%c40_93, %c0_94] : memref<288x128xf32, #tpu.memory_space<vmem>>, vector<8x128xf32>
    %c52 = arith.constant 52 : index
    %c0_95 = arith.constant 0 : index
    %108 = vector.load %arg10[%c52, %c0_95] : memref<288x128xf32, #tpu.memory_space<vmem>>, vector<8x128xf32>
    %109 = tpu.concatenate %105, %106, %107, %108 in 0 : vector<8x128xf32>, vector<8x128xf32>, vector<8x128xf32>, vector<8x128xf32> -> vector<32x128xf32>
    %110 = arith.truncf %109 : vector<32x128xf32> to vector<32x128xbf16>
    %c156_96 = arith.constant 156 : index
    %c0_97 = arith.constant 0 : index
    %111 = vector.load %arg10[%c156_96, %c0_97] : memref<288x128xf32, #tpu.memory_space<vmem>>, vector<8x128xf32>
    %c168_98 = arith.constant 168 : index
    %c0_99 = arith.constant 0 : index
    %112 = vector.load %arg10[%c168_98, %c0_99] : memref<288x128xf32, #tpu.memory_space<vmem>>, vector<8x128xf32>
    %c180_100 = arith.constant 180 : index
    %c0_101 = arith.constant 0 : index
    %113 = vector.load %arg10[%c180_100, %c0_101] : memref<288x128xf32, #tpu.memory_space<vmem>>, vector<8x128xf32>
    %c192 = arith.constant 192 : index
    %c0_102 = arith.constant 0 : index
    %114 = vector.load %arg10[%c192, %c0_102] : memref<288x128xf32, #tpu.memory_space<vmem>>, vector<8x128xf32>
    %115 = tpu.concatenate %111, %112, %113, %114 in 0 : vector<8x128xf32>, vector<8x128xf32>, vector<8x128xf32>, vector<8x128xf32> -> vector<32x128xf32>
    %116 = arith.truncf %115 : vector<32x128xf32> to vector<32x128xbf16>
    %c228_103 = arith.constant 228 : index
    %c0_104 = arith.constant 0 : index
    %117 = vector.load %arg10[%c228_103, %c0_104] : memref<288x128xf32, #tpu.memory_space<vmem>>, vector<8x128xf32>
    %c240_105 = arith.constant 240 : index
    %c0_106 = arith.constant 0 : index
    %118 = vector.load %arg10[%c240_105, %c0_106] : memref<288x128xf32, #tpu.memory_space<vmem>>, vector<8x128xf32>
    %c252_107 = arith.constant 252 : index
    %c0_108 = arith.constant 0 : index
    %119 = vector.load %arg10[%c252_107, %c0_108] : memref<288x128xf32, #tpu.memory_space<vmem>>, vector<8x128xf32>
    %c264 = arith.constant 264 : index
    %c0_109 = arith.constant 0 : index
    %120 = vector.load %arg10[%c264, %c0_109] : memref<288x128xf32, #tpu.memory_space<vmem>>, vector<8x128xf32>
    %121 = tpu.concatenate %117, %118, %119, %120 in 0 : vector<8x128xf32>, vector<8x128xf32>, vector<8x128xf32>, vector<8x128xf32> -> vector<32x128xf32>
    %122 = arith.truncf %121 : vector<32x128xf32> to vector<32x128xbf16>
    %c158_110 = arith.constant 158 : index
    %c0_111 = arith.constant 0 : index
    %123 = vector.load %arg10[%c158_110, %c0_111] : memref<288x128xf32, #tpu.memory_space<vmem>>, vector<8x128xf32>
    %c170_112 = arith.constant 170 : index
    %c0_113 = arith.constant 0 : index
    %124 = vector.load %arg10[%c170_112, %c0_113] : memref<288x128xf32, #tpu.memory_space<vmem>>, vector<8x128xf32>
    %c182_114 = arith.constant 182 : index
    %c0_115 = arith.constant 0 : index
    %125 = vector.load %arg10[%c182_114, %c0_115] : memref<288x128xf32, #tpu.memory_space<vmem>>, vector<8x128xf32>
    %c194 = arith.constant 194 : index
    %c0_116 = arith.constant 0 : index
    %126 = vector.load %arg10[%c194, %c0_116] : memref<288x128xf32, #tpu.memory_space<vmem>>, vector<8x128xf32>
    %127 = tpu.concatenate %123, %124, %125, %126 in 0 : vector<8x128xf32>, vector<8x128xf32>, vector<8x128xf32>, vector<8x128xf32> -> vector<32x128xf32>
    %128 = arith.truncf %127 : vector<32x128xf32> to vector<32x128xbf16>
    %c230_117 = arith.constant 230 : index
    %c0_118 = arith.constant 0 : index
    %129 = vector.load %arg10[%c230_117, %c0_118] : memref<288x128xf32, #tpu.memory_space<vmem>>, vector<8x128xf32>
    %c242_119 = arith.constant 242 : index
    %c0_120 = arith.constant 0 : index
    %130 = vector.load %arg10[%c242_119, %c0_120] : memref<288x128xf32, #tpu.memory_space<vmem>>, vector<8x128xf32>
    %c254_121 = arith.constant 254 : index
    %c0_122 = arith.constant 0 : index
    %131 = vector.load %arg10[%c254_121, %c0_122] : memref<288x128xf32, #tpu.memory_space<vmem>>, vector<8x128xf32>
    %c266 = arith.constant 266 : index
    %c0_123 = arith.constant 0 : index
    %132 = vector.load %arg10[%c266, %c0_123] : memref<288x128xf32, #tpu.memory_space<vmem>>, vector<8x128xf32>
    %133 = tpu.concatenate %129, %130, %131, %132 in 0 : vector<8x128xf32>, vector<8x128xf32>, vector<8x128xf32>, vector<8x128xf32> -> vector<32x128xf32>
    %134 = arith.truncf %133 : vector<32x128xf32> to vector<32x128xbf16>
    %c160_124 = arith.constant 160 : index
    %c0_125 = arith.constant 0 : index
    %135 = vector.load %arg10[%c160_124, %c0_125] : memref<288x128xf32, #tpu.memory_space<vmem>>, vector<8x128xf32>
    %c172_126 = arith.constant 172 : index
    %c0_127 = arith.constant 0 : index
    %136 = vector.load %arg10[%c172_126, %c0_127] : memref<288x128xf32, #tpu.memory_space<vmem>>, vector<8x128xf32>
    %c184_128 = arith.constant 184 : index
    %c0_129 = arith.constant 0 : index
    %137 = vector.load %arg10[%c184_128, %c0_129] : memref<288x128xf32, #tpu.memory_space<vmem>>, vector<8x128xf32>
    %c196 = arith.constant 196 : index
    %c0_130 = arith.constant 0 : index
    %138 = vector.load %arg10[%c196, %c0_130] : memref<288x128xf32, #tpu.memory_space<vmem>>, vector<8x128xf32>
    %139 = tpu.concatenate %135, %136, %137, %138 in 0 : vector<8x128xf32>, vector<8x128xf32>, vector<8x128xf32>, vector<8x128xf32> -> vector<32x128xf32>
    %140 = arith.truncf %139 : vector<32x128xf32> to vector<32x128xbf16>
    %c24_131 = arith.constant 24 : index
    %c0_132 = arith.constant 0 : index
    %141 = vector.load %arg10[%c24_131, %c0_132] : memref<288x128xf32, #tpu.memory_space<vmem>>, vector<8x128xf32>
    %c36_133 = arith.constant 36 : index
    %c0_134 = arith.constant 0 : index
    %142 = vector.load %arg10[%c36_133, %c0_134] : memref<288x128xf32, #tpu.memory_space<vmem>>, vector<8x128xf32>
    %c48_135 = arith.constant 48 : index
    %c0_136 = arith.constant 0 : index
    %143 = vector.load %arg10[%c48_135, %c0_136] : memref<288x128xf32, #tpu.memory_space<vmem>>, vector<8x128xf32>
    %c60 = arith.constant 60 : index
    %c0_137 = arith.constant 0 : index
    %144 = vector.load %arg10[%c60, %c0_137] : memref<288x128xf32, #tpu.memory_space<vmem>>, vector<8x128xf32>
    %145 = tpu.concatenate %141, %142, %143, %144 in 0 : vector<8x128xf32>, vector<8x128xf32>, vector<8x128xf32>, vector<8x128xf32> -> vector<32x128xf32>
    %146 = arith.truncf %145 : vector<32x128xf32> to vector<32x128xbf16>
    %c96_138 = arith.constant 96 : index
    %c0_139 = arith.constant 0 : index
    %147 = vector.load %arg10[%c96_138, %c0_139] : memref<288x128xf32, #tpu.memory_space<vmem>>, vector<8x128xf32>
    %c108_140 = arith.constant 108 : index
    %c0_141 = arith.constant 0 : index
    %148 = vector.load %arg10[%c108_140, %c0_141] : memref<288x128xf32, #tpu.memory_space<vmem>>, vector<8x128xf32>
    %c120_142 = arith.constant 120 : index
    %c0_143 = arith.constant 0 : index
    %149 = vector.load %arg10[%c120_142, %c0_143] : memref<288x128xf32, #tpu.memory_space<vmem>>, vector<8x128xf32>
    %c132 = arith.constant 132 : index
    %c0_144 = arith.constant 0 : index
    %150 = vector.load %arg10[%c132, %c0_144] : memref<288x128xf32, #tpu.memory_space<vmem>>, vector<8x128xf32>
    %151 = tpu.concatenate %147, %148, %149, %150 in 0 : vector<8x128xf32>, vector<8x128xf32>, vector<8x128xf32>, vector<8x128xf32> -> vector<32x128xf32>
    %152 = arith.truncf %151 : vector<32x128xf32> to vector<32x128xbf16>
    %c26_145 = arith.constant 26 : index
    %c0_146 = arith.constant 0 : index
    %153 = vector.load %arg10[%c26_145, %c0_146] : memref<288x128xf32, #tpu.memory_space<vmem>>, vector<8x128xf32>
    %c38_147 = arith.constant 38 : index
    %c0_148 = arith.constant 0 : index
    %154 = vector.load %arg10[%c38_147, %c0_148] : memref<288x128xf32, #tpu.memory_space<vmem>>, vector<8x128xf32>
    %c50_149 = arith.constant 50 : index
    %c0_150 = arith.constant 0 : index
    %155 = vector.load %arg10[%c50_149, %c0_150] : memref<288x128xf32, #tpu.memory_space<vmem>>, vector<8x128xf32>
    %c62 = arith.constant 62 : index
    %c0_151 = arith.constant 0 : index
    %156 = vector.load %arg10[%c62, %c0_151] : memref<288x128xf32, #tpu.memory_space<vmem>>, vector<8x128xf32>
    %157 = tpu.concatenate %153, %154, %155, %156 in 0 : vector<8x128xf32>, vector<8x128xf32>, vector<8x128xf32>, vector<8x128xf32> -> vector<32x128xf32>
    %158 = arith.truncf %157 : vector<32x128xf32> to vector<32x128xbf16>
    %c98_152 = arith.constant 98 : index
    %c0_153 = arith.constant 0 : index
    %159 = vector.load %arg10[%c98_152, %c0_153] : memref<288x128xf32, #tpu.memory_space<vmem>>, vector<8x128xf32>
    %c110_154 = arith.constant 110 : index
    %c0_155 = arith.constant 0 : index
    %160 = vector.load %arg10[%c110_154, %c0_155] : memref<288x128xf32, #tpu.memory_space<vmem>>, vector<8x128xf32>
    %c122_156 = arith.constant 122 : index
    %c0_157 = arith.constant 0 : index
    %161 = vector.load %arg10[%c122_156, %c0_157] : memref<288x128xf32, #tpu.memory_space<vmem>>, vector<8x128xf32>
    %c134 = arith.constant 134 : index
    %c0_158 = arith.constant 0 : index
    %162 = vector.load %arg10[%c134, %c0_158] : memref<288x128xf32, #tpu.memory_space<vmem>>, vector<8x128xf32>
    %163 = tpu.concatenate %159, %160, %161, %162 in 0 : vector<8x128xf32>, vector<8x128xf32>, vector<8x128xf32>, vector<8x128xf32> -> vector<32x128xf32>
    %164 = arith.truncf %163 : vector<32x128xf32> to vector<32x128xbf16>
    %c28_159 = arith.constant 28 : index
    %c0_160 = arith.constant 0 : index
    %165 = vector.load %arg10[%c28_159, %c0_160] : memref<288x128xf32, #tpu.memory_space<vmem>>, vector<8x128xf32>
    %c40_161 = arith.constant 40 : index
    %c0_162 = arith.constant 0 : index
    %166 = vector.load %arg10[%c40_161, %c0_162] : memref<288x128xf32, #tpu.memory_space<vmem>>, vector<8x128xf32>
    %c52_163 = arith.constant 52 : index
    %c0_164 = arith.constant 0 : index
    %167 = vector.load %arg10[%c52_163, %c0_164] : memref<288x128xf32, #tpu.memory_space<vmem>>, vector<8x128xf32>
    %c64 = arith.constant 64 : index
    %c0_165 = arith.constant 0 : index
    %168 = vector.load %arg10[%c64, %c0_165] : memref<288x128xf32, #tpu.memory_space<vmem>>, vector<8x128xf32>
    %169 = tpu.concatenate %165, %166, %167, %168 in 0 : vector<8x128xf32>, vector<8x128xf32>, vector<8x128xf32>, vector<8x128xf32> -> vector<32x128xf32>
    %170 = arith.truncf %169 : vector<32x128xf32> to vector<32x128xbf16>
    %171 = tpu.concatenate %26, %32, %38, %44, %50, %56, %62, %68, %74, %80, %86, %92, %98, %104, %110, %116 in 1 : vector<32x128xbf16>, vector<32x128xbf16>, vector<32x128xbf16>, vector<32x128xbf16>, vector<32x128xbf16>, vector<32x128xbf16>, vector<32x128xbf16>, vector<32x128xbf16>, vector<32x128xbf16>, vector<32x128xbf16>, vector<32x128xbf16>, vector<32x128xbf16>, vector<32x128xbf16>, vector<32x128xbf16>, vector<32x128xbf16>, vector<32x128xbf16> -> vector<32x2048xbf16>
    %172 = tpu.concatenate %122, %128, %134, %140, %146, %152, %158, %164, %170 in 1 : vector<32x128xbf16>, vector<32x128xbf16>, vector<32x128xbf16>, vector<32x128xbf16>, vector<32x128xbf16>, vector<32x128xbf16>, vector<32x128xbf16>, vector<32x128xbf16>, vector<32x128xbf16> -> vector<32x1152xbf16>
    %173 = tpu.concatenate %171, %172 in 1 : vector<32x2048xbf16>, vector<32x1152xbf16> -> vector<32x3200xbf16>
    %cst_166 = arith.constant dense<0.000000e+00> : vector<32x128xf32>
    %174 = tpu.matmul %173, %20, %cst_166 {dimension_numbers = #tpu.dot_dimension_numbers<[1], [0], [0], [1], [0, 0, 1, 1], [], []>} : vector<32x3200xbf16>, vector<3200x128xbf16>, vector<32x128xf32> -> vector<32x128xf32>
    %c76 = arith.constant 76 : index
    %c0_167 = arith.constant 0 : index
    %175 = vector.load %arg10[%c76, %c0_167] : memref<288x128xf32, #tpu.memory_space<vmem>>, vector<8x128xf32>
    %c88 = arith.constant 88 : index
    %c0_168 = arith.constant 0 : index
    %176 = vector.load %arg10[%c88, %c0_168] : memref<288x128xf32, #tpu.memory_space<vmem>>, vector<8x128xf32>
    %c100 = arith.constant 100 : index
    %c0_169 = arith.constant 0 : index
    %177 = vector.load %arg10[%c100, %c0_169] : memref<288x128xf32, #tpu.memory_space<vmem>>, vector<8x128xf32>
    %c112 = arith.constant 112 : index
    %c0_170 = arith.constant 0 : index
    %178 = vector.load %arg10[%c112, %c0_170] : memref<288x128xf32, #tpu.memory_space<vmem>>, vector<8x128xf32>
    %179 = tpu.concatenate %175, %176, %177, %178 in 0 : vector<8x128xf32>, vector<8x128xf32>, vector<8x128xf32>, vector<8x128xf32> -> vector<32x128xf32>
    %180 = arith.truncf %179 : vector<32x128xf32> to vector<32x128xbf16>
    %c220 = arith.constant 220 : index
    %c0_171 = arith.constant 0 : index
    %181 = vector.load %arg10[%c220, %c0_171] : memref<288x128xf32, #tpu.memory_space<vmem>>, vector<8x128xf32>
    %c232 = arith.constant 232 : index
    %c0_172 = arith.constant 0 : index
    %182 = vector.load %arg10[%c232, %c0_172] : memref<288x128xf32, #tpu.memory_space<vmem>>, vector<8x128xf32>
    %c244 = arith.constant 244 : index
    %c0_173 = arith.constant 0 : index
    %183 = vector.load %arg10[%c244, %c0_173] : memref<288x128xf32, #tpu.memory_space<vmem>>, vector<8x128xf32>
    %c256 = arith.constant 256 : index
    %c0_174 = arith.constant 0 : index
    %184 = vector.load %arg10[%c256, %c0_174] : memref<288x128xf32, #tpu.memory_space<vmem>>, vector<8x128xf32>
    %185 = tpu.concatenate %181, %182, %183, %184 in 0 : vector<8x128xf32>, vector<8x128xf32>, vector<8x128xf32>, vector<8x128xf32> -> vector<32x128xf32>
    %186 = arith.truncf %185 : vector<32x128xf32> to vector<32x128xbf16>
    %c88_175 = arith.constant 88 : index
    %c0_176 = arith.constant 0 : index
    %187 = vector.load %arg10[%c88_175, %c0_176] : memref<288x128xf32, #tpu.memory_space<vmem>>, vector<8x128xf32>
    %c100_177 = arith.constant 100 : index
    %c0_178 = arith.constant 0 : index
    %188 = vector.load %arg10[%c100_177, %c0_178] : memref<288x128xf32, #tpu.memory_space<vmem>>, vector<8x128xf32>
    %c112_179 = arith.constant 112 : index
    %c0_180 = arith.constant 0 : index
    %189 = vector.load %arg10[%c112_179, %c0_180] : memref<288x128xf32, #tpu.memory_space<vmem>>, vector<8x128xf32>
    %c124 = arith.constant 124 : index
    %c0_181 = arith.constant 0 : index
    %190 = vector.load %arg10[%c124, %c0_181] : memref<288x128xf32, #tpu.memory_space<vmem>>, vector<8x128xf32>
    %191 = tpu.concatenate %187, %188, %189, %190 in 0 : vector<8x128xf32>, vector<8x128xf32>, vector<8x128xf32>, vector<8x128xf32> -> vector<32x128xf32>
    %192 = arith.truncf %191 : vector<32x128xf32> to vector<32x128xbf16>
    %c232_182 = arith.constant 232 : index
    %c0_183 = arith.constant 0 : index
    %193 = vector.load %arg10[%c232_182, %c0_183] : memref<288x128xf32, #tpu.memory_space<vmem>>, vector<8x128xf32>
    %c244_184 = arith.constant 244 : index
    %c0_185 = arith.constant 0 : index
    %194 = vector.load %arg10[%c244_184, %c0_185] : memref<288x128xf32, #tpu.memory_space<vmem>>, vector<8x128xf32>
    %c256_186 = arith.constant 256 : index
    %c0_187 = arith.constant 0 : index
    %195 = vector.load %arg10[%c256_186, %c0_187] : memref<288x128xf32, #tpu.memory_space<vmem>>, vector<8x128xf32>
    %c268 = arith.constant 268 : index
    %c0_188 = arith.constant 0 : index
    %196 = vector.load %arg10[%c268, %c0_188] : memref<288x128xf32, #tpu.memory_space<vmem>>, vector<8x128xf32>
    %197 = tpu.concatenate %193, %194, %195, %196 in 0 : vector<8x128xf32>, vector<8x128xf32>, vector<8x128xf32>, vector<8x128xf32> -> vector<32x128xf32>
    %198 = arith.truncf %197 : vector<32x128xf32> to vector<32x128xbf16>
    %c100_189 = arith.constant 100 : index
    %c0_190 = arith.constant 0 : index
    %199 = vector.load %arg10[%c100_189, %c0_190] : memref<288x128xf32, #tpu.memory_space<vmem>>, vector<8x128xf32>
    %c112_191 = arith.constant 112 : index
    %c0_192 = arith.constant 0 : index
    %200 = vector.load %arg10[%c112_191, %c0_192] : memref<288x128xf32, #tpu.memory_space<vmem>>, vector<8x128xf32>
    %c124_193 = arith.constant 124 : index
    %c0_194 = arith.constant 0 : index
    %201 = vector.load %arg10[%c124_193, %c0_194] : memref<288x128xf32, #tpu.memory_space<vmem>>, vector<8x128xf32>
    %c136 = arith.constant 136 : index
    %c0_195 = arith.constant 0 : index
    %202 = vector.load %arg10[%c136, %c0_195] : memref<288x128xf32, #tpu.memory_space<vmem>>, vector<8x128xf32>
    %203 = tpu.concatenate %199, %200, %201, %202 in 0 : vector<8x128xf32>, vector<8x128xf32>, vector<8x128xf32>, vector<8x128xf32> -> vector<32x128xf32>
    %204 = arith.truncf %203 : vector<32x128xf32> to vector<32x128xbf16>
    %205 = tpu.concatenate %32, %38, %44, %50, %180, %62, %68, %74, %80, %186, %92, %98, %104, %110, %192, %122 in 1 : vector<32x128xbf16>, vector<32x128xbf16>, vector<32x128xbf16>, vector<32x128xbf16>, vector<32x128xbf16>, vector<32x128xbf16>, vector<32x128xbf16>, vector<32x128xbf16>, vector<32x128xbf16>, vector<32x128xbf16>, vector<32x128xbf16>, vector<32x128xbf16>, vector<32x128xbf16>, vector<32x128xbf16>, vector<32x128xbf16>, vector<32x128xbf16> -> vector<32x2048xbf16>
    %206 = tpu.concatenate %128, %134, %140, %198, %152, %158, %164, %170, %204 in 1 : vector<32x128xbf16>, vector<32x128xbf16>, vector<32x128xbf16>, vector<32x128xbf16>, vector<32x128xbf16>, vector<32x128xbf16>, vector<32x128xbf16>, vector<32x128xbf16>, vector<32x128xbf16> -> vector<32x1152xbf16>
    %207 = tpu.concatenate %205, %206 in 1 : vector<32x2048xbf16>, vector<32x1152xbf16> -> vector<32x3200xbf16>
    %cst_196 = arith.constant dense<0.000000e+00> : vector<32x128xf32>
    %208 = tpu.matmul %207, %20, %cst_196 {dimension_numbers = #tpu.dot_dimension_numbers<[1], [0], [0], [1], [0, 0, 1, 1], [], []>} : vector<32x3200xbf16>, vector<3200x128xbf16>, vector<32x128xf32> -> vector<32x128xf32>
    %c168_197 = arith.constant 168 : index
    %c0_198 = arith.constant 0 : index
    %209 = vector.load %arg10[%c168_197, %c0_198] : memref<288x128xf32, #tpu.memory_space<vmem>>, vector<8x128xf32>
    %c180_199 = arith.constant 180 : index
    %c0_200 = arith.constant 0 : index
    %210 = vector.load %arg10[%c180_199, %c0_200] : memref<288x128xf32, #tpu.memory_space<vmem>>, vector<8x128xf32>
    %c192_201 = arith.constant 192 : index
    %c0_202 = arith.constant 0 : index
    %211 = vector.load %arg10[%c192_201, %c0_202] : memref<288x128xf32, #tpu.memory_space<vmem>>, vector<8x128xf32>
    %c204 = arith.constant 204 : index
    %c0_203 = arith.constant 0 : index
    %212 = vector.load %arg10[%c204, %c0_203] : memref<288x128xf32, #tpu.memory_space<vmem>>, vector<8x128xf32>
    %213 = tpu.concatenate %209, %210, %211, %212 in 0 : vector<8x128xf32>, vector<8x128xf32>, vector<8x128xf32>, vector<8x128xf32> -> vector<32x128xf32>
    %214 = arith.truncf %213 : vector<32x128xf32> to vector<32x128xbf16>
    %c240_204 = arith.constant 240 : index
    %c0_205 = arith.constant 0 : index
    %215 = vector.load %arg10[%c240_204, %c0_205] : memref<288x128xf32, #tpu.memory_space<vmem>>, vector<8x128xf32>
    %c252_206 = arith.constant 252 : index
    %c0_207 = arith.constant 0 : index
    %216 = vector.load %arg10[%c252_206, %c0_207] : memref<288x128xf32, #tpu.memory_space<vmem>>, vector<8x128xf32>
    %c264_208 = arith.constant 264 : index
    %c0_209 = arith.constant 0 : index
    %217 = vector.load %arg10[%c264_208, %c0_209] : memref<288x128xf32, #tpu.memory_space<vmem>>, vector<8x128xf32>
    %c276 = arith.constant 276 : index
    %c0_210 = arith.constant 0 : index
    %218 = vector.load %arg10[%c276, %c0_210] : memref<288x128xf32, #tpu.memory_space<vmem>>, vector<8x128xf32>
    %219 = tpu.concatenate %215, %216, %217, %218 in 0 : vector<8x128xf32>, vector<8x128xf32>, vector<8x128xf32>, vector<8x128xf32> -> vector<32x128xf32>
    %220 = arith.truncf %219 : vector<32x128xf32> to vector<32x128xbf16>
    %c170_211 = arith.constant 170 : index
    %c0_212 = arith.constant 0 : index
    %221 = vector.load %arg10[%c170_211, %c0_212] : memref<288x128xf32, #tpu.memory_space<vmem>>, vector<8x128xf32>
    %c182_213 = arith.constant 182 : index
    %c0_214 = arith.constant 0 : index
    %222 = vector.load %arg10[%c182_213, %c0_214] : memref<288x128xf32, #tpu.memory_space<vmem>>, vector<8x128xf32>
    %c194_215 = arith.constant 194 : index
    %c0_216 = arith.constant 0 : index
    %223 = vector.load %arg10[%c194_215, %c0_216] : memref<288x128xf32, #tpu.memory_space<vmem>>, vector<8x128xf32>
    %c206 = arith.constant 206 : index
    %c0_217 = arith.constant 0 : index
    %224 = vector.load %arg10[%c206, %c0_217] : memref<288x128xf32, #tpu.memory_space<vmem>>, vector<8x128xf32>
    %225 = tpu.concatenate %221, %222, %223, %224 in 0 : vector<8x128xf32>, vector<8x128xf32>, vector<8x128xf32>, vector<8x128xf32> -> vector<32x128xf32>
    %226 = arith.truncf %225 : vector<32x128xf32> to vector<32x128xbf16>
    %c242_218 = arith.constant 242 : index
    %c0_219 = arith.constant 0 : index
    %227 = vector.load %arg10[%c242_218, %c0_219] : memref<288x128xf32, #tpu.memory_space<vmem>>, vector<8x128xf32>
    %c254_220 = arith.constant 254 : index
    %c0_221 = arith.constant 0 : index
    %228 = vector.load %arg10[%c254_220, %c0_221] : memref<288x128xf32, #tpu.memory_space<vmem>>, vector<8x128xf32>
    %c266_222 = arith.constant 266 : index
    %c0_223 = arith.constant 0 : index
    %229 = vector.load %arg10[%c266_222, %c0_223] : memref<288x128xf32, #tpu.memory_space<vmem>>, vector<8x128xf32>
    %c278 = arith.constant 278 : index
    %c0_224 = arith.constant 0 : index
    %230 = vector.load %arg10[%c278, %c0_224] : memref<288x128xf32, #tpu.memory_space<vmem>>, vector<8x128xf32>
    %231 = tpu.concatenate %227, %228, %229, %230 in 0 : vector<8x128xf32>, vector<8x128xf32>, vector<8x128xf32>, vector<8x128xf32> -> vector<32x128xf32>
    %232 = arith.truncf %231 : vector<32x128xf32> to vector<32x128xbf16>
    %c172_225 = arith.constant 172 : index
    %c0_226 = arith.constant 0 : index
    %233 = vector.load %arg10[%c172_225, %c0_226] : memref<288x128xf32, #tpu.memory_space<vmem>>, vector<8x128xf32>
    %c184_227 = arith.constant 184 : index
    %c0_228 = arith.constant 0 : index
    %234 = vector.load %arg10[%c184_227, %c0_228] : memref<288x128xf32, #tpu.memory_space<vmem>>, vector<8x128xf32>
    %c196_229 = arith.constant 196 : index
    %c0_230 = arith.constant 0 : index
    %235 = vector.load %arg10[%c196_229, %c0_230] : memref<288x128xf32, #tpu.memory_space<vmem>>, vector<8x128xf32>
    %c208 = arith.constant 208 : index
    %c0_231 = arith.constant 0 : index
    %236 = vector.load %arg10[%c208, %c0_231] : memref<288x128xf32, #tpu.memory_space<vmem>>, vector<8x128xf32>
    %237 = tpu.concatenate %233, %234, %235, %236 in 0 : vector<8x128xf32>, vector<8x128xf32>, vector<8x128xf32>, vector<8x128xf32> -> vector<32x128xf32>
    %238 = arith.truncf %237 : vector<32x128xf32> to vector<32x128xbf16>
    %239 = tpu.concatenate %56, %62, %68, %74, %80, %86, %92, %98, %104, %110, %116, %122, %128, %134, %140, %146 in 1 : vector<32x128xbf16>, vector<32x128xbf16>, vector<32x128xbf16>, vector<32x128xbf16>, vector<32x128xbf16>, vector<32x128xbf16>, vector<32x128xbf16>, vector<32x128xbf16>, vector<32x128xbf16>, vector<32x128xbf16>, vector<32x128xbf16>, vector<32x128xbf16>, vector<32x128xbf16>, vector<32x128xbf16>, vector<32x128xbf16>, vector<32x128xbf16> -> vector<32x2048xbf16>
    %240 = tpu.concatenate %152, %158, %164, %170, %214, %220, %226, %232, %238 in 1 : vector<32x128xbf16>, vector<32x128xbf16>, vector<32x128xbf16>, vector<32x128xbf16>, vector<32x128xbf16>, vector<32x128xbf16>, vector<32x128xbf16>, vector<32x128xbf16>, vector<32x128xbf16> -> vector<32x1152xbf16>
    %241 = tpu.concatenate %239, %240 in 1 : vector<32x2048xbf16>, vector<32x1152xbf16> -> vector<32x3200xbf16>
    %cst_232 = arith.constant dense<0.000000e+00> : vector<32x128xf32>
    %242 = tpu.matmul %241, %20, %cst_232 {dimension_numbers = #tpu.dot_dimension_numbers<[1], [0], [0], [1], [0, 0, 1, 1], [], []>} : vector<32x3200xbf16>, vector<3200x128xbf16>, vector<32x128xf32> -> vector<32x128xf32>
    %c244_233 = arith.constant 244 : index
    %c0_234 = arith.constant 0 : index
    %243 = vector.load %arg10[%c244_233, %c0_234] : memref<288x128xf32, #tpu.memory_space<vmem>>, vector<8x128xf32>
    %c256_235 = arith.constant 256 : index
    %c0_236 = arith.constant 0 : index
    %244 = vector.load %arg10[%c256_235, %c0_236] : memref<288x128xf32, #tpu.memory_space<vmem>>, vector<8x128xf32>
    %c268_237 = arith.constant 268 : index
    %c0_238 = arith.constant 0 : index
    %245 = vector.load %arg10[%c268_237, %c0_238] : memref<288x128xf32, #tpu.memory_space<vmem>>, vector<8x128xf32>
    %c280 = arith.constant 280 : index
    %c0_239 = arith.constant 0 : index
    %246 = vector.load %arg10[%c280, %c0_239] : memref<288x128xf32, #tpu.memory_space<vmem>>, vector<8x128xf32>
    %247 = tpu.concatenate %243, %244, %245, %246 in 0 : vector<8x128xf32>, vector<8x128xf32>, vector<8x128xf32>, vector<8x128xf32> -> vector<32x128xf32>
    %248 = arith.truncf %247 : vector<32x128xf32> to vector<32x128xbf16>
    %249 = tpu.concatenate %62, %68, %74, %80, %186, %92, %98, %104, %110, %192, %122, %128, %134, %140, %198, %152 in 1 : vector<32x128xbf16>, vector<32x128xbf16>, vector<32x128xbf16>, vector<32x128xbf16>, vector<32x128xbf16>, vector<32x128xbf16>, vector<32x128xbf16>, vector<32x128xbf16>, vector<32x128xbf16>, vector<32x128xbf16>, vector<32x128xbf16>, vector<32x128xbf16>, vector<32x128xbf16>, vector<32x128xbf16>, vector<32x128xbf16>, vector<32x128xbf16> -> vector<32x2048xbf16>
    %250 = tpu.concatenate %158, %164, %170, %204, %220, %226, %232, %238, %248 in 1 : vector<32x128xbf16>, vector<32x128xbf16>, vector<32x128xbf16>, vector<32x128xbf16>, vector<32x128xbf16>, vector<32x128xbf16>, vector<32x128xbf16>, vector<32x128xbf16>, vector<32x128xbf16> -> vector<32x1152xbf16>
    %251 = tpu.concatenate %249, %250 in 1 : vector<32x2048xbf16>, vector<32x1152xbf16> -> vector<32x3200xbf16>
    %cst_240 = arith.constant dense<0.000000e+00> : vector<32x128xf32>
    %252 = tpu.matmul %251, %20, %cst_240 {dimension_numbers = #tpu.dot_dimension_numbers<[1], [0], [0], [1], [0, 0, 1, 1], [], []>} : vector<32x3200xbf16>, vector<3200x128xbf16>, vector<32x128xf32> -> vector<32x128xf32>
    %253 = arith.maximumf %174, %208 : vector<32x128xf32>
    %254 = arith.maximumf %242, %252 : vector<32x128xf32>
    %255 = arith.maximumf %253, %254 : vector<32x128xf32>
    %c0_241 = arith.constant 0 : index
    %c0_242 = arith.constant 0 : index
    %256 = vector.load %arg4[%c0_241, %c0_242] : memref<1x128xf32, #tpu.memory_space<vmem>>, vector<1x128xf32>
    %257 = vector.broadcast %256 : vector<1x128xf32> to vector<32x128xf32>
    %258 = arith.addf %255, %257 : vector<32x128xf32>
    %c0_243 = arith.constant 0 : index
    %c0_244 = arith.constant 0 : index
    %259 = vector.load %arg11[%c0_243, %c0_244] : memref<32x128xf32, #tpu.memory_space<vmem>>, vector<32x128xf32>
    tpu.vector_store %arg11[%c0_243, %c0_244], %258 {strides = array<i32>} : memref<32x128xf32, #tpu.memory_space<vmem>>, vector<32x128xf32>,
    %c0_245 = arith.constant 0 : index
    %c0_246 = arith.constant 0 : index
    %260 = vector.load %arg11[%c0_245, %c0_246] : memref<32x128xf32, #tpu.memory_space<vmem>>, vector<2x128xf32>
    %c2_247 = arith.constant 2 : index
    %c0_248 = arith.constant 0 : index
    %261 = vector.load %arg11[%c2_247, %c0_248] : memref<32x128xf32, #tpu.memory_space<vmem>>, vector<2x128xf32>
    %c4_249 = arith.constant 4 : index
    %c0_250 = arith.constant 0 : index
    %262 = vector.load %arg11[%c4_249, %c0_250] : memref<32x128xf32, #tpu.memory_space<vmem>>, vector<2x128xf32>
    %c6 = arith.constant 6 : index
    %c0_251 = arith.constant 0 : index
    %263 = vector.load %arg11[%c6, %c0_251] : memref<32x128xf32, #tpu.memory_space<vmem>>, vector<2x128xf32>
    %c8 = arith.constant 8 : index
    %c0_252 = arith.constant 0 : index
    %264 = vector.load %arg11[%c8, %c0_252] : memref<32x128xf32, #tpu.memory_space<vmem>>, vector<2x128xf32>
    %c10 = arith.constant 10 : index
    %c0_253 = arith.constant 0 : index
    %265 = vector.load %arg11[%c10, %c0_253] : memref<32x128xf32, #tpu.memory_space<vmem>>, vector<2x128xf32>
    %c12_254 = arith.constant 12 : index
    %c0_255 = arith.constant 0 : index
    %266 = vector.load %arg11[%c12_254, %c0_255] : memref<32x128xf32, #tpu.memory_space<vmem>>, vector<2x128xf32>
    %c14_256 = arith.constant 14 : index
    %c0_257 = arith.constant 0 : index
    %267 = vector.load %arg11[%c14_256, %c0_257] : memref<32x128xf32, #tpu.memory_space<vmem>>, vector<2x128xf32>
    %c16_258 = arith.constant 16 : index
    %c0_259 = arith.constant 0 : index
    %268 = vector.load %arg11[%c16_258, %c0_259] : memref<32x128xf32, #tpu.memory_space<vmem>>, vector<2x128xf32>
    %c18 = arith.constant 18 : index
    %c0_260 = arith.constant 0 : index
    %269 = vector.load %arg11[%c18, %c0_260] : memref<32x128xf32, #tpu.memory_space<vmem>>, vector<2x128xf32>
    %c20 = arith.constant 20 : index
    %c0_261 = arith.constant 0 : index
    %270 = vector.load %arg11[%c20, %c0_261] : memref<32x128xf32, #tpu.memory_space<vmem>>, vector<2x128xf32>
    %c22 = arith.constant 22 : index
    %c0_262 = arith.constant 0 : index
    %271 = vector.load %arg11[%c22, %c0_262] : memref<32x128xf32, #tpu.memory_space<vmem>>, vector<2x128xf32>
    %c24_263 = arith.constant 24 : index
    %c0_264 = arith.constant 0 : index
    %272 = vector.load %arg11[%c24_263, %c0_264] : memref<32x128xf32, #tpu.memory_space<vmem>>, vector<2x128xf32>
    %c26_265 = arith.constant 26 : index
    %c0_266 = arith.constant 0 : index
    %273 = vector.load %arg11[%c26_265, %c0_266] : memref<32x128xf32, #tpu.memory_space<vmem>>, vector<2x128xf32>
    %c28_267 = arith.constant 28 : index
    %c0_268 = arith.constant 0 : index
    %274 = vector.load %arg11[%c28_267, %c0_268] : memref<32x128xf32, #tpu.memory_space<vmem>>, vector<2x128xf32>
    %c30 = arith.constant 30 : index
    %c0_269 = arith.constant 0 : index
    %275 = vector.load %arg11[%c30, %c0_269] : memref<32x128xf32, #tpu.memory_space<vmem>>, vector<2x128xf32>
    %276 = tpu.concatenate %260, %261, %262, %263, %264, %265, %266, %267, %268, %269, %270, %271, %272, %273, %274, %275 in 1 : vector<2x128xf32>, vector<2x128xf32>, vector<2x128xf32>, vector<2x128xf32>, vector<2x128xf32>, vector<2x128xf32>, vector<2x128xf32>, vector<2x128xf32>, vector<2x128xf32>, vector<2x128xf32>, vector<2x128xf32>, vector<2x128xf32>, vector<2x128xf32>, vector<2x128xf32>, vector<2x128xf32>, vector<2x128xf32> -> vector<2x2048xf32>
    %277 = arith.truncf %276 : vector<2x2048xf32> to vector<2x2048xbf16>
    %c0_270 = arith.constant 0 : index
    %c0_271 = arith.constant 0 : index
    %278 = vector.load %arg5[%c0_270, %c0_271] : memref<2048x512xbf16, #tpu.memory_space<vmem>>, vector<2048x512xbf16>
    %cst_272 = arith.constant dense<0.000000e+00> : vector<2x512xf32>
    %279 = tpu.matmul %277, %278, %cst_272 {dimension_numbers = #tpu.dot_dimension_numbers<[1], [0], [0], [1], [0, 0, 1, 1], [], []>} : vector<2x2048xbf16>, vector<2048x512xbf16>, vector<2x512xf32> -> vector<2x512xf32>
    %c0_273 = arith.constant 0 : index
    %c0_274 = arith.constant 0 : index
    %280 = vector.load %arg6[%c0_273, %c0_274] : memref<1x512xf32, #tpu.memory_space<vmem>>, vector<1x512xf32>
    %281 = vector.broadcast %280 : vector<1x512xf32> to vector<2x512xf32>
    %282 = arith.addf %279, %281 : vector<2x512xf32>
    %cst_275 = arith.constant 0.000000e+00 : f32
    %283 = vector.broadcast %cst_275 : f32 to vector<2x512xf32>
    %284 = arith.maximumf %282, %283 : vector<2x512xf32>
    %285 = arith.truncf %284 : vector<2x512xf32> to vector<2x512xbf16>
    %c0_276 = arith.constant 0 : index
    %c0_277 = arith.constant 0 : index
    %286 = vector.load %arg7[%c0_276, %c0_277] : memref<512x128xbf16, #tpu.memory_space<vmem>>, vector<512x128xbf16>
    %cst_278 = arith.constant dense<0.000000e+00> : vector<2x128xf32>
    %287 = tpu.matmul %285, %286, %cst_278 {dimension_numbers = #tpu.dot_dimension_numbers<[1], [0], [0], [1], [0, 0, 1, 1], [], []>} : vector<2x512xbf16>, vector<512x128xbf16>, vector<2x128xf32> -> vector<2x128xf32>
    %c0_279 = arith.constant 0 : index
    %c0_280 = arith.constant 0 : index
    %288 = vector.load %arg8[%c0_279, %c0_280] : memref<1x128xf32, #tpu.memory_space<vmem>>, vector<1x128xf32>
    %289 = vector.broadcast %288 : vector<1x128xf32> to vector<2x128xf32>
    %290 = arith.addf %287, %289 : vector<2x128xf32>
    %291 = tpu.iota {dimensions = array<i32: 1>} : vector<2x128xi32>
    %c10_i32 = arith.constant 10 : i32
    %292 = vector.broadcast %c10_i32 : i32 to vector<2x128xi32>
    %293 = arith.cmpi slt, %291, %292 : vector<2x128xi32>
    %cst_281 = arith.constant -1.000000e+30 : f32
    %294 = vector.broadcast %cst_281 : f32 to vector<2x128xf32>
    %295 = arith.select %293, %290, %294 : vector<2x128xi1>, vector<2x128xf32>
    %cst_282 = arith.constant dense<0xFF800000> : vector<2xf32>
    %296 = vector.multi_reduction <maximumf>, %295, %cst_282 [1] : vector<2x128xf32> to vector<2xf32>
    %297 = vector.shape_cast %296 : vector<2xf32> to vector<2x1xf32>
    %298 = vector.broadcast %297 : vector<2x1xf32> to vector<2x128xf32>
    %299 = arith.subf %295, %298 : vector<2x128xf32>
    %300 = math.exp %299 : vector<2x128xf32>
    %cst_283 = arith.constant dense<0.000000e+00> : vector<2xf32>
    %301 = vector.multi_reduction <add>, %300, %cst_283 [1] : vector<2x128xf32> to vector<2xf32>
    %302 = vector.shape_cast %301 : vector<2xf32> to vector<2x1xf32>
    %303 = vector.broadcast %297 : vector<2x1xf32> to vector<2x128xf32>
    %304 = arith.subf %295, %303 : vector<2x128xf32>
    %305 = math.log %302 : vector<2x1xf32>
    %306 = vector.broadcast %305 : vector<2x1xf32> to vector<2x128xf32>
    %307 = arith.subf %304, %306 : vector<2x128xf32>
    %c0_284 = arith.constant 0 : index
    %c0_285 = arith.constant 0 : index
    %308 = vector.load %arg9[%c0_284, %c0_285] : memref<2x128xf32, #tpu.memory_space<vmem>>, vector<2x128xf32>
    tpu.vector_store %arg9[%c0_284, %c0_285], %307 {strides = array<i32>} : memref<2x128xf32, #tpu.memory_space<vmem>>, vector<2x128xf32>,
    return
  }
}

</mosaic_0001>

<llo_original>
// kernel: net_forward.1
$region0: #{net_forward.1}
  #allocation0 [shape = 'u32[]', space=smem, size = 0x4, offset = 0x4, fixed_abs, tag = 'smem constant byte address 0x4 - core index']
  #allocation1 [shape = 'u32[144,128]{1,0:T(1,128)}', space=vmem, size = 0x12000, scoped, tag = 'internal scratch']
  #allocation2 [shape = 'f32[288,128]{1,0:T(8,128)}', space=vmem, size = 0x24000, scoped, tag = 'scratch operand']
  #allocation3 [shape = 'f32[32,128]{1,0:T(8,128)}', space=vmem, size = 0x4000, scoped, tag = 'scratch operand']
  %s0 = inlined_call_operand.vmem [shape: bf16[4,288,32], index: 0, kind: input, shape index: {}]
  %s1 = inlined_call_operand.vmem [shape: bf16[32,128], index: 1, kind: input, shape index: {}]
  %s2 = inlined_call_operand.vmem [shape: f32[1,128], index: 2, kind: input, shape index: {}]
  %s3 = inlined_call_operand.vmem [shape: bf16[3200,128], index: 3, kind: input, shape index: {}]
  %s4 = inlined_call_operand.vmem [shape: f32[1,128], index: 4, kind: input, shape index: {}]
  %s5 = inlined_call_operand.vmem [shape: bf16[2048,512], index: 5, kind: input, shape index: {}]
  %s6 = inlined_call_operand.vmem [shape: f32[1,512], index: 6, kind: input, shape index: {}]
  %s7 = inlined_call_operand.vmem [shape: bf16[512,128], index: 7, kind: input, shape index: {}]
  %s8 = inlined_call_operand.vmem [shape: f32[1,128], index: 8, kind: input, shape index: {}]
  %s9 = inlined_call_operand.hbm [shape: f32[2,128], index: 9, kind: output, shape index: {}]
  %s10 = sld [smem:[#allocation0]]
  $region46: #{net_forward.1} parent=0
    _
  %s12 = ssub.s32 1, %s10
  %s13 = scalar_select 0, %s12, %s10
  $region1: #{net_forward.1} parent=0
    #allocation4 [shape = 'u8[1024]{0}', space=vmem, size = 0x400, scoped, tag = 'output window, operand 0, single buffered']
    #allocation5 [shape = 's32[1]{0}', space=sflag, size = 0x4, scoped, tag = 'scoped memory for net_forward.1']
    %14 = vsyncpa [#allocation5], 0
    // Predicated region
    $region2: #{net_forward.1} parent=1 // pred_check
      _
    $region3: #{net_forward.1} parent=1 // pred_check_branch
      %16 = sbr.rel (0) target = $region5
    $region4: #{net_forward.1} parent=1 // pred_region
      _
    $region5: #{net_forward.1} parent=1 // pred_fallthru
      _
    // Predicated region
    $region6: #{net_forward.1} parent=1 // pred_check
      _
    $region7: #{net_forward.1} parent=1 // pred_check_branch
      %18 = sbr.rel (0) target = $region9
    $region8: #{net_forward.1} parent=1 // pred_region
      _
    $region9: #{net_forward.1} parent=1 // pred_fallthru
      _
    // Predicated region
    $region10: #{net_forward.1} parent=1 // pred_check
      _
    $region11: #{net_forward.1} parent=1 // pred_check_branch
      %20 = sbr.rel (0) target = $region13
    $region12: #{net_forward.1} parent=1 // pred_region
      _
    $region13: #{net_forward.1} parent=1 // pred_fallthru
      _
    // Predicated region
    $region14: #{net_forward.1} parent=1 // pred_check
      _
    $region15: #{net_forward.1} parent=1 // pred_check_branch
      %22 = sbr.rel (0) target = $region17
    $region16: #{net_forward.1} parent=1 // pred_region
      _
    $region17: #{net_forward.1} parent=1 // pred_fallthru
      _
    // Predicated region
    $region18: #{net_forward.1} parent=1 // pred_check
      _
    $region19: #{net_forward.1} parent=1 // pred_check_branch
      %24 = sbr.rel (0) target = $region21
    $region20: #{net_forward.1} parent=1 // pred_region
      _
    $region21: #{net_forward.1} parent=1 // pred_fallthru
      _
    // Predicated region
    $region22: #{net_forward.1} parent=1 // pred_check
      _
    $region23: #{net_forward.1} parent=1 // pred_check_branch
      %26 = sbr.rel (0) target = $region25
    $region24: #{net_forward.1} parent=1 // pred_region
      _
    $region25: #{net_forward.1} parent=1 // pred_fallthru
      _
    // Predicated region
    $region26: #{net_forward.1} parent=1 // pred_check
      _
    $region27: #{net_forward.1} parent=1 // pred_check_branch
      %28 = sbr.rel (0) target = $region29
    $region28: #{net_forward.1} parent=1 // pred_region
      _
    $region29: #{net_forward.1} parent=1 // pred_fallthru
      _
    // Predicated region
    $region30: #{net_forward.1} parent=1 // pred_check
      _
    $region31: #{net_forward.1} parent=1 // pred_check_branch
      %30 = sbr.rel (0) target = $region33
    $region32: #{net_forward.1} parent=1 // pred_region
      _
    $region33: #{net_forward.1} parent=1 // pred_fallthru
      _
    // Predicated region
    $region34: #{net_forward.1} parent=1 // pred_check
      _
    $region35: #{net_forward.1} parent=1 // pred_check_branch
      %32 = sbr.rel (0) target = $region37
    $region36: #{net_forward.1} parent=1 // pred_region
      _
    $region37: #{net_forward.1} parent=1 // pred_fallthru
      _
    %v34 = vld [vmem:[%s1] sm:$0xf]
    %v35 = vld [vmem:[%s1 + $0x4] sm:$0xf]
    %v36 = vld [vmem:[%s1 + $0x8] sm:$0xf]
    %v37 = vld [vmem:[%s1 + $0xc] sm:$0xf]
    %v38 = vld [vmem:[%s0] sm:$0xf]
    %v39 = vld [vmem:[%s0 + $0x4] sm:$0xf]
    %v40 = vld [vmem:[%s0 + $0x8] sm:$0xf]
    %v41 = vld [vmem:[%s0 + $0xc] sm:$0xf]
    %v42 = vld [vmem:[%s0 + $0x10] sm:$0xf]
    %v43 = vld [vmem:[%s0 + $0x14] sm:$0xf]
    %v44 = vld [vmem:[%s0 + $0x18] sm:$0xf]
    %v45 = vld [vmem:[%s0 + $0x1c] sm:$0xf]
    %v46 = vld [vmem:[%s0 + $0x20] sm:$0xf]
    %v47 = vld [vmem:[%s0 + $0x24] sm:$0xf]
    %v48 = vld [vmem:[%s0 + $0x28] sm:$0xf]
    %v49 = vld [vmem:[%s0 + $0x2c] sm:$0xf]
    %v50 = vld [vmem:[%s0 + $0x30] sm:$0xf]
    %v51 = vld [vmem:[%s0 + $0x34] sm:$0xf]
    %v52 = vld [vmem:[%s0 + $0x38] sm:$0xf]
    %v53 = vld [vmem:[%s0 + $0x3c] sm:$0xf]
    %v54 = vld [vmem:[%s0 + $0x40] sm:$0xf]
    %v55 = vld [vmem:[%s0 + $0x44] sm:$0xf]
    %v56 = vld [vmem:[%s0 + $0x48] sm:$0xf]
    %v57 = vld [vmem:[%s0 + $0x4c] sm:$0xf]
    %v58 = vld [vmem:[%s0 + $0x50] sm:$0xf]
    %v59 = vld [vmem:[%s0 + $0x54] sm:$0xf]
    %v60 = vld [vmem:[%s0 + $0x58] sm:$0xf]
    %v61 = vld [vmem:[%s0 + $0x5c] sm:$0xf]
    %v62 = vld [vmem:[%s0 + $0x60] sm:$0xf]
    %v63 = vld [vmem:[%s0 + $0x64] sm:$0xf]
    %v64 = vld [vmem:[%s0 + $0x68] sm:$0xf]
    %v65 = vld [vmem:[%s0 + $0x6c] sm:$0xf]
    %v66 = vld [vmem:[%s0 + $0x70] sm:$0xf]
    %v67 = vld [vmem:[%s0 + $0x74] sm:$0xf]
    %v68 = vld [vmem:[%s0 + $0x78] sm:$0xf]
    %v69 = vld [vmem:[%s0 + $0x7c] sm:$0xf]
    %v70 = vld [vmem:[%s0 + $0x80] sm:$0xf]
    %v71 = vld [vmem:[%s0 + $0x84] sm:$0xf]
    %v72 = vld [vmem:[%s0 + $0x88] sm:$0xf]
    %v73 = vld [vmem:[%s0 + $0x8c] sm:$0xf]
    %v110 = vunpack.c.l.b16 %v38
    %v111 = vunpack.c.l.b16 %v39
    %v112 = vunpack.c.l.b16 %v40
    %v113 = vunpack.c.l.b16 %v41
    %v114 = vunpack.c.l.b16 %v42
    %v115 = vunpack.c.l.b16 %v43
    %v116 = vunpack.c.l.b16 %v44
    %v117 = vunpack.c.l.b16 %v45
    %v118 = vunpack.c.l.b16 %v46
    %v119 = vunpack.c.l.b16 %v47
    %v120 = vunpack.c.l.b16 %v48
    %v121 = vunpack.c.l.b16 %v49
    %v122 = vunpack.c.l.b16 %v50
    %v123 = vunpack.c.l.b16 %v51
    %v124 = vunpack.c.l.b16 %v52
    %v125 = vunpack.c.l.b16 %v53
    %v126 = vunpack.c.l.b16 %v54
    %v127 = vunpack.c.l.b16 %v55
    %v128 = vunpack.c.l.b16 %v56
    %v129 = vunpack.c.l.b16 %v57
    %v130 = vunpack.c.l.b16 %v58
    %v131 = vunpack.c.l.b16 %v59
    %v132 = vunpack.c.l.b16 %v60
    %v133 = vunpack.c.l.b16 %v61
    %v134 = vunpack.c.l.b16 %v62
    %v135 = vunpack.c.l.b16 %v63
    %v136 = vunpack.c.l.b16 %v64
    %v137 = vunpack.c.l.b16 %v65
    %v138 = vunpack.c.l.b16 %v66
    %v139 = vunpack.c.l.b16 %v67
    %v140 = vunpack.c.l.b16 %v68
    %v141 = vunpack.c.l.b16 %v69
    %v142 = vunpack.c.l.b16 %v70
    %v143 = vunpack.c.l.b16 %v71
    %v144 = vunpack.c.l.b16 %v72
    %v145 = vunpack.c.l.b16 %v73
    %v146 = vpack.c.b16 %v111, %v110
    %v147 = vpack.c.b16 %v113, %v112
    %v148 = vpack.c.b16 %v115, %v114
    %v149 = vpack.c.b16 %v117, %v116
    %v150 = vpack.c.b16 %v119, %v118
    %v151 = vpack.c.b16 %v121, %v120
    %v152 = vpack.c.b16 %v123, %v122
    %v153 = vpack.c.b16 %v125, %v124
    %v154 = vpack.c.b16 %v127, %v126
    %v155 = vpack.c.b16 %v129, %v128
    %v156 = vpack.c.b16 %v131, %v130
    %v157 = vpack.c.b16 %v133, %v132
    %v158 = vpack.c.b16 %v135, %v134
    %v159 = vpack.c.b16 %v137, %v136
    %v160 = vpack.c.b16 %v139, %v138
    %v161 = vpack.c.b16 %v141, %v140
    %v162 = vpack.c.b16 %v143, %v142
    %v163 = vpack.c.b16 %v145, %v144
    %v168 = vunpack.c.l.b16 %v34
    %v169 = vunpack.c.l.b16 %v35
    %v170 = vunpack.c.l.b16 %v36
    %v171 = vunpack.c.l.b16 %v37
    %v172 = vpack.c.b16 %v169, %v168
    %v173 = vpack.c.b16 %v171, %v170
    %vm176 = vcmask 261120
    %v178 = vsel %vm176, %v146, 0
    %v181 = vsel %vm176, %v147, 0
    %v184 = vsel %vm176, %v148, 0
    %v187 = vsel %vm176, %v149, 0
    %v190 = vsel %vm176, %v150, 0
    %v193 = vsel %vm176, %v151, 0
    %v196 = vsel %vm176, %v152, 0
    %v199 = vsel %vm176, %v153, 0
    %v202 = vsel %vm176, %v154, 0
    %v205 = vsel %vm176, %v155, 0
    %v208 = vsel %vm176, %v156, 0
    %v211 = vsel %vm176, %v157, 0
    %v214 = vsel %vm176, %v158, 0
    %v217 = vsel %vm176, %v159, 0
    %v220 = vsel %vm176, %v160, 0
    %v223 = vsel %vm176, %v161, 0
    %v226 = vsel %vm176, %v162, 0
    %v229 = vsel %vm176, %v163, 0
    %231 = vmatprep.subr.bf16.mxu0 0
    %232 = vmatpush1.bf16.msra.mxu0 %v172
    %233 = vmatprep.subr.bf16.mxu0 0
    %234 = vmatpush1.bf16.msra.mxu0 %v173
    %235 = vmatprep.subr.bf16.mxu0 0
    %236 = vmatpush1.bf16.msra.mxu0 0
    %237 = vmatprep.subr.bf16.mxu0 0
    %238 = vmatpush1.bf16.msra.mxu0 0
    %239 = vmatprep.subr.bf16.mxu0 0
    %240 = vmatpush1.bf16.msra.mxu0 0
    %241 = vmatprep.subr.bf16.mxu0 0
    %242 = vmatpush1.bf16.msra.mxu0 0
    %243 = vmatprep.subr.bf16.mxu0 0
    %244 = vmatpush1.bf16.msra.mxu0 0
    %245 = vmatprep.subr.bf16.mxu0 0
    %246 = vmatpush1.bf16.msra.mxu0 0
    %247 = vmatprep.subr.bf16.mxu0 0
    %248 = vmatpush1.bf16.msra.mxu0 0
    %249 = vmatprep.subr.bf16.mxu0 0
    %250 = vmatpush1.bf16.msra.mxu0 0
    %251 = vmatprep.subr.bf16.mxu0 0
    %252 = vmatpush1.bf16.msra.mxu0 0
    %253 = vmatprep.subr.bf16.mxu0 0
    %254 = vmatpush1.bf16.msra.mxu0 0
    %255 = vmatprep.subr.bf16.mxu0 0
    %256 = vmatpush1.bf16.msra.mxu0 0
    %257 = vmatprep.subr.bf16.mxu0 0
    %258 = vmatpush1.bf16.msra.mxu0 0
    %259 = vmatprep.subr.bf16.mxu0 0
    %260 = vmatpush1.bf16.msra.mxu0 0
    %261 = vmatprep.subr.bf16.mxu0 0
    %262 = vmatpush1.bf16.msra.mxu0 0
    %263 = vmatprep.mubr.bf16.mxu0 0
    %264 = vmatmul.mubr.bf16.gmra.mrb[0].mxu0 %v178
    %v265 = vpop.f32.mrb[0].mxu0
    %v266 = vadd.f32 0.0, %v265
    %v267 = vpop.f32.mrb[0].mxu0
    %v268 = vpop.f32.mrb[0].mxu0
    %v269 = vadd.f32 0.0, %v268
    %v270 = vpop.f32.mrb[0].mxu0
    %271 = vmatprep.mubr.bf16.mxu0 0
    %272 = vmatmul.mubr.bf16.gmra.mrb[0].mxu0 %v181
    %v273 = vpop.f32.mrb[0].mxu0
    %v274 = vadd.f32 0.0, %v273
    %v275 = vpop.f32.mrb[0].mxu0
    %v276 = vpop.f32.mrb[0].mxu0
    %v277 = vadd.f32 0.0, %v276
    %v278 = vpop.f32.mrb[0].mxu0
    %279 = vmatprep.mubr.bf16.mxu0 0
    %280 = vmatmul.mubr.bf16.gmra.mrb[0].mxu0 %v184
    %v281 = vpop.f32.mrb[0].mxu0
    %v282 = vadd.f32 0.0, %v281
    %v283 = vpop.f32.mrb[0].mxu0
    %v284 = vpop.f32.mrb[0].mxu0
    %v285 = vadd.f32 0.0, %v284
    %v286 = vpop.f32.mrb[0].mxu0
    %287 = vmatprep.mubr.bf16.mxu0 0
    %288 = vmatmul.mubr.bf16.gmra.mrb[0].mxu0 %v187
    %v289 = vpop.f32.mrb[0].mxu0
    %v290 = vadd.f32 0.0, %v289
    %v291 = vpop.f32.mrb[0].mxu0
    %v292 = vpop.f32.mrb[0].mxu0
    %v293 = vadd.f32 0.0, %v292
    %v294 = vpop.f32.mrb[0].mxu0
    %295 = vmatprep.mubr.bf16.mxu0 0
    %296 = vmatmul.mubr.bf16.gmra.mrb[0].mxu0 %v190
    %v297 = vpop.f32.mrb[0].mxu0
    %v298 = vadd.f32 0.0, %v297
    %v299 = vpop.f32.mrb[0].mxu0
    %v300 = vpop.f32.mrb[0].mxu0
    %v301 = vadd.f32 0.0, %v300
    %v302 = vpop.f32.mrb[0].mxu0
    %303 = vmatprep.mubr.bf16.mxu0 0
    %304 = vmatmul.mubr.bf16.gmra.mrb[0].mxu0 %v193
    %v305 = vpop.f32.mrb[0].mxu0
    %v306 = vadd.f32 0.0, %v305
    %v307 = vpop.f32.mrb[0].mxu0
    %v308 = vpop.f32.mrb[0].mxu0
    %v309 = vadd.f32 0.0, %v308
    %v310 = vpop.f32.mrb[0].mxu0
    %311 = vmatprep.mubr.bf16.mxu0 0
    %312 = vmatmul.mubr.bf16.gmra.mrb[0].mxu0 %v196
    %v313 = vpop.f32.mrb[0].mxu0
    %v314 = vadd.f32 0.0, %v313
    %v315 = vpop.f32.mrb[0].mxu0
    %v316 = vpop.f32.mrb[0].mxu0
    %v317 = vadd.f32 0.0, %v316
    %v318 = vpop.f32.mrb[0].mxu0
    %319 = vmatprep.mubr.bf16.mxu0 0
    %320 = vmatmul.mubr.bf16.gmra.mrb[0].mxu0 %v199
    %v321 = vpop.f32.mrb[0].mxu0
    %v322 = vadd.f32 0.0, %v321
    %v323 = vpop.f32.mrb[0].mxu0
    %v324 = vpop.f32.mrb[0].mxu0
    %v325 = vadd.f32 0.0, %v324
    %v326 = vpop.f32.mrb[0].mxu0
    %327 = vmatprep.mubr.bf16.mxu0 0
    %328 = vmatmul.mubr.bf16.gmra.mrb[0].mxu0 %v202
    %v329 = vpop.f32.mrb[0].mxu0
    %v330 = vadd.f32 0.0, %v329
    %v331 = vpop.f32.mrb[0].mxu0
    %v332 = vpop.f32.mrb[0].mxu0
    %v333 = vadd.f32 0.0, %v332
    %v334 = vpop.f32.mrb[0].mxu0
    %335 = vmatprep.mubr.bf16.mxu0 0
    %336 = vmatmul.mubr.bf16.gmra.mrb[0].mxu0 %v205
    %v337 = vpop.f32.mrb[0].mxu0
    %v338 = vadd.f32 0.0, %v337
    %v339 = vpop.f32.mrb[0].mxu0
    %v340 = vpop.f32.mrb[0].mxu0
    %v341 = vadd.f32 0.0, %v340
    %v342 = vpop.f32.mrb[0].mxu0
    %343 = vmatprep.mubr.bf16.mxu0 0
    %344 = vmatmul.mubr.bf16.gmra.mrb[0].mxu0 %v208
    %v345 = vpop.f32.mrb[0].mxu0
    %v346 = vadd.f32 0.0, %v345
    %v347 = vpop.f32.mrb[0].mxu0
    %v348 = vpop.f32.mrb[0].mxu0
    %v349 = vadd.f32 0.0, %v348
    %v350 = vpop.f32.mrb[0].mxu0
    %351 = vmatprep.mubr.bf16.mxu0 0
    %352 = vmatmul.mubr.bf16.gmra.mrb[0].mxu0 %v211
    %v353 = vpop.f32.mrb[0].mxu0
    %v354 = vadd.f32 0.0, %v353
    %v355 = vpop.f32.mrb[0].mxu0
    %v356 = vpop.f32.mrb[0].mxu0
    %v357 = vadd.f32 0.0, %v356
    %v358 = vpop.f32.mrb[0].mxu0
    %359 = vmatprep.mubr.bf16.mxu0 0
    %360 = vmatmul.mubr.bf16.gmra.mrb[0].mxu0 %v214
    %v361 = vpop.f32.mrb[0].mxu0
    %v362 = vadd.f32 0.0, %v361
    %v363 = vpop.f32.mrb[0].mxu0
    %v364 = vpop.f32.mrb[0].mxu0
    %v365 = vadd.f32 0.0, %v364
    %v366 = vpop.f32.mrb[0].mxu0
    %367 = vmatprep.mubr.bf16.mxu0 0
    %368 = vmatmul.mubr.bf16.gmra.mrb[0].mxu0 %v217
    %v369 = vpop.f32.mrb[0].mxu0
    %v370 = vadd.f32 0.0, %v369
    %v371 = vpop.f32.mrb[0].mxu0
    %v372 = vpop.f32.mrb[0].mxu0
    %v373 = vadd.f32 0.0, %v372
    %v374 = vpop.f32.mrb[0].mxu0
    %375 = vmatprep.mubr.bf16.mxu0 0
    %376 = vmatmul.mubr.bf16.gmra.mrb[0].mxu0 %v220
    %v377 = vpop.f32.mrb[0].mxu0
    %v378 = vadd.f32 0.0, %v377
    %v379 = vpop.f32.mrb[0].mxu0
    %v380 = vpop.f32.mrb[0].mxu0
    %v381 = vadd.f32 0.0, %v380
    %v382 = vpop.f32.mrb[0].mxu0
    %383 = vmatprep.mubr.bf16.mxu0 0
    %384 = vmatmul.mubr.bf16.gmra.mrb[0].mxu0 %v223
    %v385 = vpop.f32.mrb[0].mxu0
    %v386 = vadd.f32 0.0, %v385
    %v387 = vpop.f32.mrb[0].mxu0
    %v388 = vpop.f32.mrb[0].mxu0
    %v389 = vadd.f32 0.0, %v388
    %v390 = vpop.f32.mrb[0].mxu0
    %391 = vmatprep.mubr.bf16.mxu0 0
    %392 = vmatmul.mubr.bf16.gmra.mrb[0].mxu0 %v226
    %v393 = vpop.f32.mrb[0].mxu0
    %v394 = vadd.f32 0.0, %v393
    %v395 = vpop.f32.mrb[0].mxu0
    %v396 = vpop.f32.mrb[0].mxu0
    %v397 = vadd.f32 0.0, %v396
    %v398 = vpop.f32.mrb[0].mxu0
    %399 = vmatprep.mubr.bf16.mxu0 0
    %400 = vmatmul.mubr.bf16.gmra.mrb[0].mxu0 %v229
    %v401 = vpop.f32.mrb[0].mxu0
    %v402 = vadd.f32 0.0, %v401
    %v403 = vpop.f32.mrb[0].mxu0
    %v404 = vpop.f32.mrb[0].mxu0
    %v405 = vadd.f32 0.0, %v404
    %v406 = vpop.f32.mrb[0].mxu0
    %407 = vdwg.mxu0
    %s408 = scalar_lea.vmem %s0, 144
    %v409 = vld [vmem:[%s408] sm:$0xf]
    %v410 = vld [vmem:[%s408 + $0x4] sm:$0xf]
    %v411 = vld [vmem:[%s408 + $0x8] sm:$0xf]
    %v412 = vld [vmem:[%s408 + $0xc] sm:$0xf]
    %v413 = vld [vmem:[%s408 + $0x10] sm:$0xf]
    %v414 = vld [vmem:[%s408 + $0x14] sm:$0xf]
    %v415 = vld [vmem:[%s408 + $0x18] sm:$0xf]
    %v416 = vld [vmem:[%s408 + $0x1c] sm:$0xf]
    %v417 = vld [vmem:[%s408 + $0x20] sm:$0xf]
    %v418 = vld [vmem:[%s408 + $0x24] sm:$0xf]
    %v419 = vld [vmem:[%s408 + $0x28] sm:$0xf]
    %v420 = vld [vmem:[%s408 + $0x2c] sm:$0xf]
    %v421 = vld [vmem:[%s408 + $0x30] sm:$0xf]
    %v422 = vld [vmem:[%s408 + $0x34] sm:$0xf]
    %v423 = vld [vmem:[%s408 + $0x38] sm:$0xf]
    %v424 = vld [vmem:[%s408 + $0x3c] sm:$0xf]
    %v425 = vld [vmem:[%s408 + $0x40] sm:$0xf]
    %v426 = vld [vmem:[%s408 + $0x44] sm:$0xf]
    %v427 = vld [vmem:[%s408 + $0x48] sm:$0xf]
    %v428 = vld [vmem:[%s408 + $0x4c] sm:$0xf]
    %v429 = vld [vmem:[%s408 + $0x50] sm:$0xf]
    %v430 = vld [vmem:[%s408 + $0x54] sm:$0xf]
    %v431 = vld [vmem:[%s408 + $0x58] sm:$0xf]
    %v432 = vld [vmem:[%s408 + $0x5c] sm:$0xf]
    %v433 = vld [vmem:[%s408 + $0x60] sm:$0xf]
    %v434 = vld [vmem:[%s408 + $0x64] sm:$0xf]
    %v435 = vld [vmem:[%s408 + $0x68] sm:$0xf]
    %v436 = vld [vmem:[%s408 + $0x6c] sm:$0xf]
    %v437 = vld [vmem:[%s408 + $0x70] sm:$0xf]
    %v438 = vld [vmem:[%s408 + $0x74] sm:$0xf]
    %v439 = vld [vmem:[%s408 + $0x78] sm:$0xf]
    %v440 = vld [vmem:[%s408 + $0x7c] sm:$0xf]
    %v441 = vld [vmem:[%s408 + $0x80] sm:$0xf]
    %v442 = vld [vmem:[%s408 + $0x84] sm:$0xf]
    %v443 = vld [vmem:[%s408 + $0x88] sm:$0xf]
    %v444 = vld [vmem:[%s408 + $0x8c] sm:$0xf]
    %v481 = vunpack.c.l.b16 %v409
    %v482 = vunpack.c.l.b16 %v410
    %v483 = vunpack.c.l.b16 %v411
    %v484 = vunpack.c.l.b16 %v412
    %v485 = vunpack.c.l.b16 %v413
    %v486 = vunpack.c.l.b16 %v414
    %v487 = vunpack.c.l.b16 %v415
    %v488 = vunpack.c.l.b16 %v416
    %v489 = vunpack.c.l.b16 %v417
    %v490 = vunpack.c.l.b16 %v418
    %v491 = vunpack.c.l.b16 %v419
    %v492 = vunpack.c.l.b16 %v420
    %v493 = vunpack.c.l.b16 %v421
    %v494 = vunpack.c.l.b16 %v422
    %v495 = vunpack.c.l.b16 %v423
    %v496 = vunpack.c.l.b16 %v424
    %v497 = vunpack.c.l.b16 %v425
    %v498 = vunpack.c.l.b16 %v426
    %v499 = vunpack.c.l.b16 %v427
    %v500 = vunpack.c.l.b16 %v428
    %v501 = vunpack.c.l.b16 %v429
    %v502 = vunpack.c.l.b16 %v430
    %v503 = vunpack.c.l.b16 %v431
    %v504 = vunpack.c.l.b16 %v432
    %v505 = vunpack.c.l.b16 %v433
    %v506 = vunpack.c.l.b16 %v434
    %v507 = vunpack.c.l.b16 %v435
    %v508 = vunpack.c.l.b16 %v436
    %v509 = vunpack.c.l.b16 %v437
    %v510 = vunpack.c.l.b16 %v438
    %v511 = vunpack.c.l.b16 %v439
    %v512 = vunpack.c.l.b16 %v440
    %v513 = vunpack.c.l.b16 %v441
    %v514 = vunpack.c.l.b16 %v442
    %v515 = vunpack.c.l.b16 %v443
    %v516 = vunpack.c.l.b16 %v444
    %v517 = vpack.c.b16 %v482, %v481
    %v518 = vpack.c.b16 %v484, %v483
    %v519 = vpack.c.b16 %v486, %v485
    %v520 = vpack.c.b16 %v488, %v487
    %v521 = vpack.c.b16 %v490, %v489
    %v522 = vpack.c.b16 %v492, %v491
    %v523 = vpack.c.b16 %v494, %v493
    %v524 = vpack.c.b16 %v496, %v495
    %v525 = vpack.c.b16 %v498, %v497
    %v526 = vpack.c.b16 %v500, %v499
    %v527 = vpack.c.b16 %v502, %v501
    %v528 = vpack.c.b16 %v504, %v503
    %v529 = vpack.c.b16 %v506, %v505
    %v530 = vpack.c.b16 %v508, %v507
    %v531 = vpack.c.b16 %v510, %v509
    %v532 = vpack.c.b16 %v512, %v511
    %v533 = vpack.c.b16 %v514, %v513
    %v534 = vpack.c.b16 %v516, %v515
    %v536 = vsel %vm176, %v517, 0
    %v539 = vsel %vm176, %v518, 0
    %v542 = vsel %vm176, %v519, 0
    %v545 = vsel %vm176, %v520, 0
    %v548 = vsel %vm176, %v521, 0
    %v551 = vsel %vm176, %v522, 0
    %v554 = vsel %vm176, %v523, 0
    %v557 = vsel %vm176, %v524, 0
    %v560 = vsel %vm176, %v525, 0
    %v563 = vsel %vm176, %v526, 0
    %v566 = vsel %vm176, %v527, 0
    %v569 = vsel %vm176, %v528, 0
    %v572 = vsel %vm176, %v529, 0
    %v575 = vsel %vm176, %v530, 0
    %v578 = vsel %vm176, %v531, 0
    %v581 = vsel %vm176, %v532, 0
    %v584 = vsel %vm176, %v533, 0
    %v587 = vsel %vm176, %v534, 0
    %589 = vmatprep.subr.bf16.mxu0 0
    %590 = vmatpush1.bf16.msra.mxu0 %v172
    %591 = vmatprep.subr.bf16.mxu0 0
    %592 = vmatpush1.bf16.msra.mxu0 %v173
    %593 = vmatprep.subr.bf16.mxu0 0
    %594 = vmatpush1.bf16.msra.mxu0 0
    %595 = vmatprep.subr.bf16.mxu0 0
    %596 = vmatpush1.bf16.msra.mxu0 0
    %597 = vmatprep.subr.bf16.mxu0 0
    %598 = vmatpush1.bf16.msra.mxu0 0
    %599 = vmatprep.subr.bf16.mxu0 0
    %600 = vmatpush1.bf16.msra.mxu0 0
    %601 = vmatprep.subr.bf16.mxu0 0
    %602 = vmatpush1.bf16.msra.mxu0 0
    %603 = vmatprep.subr.bf16.mxu0 0
    %604 = vmatpush1.bf16.msra.mxu0 0
    %605 = vmatprep.subr.bf16.mxu0 0
    %606 = vmatpush1.bf16.msra.mxu0 0
    %607 = vmatprep.subr.bf16.mxu0 0
    %608 = vmatpush1.bf16.msra.mxu0 0
    %609 = vmatprep.subr.bf16.mxu0 0
    %610 = vmatpush1.bf16.msra.mxu0 0
    %611 = vmatprep.subr.bf16.mxu0 0
    %612 = vmatpush1.bf16.msra.mxu0 0
    %613 = vmatprep.subr.bf16.mxu0 0
    %614 = vmatpush1.bf16.msra.mxu0 0
    %615 = vmatprep.subr.bf16.mxu0 0
    %616 = vmatpush1.bf16.msra.mxu0 0
    %617 = vmatprep.subr.bf16.mxu0 0
    %618 = vmatpush1.bf16.msra.mxu0 0
    %619 = vmatprep.subr.bf16.mxu0 0
    %620 = vmatpush1.bf16.msra.mxu0 0
    %621 = vmatprep.mubr.bf16.mxu0 0
    %622 = vmatmul.mubr.bf16.gmra.mrb[0].mxu0 %v536
    %v623 = vpop.f32.mrb[0].mxu0
    %v624 = vadd.f32 0.0, %v623
    %v625 = vpop.f32.mrb[0].mxu0
    %v626 = vpop.f32.mrb[0].mxu0
    %v627 = vadd.f32 0.0, %v626
    %v628 = vpop.f32.mrb[0].mxu0
    %629 = vmatprep.mubr.bf16.mxu0 0
    %630 = vmatmul.mubr.bf16.gmra.mrb[0].mxu0 %v539
    %v631 = vpop.f32.mrb[0].mxu0
    %v632 = vadd.f32 0.0, %v631
    %v633 = vpop.f32.mrb[0].mxu0
    %v634 = vpop.f32.mrb[0].mxu0
    %v635 = vadd.f32 0.0, %v634
    %v636 = vpop.f32.mrb[0].mxu0
    %637 = vmatprep.mubr.bf16.mxu0 0
    %638 = vmatmul.mubr.bf16.gmra.mrb[0].mxu0 %v542
    %v639 = vpop.f32.mrb[0].mxu0
    %v640 = vadd.f32 0.0, %v639
    %v641 = vpop.f32.mrb[0].mxu0
    %v642 = vpop.f32.mrb[0].mxu0
    %v643 = vadd.f32 0.0, %v642
    %v644 = vpop.f32.mrb[0].mxu0
    %645 = vmatprep.mubr.bf16.mxu0 0
    %646 = vmatmul.mubr.bf16.gmra.mrb[0].mxu0 %v545
    %v647 = vpop.f32.mrb[0].mxu0
    %v648 = vadd.f32 0.0, %v647
    %v649 = vpop.f32.mrb[0].mxu0
    %v650 = vpop.f32.mrb[0].mxu0
    %v651 = vadd.f32 0.0, %v650
    %v652 = vpop.f32.mrb[0].mxu0
    %653 = vmatprep.mubr.bf16.mxu0 0
    %654 = vmatmul.mubr.bf16.gmra.mrb[0].mxu0 %v548
    %v655 = vpop.f32.mrb[0].mxu0
    %v656 = vadd.f32 0.0, %v655
    %v657 = vpop.f32.mrb[0].mxu0
    %v658 = vpop.f32.mrb[0].mxu0
    %v659 = vadd.f32 0.0, %v658
    %v660 = vpop.f32.mrb[0].mxu0
    %661 = vmatprep.mubr.bf16.mxu0 0
    %662 = vmatmul.mubr.bf16.gmra.mrb[0].mxu0 %v551
    %v663 = vpop.f32.mrb[0].mxu0
    %v664 = vadd.f32 0.0, %v663
    %v665 = vpop.f32.mrb[0].mxu0
    %v666 = vpop.f32.mrb[0].mxu0
    %v667 = vadd.f32 0.0, %v666
    %v668 = vpop.f32.mrb[0].mxu0
    %669 = vmatprep.mubr.bf16.mxu0 0
    %670 = vmatmul.mubr.bf16.gmra.mrb[0].mxu0 %v554
    %v671 = vpop.f32.mrb[0].mxu0
    %v672 = vadd.f32 0.0, %v671
    %v673 = vpop.f32.mrb[0].mxu0
    %v674 = vpop.f32.mrb[0].mxu0
    %v675 = vadd.f32 0.0, %v674
    %v676 = vpop.f32.mrb[0].mxu0
    %677 = vmatprep.mubr.bf16.mxu0 0
    %678 = vmatmul.mubr.bf16.gmra.mrb[0].mxu0 %v557
    %v679 = vpop.f32.mrb[0].mxu0
    %v680 = vadd.f32 0.0, %v679
    %v681 = vpop.f32.mrb[0].mxu0
    %v682 = vpop.f32.mrb[0].mxu0
    %v683 = vadd.f32 0.0, %v682
    %v684 = vpop.f32.mrb[0].mxu0
    %685 = vmatprep.mubr.bf16.mxu0 0
    %686 = vmatmul.mubr.bf16.gmra.mrb[0].mxu0 %v560
    %v687 = vpop.f32.mrb[0].mxu0
    %v688 = vadd.f32 0.0, %v687
    %v689 = vpop.f32.mrb[0].mxu0
    %v690 = vpop.f32.mrb[0].mxu0
    %v691 = vadd.f32 0.0, %v690
    %v692 = vpop.f32.mrb[0].mxu0
    %693 = vmatprep.mubr.bf16.mxu0 0
    %694 = vmatmul.mubr.bf16.gmra.mrb[0].mxu0 %v563
    %v695 = vpop.f32.mrb[0].mxu0
    %v696 = vadd.f32 0.0, %v695
    %v697 = vpop.f32.mrb[0].mxu0
    %v698 = vpop.f32.mrb[0].mxu0
    %v699 = vadd.f32 0.0, %v698
    %v700 = vpop.f32.mrb[0].mxu0
    %701 = vmatprep.mubr.bf16.mxu0 0
    %702 = vmatmul.mubr.bf16.gmra.mrb[0].mxu0 %v566
    %v703 = vpop.f32.mrb[0].mxu0
    %v704 = vadd.f32 0.0, %v703
    %v705 = vpop.f32.mrb[0].mxu0
    %v706 = vpop.f32.mrb[0].mxu0
    %v707 = vadd.f32 0.0, %v706
    %v708 = vpop.f32.mrb[0].mxu0
    %709 = vmatprep.mubr.bf16.mxu0 0
    %710 = vmatmul.mubr.bf16.gmra.mrb[0].mxu0 %v569
    %v711 = vpop.f32.mrb[0].mxu0
    %v712 = vadd.f32 0.0, %v711
    %v713 = vpop.f32.mrb[0].mxu0
    %v714 = vpop.f32.mrb[0].mxu0
    %v715 = vadd.f32 0.0, %v714
    %v716 = vpop.f32.mrb[0].mxu0
    %717 = vmatprep.mubr.bf16.mxu0 0
    %718 = vmatmul.mubr.bf16.gmra.mrb[0].mxu0 %v572
    %v719 = vpop.f32.mrb[0].mxu0
    %v720 = vadd.f32 0.0, %v719
    %v721 = vpop.f32.mrb[0].mxu0
    %v722 = vpop.f32.mrb[0].mxu0
    %v723 = vadd.f32 0.0, %v722
    %v724 = vpop.f32.mrb[0].mxu0
    %725 = vmatprep.mubr.bf16.mxu0 0
    %726 = vmatmul.mubr.bf16.gmra.mrb[0].mxu0 %v575
    %v727 = vpop.f32.mrb[0].mxu0
    %v728 = vadd.f32 0.0, %v727
    %v729 = vpop.f32.mrb[0].mxu0
    %v730 = vpop.f32.mrb[0].mxu0
    %v731 = vadd.f32 0.0, %v730
    %v732 = vpop.f32.mrb[0].mxu0
    %733 = vmatprep.mubr.bf16.mxu0 0
    %734 = vmatmul.mubr.bf16.gmra.mrb[0].mxu0 %v578
    %v735 = vpop.f32.mrb[0].mxu0
    %v736 = vadd.f32 0.0, %v735
    %v737 = vpop.f32.mrb[0].mxu0
    %v738 = vpop.f32.mrb[0].mxu0
    %v739 = vadd.f32 0.0, %v738
    %v740 = vpop.f32.mrb[0].mxu0
    %741 = vmatprep.mubr.bf16.mxu0 0
    %742 = vmatmul.mubr.bf16.gmra.mrb[0].mxu0 %v581
    %v743 = vpop.f32.mrb[0].mxu0
    %v744 = vadd.f32 0.0, %v743
    %v745 = vpop.f32.mrb[0].mxu0
    %v746 = vpop.f32.mrb[0].mxu0
    %v747 = vadd.f32 0.0, %v746
    %v748 = vpop.f32.mrb[0].mxu0
    %749 = vmatprep.mubr.bf16.mxu0 0
    %750 = vmatmul.mubr.bf16.gmra.mrb[0].mxu0 %v584
    %v751 = vpop.f32.mrb[0].mxu0
    %v752 = vadd.f32 0.0, %v751
    %v753 = vpop.f32.mrb[0].mxu0
    %v754 = vpop.f32.mrb[0].mxu0
    %v755 = vadd.f32 0.0, %v754
    %v756 = vpop.f32.mrb[0].mxu0
    %757 = vmatprep.mubr.bf16.mxu0 0
    %758 = vmatmul.mubr.bf16.gmra.mrb[0].mxu0 %v587
    %v759 = vpop.f32.mrb[0].mxu0
    %v760 = vadd.f32 0.0, %v759
    %v761 = vpop.f32.mrb[0].mxu0
    %v762 = vpop.f32.mrb[0].mxu0
    %v763 = vadd.f32 0.0, %v762
    %v764 = vpop.f32.mrb[0].mxu0
    %765 = vdwg.mxu0
    %s766 = scalar_lea.vmem %s0, 288
    %v767 = vld [vmem:[%s766] sm:$0xf]
    %v768 = vld [vmem:[%s766 + $0x4] sm:$0xf]
    %v769 = vld [vmem:[%s766 + $0x8] sm:$0xf]
    %v770 = vld [vmem:[%s766 + $0xc] sm:$0xf]
    %v771 = vld [vmem:[%s766 + $0x10] sm:$0xf]
    %v772 = vld [vmem:[%s766 + $0x14] sm:$0xf]
    %v773 = vld [vmem:[%s766 + $0x18] sm:$0xf]
    %v774 = vld [vmem:[%s766 + $0x1c] sm:$0xf]
    %v775 = vld [vmem:[%s766 + $0x20] sm:$0xf]
    %v776 = vld [vmem:[%s766 + $0x24] sm:$0xf]
    %v777 = vld [vmem:[%s766 + $0x28] sm:$0xf]
    %v778 = vld [vmem:[%s766 + $0x2c] sm:$0xf]
    %v779 = vld [vmem:[%s766 + $0x30] sm:$0xf]
    %v780 = vld [vmem:[%s766 + $0x34] sm:$0xf]
    %v781 = vld [vmem:[%s766 + $0x38] sm:$0xf]
    %v782 = vld [vmem:[%s766 + $0x3c] sm:$0xf]
    %v783 = vld [vmem:[%s766 + $0x40] sm:$0xf]
    %v784 = vld [vmem:[%s766 + $0x44] sm:$0xf]
    %v785 = vld [vmem:[%s766 + $0x48] sm:$0xf]
    %v786 = vld [vmem:[%s766 + $0x4c] sm:$0xf]
    %v787 = vld [vmem:[%s766 + $0x50] sm:$0xf]
    %v788 = vld [vmem:[%s766 + $0x54] sm:$0xf]
    %v789 = vld [vmem:[%s766 + $0x58] sm:$0xf]
    %v790 = vld [vmem:[%s766 + $0x5c] sm:$0xf]
    %v791 = vld [vmem:[%s766 + $0x60] sm:$0xf]
    %v792 = vld [vmem:[%s766 + $0x64] sm:$0xf]
    %v793 = vld [vmem:[%s766 + $0x68] sm:$0xf]
    %v794 = vld [vmem:[%s766 + $0x6c] sm:$0xf]
    %v795 = vld [vmem:[%s766 + $0x70] sm:$0xf]
    %v796 = vld [vmem:[%s766 + $0x74] sm:$0xf]
    %v797 = vld [vmem:[%s766 + $0x78] sm:$0xf]
    %v798 = vld [vmem:[%s766 + $0x7c] sm:$0xf]
    %v799 = vld [vmem:[%s766 + $0x80] sm:$0xf]
    %v800 = vld [vmem:[%s766 + $0x84] sm:$0xf]
    %v801 = vld [vmem:[%s766 + $0x88] sm:$0xf]
    %v802 = vld [vmem:[%s766 + $0x8c] sm:$0xf]
    %v839 = vunpack.c.l.b16 %v767
    %v840 = vunpack.c.l.b16 %v768
    %v841 = vunpack.c.l.b16 %v769
    %v842 = vunpack.c.l.b16 %v770
    %v843 = vunpack.c.l.b16 %v771
    %v844 = vunpack.c.l.b16 %v772
    %v845 = vunpack.c.l.b16 %v773
    %v846 = vunpack.c.l.b16 %v774
    %v847 = vunpack.c.l.b16 %v775
    %v848 = vunpack.c.l.b16 %v776
    %v849 = vunpack.c.l.b16 %v777
    %v850 = vunpack.c.l.b16 %v778
    %v851 = vunpack.c.l.b16 %v779
    %v852 = vunpack.c.l.b16 %v780
    %v853 = vunpack.c.l.b16 %v781
    %v854 = vunpack.c.l.b16 %v782
    %v855 = vunpack.c.l.b16 %v783
    %v856 = vunpack.c.l.b16 %v784
    %v857 = vunpack.c.l.b16 %v785
    %v858 = vunpack.c.l.b16 %v786
    %v859 = vunpack.c.l.b16 %v787
    %v860 = vunpack.c.l.b16 %v788
    %v861 = vunpack.c.l.b16 %v789
    %v862 = vunpack.c.l.b16 %v790
    %v863 = vunpack.c.l.b16 %v791
    %v864 = vunpack.c.l.b16 %v792
    %v865 = vunpack.c.l.b16 %v793
    %v866 = vunpack.c.l.b16 %v794
    %v867 = vunpack.c.l.b16 %v795
    %v868 = vunpack.c.l.b16 %v796
    %v869 = vunpack.c.l.b16 %v797
    %v870 = vunpack.c.l.b16 %v798
    %v871 = vunpack.c.l.b16 %v799
    %v872 = vunpack.c.l.b16 %v800
    %v873 = vunpack.c.l.b16 %v801
    %v874 = vunpack.c.l.b16 %v802
    %v875 = vpack.c.b16 %v840, %v839
    %v876 = vpack.c.b16 %v842, %v841
    %v877 = vpack.c.b16 %v844, %v843
    %v878 = vpack.c.b16 %v846, %v845
    %v879 = vpack.c.b16 %v848, %v847
    %v880 = vpack.c.b16 %v850, %v849
    %v881 = vpack.c.b16 %v852, %v851
    %v882 = vpack.c.b16 %v854, %v853
    %v883 = vpack.c.b16 %v856, %v855
    %v884 = vpack.c.b16 %v858, %v857
    %v885 = vpack.c.b16 %v860, %v859
    %v886 = vpack.c.b16 %v862, %v861
    %v887 = vpack.c.b16 %v864, %v863
    %v888 = vpack.c.b16 %v866, %v865
    %v889 = vpack.c.b16 %v868, %v867
    %v890 = vpack.c.b16 %v870, %v869
    %v891 = vpack.c.b16 %v872, %v871
    %v892 = vpack.c.b16 %v874, %v873
    %v894 = vsel %vm176, %v875, 0
    %v897 = vsel %vm176, %v876, 0
    %v900 = vsel %vm176, %v877, 0
    %v903 = vsel %vm176, %v878, 0
    %v906 = vsel %vm176, %v879, 0
    %v909 = vsel %vm176, %v880, 0
    %v912 = vsel %vm176, %v881, 0
    %v915 = vsel %vm176, %v882, 0
    %v918 = vsel %vm176, %v883, 0
    %v921 = vsel %vm176, %v884, 0
    %v924 = vsel %vm176, %v885, 0
    %v927 = vsel %vm176, %v886, 0
    %v930 = vsel %vm176, %v887, 0
    %v933 = vsel %vm176, %v888, 0
    %v936 = vsel %vm176, %v889, 0
    %v939 = vsel %vm176, %v890, 0
    %v942 = vsel %vm176, %v891, 0
    %v945 = vsel %vm176, %v892, 0
    %947 = vmatprep.subr.bf16.mxu0 0
    %948 = vmatpush1.bf16.msra.mxu0 %v172
    %949 = vmatprep.subr.bf16.mxu0 0
    %950 = vmatpush1.bf16.msra.mxu0 %v173
    %951 = vmatprep.subr.bf16.mxu0 0
    %952 = vmatpush1.bf16.msra.mxu0 0
    %953 = vmatprep.subr.bf16.mxu0 0
    %954 = vmatpush1.bf16.msra.mxu0 0
    %955 = vmatprep.subr.bf16.mxu0 0
    %956 = vmatpush1.bf16.msra.mxu0 0
    %957 = vmatprep.subr.bf16.mxu0 0
    %958 = vmatpush1.bf16.msra.mxu0 0
    %959 = vmatprep.subr.bf16.mxu0 0
    %960 = vmatpush1.bf16.msra.mxu0 0
    %961 = vmatprep.subr.bf16.mxu0 0
    %962 = vmatpush1.bf16.msra.mxu0 0
    %963 = vmatprep.subr.bf16.mxu0 0
    %964 = vmatpush1.bf16.msra.mxu0 0
    %965 = vmatprep.subr.bf16.mxu0 0
    %966 = vmatpush1.bf16.msra.mxu0 0
    %967 = vmatprep.subr.bf16.mxu0 0
    %968 = vmatpush1.bf16.msra.mxu0 0
    %969 = vmatprep.subr.bf16.mxu0 0
    %970 = vmatpush1.bf16.msra.mxu0 0
    %971 = vmatprep.subr.bf16.mxu0 0
    %972 = vmatpush1.bf16.msra.mxu0 0
    %973 = vmatprep.subr.bf16.mxu0 0
    %974 = vmatpush1.bf16.msra.mxu0 0
    %975 = vmatprep.subr.bf16.mxu0 0
    %976 = vmatpush1.bf16.msra.mxu0 0
    %977 = vmatprep.subr.bf16.mxu0 0
    %978 = vmatpush1.bf16.msra.mxu0 0
    %979 = vmatprep.mubr.bf16.mxu0 0
    %980 = vmatmul.mubr.bf16.gmra.mrb[0].mxu0 %v894
    %v981 = vpop.f32.mrb[0].mxu0
    %v982 = vadd.f32 0.0, %v981
    %v983 = vpop.f32.mrb[0].mxu0
    %v984 = vpop.f32.mrb[0].mxu0
    %v985 = vadd.f32 0.0, %v984
    %v986 = vpop.f32.mrb[0].mxu0
    %987 = vmatprep.mubr.bf16.mxu0 0
    %988 = vmatmul.mubr.bf16.gmra.mrb[0].mxu0 %v897
    %v989 = vpop.f32.mrb[0].mxu0
    %v990 = vadd.f32 0.0, %v989
    %v991 = vpop.f32.mrb[0].mxu0
    %v992 = vpop.f32.mrb[0].mxu0
    %v993 = vadd.f32 0.0, %v992
    %v994 = vpop.f32.mrb[0].mxu0
    %995 = vmatprep.mubr.bf16.mxu0 0
    %996 = vmatmul.mubr.bf16.gmra.mrb[0].mxu0 %v900
    %v997 = vpop.f32.mrb[0].mxu0
    %v998 = vadd.f32 0.0, %v997
    %v999 = vpop.f32.mrb[0].mxu0
    %v1000 = vpop.f32.mrb[0].mxu0
    %v1001 = vadd.f32 0.0, %v1000
    %v1002 = vpop.f32.mrb[0].mxu0
    %1003 = vmatprep.mubr.bf16.mxu0 0
    %1004 = vmatmul.mubr.bf16.gmra.mrb[0].mxu0 %v903
    %v1005 = vpop.f32.mrb[0].mxu0
    %v1006 = vadd.f32 0.0, %v1005
    %v1007 = vpop.f32.mrb[0].mxu0
    %v1008 = vpop.f32.mrb[0].mxu0
    %v1009 = vadd.f32 0.0, %v1008
    %v1010 = vpop.f32.mrb[0].mxu0
    %1011 = vmatprep.mubr.bf16.mxu0 0
    %1012 = vmatmul.mubr.bf16.gmra.mrb[0].mxu0 %v906
    %v1013 = vpop.f32.mrb[0].mxu0
    %v1014 = vadd.f32 0.0, %v1013
    %v1015 = vpop.f32.mrb[0].mxu0
    %v1016 = vpop.f32.mrb[0].mxu0
    %v1017 = vadd.f32 0.0, %v1016
    %v1018 = vpop.f32.mrb[0].mxu0
    %1019 = vmatprep.mubr.bf16.mxu0 0
    %1020 = vmatmul.mubr.bf16.gmra.mrb[0].mxu0 %v909
    %v1021 = vpop.f32.mrb[0].mxu0
    %v1022 = vadd.f32 0.0, %v1021
    %v1023 = vpop.f32.mrb[0].mxu0
    %v1024 = vpop.f32.mrb[0].mxu0
    %v1025 = vadd.f32 0.0, %v1024
    %v1026 = vpop.f32.mrb[0].mxu0
    %1027 = vmatprep.mubr.bf16.mxu0 0
    %1028 = vmatmul.mubr.bf16.gmra.mrb[0].mxu0 %v912
    %v1029 = vpop.f32.mrb[0].mxu0
    %v1030 = vadd.f32 0.0, %v1029
    %v1031 = vpop.f32.mrb[0].mxu0
    %v1032 = vpop.f32.mrb[0].mxu0
    %v1033 = vadd.f32 0.0, %v1032
    %v1034 = vpop.f32.mrb[0].mxu0
    %1035 = vmatprep.mubr.bf16.mxu0 0
    %1036 = vmatmul.mubr.bf16.gmra.mrb[0].mxu0 %v915
    %v1037 = vpop.f32.mrb[0].mxu0
    %v1038 = vadd.f32 0.0, %v1037
    %v1039 = vpop.f32.mrb[0].mxu0
    %v1040 = vpop.f32.mrb[0].mxu0
    %v1041 = vadd.f32 0.0, %v1040
    %v1042 = vpop.f32.mrb[0].mxu0
    %1043 = vmatprep.mubr.bf16.mxu0 0
    %1044 = vmatmul.mubr.bf16.gmra.mrb[0].mxu0 %v918
    %v1045 = vpop.f32.mrb[0].mxu0
    %v1046 = vadd.f32 0.0, %v1045
    %v1047 = vpop.f32.mrb[0].mxu0
    %v1048 = vpop.f32.mrb[0].mxu0
    %v1049 = vadd.f32 0.0, %v1048
    %v1050 = vpop.f32.mrb[0].mxu0
    %1051 = vmatprep.mubr.bf16.mxu0 0
    %1052 = vmatmul.mubr.bf16.gmra.mrb[0].mxu0 %v921
    %v1053 = vpop.f32.mrb[0].mxu0
    %v1054 = vadd.f32 0.0, %v1053
    %v1055 = vpop.f32.mrb[0].mxu0
    %v1056 = vpop.f32.mrb[0].mxu0
    %v1057 = vadd.f32 0.0, %v1056
    %v1058 = vpop.f32.mrb[0].mxu0
    %1059 = vmatprep.mubr.bf16.mxu0 0
    %1060 = vmatmul.mubr.bf16.gmra.mrb[0].mxu0 %v924
    %v1061 = vpop.f32.mrb[0].mxu0
    %v1062 = vadd.f32 0.0, %v1061
    %v1063 = vpop.f32.mrb[0].mxu0
    %v1064 = vpop.f32.mrb[0].mxu0
    %v1065 = vadd.f32 0.0, %v1064
    %v1066 = vpop.f32.mrb[0].mxu0
    %1067 = vmatprep.mubr.bf16.mxu0 0
    %1068 = vmatmul.mubr.bf16.gmra.mrb[0].mxu0 %v927
    %v1069 = vpop.f32.mrb[0].mxu0
    %v1070 = vadd.f32 0.0, %v1069
    %v1071 = vpop.f32.mrb[0].mxu0
    %v1072 = vpop.f32.mrb[0].mxu0
    %v1073 = vadd.f32 0.0, %v1072
    %v1074 = vpop.f32.mrb[0].mxu0
    %1075 = vmatprep.mubr.bf16.mxu0 0
    %1076 = vmatmul.mubr.bf16.gmra.mrb[0].mxu0 %v930
    %v1077 = vpop.f32.mrb[0].mxu0
    %v1078 = vadd.f32 0.0, %v1077
    %v1079 = vpop.f32.mrb[0].mxu0
    %v1080 = vpop.f32.mrb[0].mxu0
    %v1081 = vadd.f32 0.0, %v1080
    %v1082 = vpop.f32.mrb[0].mxu0
    %1083 = vmatprep.mubr.bf16.mxu0 0
    %1084 = vmatmul.mubr.bf16.gmra.mrb[0].mxu0 %v933
    %v1085 = vpop.f32.mrb[0].mxu0
    %v1086 = vadd.f32 0.0, %v1085
    %v1087 = vpop.f32.mrb[0].mxu0
    %v1088 = vpop.f32.mrb[0].mxu0
    %v1089 = vadd.f32 0.0, %v1088
    %v1090 = vpop.f32.mrb[0].mxu0
    %1091 = vmatprep.mubr.bf16.mxu0 0
    %1092 = vmatmul.mubr.bf16.gmra.mrb[0].mxu0 %v936
    %v1093 = vpop.f32.mrb[0].mxu0
    %v1094 = vadd.f32 0.0, %v1093
    %v1095 = vpop.f32.mrb[0].mxu0
    %v1096 = vpop.f32.mrb[0].mxu0
    %v1097 = vadd.f32 0.0, %v1096
    %v1098 = vpop.f32.mrb[0].mxu0
    %1099 = vmatprep.mubr.bf16.mxu0 0
    %1100 = vmatmul.mubr.bf16.gmra.mrb[0].mxu0 %v939
    %v1101 = vpop.f32.mrb[0].mxu0
    %v1102 = vadd.f32 0.0, %v1101
    %v1103 = vpop.f32.mrb[0].mxu0
    %v1104 = vpop.f32.mrb[0].mxu0
    %v1105 = vadd.f32 0.0, %v1104
    %v1106 = vpop.f32.mrb[0].mxu0
    %1107 = vmatprep.mubr.bf16.mxu0 0
    %1108 = vmatmul.mubr.bf16.gmra.mrb[0].mxu0 %v942
    %v1109 = vpop.f32.mrb[0].mxu0
    %v1110 = vadd.f32 0.0, %v1109
    %v1111 = vpop.f32.mrb[0].mxu0
    %v1112 = vpop.f32.mrb[0].mxu0
    %v1113 = vadd.f32 0.0, %v1112
    %v1114 = vpop.f32.mrb[0].mxu0
    %1115 = vmatprep.mubr.bf16.mxu0 0
    %1116 = vmatmul.mubr.bf16.gmra.mrb[0].mxu0 %v945
    %v1117 = vpop.f32.mrb[0].mxu0
    %v1118 = vadd.f32 0.0, %v1117
    %v1119 = vpop.f32.mrb[0].mxu0
    %v1120 = vpop.f32.mrb[0].mxu0
    %v1121 = vadd.f32 0.0, %v1120
    %v1122 = vpop.f32.mrb[0].mxu0
    %1123 = vdwg.mxu0
    %s1124 = scalar_lea.vmem %s0, 432
    %v1125 = vld [vmem:[%s1124] sm:$0xf]
    %v1126 = vld [vmem:[%s1124 + $0x4] sm:$0xf]
    %v1127 = vld [vmem:[%s1124 + $0x8] sm:$0xf]
    %v1128 = vld [vmem:[%s1124 + $0xc] sm:$0xf]
    %v1129 = vld [vmem:[%s1124 + $0x10] sm:$0xf]
    %v1130 = vld [vmem:[%s1124 + $0x14] sm:$0xf]
    %v1131 = vld [vmem:[%s1124 + $0x18] sm:$0xf]
    %v1132 = vld [vmem:[%s1124 + $0x1c] sm:$0xf]
    %v1133 = vld [vmem:[%s1124 + $0x20] sm:$0xf]
    %v1134 = vld [vmem:[%s1124 + $0x24] sm:$0xf]
    %v1135 = vld [vmem:[%s1124 + $0x28] sm:$0xf]
    %v1136 = vld [vmem:[%s1124 + $0x2c] sm:$0xf]
    %v1137 = vld [vmem:[%s1124 + $0x30] sm:$0xf]
    %v1138 = vld [vmem:[%s1124 + $0x34] sm:$0xf]
    %v1139 = vld [vmem:[%s1124 + $0x38] sm:$0xf]
    %v1140 = vld [vmem:[%s1124 + $0x3c] sm:$0xf]
    %v1141 = vld [vmem:[%s1124 + $0x40] sm:$0xf]
    %v1142 = vld [vmem:[%s1124 + $0x44] sm:$0xf]
    %v1143 = vld [vmem:[%s1124 + $0x48] sm:$0xf]
    %v1144 = vld [vmem:[%s1124 + $0x4c] sm:$0xf]
    %v1145 = vld [vmem:[%s1124 + $0x50] sm:$0xf]
    %v1146 = vld [vmem:[%s1124 + $0x54] sm:$0xf]
    %v1147 = vld [vmem:[%s1124 + $0x58] sm:$0xf]
    %v1148 = vld [vmem:[%s1124 + $0x5c] sm:$0xf]
    %v1149 = vld [vmem:[%s1124 + $0x60] sm:$0xf]
    %v1150 = vld [vmem:[%s1124 + $0x64] sm:$0xf]
    %v1151 = vld [vmem:[%s1124 + $0x68] sm:$0xf]
    %v1152 = vld [vmem:[%s1124 + $0x6c] sm:$0xf]
    %v1153 = vld [vmem:[%s1124 + $0x70] sm:$0xf]
    %v1154 = vld [vmem:[%s1124 + $0x74] sm:$0xf]
    %v1155 = vld [vmem:[%s1124 + $0x78] sm:$0xf]
    %v1156 = vld [vmem:[%s1124 + $0x7c] sm:$0xf]
    %v1157 = vld [vmem:[%s1124 + $0x80] sm:$0xf]
    %v1158 = vld [vmem:[%s1124 + $0x84] sm:$0xf]
    %v1159 = vld [vmem:[%s1124 + $0x88] sm:$0xf]
    %v1160 = vld [vmem:[%s1124 + $0x8c] sm:$0xf]
    %v1197 = vunpack.c.l.b16 %v1125
    %v1198 = vunpack.c.l.b16 %v1126
    %v1199 = vunpack.c.l.b16 %v1127
    %v1200 = vunpack.c.l.b16 %v1128
    %v1201 = vunpack.c.l.b16 %v1129
    %v1202 = vunpack.c.l.b16 %v1130
    %v1203 = vunpack.c.l.b16 %v1131
    %v1204 = vunpack.c.l.b16 %v1132
    %v1205 = vunpack.c.l.b16 %v1133
    %v1206 = vunpack.c.l.b16 %v1134
    %v1207 = vunpack.c.l.b16 %v1135
    %v1208 = vunpack.c.l.b16 %v1136
    %v1209 = vunpack.c.l.b16 %v1137
    %v1210 = vunpack.c.l.b16 %v1138
    %v1211 = vunpack.c.l.b16 %v1139
    %v1212 = vunpack.c.l.b16 %v1140
    %v1213 = vunpack.c.l.b16 %v1141
    %v1214 = vunpack.c.l.b16 %v1142
    %v1215 = vunpack.c.l.b16 %v1143
    %v1216 = vunpack.c.l.b16 %v1144
    %v1217 = vunpack.c.l.b16 %v1145
    %v1218 = vunpack.c.l.b16 %v1146
    %v1219 = vunpack.c.l.b16 %v1147
    %v1220 = vunpack.c.l.b16 %v1148
    %v1221 = vunpack.c.l.b16 %v1149
    %v1222 = vunpack.c.l.b16 %v1150
    %v1223 = vunpack.c.l.b16 %v1151
    %v1224 = vunpack.c.l.b16 %v1152
    %v1225 = vunpack.c.l.b16 %v1153
    %v1226 = vunpack.c.l.b16 %v1154
    %v1227 = vunpack.c.l.b16 %v1155
    %v1228 = vunpack.c.l.b16 %v1156
    %v1229 = vunpack.c.l.b16 %v1157
    %v1230 = vunpack.c.l.b16 %v1158
    %v1231 = vunpack.c.l.b16 %v1159
    %v1232 = vunpack.c.l.b16 %v1160
    %v1233 = vpack.c.b16 %v1198, %v1197
    %v1234 = vpack.c.b16 %v1200, %v1199
    %v1235 = vpack.c.b16 %v1202, %v1201
    %v1236 = vpack.c.b16 %v1204, %v1203
    %v1237 = vpack.c.b16 %v1206, %v1205
    %v1238 = vpack.c.b16 %v1208, %v1207
    %v1239 = vpack.c.b16 %v1210, %v1209
    %v1240 = vpack.c.b16 %v1212, %v1211
    %v1241 = vpack.c.b16 %v1214, %v1213
    %v1242 = vpack.c.b16 %v1216, %v1215
    %v1243 = vpack.c.b16 %v1218, %v1217
    %v1244 = vpack.c.b16 %v1220, %v1219
    %v1245 = vpack.c.b16 %v1222, %v1221
    %v1246 = vpack.c.b16 %v1224, %v1223
    %v1247 = vpack.c.b16 %v1226, %v1225
    %v1248 = vpack.c.b16 %v1228, %v1227
    %v1249 = vpack.c.b16 %v1230, %v1229
    %v1250 = vpack.c.b16 %v1232, %v1231
    %v1252 = vsel %vm176, %v1233, 0
    %v1255 = vsel %vm176, %v1234, 0
    %v1258 = vsel %vm176, %v1235, 0
    %v1261 = vsel %vm176, %v1236, 0
    %v1264 = vsel %vm176, %v1237, 0
    %v1267 = vsel %vm176, %v1238, 0
    %v1270 = vsel %vm176, %v1239, 0
    %v1273 = vsel %vm176, %v1240, 0
    %v1276 = vsel %vm176, %v1241, 0
    %v1279 = vsel %vm176, %v1242, 0
    %v1282 = vsel %vm176, %v1243, 0
    %v1285 = vsel %vm176, %v1244, 0
    %v1288 = vsel %vm176, %v1245, 0
    %v1291 = vsel %vm176, %v1246, 0
    %v1294 = vsel %vm176, %v1247, 0
    %v1297 = vsel %vm176, %v1248, 0
    %v1300 = vsel %vm176, %v1249, 0
    %v1303 = vsel %vm176, %v1250, 0
    %1305 = vmatprep.subr.bf16.mxu0 0
    %1306 = vmatpush1.bf16.msra.mxu0 %v172
    %1307 = vmatprep.subr.bf16.mxu0 0
    %1308 = vmatpush1.bf16.msra.mxu0 %v173
    %1309 = vmatprep.subr.bf16.mxu0 0
    %1310 = vmatpush1.bf16.msra.mxu0 0
    %1311 = vmatprep.subr.bf16.mxu0 0
    %1312 = vmatpush1.bf16.msra.mxu0 0
    %1313 = vmatprep.subr.bf16.mxu0 0
    %1314 = vmatpush1.bf16.msra.mxu0 0
    %1315 = vmatprep.subr.bf16.mxu0 0
    %1316 = vmatpush1.bf16.msra.mxu0 0
    %1317 = vmatprep.subr.bf16.mxu0 0
    %1318 = vmatpush1.bf16.msra.mxu0 0
    %1319 = vmatprep.subr.bf16.mxu0 0
    %1320 = vmatpush1.bf16.msra.mxu0 0
    %1321 = vmatprep.subr.bf16.mxu0 0
    %1322 = vmatpush1.bf16.msra.mxu0 0
    %1323 = vmatprep.subr.bf16.mxu0 0
    %1324 = vmatpush1.bf16.msra.mxu0 0
    %1325 = vmatprep.subr.bf16.mxu0 0
    %1326 = vmatpush1.bf16.msra.mxu0 0
    %1327 = vmatprep.subr.bf16.mxu0 0
    %1328 = vmatpush1.bf16.msra.mxu0 0
    %1329 = vmatprep.subr.bf16.mxu0 0
    %1330 = vmatpush1.bf16.msra.mxu0 0
    %1331 = vmatprep.subr.bf16.mxu0 0
    %1332 = vmatpush1.bf16.msra.mxu0 0
    %1333 = vmatprep.subr.bf16.mxu0 0
    %1334 = vmatpush1.bf16.msra.mxu0 0
    %1335 = vmatprep.subr.bf16.mxu0 0
    %1336 = vmatpush1.bf16.msra.mxu0 0
    %1337 = vmatprep.mubr.bf16.mxu0 0
    %1338 = vmatmul.mubr.bf16.gmra.mrb[0].mxu0 %v1252
    %v1339 = vpop.f32.mrb[0].mxu0
    %v1340 = vadd.f32 0.0, %v1339
    %v1341 = vpop.f32.mrb[0].mxu0
    %v1342 = vpop.f32.mrb[0].mxu0
    %v1343 = vadd.f32 0.0, %v1342
    %v1344 = vpop.f32.mrb[0].mxu0
    %1345 = vmatprep.mubr.bf16.mxu0 0
    %1346 = vmatmul.mubr.bf16.gmra.mrb[0].mxu0 %v1255
    %v1347 = vpop.f32.mrb[0].mxu0
    %v1348 = vadd.f32 0.0, %v1347
    %v1349 = vpop.f32.mrb[0].mxu0
    %v1350 = vpop.f32.mrb[0].mxu0
    %v1351 = vadd.f32 0.0, %v1350
    %v1352 = vpop.f32.mrb[0].mxu0
    %1353 = vmatprep.mubr.bf16.mxu0 0
    %1354 = vmatmul.mubr.bf16.gmra.mrb[0].mxu0 %v1258
    %v1355 = vpop.f32.mrb[0].mxu0
    %v1356 = vadd.f32 0.0, %v1355
    %v1357 = vpop.f32.mrb[0].mxu0
    %v1358 = vpop.f32.mrb[0].mxu0
    %v1359 = vadd.f32 0.0, %v1358
    %v1360 = vpop.f32.mrb[0].mxu0
    %1361 = vmatprep.mubr.bf16.mxu0 0
    %1362 = vmatmul.mubr.bf16.gmra.mrb[0].mxu0 %v1261
    %v1363 = vpop.f32.mrb[0].mxu0
    %v1364 = vadd.f32 0.0, %v1363
    %v1365 = vpop.f32.mrb[0].mxu0
    %v1366 = vpop.f32.mrb[0].mxu0
    %v1367 = vadd.f32 0.0, %v1366
    %v1368 = vpop.f32.mrb[0].mxu0
    %1369 = vmatprep.mubr.bf16.mxu0 0
    %1370 = vmatmul.mubr.bf16.gmra.mrb[0].mxu0 %v1264
    %v1371 = vpop.f32.mrb[0].mxu0
    %v1372 = vadd.f32 0.0, %v1371
    %v1373 = vpop.f32.mrb[0].mxu0
    %v1374 = vpop.f32.mrb[0].mxu0
    %v1375 = vadd.f32 0.0, %v1374
    %v1376 = vpop.f32.mrb[0].mxu0
    %1377 = vmatprep.mubr.bf16.mxu0 0
    %1378 = vmatmul.mubr.bf16.gmra.mrb[0].mxu0 %v1267
    %v1379 = vpop.f32.mrb[0].mxu0
    %v1380 = vadd.f32 0.0, %v1379
    %v1381 = vpop.f32.mrb[0].mxu0
    %v1382 = vpop.f32.mrb[0].mxu0
    %v1383 = vadd.f32 0.0, %v1382
    %v1384 = vpop.f32.mrb[0].mxu0
    %1385 = vmatprep.mubr.bf16.mxu0 0
    %1386 = vmatmul.mubr.bf16.gmra.mrb[0].mxu0 %v1270
    %v1387 = vpop.f32.mrb[0].mxu0
    %v1388 = vadd.f32 0.0, %v1387
    %v1389 = vpop.f32.mrb[0].mxu0
    %v1390 = vpop.f32.mrb[0].mxu0
    %v1391 = vadd.f32 0.0, %v1390
    %v1392 = vpop.f32.mrb[0].mxu0
    %1393 = vmatprep.mubr.bf16.mxu0 0
    %1394 = vmatmul.mubr.bf16.gmra.mrb[0].mxu0 %v1273
    %v1395 = vpop.f32.mrb[0].mxu0
    %v1396 = vadd.f32 0.0, %v1395
    %v1397 = vpop.f32.mrb[0].mxu0
    %v1398 = vpop.f32.mrb[0].mxu0
    %v1399 = vadd.f32 0.0, %v1398
    %v1400 = vpop.f32.mrb[0].mxu0
    %1401 = vmatprep.mubr.bf16.mxu0 0
    %1402 = vmatmul.mubr.bf16.gmra.mrb[0].mxu0 %v1276
    %v1403 = vpop.f32.mrb[0].mxu0
    %v1404 = vadd.f32 0.0, %v1403
    %v1405 = vpop.f32.mrb[0].mxu0
    %v1406 = vpop.f32.mrb[0].mxu0
    %v1407 = vadd.f32 0.0, %v1406
    %v1408 = vpop.f32.mrb[0].mxu0
    %1409 = vmatprep.mubr.bf16.mxu0 0
    %1410 = vmatmul.mubr.bf16.gmra.mrb[0].mxu0 %v1279
    %v1411 = vpop.f32.mrb[0].mxu0
    %v1412 = vadd.f32 0.0, %v1411
    %v1413 = vpop.f32.mrb[0].mxu0
    %v1414 = vpop.f32.mrb[0].mxu0
    %v1415 = vadd.f32 0.0, %v1414
    %v1416 = vpop.f32.mrb[0].mxu0
    %1417 = vmatprep.mubr.bf16.mxu0 0
    %1418 = vmatmul.mubr.bf16.gmra.mrb[0].mxu0 %v1282
    %v1419 = vpop.f32.mrb[0].mxu0
    %v1420 = vadd.f32 0.0, %v1419
    %v1421 = vpop.f32.mrb[0].mxu0
    %v1422 = vpop.f32.mrb[0].mxu0
    %v1423 = vadd.f32 0.0, %v1422
    %v1424 = vpop.f32.mrb[0].mxu0
    %1425 = vmatprep.mubr.bf16.mxu0 0
    %1426 = vmatmul.mubr.bf16.gmra.mrb[0].mxu0 %v1285
    %v1427 = vpop.f32.mrb[0].mxu0
    %v1428 = vadd.f32 0.0, %v1427
    %v1429 = vpop.f32.mrb[0].mxu0
    %v1430 = vpop.f32.mrb[0].mxu0
    %v1431 = vadd.f32 0.0, %v1430
    %v1432 = vpop.f32.mrb[0].mxu0
    %1433 = vmatprep.mubr.bf16.mxu0 0
    %1434 = vmatmul.mubr.bf16.gmra.mrb[0].mxu0 %v1288
    %v1435 = vpop.f32.mrb[0].mxu0
    %v1436 = vadd.f32 0.0, %v1435
    %v1437 = vpop.f32.mrb[0].mxu0
    %v1438 = vpop.f32.mrb[0].mxu0
    %v1439 = vadd.f32 0.0, %v1438
    %v1440 = vpop.f32.mrb[0].mxu0
    %1441 = vmatprep.mubr.bf16.mxu0 0
    %1442 = vmatmul.mubr.bf16.gmra.mrb[0].mxu0 %v1291
    %v1443 = vpop.f32.mrb[0].mxu0
    %v1444 = vadd.f32 0.0, %v1443
    %v1445 = vpop.f32.mrb[0].mxu0
    %v1446 = vpop.f32.mrb[0].mxu0
    %v1447 = vadd.f32 0.0, %v1446
    %v1448 = vpop.f32.mrb[0].mxu0
    %1449 = vmatprep.mubr.bf16.mxu0 0
    %1450 = vmatmul.mubr.bf16.gmra.mrb[0].mxu0 %v1294
    %v1451 = vpop.f32.mrb[0].mxu0
    %v1452 = vadd.f32 0.0, %v1451
    %v1453 = vpop.f32.mrb[0].mxu0
    %v1454 = vpop.f32.mrb[0].mxu0
    %v1455 = vadd.f32 0.0, %v1454
    %v1456 = vpop.f32.mrb[0].mxu0
    %1457 = vmatprep.mubr.bf16.mxu0 0
    %1458 = vmatmul.mubr.bf16.gmra.mrb[0].mxu0 %v1297
    %v1459 = vpop.f32.mrb[0].mxu0
    %v1460 = vadd.f32 0.0, %v1459
    %v1461 = vpop.f32.mrb[0].mxu0
    %v1462 = vpop.f32.mrb[0].mxu0
    %v1463 = vadd.f32 0.0, %v1462
    %v1464 = vpop.f32.mrb[0].mxu0
    %1465 = vmatprep.mubr.bf16.mxu0 0
    %1466 = vmatmul.mubr.bf16.gmra.mrb[0].mxu0 %v1300
    %v1467 = vpop.f32.mrb[0].mxu0
    %v1468 = vadd.f32 0.0, %v1467
    %v1469 = vpop.f32.mrb[0].mxu0
    %v1470 = vpop.f32.mrb[0].mxu0
    %v1471 = vadd.f32 0.0, %v1470
    %v1472 = vpop.f32.mrb[0].mxu0
    %1473 = vmatprep.mubr.bf16.mxu0 0
    %1474 = vmatmul.mubr.bf16.gmra.mrb[0].mxu0 %v1303
    %v1475 = vpop.f32.mrb[0].mxu0
    %v1476 = vadd.f32 0.0, %v1475
    %v1477 = vpop.f32.mrb[0].mxu0
    %v1478 = vpop.f32.mrb[0].mxu0
    %v1479 = vadd.f32 0.0, %v1478
    %v1480 = vpop.f32.mrb[0].mxu0
    %1481 = vdwg.mxu0
    %v1482 = vmax.f32 %v266, %v624
    %v1483 = vmax.f32 %v269, %v627
    %v1484 = vmax.f32 %v274, %v632
    %v1485 = vmax.f32 %v277, %v635
    %v1486 = vmax.f32 %v282, %v640
    %v1487 = vmax.f32 %v285, %v643
    %v1488 = vmax.f32 %v290, %v648
    %v1489 = vmax.f32 %v293, %v651
    %v1490 = vmax.f32 %v298, %v656
    %v1491 = vmax.f32 %v301, %v659
    %v1492 = vmax.f32 %v306, %v664
    %v1493 = vmax.f32 %v309, %v667
    %v1494 = vmax.f32 %v314, %v672
    %v1495 = vmax.f32 %v317, %v675
    %v1496 = vmax.f32 %v322, %v680
    %v1497 = vmax.f32 %v325, %v683
    %v1498 = vmax.f32 %v330, %v688
    %v1499 = vmax.f32 %v333, %v691
    %v1500 = vmax.f32 %v338, %v696
    %v1501 = vmax.f32 %v341, %v699
    %v1502 = vmax.f32 %v346, %v704
    %v1503 = vmax.f32 %v349, %v707
    %v1504 = vmax.f32 %v354, %v712
    %v1505 = vmax.f32 %v357, %v715
    %v1506 = vmax.f32 %v362, %v720
    %v1507 = vmax.f32 %v365, %v723
    %v1508 = vmax.f32 %v370, %v728
    %v1509 = vmax.f32 %v373, %v731
    %v1510 = vmax.f32 %v378, %v736
    %v1511 = vmax.f32 %v381, %v739
    %v1512 = vmax.f32 %v386, %v744
    %v1513 = vmax.f32 %v389, %v747
    %v1514 = vmax.f32 %v394, %v752
    %v1515 = vmax.f32 %v397, %v755
    %v1516 = vmax.f32 %v402, %v760
    %v1517 = vmax.f32 %v405, %v763
    %v1518 = vmax.f32 %v982, %v1340
    %v1519 = vmax.f32 %v985, %v1343
    %v1520 = vmax.f32 %v990, %v1348
    %v1521 = vmax.f32 %v993, %v1351
    %v1522 = vmax.f32 %v998, %v1356
    %v1523 = vmax.f32 %v1001, %v1359
    %v1524 = vmax.f32 %v1006, %v1364
    %v1525 = vmax.f32 %v1009, %v1367
    %v1526 = vmax.f32 %v1014, %v1372
    %v1527 = vmax.f32 %v1017, %v1375
    %v1528 = vmax.f32 %v1022, %v1380
    %v1529 = vmax.f32 %v1025, %v1383
    %v1530 = vmax.f32 %v1030, %v1388
    %v1531 = vmax.f32 %v1033, %v1391
    %v1532 = vmax.f32 %v1038, %v1396
    %v1533 = vmax.f32 %v1041, %v1399
    %v1534 = vmax.f32 %v1046, %v1404
    %v1535 = vmax.f32 %v1049, %v1407
    %v1536 = vmax.f32 %v1054, %v1412
    %v1537 = vmax.f32 %v1057, %v1415
    %v1538 = vmax.f32 %v1062, %v1420
    %v1539 = vmax.f32 %v1065, %v1423
    %v1540 = vmax.f32 %v1070, %v1428
    %v1541 = vmax.f32 %v1073, %v1431
    %v1542 = vmax.f32 %v1078, %v1436
    %v1543 = vmax.f32 %v1081, %v1439
    %v1544 = vmax.f32 %v1086, %v1444
    %v1545 = vmax.f32 %v1089, %v1447
    %v1546 = vmax.f32 %v1094, %v1452
    %v1547 = vmax.f32 %v1097, %v1455
    %v1548 = vmax.f32 %v1102, %v1460
    %v1549 = vmax.f32 %v1105, %v1463
    %v1550 = vmax.f32 %v1110, %v1468
    %v1551 = vmax.f32 %v1113, %v1471
    %v1552 = vmax.f32 %v1118, %v1476
    %v1553 = vmax.f32 %v1121, %v1479
    %v1554 = vmax.f32 %v1482, %v1518
    %v1555 = vmax.f32 %v1483, %v1519
    %v1556 = vmax.f32 %v1484, %v1520
    %v1557 = vmax.f32 %v1485, %v1521
    %v1558 = vmax.f32 %v1486, %v1522
    %v1559 = vmax.f32 %v1487, %v1523
    %v1560 = vmax.f32 %v1488, %v1524
    %v1561 = vmax.f32 %v1489, %v1525
    %v1562 = vmax.f32 %v1490, %v1526
    %v1563 = vmax.f32 %v1491, %v1527
    %v1564 = vmax.f32 %v1492, %v1528
    %v1565 = vmax.f32 %v1493, %v1529
    %v1566 = vmax.f32 %v1494, %v1530
    %v1567 = vmax.f32 %v1495, %v1531
    %v1568 = vmax.f32 %v1496, %v1532
    %v1569 = vmax.f32 %v1497, %v1533
    %v1570 = vmax.f32 %v1498, %v1534
    %v1571 = vmax.f32 %v1499, %v1535
    %v1572 = vmax.f32 %v1500, %v1536
    %v1573 = vmax.f32 %v1501, %v1537
    %v1574 = vmax.f32 %v1502, %v1538
    %v1575 = vmax.f32 %v1503, %v1539
    %v1576 = vmax.f32 %v1504, %v1540
    %v1577 = vmax.f32 %v1505, %v1541
    %v1578 = vmax.f32 %v1506, %v1542
    %v1579 = vmax.f32 %v1507, %v1543
    %v1580 = vmax.f32 %v1508, %v1544
    %v1581 = vmax.f32 %v1509, %v1545
    %v1582 = vmax.f32 %v1510, %v1546
    %v1583 = vmax.f32 %v1511, %v1547
    %v1584 = vmax.f32 %v1512, %v1548
    %v1585 = vmax.f32 %v1513, %v1549
    %v1586 = vmax.f32 %v1514, %v1550
    %v1587 = vmax.f32 %v1515, %v1551
    %v1588 = vmax.f32 %v1516, %v1552
    %v1589 = vmax.f32 %v1517, %v1553
    %v1590 = vld [vmem:[%s2] sm:$0x1]
    %v1592 = vlaneseq
    %v1593 = vshrl.u32 %v1592, 7
    %v1594 = vsub.s32 0, %v1593
    %v1595 = vrot.slane %v1590, %v1594
    %v1597 = vadd.f32 %v1554, %v1595
    %v1598 = vadd.f32 %v1555, %v1595
    %v1599 = vadd.f32 %v1556, %v1595
    %v1600 = vadd.f32 %v1557, %v1595
    %v1601 = vadd.f32 %v1558, %v1595
    %v1602 = vadd.f32 %v1559, %v1595
    %v1603 = vadd.f32 %v1560, %v1595
    %v1604 = vadd.f32 %v1561, %v1595
    %v1605 = vadd.f32 %v1562, %v1595
    %v1606 = vadd.f32 %v1563, %v1595
    %v1607 = vadd.f32 %v1564, %v1595
    %v1608 = vadd.f32 %v1565, %v1595
    %v1609 = vadd.f32 %v1566, %v1595
    %v1610 = vadd.f32 %v1567, %v1595
    %v1611 = vadd.f32 %v1568, %v1595
    %v1612 = vadd.f32 %v1569, %v1595
    %v1613 = vadd.f32 %v1570, %v1595
    %v1614 = vadd.f32 %v1571, %v1595
    %v1615 = vadd.f32 %v1572, %v1595
    %v1616 = vadd.f32 %v1573, %v1595
    %v1617 = vadd.f32 %v1574, %v1595
    %v1618 = vadd.f32 %v1575, %v1595
    %v1619 = vadd.f32 %v1576, %v1595
    %v1620 = vadd.f32 %v1577, %v1595
    %v1621 = vadd.f32 %v1578, %v1595
    %v1622 = vadd.f32 %v1579, %v1595
    %v1623 = vadd.f32 %v1580, %v1595
    %v1624 = vadd.f32 %v1581, %v1595
    %v1625 = vadd.f32 %v1582, %v1595
    %v1626 = vadd.f32 %v1583, %v1595
    %v1627 = vadd.f32 %v1584, %v1595
    %v1628 = vadd.f32 %v1585, %v1595
    %v1629 = vadd.f32 %v1586, %v1595
    %v1630 = vadd.f32 %v1587, %v1595
    %v1631 = vadd.f32 %v1588, %v1595
    %v1632 = vadd.f32 %v1589, %v1595
    %1633 = vst [vmem:[#allocation2] sm:$0xff] %v1597
    %1634 = vst [vmem:[#allocation2 + $0x8] sm:$0xff] %v1598
    %1635 = vst [vmem:[#allocation2 + $0x10] sm:$0xff] %v1599
    %1636 = vst [vmem:[#allocation2 + $0x18] sm:$0xff] %v1600
    %1637 = vst [vmem:[#allocation2 + $0x20] sm:$0xff] %v1601
    %1638 = vst [vmem:[#allocation2 + $0x28] sm:$0xff] %v1602
    %1639 = vst [vmem:[#allocation2 + $0x30] sm:$0xff] %v1603
    %1640 = vst [vmem:[#allocation2 + $0x38] sm:$0xff] %v1604
    %1641 = vst [vmem:[#allocation2 + $0x40] sm:$0xff] %v1605
    %1642 = vst [vmem:[#allocation2 + $0x48] sm:$0xff] %v1606
    %1643 = vst [vmem:[#allocation2 + $0x50] sm:$0xff] %v1607
    %1644 = vst [vmem:[#allocation2 + $0x58] sm:$0xff] %v1608
    %1645 = vst [vmem:[#allocation2 + $0x60] sm:$0xff] %v1609
    %1646 = vst [vmem:[#allocation2 + $0x68] sm:$0xff] %v1610
    %1647 = vst [vmem:[#allocation2 + $0x70] sm:$0xff] %v1611
    %1648 = vst [vmem:[#allocation2 + $0x78] sm:$0xff] %v1612
    %1649 = vst [vmem:[#allocation2 + $0x80] sm:$0xff] %v1613
    %1650 = vst [vmem:[#allocation2 + $0x88] sm:$0xff] %v1614
    %1651 = vst [vmem:[#allocation2 + $0x90] sm:$0xff] %v1615
    %1652 = vst [vmem:[#allocation2 + $0x98] sm:$0xff] %v1616
    %1653 = vst [vmem:[#allocation2 + $0xa0] sm:$0xff] %v1617
    %1654 = vst [vmem:[#allocation2 + $0xa8] sm:$0xff] %v1618
    %1655 = vst [vmem:[#allocation2 + $0xb0] sm:$0xff] %v1619
    %1656 = vst [vmem:[#allocation2 + $0xb8] sm:$0xff] %v1620
    %1657 = vst [vmem:[#allocation2 + $0xc0] sm:$0xff] %v1621
    %1658 = vst [vmem:[#allocation2 + $0xc8] sm:$0xff] %v1622
    %1659 = vst [vmem:[#allocation2 + $0xd0] sm:$0xff] %v1623
    %1660 = vst [vmem:[#allocation2 + $0xd8] sm:$0xff] %v1624
    %1661 = vst [vmem:[#allocation2 + $0xe0] sm:$0xff] %v1625
    %1662 = vst [vmem:[#allocation2 + $0xe8] sm:$0xff] %v1626
    %1663 = vst [vmem:[#allocation2 + $0xf0] sm:$0xff] %v1627
    %1664 = vst [vmem:[#allocation2 + $0xf8] sm:$0xff] %v1628
    %1665 = vst [vmem:[#allocation2 + $0x100] sm:$0xff] %v1629
    %1666 = vst [vmem:[#allocation2 + $0x108] sm:$0xff] %v1630
    %1667 = vst [vmem:[#allocation2 + $0x110] sm:$0xff] %v1631
    %1668 = vst [vmem:[#allocation2 + $0x118] sm:$0xff] %v1632
    %v1669 = vld [vmem:[%s3] sm:$0xf]
    %v1670 = vld [vmem:[%s3 + $0x4] sm:$0xf]
    %v1671 = vld [vmem:[%s3 + $0x8] sm:$0xf]
    %v1672 = vld [vmem:[%s3 + $0xc] sm:$0xf]
    %v1673 = vld [vmem:[%s3 + $0x10] sm:$0xf]
    %v1674 = vld [vmem:[%s3 + $0x14] sm:$0xf]
    %v1675 = vld [vmem:[%s3 + $0x18] sm:$0xf]
    %v1676 = vld [vmem:[%s3 + $0x1c] sm:$0xf]
    %v1677 = vld [vmem:[%s3 + $0x20] sm:$0xf]
    %v1678 = vld [vmem:[%s3 + $0x24] sm:$0xf]
    %v1679 = vld [vmem:[%s3 + $0x28] sm:$0xf]
    %v1680 = vld [vmem:[%s3 + $0x2c] sm:$0xf]
    %v1681 = vld [vmem:[%s3 + $0x30] sm:$0xf]
    %v1682 = vld [vmem:[%s3 + $0x34] sm:$0xf]
    %v1683 = vld [vmem:[%s3 + $0x38] sm:$0xf]
    %v1684 = vld [vmem:[%s3 + $0x3c] sm:$0xf]
    %v1685 = vld [vmem:[%s3 + $0x40] sm:$0xf]
    %v1686 = vld [vmem:[%s3 + $0x44] sm:$0xf]
    %v1687 = vld [vmem:[%s3 + $0x48] sm:$0xf]
    %v1688 = vld [vmem:[%s3 + $0x4c] sm:$0xf]
    %v1689 = vld [vmem:[%s3 + $0x50] sm:$0xf]
    %v1690 = vld [vmem:[%s3 + $0x54] sm:$0xf]
    %v1691 = vld [vmem:[%s3 + $0x58] sm:$0xf]
    %v1692 = vld [vmem:[%s3 + $0x5c] sm:$0xf]
    %v1693 = vld [vmem:[%s3 + $0x60] sm:$0xf]
    %v1694 = vld [vmem:[%s3 + $0x64] sm:$0xf]
    %v1695 = vld [vmem:[%s3 + $0x68] sm:$0xf]
    %v1696 = vld [vmem:[%s3 + $0x6c] sm:$0xf]
    %v1697 = vld [vmem:[%s3 + $0x70] sm:$0xf]
    %v1698 = vld [vmem:[%s3 + $0x74] sm:$0xf]
    %v1699 = vld [vmem:[%s3 + $0x78] sm:$0xf]
    %v1700 = vld [vmem:[%s3 + $0x7c] sm:$0xf]
    %v1701 = vld [vmem:[%s3 + $0x80] sm:$0xf]
    %v1702 = vld [vmem:[%s3 + $0x84] sm:$0xf]
    %v1703 = vld [vmem:[%s3 + $0x88] sm:$0xf]
    %v1704 = vld [vmem:[%s3 + $0x8c] sm:$0xf]
    %v1705 = vld [vmem:[%s3 + $0x90] sm:$0xf]
    %v1706 = vld [vmem:[%s3 + $0x94] sm:$0xf]
    %v1707 = vld [vmem:[%s3 + $0x98] sm:$0xf]
    %v1708 = vld [vmem:[%s3 + $0x9c] sm:$0xf]
    %v1709 = vld [vmem:[%s3 + $0xa0] sm:$0xf]
    %v1710 = vld [vmem:[%s3 + $0xa4] sm:$0xf]
    %v1711 = vld [vmem:[%s3 + $0xa8] sm:$0xf]
    %v1712 = vld [vmem:[%s3 + $0xac] sm:$0xf]
    %v1713 = vld [vmem:[%s3 + $0xb0] sm:$0xf]
    %v1714 = vld [vmem:[%s3 + $0xb4] sm:$0xf]
    %v1715 = vld [vmem:[%s3 + $0xb8] sm:$0xf]
    %v1716 = vld [vmem:[%s3 + $0xbc] sm:$0xf]
    %v1717 = vld [vmem:[%s3 + $0xc0] sm:$0xf]
    %v1718 = vld [vmem:[%s3 + $0xc4] sm:$0xf]
    %v1719 = vld [vmem:[%s3 + $0xc8] sm:$0xf]
    %v1720 = vld [vmem:[%s3 + $0xcc] sm:$0xf]
    %v1721 = vld [vmem:[%s3 + $0xd0] sm:$0xf]
    %v1722 = vld [vmem:[%s3 + $0xd4] sm:$0xf]
    %v1723 = vld [vmem:[%s3 + $0xd8] sm:$0xf]
    %v1724 = vld [vmem:[%s3 + $0xdc] sm:$0xf]
    %v1725 = vld [vmem:[%s3 + $0xe0] sm:$0xf]
    %v1726 = vld [vmem:[%s3 + $0xe4] sm:$0xf]
    %v1727 = vld [vmem:[%s3 + $0xe8] sm:$0xf]
    %v1728 = vld [vmem:[%s3 + $0xec] sm:$0xf]
    %v1729 = vld [vmem:[%s3 + $0xf0] sm:$0xf]
    %v1730 = vld [vmem:[%s3 + $0xf4] sm:$0xf]
    %v1731 = vld [vmem:[%s3 + $0xf8] sm:$0xf]
    %v1732 = vld [vmem:[%s3 + $0xfc] sm:$0xf]
    %v1733 = vld [vmem:[%s3 + $0x100] sm:$0xf]
    %v1734 = vld [vmem:[%s3 + $0x104] sm:$0xf]
    %v1735 = vld [vmem:[%s3 + $0x108] sm:$0xf]
    %v1736 = vld [vmem:[%s3 + $0x10c] sm:$0xf]
    %v1737 = vld [vmem:[%s3 + $0x110] sm:$0xf]
    %v1738 = vld [vmem:[%s3 + $0x114] sm:$0xf]
    %v1739 = vld [vmem:[%s3 + $0x118] sm:$0xf]
    %v1740 = vld [vmem:[%s3 + $0x11c] sm:$0xf]
    %v1741 = vld [vmem:[%s3 + $0x120] sm:$0xf]
    %v1742 = vld [vmem:[%s3 + $0x124] sm:$0xf]
    %v1743 = vld [vmem:[%s3 + $0x128] sm:$0xf]
    %v1744 = vld [vmem:[%s3 + $0x12c] sm:$0xf]
    %v1745 = vld [vmem:[%s3 + $0x130] sm:$0xf]
    %v1746 = vld [vmem:[%s3 + $0x134] sm:$0xf]
    %v1747 = vld [vmem:[%s3 + $0x138] sm:$0xf]
    %v1748 = vld [vmem:[%s3 + $0x13c] sm:$0xf]
    %v1749 = vld [vmem:[%s3 + $0x140] sm:$0xf]
    %v1750 = vld [vmem:[%s3 + $0x144] sm:$0xf]
    %v1751 = vld [vmem:[%s3 + $0x148] sm:$0xf]
    %v1752 = vld [vmem:[%s3 + $0x14c] sm:$0xf]
    %v1753 = vld [vmem:[%s3 + $0x150] sm:$0xf]
    %v1754 = vld [vmem:[%s3 + $0x154] sm:$0xf]
    %v1755 = vld [vmem:[%s3 + $0x158] sm:$0xf]
    %v1756 = vld [vmem:[%s3 + $0x15c] sm:$0xf]
    %v1757 = vld [vmem:[%s3 + $0x160] sm:$0xf]
    %v1758 = vld [vmem:[%s3 + $0x164] sm:$0xf]
    %v1759 = vld [vmem:[%s3 + $0x168] sm:$0xf]
    %v1760 = vld [vmem:[%s3 + $0x16c] sm:$0xf]
    %v1761 = vld [vmem:[%s3 + $0x170] sm:$0xf]
    %v1762 = vld [vmem:[%s3 + $0x174] sm:$0xf]
    %v1763 = vld [vmem:[%s3 + $0x178] sm:$0xf]
    %v1764 = vld [vmem:[%s3 + $0x17c] sm:$0xf]
    %v1765 = vld [vmem:[%s3 + $0x180] sm:$0xf]
    %v1766 = vld [vmem:[%s3 + $0x184] sm:$0xf]
    %v1767 = vld [vmem:[%s3 + $0x188] sm:$0xf]
    %v1768 = vld [vmem:[%s3 + $0x18c] sm:$0xf]
    %v1769 = vld [vmem:[%s3 + $0x190] sm:$0xf]
    %v1770 = vld [vmem:[%s3 + $0x194] sm:$0xf]
    %v1771 = vld [vmem:[%s3 + $0x198] sm:$0xf]
    %v1772 = vld [vmem:[%s3 + $0x19c] sm:$0xf]
    %v1773 = vld [vmem:[%s3 + $0x1a0] sm:$0xf]
    %v1774 = vld [vmem:[%s3 + $0x1a4] sm:$0xf]
    %v1775 = vld [vmem:[%s3 + $0x1a8] sm:$0xf]
    %v1776 = vld [vmem:[%s3 + $0x1ac] sm:$0xf]
    %v1777 = vld [vmem:[%s3 + $0x1b0] sm:$0xf]
    %v1778 = vld [vmem:[%s3 + $0x1b4] sm:$0xf]
    %v1779 = vld [vmem:[%s3 + $0x1b8] sm:$0xf]
    %v1780 = vld [vmem:[%s3 + $0x1bc] sm:$0xf]
    %v1781 = vld [vmem:[%s3 + $0x1c0] sm:$0xf]
    %v1782 = vld [vmem:[%s3 + $0x1c4] sm:$0xf]
    %v1783 = vld [vmem:[%s3 + $0x1c8] sm:$0xf]
    %v1784 = vld [vmem:[%s3 + $0x1cc] sm:$0xf]
    %v1785 = vld [vmem:[%s3 + $0x1d0] sm:$0xf]
    %v1786 = vld [vmem:[%s3 + $0x1d4] sm:$0xf]
    %v1787 = vld [vmem:[%s3 + $0x1d8] sm:$0xf]
    %v1788 = vld [vmem:[%s3 + $0x1dc] sm:$0xf]
    %v1789 = vld [vmem:[%s3 + $0x1e0] sm:$0xf]
    %v1790 = vld [vmem:[%s3 + $0x1e4] sm:$0xf]
    %v1791 = vld [vmem:[%s3 + $0x1e8] sm:$0xf]
    %v1792 = vld [vmem:[%s3 + $0x1ec] sm:$0xf]
    %v1793 = vld [vmem:[%s3 + $0x1f0] sm:$0xf]
    %v1794 = vld [vmem:[%s3 + $0x1f4] sm:$0xf]
    %v1795 = vld [vmem:[%s3 + $0x1f8] sm:$0xf]
    %v1796 = vld [vmem:[%s3 + $0x1fc] sm:$0xf]
    %v1797 = vld [vmem:[%s3 + $0x200] sm:$0xf]
    %v1798 = vld [vmem:[%s3 + $0x204] sm:$0xf]
    %v1799 = vld [vmem:[%s3 + $0x208] sm:$0xf]
    %v1800 = vld [vmem:[%s3 + $0x20c] sm:$0xf]
    %v1801 = vld [vmem:[%s3 + $0x210] sm:$0xf]
    %v1802 = vld [vmem:[%s3 + $0x214] sm:$0xf]
    %v1803 = vld [vmem:[%s3 + $0x218] sm:$0xf]
    %v1804 = vld [vmem:[%s3 + $0x21c] sm:$0xf]
    %v1805 = vld [vmem:[%s3 + $0x220] sm:$0xf]
    %v1806 = vld [vmem:[%s3 + $0x224] sm:$0xf]
    %v1807 = vld [vmem:[%s3 + $0x228] sm:$0xf]
    %v1808 = vld [vmem:[%s3 + $0x22c] sm:$0xf]
    %v1809 = vld [vmem:[%s3 + $0x230] sm:$0xf]
    %v1810 = vld [vmem:[%s3 + $0x234] sm:$0xf]
    %v1811 = vld [vmem:[%s3 + $0x238] sm:$0xf]
    %v1812 = vld [vmem:[%s3 + $0x23c] sm:$0xf]
    %v1813 = vld [vmem:[%s3 + $0x240] sm:$0xf]
    %v1814 = vld [vmem:[%s3 + $0x244] sm:$0xf]
    %v1815 = vld [vmem:[%s3 + $0x248] sm:$0xf]
    %v1816 = vld [vmem:[%s3 + $0x24c] sm:$0xf]
    %v1817 = vld [vmem:[%s3 + $0x250] sm:$0xf]
    %v1818 = vld [vmem:[%s3 + $0x254] sm:$0xf]
    %v1819 = vld [vmem:[%s3 + $0x258] sm:$0xf]
    %v1820 = vld [vmem:[%s3 + $0x25c] sm:$0xf]
    %v1821 = vld [vmem:[%s3 + $0x260] sm:$0xf]
    %v1822 = vld [vmem:[%s3 + $0x264] sm:$0xf]
    %v1823 = vld [vmem:[%s3 + $0x268] sm:$0xf]
    %v1824 = vld [vmem:[%s3 + $0x26c] sm:$0xf]
    %v1825 = vld [vmem:[%s3 + $0x270] sm:$0xf]
    %v1826 = vld [vmem:[%s3 + $0x274] sm:$0xf]
    %v1827 = vld [vmem:[%s3 + $0x278] sm:$0xf]
    %v1828 = vld [vmem:[%s3 + $0x27c] sm:$0xf]
    %v1829 = vld [vmem:[%s3 + $0x280] sm:$0xf]
    %v1830 = vld [vmem:[%s3 + $0x284] sm:$0xf]
    %v1831 = vld [vmem:[%s3 + $0x288] sm:$0xf]
    %v1832 = vld [vmem:[%s3 + $0x28c] sm:$0xf]
    %v1833 = vld [vmem:[%s3 + $0x290] sm:$0xf]
    %v1834 = vld [vmem:[%s3 + $0x294] sm:$0xf]
    %v1835 = vld [vmem:[%s3 + $0x298] sm:$0xf]
    %v1836 = vld [vmem:[%s3 + $0x29c] sm:$0xf]
    %v1837 = vld [vmem:[%s3 + $0x2a0] sm:$0xf]
    %v1838 = vld [vmem:[%s3 + $0x2a4] sm:$0xf]
    %v1839 = vld [vmem:[%s3 + $0x2a8] sm:$0xf]
    %v1840 = vld [vmem:[%s3 + $0x2ac] sm:$0xf]
    %v1841 = vld [vmem:[%s3 + $0x2b0] sm:$0xf]
    %v1842 = vld [vmem:[%s3 + $0x2b4] sm:$0xf]
    %v1843 = vld [vmem:[%s3 + $0x2b8] sm:$0xf]
    %v1844 = vld [vmem:[%s3 + $0x2bc] sm:$0xf]
    %v1845 = vld [vmem:[%s3 + $0x2c0] sm:$0xf]
    %v1846 = vld [vmem:[%s3 + $0x2c4] sm:$0xf]
    %v1847 = vld [vmem:[%s3 + $0x2c8] sm:$0xf]
    %v1848 = vld [vmem:[%s3 + $0x2cc] sm:$0xf]
    %v1849 = vld [vmem:[%s3 + $0x2d0] sm:$0xf]
    %v1850 = vld [vmem:[%s3 + $0x2d4] sm:$0xf]
    %v1851 = vld [vmem:[%s3 + $0x2d8] sm:$0xf]
    %v1852 = vld [vmem:[%s3 + $0x2dc] sm:$0xf]
    %v1853 = vld [vmem:[%s3 + $0x2e0] sm:$0xf]
    %v1854 = vld [vmem:[%s3 + $0x2e4] sm:$0xf]
    %v1855 = vld [vmem:[%s3 + $0x2e8] sm:$0xf]
    %v1856 = vld [vmem:[%s3 + $0x2ec] sm:$0xf]
    %v1857 = vld [vmem:[%s3 + $0x2f0] sm:$0xf]
    %v1858 = vld [vmem:[%s3 + $0x2f4] sm:$0xf]
    %v1859 = vld [vmem:[%s3 + $0x2f8] sm:$0xf]
    %v1860 = vld [vmem:[%s3 + $0x2fc] sm:$0xf]
    %v1861 = vld [vmem:[%s3 + $0x300] sm:$0xf]
    %v1862 = vld [vmem:[%s3 + $0x304] sm:$0xf]
    %v1863 = vld [vmem:[%s3 + $0x308] sm:$0xf]
    %v1864 = vld [vmem:[%s3 + $0x30c] sm:$0xf]
    %v1865 = vld [vmem:[%s3 + $0x310] sm:$0xf]
    %v1866 = vld [vmem:[%s3 + $0x314] sm:$0xf]
    %v1867 = vld [vmem:[%s3 + $0x318] sm:$0xf]
    %v1868 = vld [vmem:[%s3 + $0x31c] sm:$0xf]
    %v1869 = vld [vmem:[%s3 + $0x320] sm:$0xf]
    %v1870 = vld [vmem:[%s3 + $0x324] sm:$0xf]
    %v1871 = vld [vmem:[%s3 + $0x328] sm:$0xf]
    %v1872 = vld [vmem:[%s3 + $0x32c] sm:$0xf]
    %v1873 = vld [vmem:[%s3 + $0x330] sm:$0xf]
    %v1874 = vld [vmem:[%s3 + $0x334] sm:$0xf]
    %v1875 = vld [vmem:[%s3 + $0x338] sm:$0xf]
    %v1876 = vld [vmem:[%s3 + $0x33c] sm:$0xf]
    %v1877 = vld [vmem:[%s3 + $0x340] sm:$0xf]
    %v1878 = vld [vmem:[%s3 + $0x344] sm:$0xf]
    %v1879 = vld [vmem:[%s3 + $0x348] sm:$0xf]
    %v1880 = vld [vmem:[%s3 + $0x34c] sm:$0xf]
    %v1881 = vld [vmem:[%s3 + $0x350] sm:$0xf]
    %v1882 = vld [vmem:[%s3 + $0x354] sm:$0xf]
    %v1883 = vld [vmem:[%s3 + $0x358] sm:$0xf]
    %v1884 = vld [vmem:[%s3 + $0x35c] sm:$0xf]
    %v1885 = vld [vmem:[%s3 + $0x360] sm:$0xf]
    %v1886 = vld [vmem:[%s3 + $0x364] sm:$0xf]
    %v1887 = vld [vmem:[%s3 + $0x368] sm:$0xf]
    %v1888 = vld [vmem:[%s3 + $0x36c] sm:$0xf]
    %v1889 = vld [vmem:[%s3 + $0x370] sm:$0xf]
    %v1890 = vld [vmem:[%s3 + $0x374] sm:$0xf]
    %v1891 = vld [vmem:[%s3 + $0x378] sm:$0xf]
    %v1892 = vld [vmem:[%s3 + $0x37c] sm:$0xf]
    %v1893 = vld [vmem:[%s3 + $0x380] sm:$0xf]
    %v1894 = vld [vmem:[%s3 + $0x384] sm:$0xf]
    %v1895 = vld [vmem:[%s3 + $0x388] sm:$0xf]
    %v1896 = vld [vmem:[%s3 + $0x38c] sm:$0xf]
    %v1897 = vld [vmem:[%s3 + $0x390] sm:$0xf]
    %v1898 = vld [vmem:[%s3 + $0x394] sm:$0xf]
    %v1899 = vld [vmem:[%s3 + $0x398] sm:$0xf]
    %v1900 = vld [vmem:[%s3 + $0x39c] sm:$0xf]
    %v1901 = vld [vmem:[%s3 + $0x3a0] sm:$0xf]
    %v1902 = vld [vmem:[%s3 + $0x3a4] sm:$0xf]
    %v1903 = vld [vmem:[%s3 + $0x3a8] sm:$0xf]
    %v1904 = vld [vmem:[%s3 + $0x3ac] sm:$0xf]
    %v1905 = vld [vmem:[%s3 + $0x3b0] sm:$0xf]
    %v1906 = vld [vmem:[%s3 + $0x3b4] sm:$0xf]
    %v1907 = vld [vmem:[%s3 + $0x3b8] sm:$0xf]
    %v1908 = vld [vmem:[%s3 + $0x3bc] sm:$0xf]
    %v1909 = vld [vmem:[%s3 + $0x3c0] sm:$0xf]
    %v1910 = vld [vmem:[%s3 + $0x3c4] sm:$0xf]
    %v1911 = vld [vmem:[%s3 + $0x3c8] sm:$0xf]
    %v1912 = vld [vmem:[%s3 + $0x3cc] sm:$0xf]
    %v1913 = vld [vmem:[%s3 + $0x3d0] sm:$0xf]
    %v1914 = vld [vmem:[%s3 + $0x3d4] sm:$0xf]
    %v1915 = vld [vmem:[%s3 + $0x3d8] sm:$0xf]
    %v1916 = vld [vmem:[%s3 + $0x3dc] sm:$0xf]
    %v1917 = vld [vmem:[%s3 + $0x3e0] sm:$0xf]
    %v1918 = vld [vmem:[%s3 + $0x3e4] sm:$0xf]
    %v1919 = vld [vmem:[%s3 + $0x3e8] sm:$0xf]
    %v1920 = vld [vmem:[%s3 + $0x3ec] sm:$0xf]
    %v1921 = vld [vmem:[%s3 + $0x3f0] sm:$0xf]
    %v1922 = vld [vmem:[%s3 + $0x3f4] sm:$0xf]
    %v1923 = vld [vmem:[%s3 + $0x3f8] sm:$0xf]
    %v1924 = vld [vmem:[%s3 + $0x3fc] sm:$0xf]
    %v1925 = vld [vmem:[%s3 + $0x400] sm:$0xf]
    %v1926 = vld [vmem:[%s3 + $0x404] sm:$0xf]
    %v1927 = vld [vmem:[%s3 + $0x408] sm:$0xf]
    %v1928 = vld [vmem:[%s3 + $0x40c] sm:$0xf]
    %v1929 = vld [vmem:[%s3 + $0x410] sm:$0xf]
    %v1930 = vld [vmem:[%s3 + $0x414] sm:$0xf]
    %v1931 = vld [vmem:[%s3 + $0x418] sm:$0xf]
    %v1932 = vld [vmem:[%s3 + $0x41c] sm:$0xf]
    %v1933 = vld [vmem:[%s3 + $0x420] sm:$0xf]
    %v1934 = vld [vmem:[%s3 + $0x424] sm:$0xf]
    %v1935 = vld [vmem:[%s3 + $0x428] sm:$0xf]
    %v1936 = vld [vmem:[%s3 + $0x42c] sm:$0xf]
    %v1937 = vld [vmem:[%s3 + $0x430] sm:$0xf]
    %v1938 = vld [vmem:[%s3 + $0x434] sm:$0xf]
    %v1939 = vld [vmem:[%s3 + $0x438] sm:$0xf]
    %v1940 = vld [vmem:[%s3 + $0x43c] sm:$0xf]
    %v1941 = vld [vmem:[%s3 + $0x440] sm:$0xf]
    %v1942 = vld [vmem:[%s3 + $0x444] sm:$0xf]
    %v1943 = vld [vmem:[%s3 + $0x448] sm:$0xf]
    %v1944 = vld [vmem:[%s3 + $0x44c] sm:$0xf]
    %v1945 = vld [vmem:[%s3 + $0x450] sm:$0xf]
    %v1946 = vld [vmem:[%s3 + $0x454] sm:$0xf]
    %v1947 = vld [vmem:[%s3 + $0x458] sm:$0xf]
    %v1948 = vld [vmem:[%s3 + $0x45c] sm:$0xf]
    %v1949 = vld [vmem:[%s3 + $0x460] sm:$0xf]
    %v1950 = vld [vmem:[%s3 + $0x464] sm:$0xf]
    %v1951 = vld [vmem:[%s3 + $0x468] sm:$0xf]
    %v1952 = vld [vmem:[%s3 + $0x46c] sm:$0xf]
    %v1953 = vld [vmem:[%s3 + $0x470] sm:$0xf]
    %v1954 = vld [vmem:[%s3 + $0x474] sm:$0xf]
    %v1955 = vld [vmem:[%s3 + $0x478] sm:$0xf]
    %v1956 = vld [vmem:[%s3 + $0x47c] sm:$0xf]
    %v1957 = vld [vmem:[%s3 + $0x480] sm:$0xf]
    %v1958 = vld [vmem:[%s3 + $0x484] sm:$0xf]
    %v1959 = vld [vmem:[%s3 + $0x488] sm:$0xf]
    %v1960 = vld [vmem:[%s3 + $0x48c] sm:$0xf]
    %v1961 = vld [vmem:[%s3 + $0x490] sm:$0xf]
    %v1962 = vld [vmem:[%s3 + $0x494] sm:$0xf]
    %v1963 = vld [vmem:[%s3 + $0x498] sm:$0xf]
    %v1964 = vld [vmem:[%s3 + $0x49c] sm:$0xf]
    %v1965 = vld [vmem:[%s3 + $0x4a0] sm:$0xf]
    %v1966 = vld [vmem:[%s3 + $0x4a4] sm:$0xf]
    %v1967 = vld [vmem:[%s3 + $0x4a8] sm:$0xf]
    %v1968 = vld [vmem:[%s3 + $0x4ac] sm:$0xf]
    %v1969 = vld [vmem:[%s3 + $0x4b0] sm:$0xf]
    %v1970 = vld [vmem:[%s3 + $0x4b4] sm:$0xf]
    %v1971 = vld [vmem:[%s3 + $0x4b8] sm:$0xf]
    %v1972 = vld [vmem:[%s3 + $0x4bc] sm:$0xf]
    %v1973 = vld [vmem:[%s3 + $0x4c0] sm:$0xf]
    %v1974 = vld [vmem:[%s3 + $0x4c4] sm:$0xf]
    %v1975 = vld [vmem:[%s3 + $0x4c8] sm:$0xf]
    %v1976 = vld [vmem:[%s3 + $0x4cc] sm:$0xf]
    %v1977 = vld [vmem:[%s3 + $0x4d0] sm:$0xf]
    %v1978 = vld [vmem:[%s3 + $0x4d4] sm:$0xf]
    %v1979 = vld [vmem:[%s3 + $0x4d8] sm:$0xf]
    %v1980 = vld [vmem:[%s3 + $0x4dc] sm:$0xf]
    %v1981 = vld [vmem:[%s3 + $0x4e0] sm:$0xf]
    %v1982 = vld [vmem:[%s3 + $0x4e4] sm:$0xf]
    %v1983 = vld [vmem:[%s3 + $0x4e8] sm:$0xf]
    %v1984 = vld [vmem:[%s3 + $0x4ec] sm:$0xf]
    %v1985 = vld [vmem:[%s3 + $0x4f0] sm:$0xf]
    %v1986 = vld [vmem:[%s3 + $0x4f4] sm:$0xf]
    %v1987 = vld [vmem:[%s3 + $0x4f8] sm:$0xf]
    %v1988 = vld [vmem:[%s3 + $0x4fc] sm:$0xf]
    %v1989 = vld [vmem:[%s3 + $0x500] sm:$0xf]
    %v1990 = vld [vmem:[%s3 + $0x504] sm:$0xf]
    %v1991 = vld [vmem:[%s3 + $0x508] sm:$0xf]
    %v1992 = vld [vmem:[%s3 + $0x50c] sm:$0xf]
    %v1993 = vld [vmem:[%s3 + $0x510] sm:$0xf]
    %v1994 = vld [vmem:[%s3 + $0x514] sm:$0xf]
    %v1995 = vld [vmem:[%s3 + $0x518] sm:$0xf]
    %v1996 = vld [vmem:[%s3 + $0x51c] sm:$0xf]
    %v1997 = vld [vmem:[%s3 + $0x520] sm:$0xf]
    %v1998 = vld [vmem:[%s3 + $0x524] sm:$0xf]
    %v1999 = vld [vmem:[%s3 + $0x528] sm:$0xf]
    %v2000 = vld [vmem:[%s3 + $0x52c] sm:$0xf]
    %v2001 = vld [vmem:[%s3 + $0x530] sm:$0xf]
    %v2002 = vld [vmem:[%s3 + $0x534] sm:$0xf]
    %v2003 = vld [vmem:[%s3 + $0x538] sm:$0xf]
    %v2004 = vld [vmem:[%s3 + $0x53c] sm:$0xf]
    %v2005 = vld [vmem:[%s3 + $0x540] sm:$0xf]
    %v2006 = vld [vmem:[%s3 + $0x544] sm:$0xf]
    %v2007 = vld [vmem:[%s3 + $0x548] sm:$0xf]
    %v2008 = vld [vmem:[%s3 + $0x54c] sm:$0xf]
    %v2009 = vld [vmem:[%s3 + $0x550] sm:$0xf]
    %v2010 = vld [vmem:[%s3 + $0x554] sm:$0xf]
    %v2011 = vld [vmem:[%s3 + $0x558] sm:$0xf]
    %v2012 = vld [vmem:[%s3 + $0x55c] sm:$0xf]
    %v2013 = vld [vmem:[%s3 + $0x560] sm:$0xf]
    %v2014 = vld [vmem:[%s3 + $0x564] sm:$0xf]
    %v2015 = vld [vmem:[%s3 + $0x568] sm:$0xf]
    %v2016 = vld [vmem:[%s3 + $0x56c] sm:$0xf]
    %v2017 = vld [vmem:[%s3 + $0x570] sm:$0xf]
    %v2018 = vld [vmem:[%s3 + $0x574] sm:$0xf]
    %v2019 = vld [vmem:[%s3 + $0x578] sm:$0xf]
    %v2020 = vld [vmem:[%s3 + $0x57c] sm:$0xf]
    %v2021 = vld [vmem:[%s3 + $0x580] sm:$0xf]
    %v2022 = vld [vmem:[%s3 + $0x584] sm:$0xf]
    %v2023 = vld [vmem:[%s3 + $0x588] sm:$0xf]
    %v2024 = vld [vmem:[%s3 + $0x58c] sm:$0xf]
    %v2025 = vld [vmem:[%s3 + $0x590] sm:$0xf]
    %v2026 = vld [vmem:[%s3 + $0x594] sm:$0xf]
    %v2027 = vld [vmem:[%s3 + $0x598] sm:$0xf]
    %v2028 = vld [vmem:[%s3 + $0x59c] sm:$0xf]
    %v2029 = vld [vmem:[%s3 + $0x5a0] sm:$0xf]
    %v2030 = vld [vmem:[%s3 + $0x5a4] sm:$0xf]
    %v2031 = vld [vmem:[%s3 + $0x5a8] sm:$0xf]
    %v2032 = vld [vmem:[%s3 + $0x5ac] sm:$0xf]
    %v2033 = vld [vmem:[%s3 + $0x5b0] sm:$0xf]
    %v2034 = vld [vmem:[%s3 + $0x5b4] sm:$0xf]
    %v2035 = vld [vmem:[%s3 + $0x5b8] sm:$0xf]
    %v2036 = vld [vmem:[%s3 + $0x5bc] sm:$0xf]
    %v2037 = vld [vmem:[%s3 + $0x5c0] sm:$0xf]
    %v2038 = vld [vmem:[%s3 + $0x5c4] sm:$0xf]
    %v2039 = vld [vmem:[%s3 + $0x5c8] sm:$0xf]
    %v2040 = vld [vmem:[%s3 + $0x5cc] sm:$0xf]
    %v2041 = vld [vmem:[%s3 + $0x5d0] sm:$0xf]
    %v2042 = vld [vmem:[%s3 + $0x5d4] sm:$0xf]
    %v2043 = vld [vmem:[%s3 + $0x5d8] sm:$0xf]
    %v2044 = vld [vmem:[%s3 + $0x5dc] sm:$0xf]
    %v2045 = vld [vmem:[%s3 + $0x5e0] sm:$0xf]
    %v2046 = vld [vmem:[%s3 + $0x5e4] sm:$0xf]
    %v2047 = vld [vmem:[%s3 + $0x5e8] sm:$0xf]
    %v2048 = vld [vmem:[%s3 + $0x5ec] sm:$0xf]
    %v2049 = vld [vmem:[%s3 + $0x5f0] sm:$0xf]
    %v2050 = vld [vmem:[%s3 + $0x5f4] sm:$0xf]
    %v2051 = vld [vmem:[%s3 + $0x5f8] sm:$0xf]
    %v2052 = vld [vmem:[%s3 + $0x5fc] sm:$0xf]
    %v2053 = vld [vmem:[%s3 + $0x600] sm:$0xf]
    %v2054 = vld [vmem:[%s3 + $0x604] sm:$0xf]
    %v2055 = vld [vmem:[%s3 + $0x608] sm:$0xf]
    %v2056 = vld [vmem:[%s3 + $0x60c] sm:$0xf]
    %v2057 = vld [vmem:[%s3 + $0x610] sm:$0xf]
    %v2058 = vld [vmem:[%s3 + $0x614] sm:$0xf]
    %v2059 = vld [vmem:[%s3 + $0x618] sm:$0xf]
    %v2060 = vld [vmem:[%s3 + $0x61c] sm:$0xf]
    %v2061 = vld [vmem:[%s3 + $0x620] sm:$0xf]
    %v2062 = vld [vmem:[%s3 + $0x624] sm:$0xf]
    %v2063 = vld [vmem:[%s3 + $0x628] sm:$0xf]
    %v2064 = vld [vmem:[%s3 + $0x62c] sm:$0xf]
    %v2065 = vld [vmem:[%s3 + $0x630] sm:$0xf]
    %v2066 = vld [vmem:[%s3 + $0x634] sm:$0xf]
    %v2067 = vld [vmem:[%s3 + $0x638] sm:$0xf]
    %v2068 = vld [vmem:[%s3 + $0x63c] sm:$0xf]
    %v2069 = vld [vmem:[#allocation2] sm:$0xff]
    %v2070 = vld [vmem:[#allocation2 + $0xc] sm:$0xff]
    %v2071 = vld [vmem:[#allocation2 + $0x18] sm:$0xff]
    %v2072 = vld [vmem:[#allocation2 + $0x24] sm:$0xff]
    %v2073 = vpack.c.bf16 %v2070, %v2069
    %v2074 = vpack.c.bf16 %v2072, %v2071
    %v2075 = vld [vmem:[#allocation2 + $0x48] sm:$0xff]
    %v2076 = vld [vmem:[#allocation2 + $0x54] sm:$0xff]
    %v2077 = vld [vmem:[#allocation2 + $0x60] sm:$0xff]
    %v2078 = vld [vmem:[#allocation2 + $0x6c] sm:$0xff]
    %v2079 = vpack.c.bf16 %v2076, %v2075
    %v2080 = vpack.c.bf16 %v2078, %v2077
    %v2081 = vld [vmem:[#allocation2 + $0x2] sm:$0xff]
    %v2082 = vld [vmem:[#allocation2 + $0xe] sm:$0xff]
    %v2083 = vld [vmem:[#allocation2 + $0x1a] sm:$0xff]
    %v2084 = vld [vmem:[#allocation2 + $0x26] sm:$0xff]
    %v2085 = vpack.c.bf16 %v2082, %v2081
    %v2086 = vpack.c.bf16 %v2084, %v2083
    %v2087 = vld [vmem:[#allocation2 + $0x4a] sm:$0xff]
    %v2088 = vld [vmem:[#allocation2 + $0x56] sm:$0xff]
    %v2089 = vld [vmem:[#allocation2 + $0x62] sm:$0xff]
    %v2090 = vld [vmem:[#allocation2 + $0x6e] sm:$0xff]
    %v2091 = vpack.c.bf16 %v2088, %v2087
    %v2092 = vpack.c.bf16 %v2090, %v2089
    %v2093 = vld [vmem:[#allocation2 + $0x4] sm:$0xff]
    %v2094 = vld [vmem:[#allocation2 + $0x10] sm:$0xff]
    %v2095 = vld [vmem:[#allocation2 + $0x1c] sm:$0xff]
    %v2096 = vld [vmem:[#allocation2 + $0x28] sm:$0xff]
    %v2097 = vpack.c.bf16 %v2094, %v2093
    %v2098 = vpack.c.bf16 %v2096, %v2095
    %v2099 = vld [vmem:[#allocation2 + $0x90] sm:$0xff]
    %v2100 = vld [vmem:[#allocation2 + $0x9c] sm:$0xff]
    %v2101 = vld [vmem:[#allocation2 + $0xa8] sm:$0xff]
    %v2102 = vld [vmem:[#allocation2 + $0xb4] sm:$0xff]
    %v2103 = vpack.c.bf16 %v2100, %v2099
    %v2104 = vpack.c.bf16 %v2102, %v2101
    %v2105 = vld [vmem:[#allocation2 + $0xd8] sm:$0xff]
    %v2106 = vld [vmem:[#allocation2 + $0xe4] sm:$0xff]
    %v2107 = vld [vmem:[#allocation2 + $0xf0] sm:$0xff]
    %v2108 = vld [vmem:[#allocation2 + $0xfc] sm:$0xff]
    %v2109 = vpack.c.bf16 %v2106, %v2105
    %v2110 = vpack.c.bf16 %v2108, %v2107
    %v2111 = vld [vmem:[#allocation2 + $0x92] sm:$0xff]
    %v2112 = vld [vmem:[#allocation2 + $0x9e] sm:$0xff]
    %v2113 = vld [vmem:[#allocation2 + $0xaa] sm:$0xff]
    %v2114 = vld [vmem:[#allocation2 + $0xb6] sm:$0xff]
    %v2115 = vpack.c.bf16 %v2112, %v2111
    %v2116 = vpack.c.bf16 %v2114, %v2113
    %v2117 = vld [vmem:[#allocation2 + $0xda] sm:$0xff]
    %v2118 = vld [vmem:[#allocation2 + $0xe6] sm:$0xff]
    %v2119 = vld [vmem:[#allocation2 + $0xf2] sm:$0xff]
    %v2120 = vld [vmem:[#allocation2 + $0xfe] sm:$0xff]
    %v2121 = vpack.c.bf16 %v2118, %v2117
    %v2122 = vpack.c.bf16 %v2120, %v2119
    %v2123 = vld [vmem:[#allocation2 + $0x94] sm:$0xff]
    %v2124 = vld [vmem:[#allocation2 + $0xa0] sm:$0xff]
    %v2125 = vld [vmem:[#allocation2 + $0xac] sm:$0xff]
    %v2126 = vld [vmem:[#allocation2 + $0xb8] sm:$0xff]
    %v2127 = vpack.c.bf16 %v2124, %v2123
    %v2128 = vpack.c.bf16 %v2126, %v2125
    %v2129 = vld [vmem:[#allocation2 + $0x30] sm:$0xff]
    %v2130 = vpack.c.bf16 %v2071, %v2070
    %v2131 = vpack.c.bf16 %v2129, %v2072
    %v2132 = vld [vmem:[#allocation2 + $0x78] sm:$0xff]
    %v2133 = vpack.c.bf16 %v2077, %v2076
    %v2134 = vpack.c.bf16 %v2132, %v2078
    %v2135 = vld [vmem:[#allocation2 + $0x32] sm:$0xff]
    %v2136 = vpack.c.bf16 %v2083, %v2082
    %v2137 = vpack.c.bf16 %v2135, %v2084
    %v2138 = vld [vmem:[#allocation2 + $0x7a] sm:$0xff]
    %v2139 = vpack.c.bf16 %v2089, %v2088
    %v2140 = vpack.c.bf16 %v2138, %v2090
    %v2141 = vld [vmem:[#allocation2 + $0x34] sm:$0xff]
    %v2142 = vpack.c.bf16 %v2095, %v2094
    %v2143 = vpack.c.bf16 %v2141, %v2096
    %v2144 = vld [vmem:[#allocation2 + $0xc0] sm:$0xff]
    %v2145 = vpack.c.bf16 %v2101, %v2100
    %v2146 = vpack.c.bf16 %v2144, %v2102
    %v2147 = vld [vmem:[#allocation2 + $0x108] sm:$0xff]
    %v2148 = vpack.c.bf16 %v2107, %v2106
    %v2149 = vpack.c.bf16 %v2147, %v2108
    %v2150 = vld [vmem:[#allocation2 + $0xc2] sm:$0xff]
    %v2151 = vpack.c.bf16 %v2113, %v2112
    %v2152 = vpack.c.bf16 %v2150, %v2114
    %v2153 = vld [vmem:[#allocation2 + $0x10a] sm:$0xff]
    %v2154 = vpack.c.bf16 %v2119, %v2118
    %v2155 = vpack.c.bf16 %v2153, %v2120
    %v2156 = vld [vmem:[#allocation2 + $0xc4] sm:$0xff]
    %v2157 = vpack.c.bf16 %v2125, %v2124
    %v2158 = vpack.c.bf16 %v2156, %v2126
    %v2159 = vld [vmem:[#allocation2 + $0x3c] sm:$0xff]
    %v2160 = vpack.c.bf16 %v2159, %v2129
    %v2161 = vld [vmem:[#allocation2 + $0x84] sm:$0xff]
    %v2162 = vpack.c.bf16 %v2161, %v2132
    %v2163 = vld [vmem:[#allocation2 + $0x3e] sm:$0xff]
    %v2164 = vpack.c.bf16 %v2163, %v2135
    %v2165 = vld [vmem:[#allocation2 + $0x86] sm:$0xff]
    %v2166 = vpack.c.bf16 %v2165, %v2138
    %v2167 = vld [vmem:[#allocation2 + $0x40] sm:$0xff]
    %v2168 = vpack.c.bf16 %v2167, %v2141
    %v2569 = vunpack.c.l.b16 %v1669
    %v2570 = vunpack.c.l.b16 %v1670
    %v2571 = vunpack.c.l.b16 %v1671
    %v2572 = vunpack.c.l.b16 %v1672
    %v2573 = vunpack.c.l.b16 %v1673
    %v2574 = vunpack.c.l.b16 %v1674
    %v2575 = vunpack.c.l.b16 %v1675
    %v2576 = vunpack.c.l.b16 %v1676
    %v2577 = vunpack.c.l.b16 %v1677
    %v2578 = vunpack.c.l.b16 %v1678
    %v2579 = vunpack.c.l.b16 %v1679
    %v2580 = vunpack.c.l.b16 %v1680
    %v2581 = vunpack.c.l.b16 %v1681
    %v2582 = vunpack.c.l.b16 %v1682
    %v2583 = vunpack.c.l.b16 %v1683
    %v2584 = vunpack.c.l.b16 %v1684
    %v2585 = vunpack.c.l.b16 %v1685
    %v2586 = vunpack.c.l.b16 %v1686
    %v2587 = vunpack.c.l.b16 %v1687
    %v2588 = vunpack.c.l.b16 %v1688
    %v2589 = vunpack.c.l.b16 %v1689
    %v2590 = vunpack.c.l.b16 %v1690
    %v2591 = vunpack.c.l.b16 %v1691
    %v2592 = vunpack.c.l.b16 %v1692
    %v2593 = vunpack.c.l.b16 %v1693
    %v2594 = vunpack.c.l.b16 %v1694
    %v2595 = vunpack.c.l.b16 %v1695
    %v2596 = vunpack.c.l.b16 %v1696
    %v2597 = vunpack.c.l.b16 %v1697
    %v2598 = vunpack.c.l.b16 %v1698
    %v2599 = vunpack.c.l.b16 %v1699
    %v2600 = vunpack.c.l.b16 %v1700
    %v2601 = vunpack.c.l.b16 %v1701
    %v2602 = vunpack.c.l.b16 %v1702
    %v2603 = vunpack.c.l.b16 %v1703
    %v2604 = vunpack.c.l.b16 %v1704
    %v2605 = vunpack.c.l.b16 %v1705
    %v2606 = vunpack.c.l.b16 %v1706
    %v2607 = vunpack.c.l.b16 %v1707
    %v2608 = vunpack.c.l.b16 %v1708
    %v2609 = vunpack.c.l.b16 %v1709
    %v2610 = vunpack.c.l.b16 %v1710
    %v2611 = vunpack.c.l.b16 %v1711
    %v2612 = vunpack.c.l.b16 %v1712
    %v2613 = vunpack.c.l.b16 %v1713
    %v2614 = vunpack.c.l.b16 %v1714
    %v2615 = vunpack.c.l.b16 %v1715
    %v2616 = vunpack.c.l.b16 %v1716
    %v2617 = vunpack.c.l.b16 %v1717
    %v2618 = vunpack.c.l.b16 %v1718
    %v2619 = vunpack.c.l.b16 %v1719
    %v2620 = vunpack.c.l.b16 %v1720
    %v2621 = vunpack.c.l.b16 %v1721
    %v2622 = vunpack.c.l.b16 %v1722
    %v2623 = vunpack.c.l.b16 %v1723
    %v2624 = vunpack.c.l.b16 %v1724
    %v2625 = vunpack.c.l.b16 %v1725
    %v2626 = vunpack.c.l.b16 %v1726
    %v2627 = vunpack.c.l.b16 %v1727
    %v2628 = vunpack.c.l.b16 %v1728
    %v2629 = vunpack.c.l.b16 %v1729
    %v2630 = vunpack.c.l.b16 %v1730
    %v2631 = vunpack.c.l.b16 %v1731
    %v2632 = vunpack.c.l.b16 %v1732
    %v2633 = vunpack.c.l.b16 %v1733
    %v2634 = vunpack.c.l.b16 %v1734
    %v2635 = vunpack.c.l.b16 %v1735
    %v2636 = vunpack.c.l.b16 %v1736
    %v2637 = vunpack.c.l.b16 %v1737
    %v2638 = vunpack.c.l.b16 %v1738
    %v2639 = vunpack.c.l.b16 %v1739
    %v2640 = vunpack.c.l.b16 %v1740
    %v2641 = vunpack.c.l.b16 %v1741
    %v2642 = vunpack.c.l.b16 %v1742
    %v2643 = vunpack.c.l.b16 %v1743
    %v2644 = vunpack.c.l.b16 %v1744
    %v2645 = vunpack.c.l.b16 %v1745
    %v2646 = vunpack.c.l.b16 %v1746
    %v2647 = vunpack.c.l.b16 %v1747
    %v2648 = vunpack.c.l.b16 %v1748
    %v2649 = vunpack.c.l.b16 %v1749
    %v2650 = vunpack.c.l.b16 %v1750
    %v2651 = vunpack.c.l.b16 %v1751
    %v2652 = vunpack.c.l.b16 %v1752
    %v2653 = vunpack.c.l.b16 %v1753
    %v2654 = vunpack.c.l.b16 %v1754
    %v2655 = vunpack.c.l.b16 %v1755
    %v2656 = vunpack.c.l.b16 %v1756
    %v2657 = vunpack.c.l.b16 %v1757
    %v2658 = vunpack.c.l.b16 %v1758
    %v2659 = vunpack.c.l.b16 %v1759
    %v2660 = vunpack.c.l.b16 %v1760
    %v2661 = vunpack.c.l.b16 %v1761
    %v2662 = vunpack.c.l.b16 %v1762
    %v2663 = vunpack.c.l.b16 %v1763
    %v2664 = vunpack.c.l.b16 %v1764
    %v2665 = vunpack.c.l.b16 %v1765
    %v2666 = vunpack.c.l.b16 %v1766
    %v2667 = vunpack.c.l.b16 %v1767
    %v2668 = vunpack.c.l.b16 %v1768
    %v2669 = vunpack.c.l.b16 %v1769
    %v2670 = vunpack.c.l.b16 %v1770
    %v2671 = vunpack.c.l.b16 %v1771
    %v2672 = vunpack.c.l.b16 %v1772
    %v2673 = vunpack.c.l.b16 %v1773
    %v2674 = vunpack.c.l.b16 %v1774
    %v2675 = vunpack.c.l.b16 %v1775
    %v2676 = vunpack.c.l.b16 %v1776
    %v2677 = vunpack.c.l.b16 %v1777
    %v2678 = vunpack.c.l.b16 %v1778
    %v2679 = vunpack.c.l.b16 %v1779
    %v2680 = vunpack.c.l.b16 %v1780
    %v2681 = vunpack.c.l.b16 %v1781
    %v2682 = vunpack.c.l.b16 %v1782
    %v2683 = vunpack.c.l.b16 %v1783
    %v2684 = vunpack.c.l.b16 %v1784
    %v2685 = vunpack.c.l.b16 %v1785
    %v2686 = vunpack.c.l.b16 %v1786
    %v2687 = vunpack.c.l.b16 %v1787
    %v2688 = vunpack.c.l.b16 %v1788
    %v2689 = vunpack.c.l.b16 %v1789
    %v2690 = vunpack.c.l.b16 %v1790
    %v2691 = vunpack.c.l.b16 %v1791
    %v2692 = vunpack.c.l.b16 %v1792
    %v2693 = vunpack.c.l.b16 %v1793
    %v2694 = vunpack.c.l.b16 %v1794
    %v2695 = vunpack.c.l.b16 %v1795
    %v2696 = vunpack.c.l.b16 %v1796
    %v2697 = vunpack.c.l.b16 %v1797
    %v2698 = vunpack.c.l.b16 %v1798
    %v2699 = vunpack.c.l.b16 %v1799
    %v2700 = vunpack.c.l.b16 %v1800
    %v2701 = vunpack.c.l.b16 %v1801
    %v2702 = vunpack.c.l.b16 %v1802
    %v2703 = vunpack.c.l.b16 %v1803
    %v2704 = vunpack.c.l.b16 %v1804
    %v2705 = vunpack.c.l.b16 %v1805
    %v2706 = vunpack.c.l.b16 %v1806
    %v2707 = vunpack.c.l.b16 %v1807
    %v2708 = vunpack.c.l.b16 %v1808
    %v2709 = vunpack.c.l.b16 %v1809
    %v2710 = vunpack.c.l.b16 %v1810
    %v2711 = vunpack.c.l.b16 %v1811
    %v2712 = vunpack.c.l.b16 %v1812
    %v2713 = vunpack.c.l.b16 %v1813
    %v2714 = vunpack.c.l.b16 %v1814
    %v2715 = vunpack.c.l.b16 %v1815
    %v2716 = vunpack.c.l.b16 %v1816
    %v2717 = vunpack.c.l.b16 %v1817
    %v2718 = vunpack.c.l.b16 %v1818
    %v2719 = vunpack.c.l.b16 %v1819
    %v2720 = vunpack.c.l.b16 %v1820
    %v2721 = vunpack.c.l.b16 %v1821
    %v2722 = vunpack.c.l.b16 %v1822
    %v2723 = vunpack.c.l.b16 %v1823
    %v2724 = vunpack.c.l.b16 %v1824
    %v2725 = vunpack.c.l.b16 %v1825
    %v2726 = vunpack.c.l.b16 %v1826
    %v2727 = vunpack.c.l.b16 %v1827
    %v2728 = vunpack.c.l.b16 %v1828
    %v2729 = vunpack.c.l.b16 %v1829
    %v2730 = vunpack.c.l.b16 %v1830
    %v2731 = vunpack.c.l.b16 %v1831
    %v2732 = vunpack.c.l.b16 %v1832
    %v2733 = vunpack.c.l.b16 %v1833
    %v2734 = vunpack.c.l.b16 %v1834
    %v2735 = vunpack.c.l.b16 %v1835
    %v2736 = vunpack.c.l.b16 %v1836
    %v2737 = vunpack.c.l.b16 %v1837
    %v2738 = vunpack.c.l.b16 %v1838
    %v2739 = vunpack.c.l.b16 %v1839
    %v2740 = vunpack.c.l.b16 %v1840
    %v2741 = vunpack.c.l.b16 %v1841
    %v2742 = vunpack.c.l.b16 %v1842
    %v2743 = vunpack.c.l.b16 %v1843
    %v2744 = vunpack.c.l.b16 %v1844
    %v2745 = vunpack.c.l.b16 %v1845
    %v2746 = vunpack.c.l.b16 %v1846
    %v2747 = vunpack.c.l.b16 %v1847
    %v2748 = vunpack.c.l.b16 %v1848
    %v2749 = vunpack.c.l.b16 %v1849
    %v2750 = vunpack.c.l.b16 %v1850
    %v2751 = vunpack.c.l.b16 %v1851
    %v2752 = vunpack.c.l.b16 %v1852
    %v2753 = vunpack.c.l.b16 %v1853
    %v2754 = vunpack.c.l.b16 %v1854
    %v2755 = vunpack.c.l.b16 %v1855
    %v2756 = vunpack.c.l.b16 %v1856
    %v2757 = vunpack.c.l.b16 %v1857
    %v2758 = vunpack.c.l.b16 %v1858
    %v2759 = vunpack.c.l.b16 %v1859
    %v2760 = vunpack.c.l.b16 %v1860
    %v2761 = vunpack.c.l.b16 %v1861
    %v2762 = vunpack.c.l.b16 %v1862
    %v2763 = vunpack.c.l.b16 %v1863
    %v2764 = vunpack.c.l.b16 %v1864
    %v2765 = vunpack.c.l.b16 %v1865
    %v2766 = vunpack.c.l.b16 %v1866
    %v2767 = vunpack.c.l.b16 %v1867
    %v2768 = vunpack.c.l.b16 %v1868
    %v2769 = vunpack.c.l.b16 %v1869
    %v2770 = vunpack.c.l.b16 %v1870
    %v2771 = vunpack.c.l.b16 %v1871
    %v2772 = vunpack.c.l.b16 %v1872
    %v2773 = vunpack.c.l.b16 %v1873
    %v2774 = vunpack.c.l.b16 %v1874
    %v2775 = vunpack.c.l.b16 %v1875
    %v2776 = vunpack.c.l.b16 %v1876
    %v2777 = vunpack.c.l.b16 %v1877
    %v2778 = vunpack.c.l.b16 %v1878
    %v2779 = vunpack.c.l.b16 %v1879
    %v2780 = vunpack.c.l.b16 %v1880
    %v2781 = vunpack.c.l.b16 %v1881
    %v2782 = vunpack.c.l.b16 %v1882
    %v2783 = vunpack.c.l.b16 %v1883
    %v2784 = vunpack.c.l.b16 %v1884
    %v2785 = vunpack.c.l.b16 %v1885
    %v2786 = vunpack.c.l.b16 %v1886
    %v2787 = vunpack.c.l.b16 %v1887
    %v2788 = vunpack.c.l.b16 %v1888
    %v2789 = vunpack.c.l.b16 %v1889
    %v2790 = vunpack.c.l.b16 %v1890
    %v2791 = vunpack.c.l.b16 %v1891
    %v2792 = vunpack.c.l.b16 %v1892
    %v2793 = vunpack.c.l.b16 %v1893
    %v2794 = vunpack.c.l.b16 %v1894
    %v2795 = vunpack.c.l.b16 %v1895
    %v2796 = vunpack.c.l.b16 %v1896
    %v2797 = vunpack.c.l.b16 %v1897
    %v2798 = vunpack.c.l.b16 %v1898
    %v2799 = vunpack.c.l.b16 %v1899
    %v2800 = vunpack.c.l.b16 %v1900
    %v2801 = vunpack.c.l.b16 %v1901
    %v2802 = vunpack.c.l.b16 %v1902
    %v2803 = vunpack.c.l.b16 %v1903
    %v2804 = vunpack.c.l.b16 %v1904
    %v2805 = vunpack.c.l.b16 %v1905
    %v2806 = vunpack.c.l.b16 %v1906
    %v2807 = vunpack.c.l.b16 %v1907
    %v2808 = vunpack.c.l.b16 %v1908
    %v2809 = vunpack.c.l.b16 %v1909
    %v2810 = vunpack.c.l.b16 %v1910
    %v2811 = vunpack.c.l.b16 %v1911
    %v2812 = vunpack.c.l.b16 %v1912
    %v2813 = vunpack.c.l.b16 %v1913
    %v2814 = vunpack.c.l.b16 %v1914
    %v2815 = vunpack.c.l.b16 %v1915
    %v2816 = vunpack.c.l.b16 %v1916
    %v2817 = vunpack.c.l.b16 %v1917
    %v2818 = vunpack.c.l.b16 %v1918
    %v2819 = vunpack.c.l.b16 %v1919
    %v2820 = vunpack.c.l.b16 %v1920
    %v2821 = vunpack.c.l.b16 %v1921
    %v2822 = vunpack.c.l.b16 %v1922
    %v2823 = vunpack.c.l.b16 %v1923
    %v2824 = vunpack.c.l.b16 %v1924
    %v2825 = vunpack.c.l.b16 %v1925
    %v2826 = vunpack.c.l.b16 %v1926
    %v2827 = vunpack.c.l.b16 %v1927
    %v2828 = vunpack.c.l.b16 %v1928
    %v2829 = vunpack.c.l.b16 %v1929
    %v2830 = vunpack.c.l.b16 %v1930
    %v2831 = vunpack.c.l.b16 %v1931
    %v2832 = vunpack.c.l.b16 %v1932
    %v2833 = vunpack.c.l.b16 %v1933
    %v2834 = vunpack.c.l.b16 %v1934
    %v2835 = vunpack.c.l.b16 %v1935
    %v2836 = vunpack.c.l.b16 %v1936
    %v2837 = vunpack.c.l.b16 %v1937
    %v2838 = vunpack.c.l.b16 %v1938
    %v2839 = vunpack.c.l.b16 %v1939
    %v2840 = vunpack.c.l.b16 %v1940
    %v2841 = vunpack.c.l.b16 %v1941
    %v2842 = vunpack.c.l.b16 %v1942
    %v2843 = vunpack.c.l.b16 %v1943
    %v2844 = vunpack.c.l.b16 %v1944
    %v2845 = vunpack.c.l.b16 %v1945
    %v2846 = vunpack.c.l.b16 %v1946
    %v2847 = vunpack.c.l.b16 %v1947
    %v2848 = vunpack.c.l.b16 %v1948
    %v2849 = vunpack.c.l.b16 %v1949
    %v2850 = vunpack.c.l.b16 %v1950
    %v2851 = vunpack.c.l.b16 %v1951
    %v2852 = vunpack.c.l.b16 %v1952
    %v2853 = vunpack.c.l.b16 %v1953
    %v2854 = vunpack.c.l.b16 %v1954
    %v2855 = vunpack.c.l.b16 %v1955
    %v2856 = vunpack.c.l.b16 %v1956
    %v2857 = vunpack.c.l.b16 %v1957
    %v2858 = vunpack.c.l.b16 %v1958
    %v2859 = vunpack.c.l.b16 %v1959
    %v2860 = vunpack.c.l.b16 %v1960
    %v2861 = vunpack.c.l.b16 %v1961
    %v2862 = vunpack.c.l.b16 %v1962
    %v2863 = vunpack.c.l.b16 %v1963
    %v2864 = vunpack.c.l.b16 %v1964
    %v2865 = vunpack.c.l.b16 %v1965
    %v2866 = vunpack.c.l.b16 %v1966
    %v2867 = vunpack.c.l.b16 %v1967
    %v2868 = vunpack.c.l.b16 %v1968
    %v2869 = vunpack.c.l.b16 %v1969
    %v2870 = vunpack.c.l.b16 %v1970
    %v2871 = vunpack.c.l.b16 %v1971
    %v2872 = vunpack.c.l.b16 %v1972
    %v2873 = vunpack.c.l.b16 %v1973
    %v2874 = vunpack.c.l.b16 %v1974
    %v2875 = vunpack.c.l.b16 %v1975
    %v2876 = vunpack.c.l.b16 %v1976
    %v2877 = vunpack.c.l.b16 %v1977
    %v2878 = vunpack.c.l.b16 %v1978
    %v2879 = vunpack.c.l.b16 %v1979
    %v2880 = vunpack.c.l.b16 %v1980
    %v2881 = vunpack.c.l.b16 %v1981
    %v2882 = vunpack.c.l.b16 %v1982
    %v2883 = vunpack.c.l.b16 %v1983
    %v2884 = vunpack.c.l.b16 %v1984
    %v2885 = vunpack.c.l.b16 %v1985
    %v2886 = vunpack.c.l.b16 %v1986
    %v2887 = vunpack.c.l.b16 %v1987
    %v2888 = vunpack.c.l.b16 %v1988
    %v2889 = vunpack.c.l.b16 %v1989
    %v2890 = vunpack.c.l.b16 %v1990
    %v2891 = vunpack.c.l.b16 %v1991
    %v2892 = vunpack.c.l.b16 %v1992
    %v2893 = vunpack.c.l.b16 %v1993
    %v2894 = vunpack.c.l.b16 %v1994
    %v2895 = vunpack.c.l.b16 %v1995
    %v2896 = vunpack.c.l.b16 %v1996
    %v2897 = vunpack.c.l.b16 %v1997
    %v2898 = vunpack.c.l.b16 %v1998
    %v2899 = vunpack.c.l.b16 %v1999
    %v2900 = vunpack.c.l.b16 %v2000
    %v2901 = vunpack.c.l.b16 %v2001
    %v2902 = vunpack.c.l.b16 %v2002
    %v2903 = vunpack.c.l.b16 %v2003
    %v2904 = vunpack.c.l.b16 %v2004
    %v2905 = vunpack.c.l.b16 %v2005
    %v2906 = vunpack.c.l.b16 %v2006
    %v2907 = vunpack.c.l.b16 %v2007
    %v2908 = vunpack.c.l.b16 %v2008
    %v2909 = vunpack.c.l.b16 %v2009
    %v2910 = vunpack.c.l.b16 %v2010
    %v2911 = vunpack.c.l.b16 %v2011
    %v2912 = vunpack.c.l.b16 %v2012
    %v2913 = vunpack.c.l.b16 %v2013
    %v2914 = vunpack.c.l.b16 %v2014
    %v2915 = vunpack.c.l.b16 %v2015
    %v2916 = vunpack.c.l.b16 %v2016
    %v2917 = vunpack.c.l.b16 %v2017
    %v2918 = vunpack.c.l.b16 %v2018
    %v2919 = vunpack.c.l.b16 %v2019
    %v2920 = vunpack.c.l.b16 %v2020
    %v2921 = vunpack.c.l.b16 %v2021
    %v2922 = vunpack.c.l.b16 %v2022
    %v2923 = vunpack.c.l.b16 %v2023
    %v2924 = vunpack.c.l.b16 %v2024
    %v2925 = vunpack.c.l.b16 %v2025
    %v2926 = vunpack.c.l.b16 %v2026
    %v2927 = vunpack.c.l.b16 %v2027
    %v2928 = vunpack.c.l.b16 %v2028
    %v2929 = vunpack.c.l.b16 %v2029
    %v2930 = vunpack.c.l.b16 %v2030
    %v2931 = vunpack.c.l.b16 %v2031
    %v2932 = vunpack.c.l.b16 %v2032
    %v2933 = vunpack.c.l.b16 %v2033
    %v2934 = vunpack.c.l.b16 %v2034
    %v2935 = vunpack.c.l.b16 %v2035
    %v2936 = vunpack.c.l.b16 %v2036
    %v2937 = vunpack.c.l.b16 %v2037
    %v2938 = vunpack.c.l.b16 %v2038
    %v2939 = vunpack.c.l.b16 %v2039
    %v2940 = vunpack.c.l.b16 %v2040
    %v2941 = vunpack.c.l.b16 %v2041
    %v2942 = vunpack.c.l.b16 %v2042
    %v2943 = vunpack.c.l.b16 %v2043
    %v2944 = vunpack.c.l.b16 %v2044
    %v2945 = vunpack.c.l.b16 %v2045
    %v2946 = vunpack.c.l.b16 %v2046
    %v2947 = vunpack.c.l.b16 %v2047
    %v2948 = vunpack.c.l.b16 %v2048
    %v2949 = vunpack.c.l.b16 %v2049
    %v2950 = vunpack.c.l.b16 %v2050
    %v2951 = vunpack.c.l.b16 %v2051
    %v2952 = vunpack.c.l.b16 %v2052
    %v2953 = vunpack.c.l.b16 %v2053
    %v2954 = vunpack.c.l.b16 %v2054
    %v2955 = vunpack.c.l.b16 %v2055
    %v2956 = vunpack.c.l.b16 %v2056
    %v2957 = vunpack.c.l.b16 %v2057
    %v2958 = vunpack.c.l.b16 %v2058
    %v2959 = vunpack.c.l.b16 %v2059
    %v2960 = vunpack.c.l.b16 %v2060
    %v2961 = vunpack.c.l.b16 %v2061
    %v2962 = vunpack.c.l.b16 %v2062
    %v2963 = vunpack.c.l.b16 %v2063
    %v2964 = vunpack.c.l.b16 %v2064
    %v2965 = vunpack.c.l.b16 %v2065
    %v2966 = vunpack.c.l.b16 %v2066
    %v2967 = vunpack.c.l.b16 %v2067
    %v2968 = vunpack.c.l.b16 %v2068
    %v2969 = vpack.c.b16 %v2570, %v2569
    %v2970 = vpack.c.b16 %v2572, %v2571
    %v2971 = vpack.c.b16 %v2574, %v2573
    %v2972 = vpack.c.b16 %v2576, %v2575
    %v2973 = vpack.c.b16 %v2578, %v2577
    %v2974 = vpack.c.b16 %v2580, %v2579
    %v2975 = vpack.c.b16 %v2582, %v2581
    %v2976 = vpack.c.b16 %v2584, %v2583
    %v2977 = vpack.c.b16 %v2586, %v2585
    %v2978 = vpack.c.b16 %v2588, %v2587
    %v2979 = vpack.c.b16 %v2590, %v2589
    %v2980 = vpack.c.b16 %v2592, %v2591
    %v2981 = vpack.c.b16 %v2594, %v2593
    %v2982 = vpack.c.b16 %v2596, %v2595
    %v2983 = vpack.c.b16 %v2598, %v2597
    %v2984 = vpack.c.b16 %v2600, %v2599
    %v2985 = vpack.c.b16 %v2602, %v2601
    %v2986 = vpack.c.b16 %v2604, %v2603
    %v2987 = vpack.c.b16 %v2606, %v2605
    %v2988 = vpack.c.b16 %v2608, %v2607
    %v2989 = vpack.c.b16 %v2610, %v2609
    %v2990 = vpack.c.b16 %v2612, %v2611
    %v2991 = vpack.c.b16 %v2614, %v2613
    %v2992 = vpack.c.b16 %v2616, %v2615
    %v2993 = vpack.c.b16 %v2618, %v2617
    %v2994 = vpack.c.b16 %v2620, %v2619
    %v2995 = vpack.c.b16 %v2622, %v2621
    %v2996 = vpack.c.b16 %v2624, %v2623
    %v2997 = vpack.c.b16 %v2626, %v2625
    %v2998 = vpack.c.b16 %v2628, %v2627
    %v2999 = vpack.c.b16 %v2630, %v2629
    %v3000 = vpack.c.b16 %v2632, %v2631
    %v3001 = vpack.c.b16 %v2634, %v2633
    %v3002 = vpack.c.b16 %v2636, %v2635
    %v3003 = vpack.c.b16 %v2638, %v2637
    %v3004 = vpack.c.b16 %v2640, %v2639
    %v3005 = vpack.c.b16 %v2642, %v2641
    %v3006 = vpack.c.b16 %v2644, %v2643
    %v3007 = vpack.c.b16 %v2646, %v2645
    %v3008 = vpack.c.b16 %v2648, %v2647
    %v3009 = vpack.c.b16 %v2650, %v2649
    %v3010 = vpack.c.b16 %v2652, %v2651
    %v3011 = vpack.c.b16 %v2654, %v2653
    %v3012 = vpack.c.b16 %v2656, %v2655
    %v3013 = vpack.c.b16 %v2658, %v2657
    %v3014 = vpack.c.b16 %v2660, %v2659
    %v3015 = vpack.c.b16 %v2662, %v2661
    %v3016 = vpack.c.b16 %v2664, %v2663
    %v3017 = vpack.c.b16 %v2666, %v2665
    %v3018 = vpack.c.b16 %v2668, %v2667
    %v3019 = vpack.c.b16 %v2670, %v2669
    %v3020 = vpack.c.b16 %v2672, %v2671
    %v3021 = vpack.c.b16 %v2674, %v2673
    %v3022 = vpack.c.b16 %v2676, %v2675
    %v3023 = vpack.c.b16 %v2678, %v2677
    %v3024 = vpack.c.b16 %v2680, %v2679
    %v3025 = vpack.c.b16 %v2682, %v2681
    %v3026 = vpack.c.b16 %v2684, %v2683
    %v3027 = vpack.c.b16 %v2686, %v2685
    %v3028 = vpack.c.b16 %v2688, %v2687
    %v3029 = vpack.c.b16 %v2690, %v2689
    %v3030 = vpack.c.b16 %v2692, %v2691
    %v3031 = vpack.c.b16 %v2694, %v2693
    %v3032 = vpack.c.b16 %v2696, %v2695
    %v3033 = vpack.c.b16 %v2698, %v2697
    %v3034 = vpack.c.b16 %v2700, %v2699
    %v3035 = vpack.c.b16 %v2702, %v2701
    %v3036 = vpack.c.b16 %v2704, %v2703
    %v3037 = vpack.c.b16 %v2706, %v2705
    %v3038 = vpack.c.b16 %v2708, %v2707
    %v3039 = vpack.c.b16 %v2710, %v2709
    %v3040 = vpack.c.b16 %v2712, %v2711
    %v3041 = vpack.c.b16 %v2714, %v2713
    %v3042 = vpack.c.b16 %v2716, %v2715
    %v3043 = vpack.c.b16 %v2718, %v2717
    %v3044 = vpack.c.b16 %v2720, %v2719
    %v3045 = vpack.c.b16 %v2722, %v2721
    %v3046 = vpack.c.b16 %v2724, %v2723
    %v3047 = vpack.c.b16 %v2726, %v2725
    %v3048 = vpack.c.b16 %v2728, %v2727
    %v3049 = vpack.c.b16 %v2730, %v2729
    %v3050 = vpack.c.b16 %v2732, %v2731
    %v3051 = vpack.c.b16 %v2734, %v2733
    %v3052 = vpack.c.b16 %v2736, %v2735
    %v3053 = vpack.c.b16 %v2738, %v2737
    %v3054 = vpack.c.b16 %v2740, %v2739
    %v3055 = vpack.c.b16 %v2742, %v2741
    %v3056 = vpack.c.b16 %v2744, %v2743
    %v3057 = vpack.c.b16 %v2746, %v2745
    %v3058 = vpack.c.b16 %v2748, %v2747
    %v3059 = vpack.c.b16 %v2750, %v2749
    %v3060 = vpack.c.b16 %v2752, %v2751
    %v3061 = vpack.c.b16 %v2754, %v2753
    %v3062 = vpack.c.b16 %v2756, %v2755
    %v3063 = vpack.c.b16 %v2758, %v2757
    %v3064 = vpack.c.b16 %v2760, %v2759
    %v3065 = vpack.c.b16 %v2762, %v2761
    %v3066 = vpack.c.b16 %v2764, %v2763
    %v3067 = vpack.c.b16 %v2766, %v2765
    %v3068 = vpack.c.b16 %v2768, %v2767
    %v3069 = vpack.c.b16 %v2770, %v2769
    %v3070 = vpack.c.b16 %v2772, %v2771
    %v3071 = vpack.c.b16 %v2774, %v2773
    %v3072 = vpack.c.b16 %v2776, %v2775
    %v3073 = vpack.c.b16 %v2778, %v2777
    %v3074 = vpack.c.b16 %v2780, %v2779
    %v3075 = vpack.c.b16 %v2782, %v2781
    %v3076 = vpack.c.b16 %v2784, %v2783
    %v3077 = vpack.c.b16 %v2786, %v2785
    %v3078 = vpack.c.b16 %v2788, %v2787
    %v3079 = vpack.c.b16 %v2790, %v2789
    %v3080 = vpack.c.b16 %v2792, %v2791
    %v3081 = vpack.c.b16 %v2794, %v2793
    %v3082 = vpack.c.b16 %v2796, %v2795
    %v3083 = vpack.c.b16 %v2798, %v2797
    %v3084 = vpack.c.b16 %v2800, %v2799
    %v3085 = vpack.c.b16 %v2802, %v2801
    %v3086 = vpack.c.b16 %v2804, %v2803
    %v3087 = vpack.c.b16 %v2806, %v2805
    %v3088 = vpack.c.b16 %v2808, %v2807
    %v3089 = vpack.c.b16 %v2810, %v2809
    %v3090 = vpack.c.b16 %v2812, %v2811
    %v3091 = vpack.c.b16 %v2814, %v2813
    %v3092 = vpack.c.b16 %v2816, %v2815
    %v3093 = vpack.c.b16 %v2818, %v2817
    %v3094 = vpack.c.b16 %v2820, %v2819
    %v3095 = vpack.c.b16 %v2822, %v2821
    %v3096 = vpack.c.b16 %v2824, %v2823
    %v3097 = vpack.c.b16 %v2826, %v2825
    %v3098 = vpack.c.b16 %v2828, %v2827
    %v3099 = vpack.c.b16 %v2830, %v2829
    %v3100 = vpack.c.b16 %v2832, %v2831
    %v3101 = vpack.c.b16 %v2834, %v2833
    %v3102 = vpack.c.b16 %v2836, %v2835
    %v3103 = vpack.c.b16 %v2838, %v2837
    %v3104 = vpack.c.b16 %v2840, %v2839
    %v3105 = vpack.c.b16 %v2842, %v2841
    %v3106 = vpack.c.b16 %v2844, %v2843
    %v3107 = vpack.c.b16 %v2846, %v2845
    %v3108 = vpack.c.b16 %v2848, %v2847
    %v3109 = vpack.c.b16 %v2850, %v2849
    %v3110 = vpack.c.b16 %v2852, %v2851
    %v3111 = vpack.c.b16 %v2854, %v2853
    %v3112 = vpack.c.b16 %v2856, %v2855
    %v3113 = vpack.c.b16 %v2858, %v2857
    %v3114 = vpack.c.b16 %v2860, %v2859
    %v3115 = vpack.c.b16 %v2862, %v2861
    %v3116 = vpack.c.b16 %v2864, %v2863
    %v3117 = vpack.c.b16 %v2866, %v2865
    %v3118 = vpack.c.b16 %v2868, %v2867
    %v3119 = vpack.c.b16 %v2870, %v2869
    %v3120 = vpack.c.b16 %v2872, %v2871
    %v3121 = vpack.c.b16 %v2874, %v2873
    %v3122 = vpack.c.b16 %v2876, %v2875
    %v3123 = vpack.c.b16 %v2878, %v2877
    %v3124 = vpack.c.b16 %v2880, %v2879
    %v3125 = vpack.c.b16 %v2882, %v2881
    %v3126 = vpack.c.b16 %v2884, %v2883
    %v3127 = vpack.c.b16 %v2886, %v2885
    %v3128 = vpack.c.b16 %v2888, %v2887
    %v3129 = vpack.c.b16 %v2890, %v2889
    %v3130 = vpack.c.b16 %v2892, %v2891
    %v3131 = vpack.c.b16 %v2894, %v2893
    %v3132 = vpack.c.b16 %v2896, %v2895
    %v3133 = vpack.c.b16 %v2898, %v2897
    %v3134 = vpack.c.b16 %v2900, %v2899
    %v3135 = vpack.c.b16 %v2902, %v2901
    %v3136 = vpack.c.b16 %v2904, %v2903
    %v3137 = vpack.c.b16 %v2906, %v2905
    %v3138 = vpack.c.b16 %v2908, %v2907
    %v3139 = vpack.c.b16 %v2910, %v2909
    %v3140 = vpack.c.b16 %v2912, %v2911
    %v3141 = vpack.c.b16 %v2914, %v2913
    %v3142 = vpack.c.b16 %v2916, %v2915
    %v3143 = vpack.c.b16 %v2918, %v2917
    %v3144 = vpack.c.b16 %v2920, %v2919
    %v3145 = vpack.c.b16 %v2922, %v2921
    %v3146 = vpack.c.b16 %v2924, %v2923
    %v3147 = vpack.c.b16 %v2926, %v2925
    %v3148 = vpack.c.b16 %v2928, %v2927
    %v3149 = vpack.c.b16 %v2930, %v2929
    %v3150 = vpack.c.b16 %v2932, %v2931
    %v3151 = vpack.c.b16 %v2934, %v2933
    %v3152 = vpack.c.b16 %v2936, %v2935
    %v3153 = vpack.c.b16 %v2938, %v2937
    %v3154 = vpack.c.b16 %v2940, %v2939
    %v3155 = vpack.c.b16 %v2942, %v2941
    %v3156 = vpack.c.b16 %v2944, %v2943
    %v3157 = vpack.c.b16 %v2946, %v2945
    %v3158 = vpack.c.b16 %v2948, %v2947
    %v3159 = vpack.c.b16 %v2950, %v2949
    %v3160 = vpack.c.b16 %v2952, %v2951
    %v3161 = vpack.c.b16 %v2954, %v2953
    %v3162 = vpack.c.b16 %v2956, %v2955
    %v3163 = vpack.c.b16 %v2958, %v2957
    %v3164 = vpack.c.b16 %v2960, %v2959
    %v3165 = vpack.c.b16 %v2962, %v2961
    %v3166 = vpack.c.b16 %v2964, %v2963
    %v3167 = vpack.c.b16 %v2966, %v2965
    %v3168 = vpack.c.b16 %v2968, %v2967
    %3369 = vmatprep.subr.bf16.mxu0 0
    %3370 = vmatpush1.bf16.msra.mxu0 %v2969
    %3371 = vmatprep.subr.bf16.mxu0 0
    %3372 = vmatpush1.bf16.msra.mxu0 %v2970
    %3373 = vmatprep.subr.bf16.mxu0 0
    %3374 = vmatpush1.bf16.msra.mxu0 %v2971
    %3375 = vmatprep.subr.bf16.mxu0 0
    %3376 = vmatpush1.bf16.msra.mxu0 %v2972
    %3377 = vmatprep.subr.bf16.mxu0 0
    %3378 = vmatpush1.bf16.msra.mxu0 %v2973
    %3379 = vmatprep.subr.bf16.mxu0 0
    %3380 = vmatpush1.bf16.msra.mxu0 %v2974
    %3381 = vmatprep.subr.bf16.mxu0 0
    %3382 = vmatpush1.bf16.msra.mxu0 %v2975
    %3383 = vmatprep.subr.bf16.mxu0 0
    %3384 = vmatpush1.bf16.msra.mxu0 %v2976
    %3385 = vmatprep.subr.bf16.mxu0 0
    %3386 = vmatpush1.bf16.msra.mxu0 %v2977
    %3387 = vmatprep.subr.bf16.mxu0 0
    %3388 = vmatpush1.bf16.msra.mxu0 %v2978
    %3389 = vmatprep.subr.bf16.mxu0 0
    %3390 = vmatpush1.bf16.msra.mxu0 %v2979
    %3391 = vmatprep.subr.bf16.mxu0 0
    %3392 = vmatpush1.bf16.msra.mxu0 %v2980
    %3393 = vmatprep.subr.bf16.mxu0 0
    %3394 = vmatpush1.bf16.msra.mxu0 %v2981
    %3395 = vmatprep.subr.bf16.mxu0 0
    %3396 = vmatpush1.bf16.msra.mxu0 %v2982
    %3397 = vmatprep.subr.bf16.mxu0 0
    %3398 = vmatpush1.bf16.msra.mxu0 %v2983
    %3399 = vmatprep.subr.bf16.mxu0 0
    %3400 = vmatpush1.bf16.msra.mxu0 %v2984
    %3401 = vmatprep.mubr.bf16.mxu0 %v2079
    %3402 = vmatmul.mubr.bf16.gmra.mrb[0].mxu0 %v2073
    %v3403 = vpop.f32.mrb[0].mxu0
    %v3404 = vadd.f32 0.0, %v3403
    %v3405 = vpop.f32.mrb[0].mxu0
    %v3406 = vpop.f32.mrb[0].mxu0
    %v3407 = vadd.f32 0.0, %v3406
    %v3408 = vpop.f32.mrb[0].mxu0
    %3409 = vmatprep.mubr.bf16.mxu0 %v2080
    %3410 = vmatmul.mubr.bf16.gmra.mrb[0].mxu0 %v2074
    %v3411 = vpop.f32.mrb[0].mxu0
    %v3412 = vadd.f32 0.0, %v3411
    %v3413 = vpop.f32.mrb[0].mxu0
    %v3414 = vpop.f32.mrb[0].mxu0
    %v3415 = vadd.f32 0.0, %v3414
    %v3416 = vpop.f32.mrb[0].mxu0
    %3417 = vdwg.mxu0
    %3418 = vmatprep.subr.bf16.mxu0 0
    %3419 = vmatpush1.bf16.msra.mxu0 %v2985
    %3420 = vmatprep.subr.bf16.mxu0 0
    %3421 = vmatpush1.bf16.msra.mxu0 %v2986
    %3422 = vmatprep.subr.bf16.mxu0 0
    %3423 = vmatpush1.bf16.msra.mxu0 %v2987
    %3424 = vmatprep.subr.bf16.mxu0 0
    %3425 = vmatpush1.bf16.msra.mxu0 %v2988
    %3426 = vmatprep.subr.bf16.mxu0 0
    %3427 = vmatpush1.bf16.msra.mxu0 %v2989
    %3428 = vmatprep.subr.bf16.mxu0 0
    %3429 = vmatpush1.bf16.msra.mxu0 %v2990
    %3430 = vmatprep.subr.bf16.mxu0 0
    %3431 = vmatpush1.bf16.msra.mxu0 %v2991
    %3432 = vmatprep.subr.bf16.mxu0 0
    %3433 = vmatpush1.bf16.msra.mxu0 %v2992
    %3434 = vmatprep.subr.bf16.mxu0 0
    %3435 = vmatpush1.bf16.msra.mxu0 %v2993
    %3436 = vmatprep.subr.bf16.mxu0 0
    %3437 = vmatpush1.bf16.msra.mxu0 %v2994
    %3438 = vmatprep.subr.bf16.mxu0 0
    %3439 = vmatpush1.bf16.msra.mxu0 %v2995
    %3440 = vmatprep.subr.bf16.mxu0 0
    %3441 = vmatpush1.bf16.msra.mxu0 %v2996
    %3442 = vmatprep.subr.bf16.mxu0 0
    %3443 = vmatpush1.bf16.msra.mxu0 %v2997
    %3444 = vmatprep.subr.bf16.mxu0 0
    %3445 = vmatpush1.bf16.msra.mxu0 %v2998
    %3446 = vmatprep.subr.bf16.mxu0 0
    %3447 = vmatpush1.bf16.msra.mxu0 %v2999
    %3448 = vmatprep.subr.bf16.mxu0 0
    %3449 = vmatpush1.bf16.msra.mxu0 %v3000
    %3450 = vmatprep.mubr.bf16.mxu0 %v2091
    %3451 = vmatmul.mubr.bf16.gmra.mrb[0].mxu0 %v2085
    %v3452 = vpop.f32.mrb[0].mxu0
    %v3453 = vadd.f32 %v3404, %v3452
    %v3454 = vpop.f32.mrb[0].mxu0
    %v3455 = vpop.f32.mrb[0].mxu0
    %v3456 = vadd.f32 %v3407, %v3455
    %v3457 = vpop.f32.mrb[0].mxu0
    %3458 = vmatprep.mubr.bf16.mxu0 %v2092
    %3459 = vmatmul.mubr.bf16.gmra.mrb[0].mxu0 %v2086
    %v3460 = vpop.f32.mrb[0].mxu0
    %v3461 = vadd.f32 %v3412, %v3460
    %v3462 = vpop.f32.mrb[0].mxu0
    %v3463 = vpop.f32.mrb[0].mxu0
    %v3464 = vadd.f32 %v3415, %v3463
    %v3465 = vpop.f32.mrb[0].mxu0
    %3466 = vdwg.mxu0
    %3467 = vmatprep.subr.bf16.mxu0 0
    %3468 = vmatpush1.bf16.msra.mxu0 %v3001
    %3469 = vmatprep.subr.bf16.mxu0 0
    %3470 = vmatpush1.bf16.msra.mxu0 %v3002
    %3471 = vmatprep.subr.bf16.mxu0 0
    %3472 = vmatpush1.bf16.msra.mxu0 %v3003
    %3473 = vmatprep.subr.bf16.mxu0 0
    %3474 = vmatpush1.bf16.msra.mxu0 %v3004
    %3475 = vmatprep.subr.bf16.mxu0 0
    %3476 = vmatpush1.bf16.msra.mxu0 %v3005
    %3477 = vmatprep.subr.bf16.mxu0 0
    %3478 = vmatpush1.bf16.msra.mxu0 %v3006
    %3479 = vmatprep.subr.bf16.mxu0 0
    %3480 = vmatpush1.bf16.msra.mxu0 %v3007
    %3481 = vmatprep.subr.bf16.mxu0 0
    %3482 = vmatpush1.bf16.msra.mxu0 %v3008
    %3483 = vmatprep.subr.bf16.mxu0 0
    %3484 = vmatpush1.bf16.msra.mxu0 %v3009
    %3485 = vmatprep.subr.bf16.mxu0 0
    %3486 = vmatpush1.bf16.msra.mxu0 %v3010
    %3487 = vmatprep.subr.bf16.mxu0 0
    %3488 = vmatpush1.bf16.msra.mxu0 %v3011
    %3489 = vmatprep.subr.bf16.mxu0 0
    %3490 = vmatpush1.bf16.msra.mxu0 %v3012
    %3491 = vmatprep.subr.bf16.mxu0 0
    %3492 = vmatpush1.bf16.msra.mxu0 %v3013
    %3493 = vmatprep.subr.bf16.mxu0 0
    %3494 = vmatpush1.bf16.msra.mxu0 %v3014
    %3495 = vmatprep.subr.bf16.mxu0 0
    %3496 = vmatpush1.bf16.msra.mxu0 %v3015
    %3497 = vmatprep.subr.bf16.mxu0 0
    %3498 = vmatpush1.bf16.msra.mxu0 %v3016
    %3499 = vmatprep.mubr.bf16.mxu0 %v2103
    %3500 = vmatmul.mubr.bf16.gmra.mrb[0].mxu0 %v2097
    %v3501 = vpop.f32.mrb[0].mxu0
    %v3502 = vadd.f32 %v3453, %v3501
    %v3503 = vpop.f32.mrb[0].mxu0
    %v3504 = vpop.f32.mrb[0].mxu0
    %v3505 = vadd.f32 %v3456, %v3504
    %v3506 = vpop.f32.mrb[0].mxu0
    %3507 = vmatprep.mubr.bf16.mxu0 %v2104
    %3508 = vmatmul.mubr.bf16.gmra.mrb[0].mxu0 %v2098
    %v3509 = vpop.f32.mrb[0].mxu0
    %v3510 = vadd.f32 %v3461, %v3509
    %v3511 = vpop.f32.mrb[0].mxu0
    %v3512 = vpop.f32.mrb[0].mxu0
    %v3513 = vadd.f32 %v3464, %v3512
    %v3514 = vpop.f32.mrb[0].mxu0
    %3515 = vdwg.mxu0
    %3516 = vmatprep.subr.bf16.mxu0 0
    %3517 = vmatpush1.bf16.msra.mxu0 %v3017
    %3518 = vmatprep.subr.bf16.mxu0 0
    %3519 = vmatpush1.bf16.msra.mxu0 %v3018
    %3520 = vmatprep.subr.bf16.mxu0 0
    %3521 = vmatpush1.bf16.msra.mxu0 %v3019
    %3522 = vmatprep.subr.bf16.mxu0 0
    %3523 = vmatpush1.bf16.msra.mxu0 %v3020
    %3524 = vmatprep.subr.bf16.mxu0 0
    %3525 = vmatpush1.bf16.msra.mxu0 %v3021
    %3526 = vmatprep.subr.bf16.mxu0 0
    %3527 = vmatpush1.bf16.msra.mxu0 %v3022
    %3528 = vmatprep.subr.bf16.mxu0 0
    %3529 = vmatpush1.bf16.msra.mxu0 %v3023
    %3530 = vmatprep.subr.bf16.mxu0 0
    %3531 = vmatpush1.bf16.msra.mxu0 %v3024
    %3532 = vmatprep.subr.bf16.mxu0 0
    %3533 = vmatpush1.bf16.msra.mxu0 %v3025
    %3534 = vmatprep.subr.bf16.mxu0 0
    %3535 = vmatpush1.bf16.msra.mxu0 %v3026
    %3536 = vmatprep.subr.bf16.mxu0 0
    %3537 = vmatpush1.bf16.msra.mxu0 %v3027
    %3538 = vmatprep.subr.bf16.mxu0 0
    %3539 = vmatpush1.bf16.msra.mxu0 %v3028
    %3540 = vmatprep.subr.bf16.mxu0 0
    %3541 = vmatpush1.bf16.msra.mxu0 %v3029
    %3542 = vmatprep.subr.bf16.mxu0 0
    %3543 = vmatpush1.bf16.msra.mxu0 %v3030
    %3544 = vmatprep.subr.bf16.mxu0 0
    %3545 = vmatpush1.bf16.msra.mxu0 %v3031
    %3546 = vmatprep.subr.bf16.mxu0 0
    %3547 = vmatpush1.bf16.msra.mxu0 %v3032
    %3548 = vmatprep.mubr.bf16.mxu0 %v2115
    %3549 = vmatmul.mubr.bf16.gmra.mrb[0].mxu0 %v2109
    %v3550 = vpop.f32.mrb[0].mxu0
    %v3551 = vadd.f32 %v3502, %v3550
    %v3552 = vpop.f32.mrb[0].mxu0
    %v3553 = vpop.f32.mrb[0].mxu0
    %v3554 = vadd.f32 %v3505, %v3553
    %v3555 = vpop.f32.mrb[0].mxu0
    %3556 = vmatprep.mubr.bf16.mxu0 %v2116
    %3557 = vmatmul.mubr.bf16.gmra.mrb[0].mxu0 %v2110
    %v3558 = vpop.f32.mrb[0].mxu0
    %v3559 = vadd.f32 %v3510, %v3558
    %v3560 = vpop.f32.mrb[0].mxu0
    %v3561 = vpop.f32.mrb[0].mxu0
    %v3562 = vadd.f32 %v3513, %v3561
    %v3563 = vpop.f32.mrb[0].mxu0
    %3564 = vdwg.mxu0
    %3565 = vmatprep.subr.bf16.mxu0 0
    %3566 = vmatpush1.bf16.msra.mxu0 %v3033
    %3567 = vmatprep.subr.bf16.mxu0 0
    %3568 = vmatpush1.bf16.msra.mxu0 %v3034
    %3569 = vmatprep.subr.bf16.mxu0 0
    %3570 = vmatpush1.bf16.msra.mxu0 %v3035
    %3571 = vmatprep.subr.bf16.mxu0 0
    %3572 = vmatpush1.bf16.msra.mxu0 %v3036
    %3573 = vmatprep.subr.bf16.mxu0 0
    %3574 = vmatpush1.bf16.msra.mxu0 %v3037
    %3575 = vmatprep.subr.bf16.mxu0 0
    %3576 = vmatpush1.bf16.msra.mxu0 %v3038
    %3577 = vmatprep.subr.bf16.mxu0 0
    %3578 = vmatpush1.bf16.msra.mxu0 %v3039
    %3579 = vmatprep.subr.bf16.mxu0 0
    %3580 = vmatpush1.bf16.msra.mxu0 %v3040
    %3581 = vmatprep.subr.bf16.mxu0 0
    %3582 = vmatpush1.bf16.msra.mxu0 %v3041
    %3583 = vmatprep.subr.bf16.mxu0 0
    %3584 = vmatpush1.bf16.msra.mxu0 %v3042
    %3585 = vmatprep.subr.bf16.mxu0 0
    %3586 = vmatpush1.bf16.msra.mxu0 %v3043
    %3587 = vmatprep.subr.bf16.mxu0 0
    %3588 = vmatpush1.bf16.msra.mxu0 %v3044
    %3589 = vmatprep.subr.bf16.mxu0 0
    %3590 = vmatpush1.bf16.msra.mxu0 %v3045
    %3591 = vmatprep.subr.bf16.mxu0 0
    %3592 = vmatpush1.bf16.msra.mxu0 %v3046
    %3593 = vmatprep.subr.bf16.mxu0 0
    %3594 = vmatpush1.bf16.msra.mxu0 %v3047
    %3595 = vmatprep.subr.bf16.mxu0 0
    %3596 = vmatpush1.bf16.msra.mxu0 %v3048
    %3597 = vmatprep.mubr.bf16.mxu0 %v2127
    %3598 = vmatmul.mubr.bf16.gmra.mrb[0].mxu0 %v2121
    %v3599 = vpop.f32.mrb[0].mxu0
    %v3600 = vadd.f32 %v3551, %v3599
    %v3601 = vpop.f32.mrb[0].mxu0
    %v3602 = vpop.f32.mrb[0].mxu0
    %v3603 = vadd.f32 %v3554, %v3602
    %v3604 = vpop.f32.mrb[0].mxu0
    %3605 = vmatprep.mubr.bf16.mxu0 %v2128
    %3606 = vmatmul.mubr.bf16.gmra.mrb[0].mxu0 %v2122
    %v3607 = vpop.f32.mrb[0].mxu0
    %v3608 = vadd.f32 %v3559, %v3607
    %v3609 = vpop.f32.mrb[0].mxu0
    %v3610 = vpop.f32.mrb[0].mxu0
    %v3611 = vadd.f32 %v3562, %v3610
    %v3612 = vpop.f32.mrb[0].mxu0
    %3613 = vdwg.mxu0
    %3614 = vmatprep.subr.bf16.mxu0 0
    %3615 = vmatpush1.bf16.msra.mxu0 %v3049
    %3616 = vmatprep.subr.bf16.mxu0 0
    %3617 = vmatpush1.bf16.msra.mxu0 %v3050
    %3618 = vmatprep.subr.bf16.mxu0 0
    %3619 = vmatpush1.bf16.msra.mxu0 %v3051
    %3620 = vmatprep.subr.bf16.mxu0 0
    %3621 = vmatpush1.bf16.msra.mxu0 %v3052
    %3622 = vmatprep.subr.bf16.mxu0 0
    %3623 = vmatpush1.bf16.msra.mxu0 %v3053
    %3624 = vmatprep.subr.bf16.mxu0 0
    %3625 = vmatpush1.bf16.msra.mxu0 %v3054
    %3626 = vmatprep.subr.bf16.mxu0 0
    %3627 = vmatpush1.bf16.msra.mxu0 %v3055
    %3628 = vmatprep.subr.bf16.mxu0 0
    %3629 = vmatpush1.bf16.msra.mxu0 %v3056
    %3630 = vmatprep.subr.bf16.mxu0 0
    %3631 = vmatpush1.bf16.msra.mxu0 %v3057
    %3632 = vmatprep.subr.bf16.mxu0 0
    %3633 = vmatpush1.bf16.msra.mxu0 %v3058
    %3634 = vmatprep.subr.bf16.mxu0 0
    %3635 = vmatpush1.bf16.msra.mxu0 %v3059
    %3636 = vmatprep.subr.bf16.mxu0 0
    %3637 = vmatpush1.bf16.msra.mxu0 %v3060
    %3638 = vmatprep.subr.bf16.mxu0 0
    %3639 = vmatpush1.bf16.msra.mxu0 %v3061
    %3640 = vmatprep.subr.bf16.mxu0 0
    %3641 = vmatpush1.bf16.msra.mxu0 %v3062
    %3642 = vmatprep.subr.bf16.mxu0 0
    %3643 = vmatpush1.bf16.msra.mxu0 %v3063
    %3644 = vmatprep.subr.bf16.mxu0 0
    %3645 = vmatpush1.bf16.msra.mxu0 %v3064
    %3646 = vmatprep.mubr.bf16.mxu0 %v2133
    %3647 = vmatmul.mubr.bf16.gmra.mrb[0].mxu0 %v2130
    %v3648 = vpop.f32.mrb[0].mxu0
    %v3649 = vadd.f32 %v3600, %v3648
    %v3650 = vpop.f32.mrb[0].mxu0
    %v3651 = vpop.f32.mrb[0].mxu0
    %v3652 = vadd.f32 %v3603, %v3651
    %v3653 = vpop.f32.mrb[0].mxu0
    %3654 = vmatprep.mubr.bf16.mxu0 %v2134
    %3655 = vmatmul.mubr.bf16.gmra.mrb[0].mxu0 %v2131
    %v3656 = vpop.f32.mrb[0].mxu0
    %v3657 = vadd.f32 %v3608, %v3656
    %v3658 = vpop.f32.mrb[0].mxu0
    %v3659 = vpop.f32.mrb[0].mxu0
    %v3660 = vadd.f32 %v3611, %v3659
    %v3661 = vpop.f32.mrb[0].mxu0
    %3662 = vdwg.mxu0
    %3663 = vmatprep.subr.bf16.mxu0 0
    %3664 = vmatpush1.bf16.msra.mxu0 %v3065
    %3665 = vmatprep.subr.bf16.mxu0 0
    %3666 = vmatpush1.bf16.msra.mxu0 %v3066
    %3667 = vmatprep.subr.bf16.mxu0 0
    %3668 = vmatpush1.bf16.msra.mxu0 %v3067
    %3669 = vmatprep.subr.bf16.mxu0 0
    %3670 = vmatpush1.bf16.msra.mxu0 %v3068
    %3671 = vmatprep.subr.bf16.mxu0 0
    %3672 = vmatpush1.bf16.msra.mxu0 %v3069
    %3673 = vmatprep.subr.bf16.mxu0 0
    %3674 = vmatpush1.bf16.msra.mxu0 %v3070
    %3675 = vmatprep.subr.bf16.mxu0 0
    %3676 = vmatpush1.bf16.msra.mxu0 %v3071
    %3677 = vmatprep.subr.bf16.mxu0 0
    %3678 = vmatpush1.bf16.msra.mxu0 %v3072
    %3679 = vmatprep.subr.bf16.mxu0 0
    %3680 = vmatpush1.bf16.msra.mxu0 %v3073
    %3681 = vmatprep.subr.bf16.mxu0 0
    %3682 = vmatpush1.bf16.msra.mxu0 %v3074
    %3683 = vmatprep.subr.bf16.mxu0 0
    %3684 = vmatpush1.bf16.msra.mxu0 %v3075
    %3685 = vmatprep.subr.bf16.mxu0 0
    %3686 = vmatpush1.bf16.msra.mxu0 %v3076
    %3687 = vmatprep.subr.bf16.mxu0 0
    %3688 = vmatpush1.bf16.msra.mxu0 %v3077
    %3689 = vmatprep.subr.bf16.mxu0 0
    %3690 = vmatpush1.bf16.msra.mxu0 %v3078
    %3691 = vmatprep.subr.bf16.mxu0 0
    %3692 = vmatpush1.bf16.msra.mxu0 %v3079
    %3693 = vmatprep.subr.bf16.mxu0 0
    %3694 = vmatpush1.bf16.msra.mxu0 %v3080
    %3695 = vmatprep.mubr.bf16.mxu0 %v2139
    %3696 = vmatmul.mubr.bf16.gmra.mrb[0].mxu0 %v2136
    %v3697 = vpop.f32.mrb[0].mxu0
    %v3698 = vadd.f32 %v3649, %v3697
    %v3699 = vpop.f32.mrb[0].mxu0
    %v3700 = vpop.f32.mrb[0].mxu0
    %v3701 = vadd.f32 %v3652, %v3700
    %v3702 = vpop.f32.mrb[0].mxu0
    %3703 = vmatprep.mubr.bf16.mxu0 %v2140
    %3704 = vmatmul.mubr.bf16.gmra.mrb[0].mxu0 %v2137
    %v3705 = vpop.f32.mrb[0].mxu0
    %v3706 = vadd.f32 %v3657, %v3705
    %v3707 = vpop.f32.mrb[0].mxu0
    %v3708 = vpop.f32.mrb[0].mxu0
    %v3709 = vadd.f32 %v3660, %v3708
    %v3710 = vpop.f32.mrb[0].mxu0
    %3711 = vdwg.mxu0
    %3712 = vmatprep.subr.bf16.mxu0 0
    %3713 = vmatpush1.bf16.msra.mxu0 %v3081
    %3714 = vmatprep.subr.bf16.mxu0 0
    %3715 = vmatpush1.bf16.msra.mxu0 %v3082
    %3716 = vmatprep.subr.bf16.mxu0 0
    %3717 = vmatpush1.bf16.msra.mxu0 %v3083
    %3718 = vmatprep.subr.bf16.mxu0 0
    %3719 = vmatpush1.bf16.msra.mxu0 %v3084
    %3720 = vmatprep.subr.bf16.mxu0 0
    %3721 = vmatpush1.bf16.msra.mxu0 %v3085
    %3722 = vmatprep.subr.bf16.mxu0 0
    %3723 = vmatpush1.bf16.msra.mxu0 %v3086
    %3724 = vmatprep.subr.bf16.mxu0 0
    %3725 = vmatpush1.bf16.msra.mxu0 %v3087
    %3726 = vmatprep.subr.bf16.mxu0 0
    %3727 = vmatpush1.bf16.msra.mxu0 %v3088
    %3728 = vmatprep.subr.bf16.mxu0 0
    %3729 = vmatpush1.bf16.msra.mxu0 %v3089
    %3730 = vmatprep.subr.bf16.mxu0 0
    %3731 = vmatpush1.bf16.msra.mxu0 %v3090
    %3732 = vmatprep.subr.bf16.mxu0 0
    %3733 = vmatpush1.bf16.msra.mxu0 %v3091
    %3734 = vmatprep.subr.bf16.mxu0 0
    %3735 = vmatpush1.bf16.msra.mxu0 %v3092
    %3736 = vmatprep.subr.bf16.mxu0 0
    %3737 = vmatpush1.bf16.msra.mxu0 %v3093
    %3738 = vmatprep.subr.bf16.mxu0 0
    %3739 = vmatpush1.bf16.msra.mxu0 %v3094
    %3740 = vmatprep.subr.bf16.mxu0 0
    %3741 = vmatpush1.bf16.msra.mxu0 %v3095
    %3742 = vmatprep.subr.bf16.mxu0 0
    %3743 = vmatpush1.bf16.msra.mxu0 %v3096
    %3744 = vmatprep.mubr.bf16.mxu0 %v2145
    %3745 = vmatmul.mubr.bf16.gmra.mrb[0].mxu0 %v2142
    %v3746 = vpop.f32.mrb[0].mxu0
    %v3747 = vadd.f32 %v3698, %v3746
    %v3748 = vpop.f32.mrb[0].mxu0
    %v3749 = vpop.f32.mrb[0].mxu0
    %v3750 = vadd.f32 %v3701, %v3749
    %v3751 = vpop.f32.mrb[0].mxu0
    %3752 = vmatprep.mubr.bf16.mxu0 %v2146
    %3753 = vmatmul.mubr.bf16.gmra.mrb[0].mxu0 %v2143
    %v3754 = vpop.f32.mrb[0].mxu0
    %v3755 = vadd.f32 %v3706, %v3754
    %v3756 = vpop.f32.mrb[0].mxu0
    %v3757 = vpop.f32.mrb[0].mxu0
    %v3758 = vadd.f32 %v3709, %v3757
    %v3759 = vpop.f32.mrb[0].mxu0
    %3760 = vdwg.mxu0
    %3761 = vmatprep.subr.bf16.mxu0 0
    %3762 = vmatpush1.bf16.msra.mxu0 %v3097
    %3763 = vmatprep.subr.bf16.mxu0 0
    %3764 = vmatpush1.bf16.msra.mxu0 %v3098
    %3765 = vmatprep.subr.bf16.mxu0 0
    %3766 = vmatpush1.bf16.msra.mxu0 %v3099
    %3767 = vmatprep.subr.bf16.mxu0 0
    %3768 = vmatpush1.bf16.msra.mxu0 %v3100
    %3769 = vmatprep.subr.bf16.mxu0 0
    %3770 = vmatpush1.bf16.msra.mxu0 %v3101
    %3771 = vmatprep.subr.bf16.mxu0 0
    %3772 = vmatpush1.bf16.msra.mxu0 %v3102
    %3773 = vmatprep.subr.bf16.mxu0 0
    %3774 = vmatpush1.bf16.msra.mxu0 %v3103
    %3775 = vmatprep.subr.bf16.mxu0 0
    %3776 = vmatpush1.bf16.msra.mxu0 %v3104
    %3777 = vmatprep.subr.bf16.mxu0 0
    %3778 = vmatpush1.bf16.msra.mxu0 %v3105
    %3779 = vmatprep.subr.bf16.mxu0 0
    %3780 = vmatpush1.bf16.msra.mxu0 %v3106
    %3781 = vmatprep.subr.bf16.mxu0 0
    %3782 = vmatpush1.bf16.msra.mxu0 %v3107
    %3783 = vmatprep.subr.bf16.mxu0 0
    %3784 = vmatpush1.bf16.msra.mxu0 %v3108
    %3785 = vmatprep.subr.bf16.mxu0 0
    %3786 = vmatpush1.bf16.msra.mxu0 %v3109
    %3787 = vmatprep.subr.bf16.mxu0 0
    %3788 = vmatpush1.bf16.msra.mxu0 %v3110
    %3789 = vmatprep.subr.bf16.mxu0 0
    %3790 = vmatpush1.bf16.msra.mxu0 %v3111
    %3791 = vmatprep.subr.bf16.mxu0 0
    %3792 = vmatpush1.bf16.msra.mxu0 %v3112
    %3793 = vmatprep.mubr.bf16.mxu0 %v2151
    %3794 = vmatmul.mubr.bf16.gmra.mrb[0].mxu0 %v2148
    %v3795 = vpop.f32.mrb[0].mxu0
    %v3796 = vadd.f32 %v3747, %v3795
    %v3797 = vpop.f32.mrb[0].mxu0
    %v3798 = vpop.f32.mrb[0].mxu0
    %v3799 = vadd.f32 %v3750, %v3798
    %v3800 = vpop.f32.mrb[0].mxu0
    %3801 = vmatprep.mubr.bf16.mxu0 %v2152
    %3802 = vmatmul.mubr.bf16.gmra.mrb[0].mxu0 %v2149
    %v3803 = vpop.f32.mrb[0].mxu0
    %v3804 = vadd.f32 %v3755, %v3803
    %v3805 = vpop.f32.mrb[0].mxu0
    %v3806 = vpop.f32.mrb[0].mxu0
    %v3807 = vadd.f32 %v3758, %v3806
    %v3808 = vpop.f32.mrb[0].mxu0
    %3809 = vdwg.mxu0
    %3810 = vmatprep.subr.bf16.mxu0 0
    %3811 = vmatpush1.bf16.msra.mxu0 %v3113
    %3812 = vmatprep.subr.bf16.mxu0 0
    %3813 = vmatpush1.bf16.msra.mxu0 %v3114
    %3814 = vmatprep.subr.bf16.mxu0 0
    %3815 = vmatpush1.bf16.msra.mxu0 %v3115
    %3816 = vmatprep.subr.bf16.mxu0 0
    %3817 = vmatpush1.bf16.msra.mxu0 %v3116
    %3818 = vmatprep.subr.bf16.mxu0 0
    %3819 = vmatpush1.bf16.msra.mxu0 %v3117
    %3820 = vmatprep.subr.bf16.mxu0 0
    %3821 = vmatpush1.bf16.msra.mxu0 %v3118
    %3822 = vmatprep.subr.bf16.mxu0 0
    %3823 = vmatpush1.bf16.msra.mxu0 %v3119
    %3824 = vmatprep.subr.bf16.mxu0 0
    %3825 = vmatpush1.bf16.msra.mxu0 %v3120
    %3826 = vmatprep.subr.bf16.mxu0 0
    %3827 = vmatpush1.bf16.msra.mxu0 %v3121
    %3828 = vmatprep.subr.bf16.mxu0 0
    %3829 = vmatpush1.bf16.msra.mxu0 %v3122
    %3830 = vmatprep.subr.bf16.mxu0 0
    %3831 = vmatpush1.bf16.msra.mxu0 %v3123
    %3832 = vmatprep.subr.bf16.mxu0 0
    %3833 = vmatpush1.bf16.msra.mxu0 %v3124
    %3834 = vmatprep.subr.bf16.mxu0 0
    %3835 = vmatpush1.bf16.msra.mxu0 %v3125
    %3836 = vmatprep.subr.bf16.mxu0 0
    %3837 = vmatpush1.bf16.msra.mxu0 %v3126
    %3838 = vmatprep.subr.bf16.mxu0 0
    %3839 = vmatpush1.bf16.msra.mxu0 %v3127
    %3840 = vmatprep.subr.bf16.mxu0 0
    %3841 = vmatpush1.bf16.msra.mxu0 %v3128
    %3842 = vmatprep.mubr.bf16.mxu0 %v2157
    %3843 = vmatmul.mubr.bf16.gmra.mrb[0].mxu0 %v2154
    %v3844 = vpop.f32.mrb[0].mxu0
    %v3845 = vadd.f32 %v3796, %v3844
    %v3846 = vpop.f32.mrb[0].mxu0
    %v3847 = vpop.f32.mrb[0].mxu0
    %v3848 = vadd.f32 %v3799, %v3847
    %v3849 = vpop.f32.mrb[0].mxu0
    %3850 = vmatprep.mubr.bf16.mxu0 %v2158
    %3851 = vmatmul.mubr.bf16.gmra.mrb[0].mxu0 %v2155
    %v3852 = vpop.f32.mrb[0].mxu0
    %v3853 = vadd.f32 %v3804, %v3852
    %v3854 = vpop.f32.mrb[0].mxu0
    %v3855 = vpop.f32.mrb[0].mxu0
    %v3856 = vadd.f32 %v3807, %v3855
    %v3857 = vpop.f32.mrb[0].mxu0
    %3858 = vdwg.mxu0
    %3859 = vmatprep.subr.bf16.mxu0 0
    %3860 = vmatpush1.bf16.msra.mxu0 %v3129
    %3861 = vmatprep.subr.bf16.mxu0 0
    %3862 = vmatpush1.bf16.msra.mxu0 %v3130
    %3863 = vmatprep.subr.bf16.mxu0 0
    %3864 = vmatpush1.bf16.msra.mxu0 %v3131
    %3865 = vmatprep.subr.bf16.mxu0 0
    %3866 = vmatpush1.bf16.msra.mxu0 %v3132
    %3867 = vmatprep.subr.bf16.mxu0 0
    %3868 = vmatpush1.bf16.msra.mxu0 %v3133
    %3869 = vmatprep.subr.bf16.mxu0 0
    %3870 = vmatpush1.bf16.msra.mxu0 %v3134
    %3871 = vmatprep.subr.bf16.mxu0 0
    %3872 = vmatpush1.bf16.msra.mxu0 %v3135
    %3873 = vmatprep.subr.bf16.mxu0 0
    %3874 = vmatpush1.bf16.msra.mxu0 %v3136
    %3875 = vmatprep.subr.bf16.mxu0 0
    %3876 = vmatpush1.bf16.msra.mxu0 %v3137
    %3877 = vmatprep.subr.bf16.mxu0 0
    %3878 = vmatpush1.bf16.msra.mxu0 %v3138
    %3879 = vmatprep.subr.bf16.mxu0 0
    %3880 = vmatpush1.bf16.msra.mxu0 %v3139
    %3881 = vmatprep.subr.bf16.mxu0 0
    %3882 = vmatpush1.bf16.msra.mxu0 %v3140
    %3883 = vmatprep.subr.bf16.mxu0 0
    %3884 = vmatpush1.bf16.msra.mxu0 %v3141
    %3885 = vmatprep.subr.bf16.mxu0 0
    %3886 = vmatpush1.bf16.msra.mxu0 %v3142
    %3887 = vmatprep.subr.bf16.mxu0 0
    %3888 = vmatpush1.bf16.msra.mxu0 %v3143
    %3889 = vmatprep.subr.bf16.mxu0 0
    %3890 = vmatpush1.bf16.msra.mxu0 %v3144
    %3891 = vmatprep.mubr.bf16.mxu0 %v2080
    %3892 = vmatmul.mubr.bf16.gmra.mrb[0].mxu0 %v2074
    %v3893 = vpop.f32.mrb[0].mxu0
    %v3894 = vadd.f32 %v3845, %v3893
    %v3895 = vpop.f32.mrb[0].mxu0
    %v3896 = vpop.f32.mrb[0].mxu0
    %v3897 = vadd.f32 %v3848, %v3896
    %v3898 = vpop.f32.mrb[0].mxu0
    %3899 = vmatprep.mubr.bf16.mxu0 %v2162
    %3900 = vmatmul.mubr.bf16.gmra.mrb[0].mxu0 %v2160
    %v3901 = vpop.f32.mrb[0].mxu0
    %v3902 = vadd.f32 %v3853, %v3901
    %v3903 = vpop.f32.mrb[0].mxu0
    %v3904 = vpop.f32.mrb[0].mxu0
    %v3905 = vadd.f32 %v3856, %v3904
    %v3906 = vpop.f32.mrb[0].mxu0
    %3907 = vdwg.mxu0
    %3908 = vmatprep.subr.bf16.mxu0 0
    %3909 = vmatpush1.bf16.msra.mxu0 %v3145
    %3910 = vmatprep.subr.bf16.mxu0 0
    %3911 = vmatpush1.bf16.msra.mxu0 %v3146
    %3912 = vmatprep.subr.bf16.mxu0 0
    %3913 = vmatpush1.bf16.msra.mxu0 %v3147
    %3914 = vmatprep.subr.bf16.mxu0 0
    %3915 = vmatpush1.bf16.msra.mxu0 %v3148
    %3916 = vmatprep.subr.bf16.mxu0 0
    %3917 = vmatpush1.bf16.msra.mxu0 %v3149
    %3918 = vmatprep.subr.bf16.mxu0 0
    %3919 = vmatpush1.bf16.msra.mxu0 %v3150
    %3920 = vmatprep.subr.bf16.mxu0 0
    %3921 = vmatpush1.bf16.msra.mxu0 %v3151
    %3922 = vmatprep.subr.bf16.mxu0 0
    %3923 = vmatpush1.bf16.msra.mxu0 %v3152
    %3924 = vmatprep.subr.bf16.mxu0 0
    %3925 = vmatpush1.bf16.msra.mxu0 %v3153
    %3926 = vmatprep.subr.bf16.mxu0 0
    %3927 = vmatpush1.bf16.msra.mxu0 %v3154
    %3928 = vmatprep.subr.bf16.mxu0 0
    %3929 = vmatpush1.bf16.msra.mxu0 %v3155
    %3930 = vmatprep.subr.bf16.mxu0 0
    %3931 = vmatpush1.bf16.msra.mxu0 %v3156
    %3932 = vmatprep.subr.bf16.mxu0 0
    %3933 = vmatpush1.bf16.msra.mxu0 %v3157
    %3934 = vmatprep.subr.bf16.mxu0 0
    %3935 = vmatpush1.bf16.msra.mxu0 %v3158
    %3936 = vmatprep.subr.bf16.mxu0 0
    %3937 = vmatpush1.bf16.msra.mxu0 %v3159
    %3938 = vmatprep.subr.bf16.mxu0 0
    %3939 = vmatpush1.bf16.msra.mxu0 %v3160
    %3940 = vmatprep.mubr.bf16.mxu0 %v2092
    %3941 = vmatmul.mubr.bf16.gmra.mrb[0].mxu0 %v2086
    %v3942 = vpop.f32.mrb[0].mxu0
    %v3943 = vadd.f32 %v3894, %v3942
    %v3944 = vpop.f32.mrb[0].mxu0
    %v3945 = vpop.f32.mrb[0].mxu0
    %v3946 = vadd.f32 %v3897, %v3945
    %v3947 = vpop.f32.mrb[0].mxu0
    %3948 = vmatprep.mubr.bf16.mxu0 %v2166
    %3949 = vmatmul.mubr.bf16.gmra.mrb[0].mxu0 %v2164
    %v3950 = vpop.f32.mrb[0].mxu0
    %v3951 = vadd.f32 %v3902, %v3950
    %v3952 = vpop.f32.mrb[0].mxu0
    %v3953 = vpop.f32.mrb[0].mxu0
    %v3954 = vadd.f32 %v3905, %v3953
    %v3955 = vpop.f32.mrb[0].mxu0
    %3956 = vdwg.mxu0
    %3957 = vmatprep.subr.bf16.mxu0 0
    %3958 = vmatpush1.bf16.msra.mxu0 %v3161
    %3959 = vmatprep.subr.bf16.mxu0 0
    %3960 = vmatpush1.bf16.msra.mxu0 %v3162
    %3961 = vmatprep.subr.bf16.mxu0 0
    %3962 = vmatpush1.bf16.msra.mxu0 %v3163
    %3963 = vmatprep.subr.bf16.mxu0 0
    %3964 = vmatpush1.bf16.msra.mxu0 %v3164
    %3965 = vmatprep.subr.bf16.mxu0 0
    %3966 = vmatpush1.bf16.msra.mxu0 %v3165
    %3967 = vmatprep.subr.bf16.mxu0 0
    %3968 = vmatpush1.bf16.msra.mxu0 %v3166
    %3969 = vmatprep.subr.bf16.mxu0 0
    %3970 = vmatpush1.bf16.msra.mxu0 %v3167
    %3971 = vmatprep.subr.bf16.mxu0 0
    %3972 = vmatpush1.bf16.msra.mxu0 %v3168
    %3973 = vmatprep.subr.bf16.mxu0 0
    %3974 = vmatpush1.bf16.msra.mxu0 0
    %3975 = vmatprep.subr.bf16.mxu0 0
    %3976 = vmatpush1.bf16.msra.mxu0 0
    %3977 = vmatprep.subr.bf16.mxu0 0
    %3978 = vmatpush1.bf16.msra.mxu0 0
    %3979 = vmatprep.subr.bf16.mxu0 0
    %3980 = vmatpush1.bf16.msra.mxu0 0
    %3981 = vmatprep.subr.bf16.mxu0 0
    %3982 = vmatpush1.bf16.msra.mxu0 0
    %3983 = vmatprep.subr.bf16.mxu0 0
    %3984 = vmatpush1.bf16.msra.mxu0 0
    %3985 = vmatprep.subr.bf16.mxu0 0
    %3986 = vmatpush1.bf16.msra.mxu0 0
    %3987 = vmatprep.subr.bf16.mxu0 0
    %3988 = vmatpush1.bf16.msra.mxu0 0
    %3989 = vmatprep.mubr.bf16.mxu0 0
    %3990 = vmatmul.mubr.bf16.gmra.mrb[0].mxu0 %v2098
    %v3991 = vpop.f32.mrb[0].mxu0
    %v3992 = vadd.f32 %v3943, %v3991
    %v3993 = vpop.f32.mrb[0].mxu0
    %v3994 = vpop.f32.mrb[0].mxu0
    %v3995 = vadd.f32 %v3946, %v3994
    %v3996 = vpop.f32.mrb[0].mxu0
    %3997 = vmatprep.mubr.bf16.mxu0 0
    %3998 = vmatmul.mubr.bf16.gmra.mrb[0].mxu0 %v2168
    %v3999 = vpop.f32.mrb[0].mxu0
    %v4000 = vadd.f32 %v3951, %v3999
    %v4001 = vpop.f32.mrb[0].mxu0
    %v4002 = vpop.f32.mrb[0].mxu0
    %v4003 = vadd.f32 %v3954, %v4002
    %v4004 = vpop.f32.mrb[0].mxu0
    %4005 = vdwg.mxu0
    %v4006 = vld [vmem:[#allocation2 + $0x4c] sm:$0xff]
    %v4007 = vld [vmem:[#allocation2 + $0x58] sm:$0xff]
    %v4008 = vld [vmem:[#allocation2 + $0x64] sm:$0xff]
    %v4009 = vld [vmem:[#allocation2 + $0x70] sm:$0xff]
    %v4010 = vpack.c.bf16 %v4007, %v4006
    %v4011 = vpack.c.bf16 %v4009, %v4008
    %v4012 = vld [vmem:[#allocation2 + $0xdc] sm:$0xff]
    %v4013 = vld [vmem:[#allocation2 + $0xe8] sm:$0xff]
    %v4014 = vld [vmem:[#allocation2 + $0xf4] sm:$0xff]
    %v4015 = vld [vmem:[#allocation2 + $0x100] sm:$0xff]
    %v4016 = vpack.c.bf16 %v4013, %v4012
    %v4017 = vpack.c.bf16 %v4015, %v4014
    %v4018 = vld [vmem:[#allocation2 + $0x7c] sm:$0xff]
    %v4019 = vpack.c.bf16 %v4008, %v4007
    %v4020 = vpack.c.bf16 %v4018, %v4009
    %v4021 = vld [vmem:[#allocation2 + $0x10c] sm:$0xff]
    %v4022 = vpack.c.bf16 %v4014, %v4013
    %v4023 = vpack.c.bf16 %v4021, %v4015
    %v4024 = vld [vmem:[#allocation2 + $0x88] sm:$0xff]
    %v4025 = vpack.c.bf16 %v4024, %v4018
    %4026 = vmatprep.subr.bf16.mxu0 0
    %4027 = vmatpush1.bf16.msra.mxu0 %v2969
    %4028 = vmatprep.subr.bf16.mxu0 0
    %4029 = vmatpush1.bf16.msra.mxu0 %v2970
    %4030 = vmatprep.subr.bf16.mxu0 0
    %4031 = vmatpush1.bf16.msra.mxu0 %v2971
    %4032 = vmatprep.subr.bf16.mxu0 0
    %4033 = vmatpush1.bf16.msra.mxu0 %v2972
    %4034 = vmatprep.subr.bf16.mxu0 0
    %4035 = vmatpush1.bf16.msra.mxu0 %v2973
    %4036 = vmatprep.subr.bf16.mxu0 0
    %4037 = vmatpush1.bf16.msra.mxu0 %v2974
    %4038 = vmatprep.subr.bf16.mxu0 0
    %4039 = vmatpush1.bf16.msra.mxu0 %v2975
    %4040 = vmatprep.subr.bf16.mxu0 0
    %4041 = vmatpush1.bf16.msra.mxu0 %v2976
    %4042 = vmatprep.subr.bf16.mxu0 0
    %4043 = vmatpush1.bf16.msra.mxu0 %v2977
    %4044 = vmatprep.subr.bf16.mxu0 0
    %4045 = vmatpush1.bf16.msra.mxu0 %v2978
    %4046 = vmatprep.subr.bf16.mxu0 0
    %4047 = vmatpush1.bf16.msra.mxu0 %v2979
    %4048 = vmatprep.subr.bf16.mxu0 0
    %4049 = vmatpush1.bf16.msra.mxu0 %v2980
    %4050 = vmatprep.subr.bf16.mxu0 0
    %4051 = vmatpush1.bf16.msra.mxu0 %v2981
    %4052 = vmatprep.subr.bf16.mxu0 0
    %4053 = vmatpush1.bf16.msra.mxu0 %v2982
    %4054 = vmatprep.subr.bf16.mxu0 0
    %4055 = vmatpush1.bf16.msra.mxu0 %v2983
    %4056 = vmatprep.subr.bf16.mxu0 0
    %4057 = vmatpush1.bf16.msra.mxu0 %v2984
    %4058 = vmatprep.mubr.bf16.mxu0 %v2085
    %4059 = vmatmul.mubr.bf16.gmra.mrb[0].mxu0 %v2079
    %v4060 = vpop.f32.mrb[0].mxu0
    %v4061 = vadd.f32 0.0, %v4060
    %v4062 = vpop.f32.mrb[0].mxu0
    %v4063 = vpop.f32.mrb[0].mxu0
    %v4064 = vadd.f32 0.0, %v4063
    %v4065 = vpop.f32.mrb[0].mxu0
    %4066 = vmatprep.mubr.bf16.mxu0 %v2086
    %4067 = vmatmul.mubr.bf16.gmra.mrb[0].mxu0 %v2080
    %v4068 = vpop.f32.mrb[0].mxu0
    %v4069 = vadd.f32 0.0, %v4068
    %v4070 = vpop.f32.mrb[0].mxu0
    %v4071 = vpop.f32.mrb[0].mxu0
    %v4072 = vadd.f32 0.0, %v4071
    %v4073 = vpop.f32.mrb[0].mxu0
    %4074 = vdwg.mxu0
    %4075 = vmatprep.subr.bf16.mxu0 0
    %4076 = vmatpush1.bf16.msra.mxu0 %v2985
    %4077 = vmatprep.subr.bf16.mxu0 0
    %4078 = vmatpush1.bf16.msra.mxu0 %v2986
    %4079 = vmatprep.subr.bf16.mxu0 0
    %4080 = vmatpush1.bf16.msra.mxu0 %v2987
    %4081 = vmatprep.subr.bf16.mxu0 0
    %4082 = vmatpush1.bf16.msra.mxu0 %v2988
    %4083 = vmatprep.subr.bf16.mxu0 0
    %4084 = vmatpush1.bf16.msra.mxu0 %v2989
    %4085 = vmatprep.subr.bf16.mxu0 0
    %4086 = vmatpush1.bf16.msra.mxu0 %v2990
    %4087 = vmatprep.subr.bf16.mxu0 0
    %4088 = vmatpush1.bf16.msra.mxu0 %v2991
    %4089 = vmatprep.subr.bf16.mxu0 0
    %4090 = vmatpush1.bf16.msra.mxu0 %v2992
    %4091 = vmatprep.subr.bf16.mxu0 0
    %4092 = vmatpush1.bf16.msra.mxu0 %v2993
    %4093 = vmatprep.subr.bf16.mxu0 0
    %4094 = vmatpush1.bf16.msra.mxu0 %v2994
    %4095 = vmatprep.subr.bf16.mxu0 0
    %4096 = vmatpush1.bf16.msra.mxu0 %v2995
    %4097 = vmatprep.subr.bf16.mxu0 0
    %4098 = vmatpush1.bf16.msra.mxu0 %v2996
    %4099 = vmatprep.subr.bf16.mxu0 0
    %4100 = vmatpush1.bf16.msra.mxu0 %v2997
    %4101 = vmatprep.subr.bf16.mxu0 0
    %4102 = vmatpush1.bf16.msra.mxu0 %v2998
    %4103 = vmatprep.subr.bf16.mxu0 0
    %4104 = vmatpush1.bf16.msra.mxu0 %v2999
    %4105 = vmatprep.subr.bf16.mxu0 0
    %4106 = vmatpush1.bf16.msra.mxu0 %v3000
    %4107 = vmatprep.mubr.bf16.mxu0 %v2097
    %4108 = vmatmul.mubr.bf16.gmra.mrb[0].mxu0 %v2091
    %v4109 = vpop.f32.mrb[0].mxu0
    %v4110 = vadd.f32 %v4061, %v4109
    %v4111 = vpop.f32.mrb[0].mxu0
    %v4112 = vpop.f32.mrb[0].mxu0
    %v4113 = vadd.f32 %v4064, %v4112
    %v4114 = vpop.f32.mrb[0].mxu0
    %4115 = vmatprep.mubr.bf16.mxu0 %v2098
    %4116 = vmatmul.mubr.bf16.gmra.mrb[0].mxu0 %v2092
    %v4117 = vpop.f32.mrb[0].mxu0
    %v4118 = vadd.f32 %v4069, %v4117
    %v4119 = vpop.f32.mrb[0].mxu0
    %v4120 = vpop.f32.mrb[0].mxu0
    %v4121 = vadd.f32 %v4072, %v4120
    %v4122 = vpop.f32.mrb[0].mxu0
    %4123 = vdwg.mxu0
    %4124 = vmatprep.subr.bf16.mxu0 0
    %4125 = vmatpush1.bf16.msra.mxu0 %v3001
    %4126 = vmatprep.subr.bf16.mxu0 0
    %4127 = vmatpush1.bf16.msra.mxu0 %v3002
    %4128 = vmatprep.subr.bf16.mxu0 0
    %4129 = vmatpush1.bf16.msra.mxu0 %v3003
    %4130 = vmatprep.subr.bf16.mxu0 0
    %4131 = vmatpush1.bf16.msra.mxu0 %v3004
    %4132 = vmatprep.subr.bf16.mxu0 0
    %4133 = vmatpush1.bf16.msra.mxu0 %v3005
    %4134 = vmatprep.subr.bf16.mxu0 0
    %4135 = vmatpush1.bf16.msra.mxu0 %v3006
    %4136 = vmatprep.subr.bf16.mxu0 0
    %4137 = vmatpush1.bf16.msra.mxu0 %v3007
    %4138 = vmatprep.subr.bf16.mxu0 0
    %4139 = vmatpush1.bf16.msra.mxu0 %v3008
    %4140 = vmatprep.subr.bf16.mxu0 0
    %4141 = vmatpush1.bf16.msra.mxu0 %v3009
    %4142 = vmatprep.subr.bf16.mxu0 0
    %4143 = vmatpush1.bf16.msra.mxu0 %v3010
    %4144 = vmatprep.subr.bf16.mxu0 0
    %4145 = vmatpush1.bf16.msra.mxu0 %v3011
    %4146 = vmatprep.subr.bf16.mxu0 0
    %4147 = vmatpush1.bf16.msra.mxu0 %v3012
    %4148 = vmatprep.subr.bf16.mxu0 0
    %4149 = vmatpush1.bf16.msra.mxu0 %v3013
    %4150 = vmatprep.subr.bf16.mxu0 0
    %4151 = vmatpush1.bf16.msra.mxu0 %v3014
    %4152 = vmatprep.subr.bf16.mxu0 0
    %4153 = vmatpush1.bf16.msra.mxu0 %v3015
    %4154 = vmatprep.subr.bf16.mxu0 0
    %4155 = vmatpush1.bf16.msra.mxu0 %v3016
    %4156 = vmatprep.mubr.bf16.mxu0 %v2109
    %4157 = vmatmul.mubr.bf16.gmra.mrb[0].mxu0 %v4010
    %v4158 = vpop.f32.mrb[0].mxu0
    %v4159 = vadd.f32 %v4110, %v4158
    %v4160 = vpop.f32.mrb[0].mxu0
    %v4161 = vpop.f32.mrb[0].mxu0
    %v4162 = vadd.f32 %v4113, %v4161
    %v4163 = vpop.f32.mrb[0].mxu0
    %4164 = vmatprep.mubr.bf16.mxu0 %v2110
    %4165 = vmatmul.mubr.bf16.gmra.mrb[0].mxu0 %v4011
    %v4166 = vpop.f32.mrb[0].mxu0
    %v4167 = vadd.f32 %v4118, %v4166
    %v4168 = vpop.f32.mrb[0].mxu0
    %v4169 = vpop.f32.mrb[0].mxu0
    %v4170 = vadd.f32 %v4121, %v4169
    %v4171 = vpop.f32.mrb[0].mxu0
    %4172 = vdwg.mxu0
    %4173 = vmatprep.subr.bf16.mxu0 0
    %4174 = vmatpush1.bf16.msra.mxu0 %v3017
    %4175 = vmatprep.subr.bf16.mxu0 0
    %4176 = vmatpush1.bf16.msra.mxu0 %v3018
    %4177 = vmatprep.subr.bf16.mxu0 0
    %4178 = vmatpush1.bf16.msra.mxu0 %v3019
    %4179 = vmatprep.subr.bf16.mxu0 0
    %4180 = vmatpush1.bf16.msra.mxu0 %v3020
    %4181 = vmatprep.subr.bf16.mxu0 0
    %4182 = vmatpush1.bf16.msra.mxu0 %v3021
    %4183 = vmatprep.subr.bf16.mxu0 0
    %4184 = vmatpush1.bf16.msra.mxu0 %v3022
    %4185 = vmatprep.subr.bf16.mxu0 0
    %4186 = vmatpush1.bf16.msra.mxu0 %v3023
    %4187 = vmatprep.subr.bf16.mxu0 0
    %4188 = vmatpush1.bf16.msra.mxu0 %v3024
    %4189 = vmatprep.subr.bf16.mxu0 0
    %4190 = vmatpush1.bf16.msra.mxu0 %v3025
    %4191 = vmatprep.subr.bf16.mxu0 0
    %4192 = vmatpush1.bf16.msra.mxu0 %v3026
    %4193 = vmatprep.subr.bf16.mxu0 0
    %4194 = vmatpush1.bf16.msra.mxu0 %v3027
    %4195 = vmatprep.subr.bf16.mxu0 0
    %4196 = vmatpush1.bf16.msra.mxu0 %v3028
    %4197 = vmatprep.subr.bf16.mxu0 0
    %4198 = vmatpush1.bf16.msra.mxu0 %v3029
    %4199 = vmatprep.subr.bf16.mxu0 0
    %4200 = vmatpush1.bf16.msra.mxu0 %v3030
    %4201 = vmatprep.subr.bf16.mxu0 0
    %4202 = vmatpush1.bf16.msra.mxu0 %v3031
    %4203 = vmatprep.subr.bf16.mxu0 0
    %4204 = vmatpush1.bf16.msra.mxu0 %v3032
    %4205 = vmatprep.mubr.bf16.mxu0 %v2121
    %4206 = vmatmul.mubr.bf16.gmra.mrb[0].mxu0 %v2115
    %v4207 = vpop.f32.mrb[0].mxu0
    %v4208 = vadd.f32 %v4159, %v4207
    %v4209 = vpop.f32.mrb[0].mxu0
    %v4210 = vpop.f32.mrb[0].mxu0
    %v4211 = vadd.f32 %v4162, %v4210
    %v4212 = vpop.f32.mrb[0].mxu0
    %4213 = vmatprep.mubr.bf16.mxu0 %v2122
    %4214 = vmatmul.mubr.bf16.gmra.mrb[0].mxu0 %v2116
    %v4215 = vpop.f32.mrb[0].mxu0
    %v4216 = vadd.f32 %v4167, %v4215
    %v4217 = vpop.f32.mrb[0].mxu0
    %v4218 = vpop.f32.mrb[0].mxu0
    %v4219 = vadd.f32 %v4170, %v4218
    %v4220 = vpop.f32.mrb[0].mxu0
    %4221 = vdwg.mxu0
    %4222 = vmatprep.subr.bf16.mxu0 0
    %4223 = vmatpush1.bf16.msra.mxu0 %v3033
    %4224 = vmatprep.subr.bf16.mxu0 0
    %4225 = vmatpush1.bf16.msra.mxu0 %v3034
    %4226 = vmatprep.subr.bf16.mxu0 0
    %4227 = vmatpush1.bf16.msra.mxu0 %v3035
    %4228 = vmatprep.subr.bf16.mxu0 0
    %4229 = vmatpush1.bf16.msra.mxu0 %v3036
    %4230 = vmatprep.subr.bf16.mxu0 0
    %4231 = vmatpush1.bf16.msra.mxu0 %v3037
    %4232 = vmatprep.subr.bf16.mxu0 0
    %4233 = vmatpush1.bf16.msra.mxu0 %v3038
    %4234 = vmatprep.subr.bf16.mxu0 0
    %4235 = vmatpush1.bf16.msra.mxu0 %v3039
    %4236 = vmatprep.subr.bf16.mxu0 0
    %4237 = vmatpush1.bf16.msra.mxu0 %v3040
    %4238 = vmatprep.subr.bf16.mxu0 0
    %4239 = vmatpush1.bf16.msra.mxu0 %v3041
    %4240 = vmatprep.subr.bf16.mxu0 0
    %4241 = vmatpush1.bf16.msra.mxu0 %v3042
    %4242 = vmatprep.subr.bf16.mxu0 0
    %4243 = vmatpush1.bf16.msra.mxu0 %v3043
    %4244 = vmatprep.subr.bf16.mxu0 0
    %4245 = vmatpush1.bf16.msra.mxu0 %v3044
    %4246 = vmatprep.subr.bf16.mxu0 0
    %4247 = vmatpush1.bf16.msra.mxu0 %v3045
    %4248 = vmatprep.subr.bf16.mxu0 0
    %4249 = vmatpush1.bf16.msra.mxu0 %v3046
    %4250 = vmatprep.subr.bf16.mxu0 0
    %4251 = vmatpush1.bf16.msra.mxu0 %v3047
    %4252 = vmatprep.subr.bf16.mxu0 0
    %4253 = vmatpush1.bf16.msra.mxu0 %v3048
    %4254 = vmatprep.mubr.bf16.mxu0 %v4016
    %4255 = vmatmul.mubr.bf16.gmra.mrb[0].mxu0 %v2127
    %v4256 = vpop.f32.mrb[0].mxu0
    %v4257 = vadd.f32 %v4208, %v4256
    %v4258 = vpop.f32.mrb[0].mxu0
    %v4259 = vpop.f32.mrb[0].mxu0
    %v4260 = vadd.f32 %v4211, %v4259
    %v4261 = vpop.f32.mrb[0].mxu0
    %4262 = vmatprep.mubr.bf16.mxu0 %v4017
    %4263 = vmatmul.mubr.bf16.gmra.mrb[0].mxu0 %v2128
    %v4264 = vpop.f32.mrb[0].mxu0
    %v4265 = vadd.f32 %v4216, %v4264
    %v4266 = vpop.f32.mrb[0].mxu0
    %v4267 = vpop.f32.mrb[0].mxu0
    %v4268 = vadd.f32 %v4219, %v4267
    %v4269 = vpop.f32.mrb[0].mxu0
    %4270 = vdwg.mxu0
    %4271 = vmatprep.subr.bf16.mxu0 0
    %4272 = vmatpush1.bf16.msra.mxu0 %v3049
    %4273 = vmatprep.subr.bf16.mxu0 0
    %4274 = vmatpush1.bf16.msra.mxu0 %v3050
    %4275 = vmatprep.subr.bf16.mxu0 0
    %4276 = vmatpush1.bf16.msra.mxu0 %v3051
    %4277 = vmatprep.subr.bf16.mxu0 0
    %4278 = vmatpush1.bf16.msra.mxu0 %v3052
    %4279 = vmatprep.subr.bf16.mxu0 0
    %4280 = vmatpush1.bf16.msra.mxu0 %v3053
    %4281 = vmatprep.subr.bf16.mxu0 0
    %4282 = vmatpush1.bf16.msra.mxu0 %v3054
    %4283 = vmatprep.subr.bf16.mxu0 0
    %4284 = vmatpush1.bf16.msra.mxu0 %v3055
    %4285 = vmatprep.subr.bf16.mxu0 0
    %4286 = vmatpush1.bf16.msra.mxu0 %v3056
    %4287 = vmatprep.subr.bf16.mxu0 0
    %4288 = vmatpush1.bf16.msra.mxu0 %v3057
    %4289 = vmatprep.subr.bf16.mxu0 0
    %4290 = vmatpush1.bf16.msra.mxu0 %v3058
    %4291 = vmatprep.subr.bf16.mxu0 0
    %4292 = vmatpush1.bf16.msra.mxu0 %v3059
    %4293 = vmatprep.subr.bf16.mxu0 0
    %4294 = vmatpush1.bf16.msra.mxu0 %v3060
    %4295 = vmatprep.subr.bf16.mxu0 0
    %4296 = vmatpush1.bf16.msra.mxu0 %v3061
    %4297 = vmatprep.subr.bf16.mxu0 0
    %4298 = vmatpush1.bf16.msra.mxu0 %v3062
    %4299 = vmatprep.subr.bf16.mxu0 0
    %4300 = vmatpush1.bf16.msra.mxu0 %v3063
    %4301 = vmatprep.subr.bf16.mxu0 0
    %4302 = vmatpush1.bf16.msra.mxu0 %v3064
    %4303 = vmatprep.mubr.bf16.mxu0 %v2136
    %4304 = vmatmul.mubr.bf16.gmra.mrb[0].mxu0 %v2133
    %v4305 = vpop.f32.mrb[0].mxu0
    %v4306 = vadd.f32 %v4257, %v4305
    %v4307 = vpop.f32.mrb[0].mxu0
    %v4308 = vpop.f32.mrb[0].mxu0
    %v4309 = vadd.f32 %v4260, %v4308
    %v4310 = vpop.f32.mrb[0].mxu0
    %4311 = vmatprep.mubr.bf16.mxu0 %v2137
    %4312 = vmatmul.mubr.bf16.gmra.mrb[0].mxu0 %v2134
    %v4313 = vpop.f32.mrb[0].mxu0
    %v4314 = vadd.f32 %v4265, %v4313
    %v4315 = vpop.f32.mrb[0].mxu0
    %v4316 = vpop.f32.mrb[0].mxu0
    %v4317 = vadd.f32 %v4268, %v4316
    %v4318 = vpop.f32.mrb[0].mxu0
    %4319 = vdwg.mxu0
    %4320 = vmatprep.subr.bf16.mxu0 0
    %4321 = vmatpush1.bf16.msra.mxu0 %v3065
    %4322 = vmatprep.subr.bf16.mxu0 0
    %4323 = vmatpush1.bf16.msra.mxu0 %v3066
    %4324 = vmatprep.subr.bf16.mxu0 0
    %4325 = vmatpush1.bf16.msra.mxu0 %v3067
    %4326 = vmatprep.subr.bf16.mxu0 0
    %4327 = vmatpush1.bf16.msra.mxu0 %v3068
    %4328 = vmatprep.subr.bf16.mxu0 0
    %4329 = vmatpush1.bf16.msra.mxu0 %v3069
    %4330 = vmatprep.subr.bf16.mxu0 0
    %4331 = vmatpush1.bf16.msra.mxu0 %v3070
    %4332 = vmatprep.subr.bf16.mxu0 0
    %4333 = vmatpush1.bf16.msra.mxu0 %v3071
    %4334 = vmatprep.subr.bf16.mxu0 0
    %4335 = vmatpush1.bf16.msra.mxu0 %v3072
    %4336 = vmatprep.subr.bf16.mxu0 0
    %4337 = vmatpush1.bf16.msra.mxu0 %v3073
    %4338 = vmatprep.subr.bf16.mxu0 0
    %4339 = vmatpush1.bf16.msra.mxu0 %v3074
    %4340 = vmatprep.subr.bf16.mxu0 0
    %4341 = vmatpush1.bf16.msra.mxu0 %v3075
    %4342 = vmatprep.subr.bf16.mxu0 0
    %4343 = vmatpush1.bf16.msra.mxu0 %v3076
    %4344 = vmatprep.subr.bf16.mxu0 0
    %4345 = vmatpush1.bf16.msra.mxu0 %v3077
    %4346 = vmatprep.subr.bf16.mxu0 0
    %4347 = vmatpush1.bf16.msra.mxu0 %v3078
    %4348 = vmatprep.subr.bf16.mxu0 0
    %4349 = vmatpush1.bf16.msra.mxu0 %v3079
    %4350 = vmatprep.subr.bf16.mxu0 0
    %4351 = vmatpush1.bf16.msra.mxu0 %v3080
    %4352 = vmatprep.mubr.bf16.mxu0 %v2142
    %4353 = vmatmul.mubr.bf16.gmra.mrb[0].mxu0 %v2139
    %v4354 = vpop.f32.mrb[0].mxu0
    %v4355 = vadd.f32 %v4306, %v4354
    %v4356 = vpop.f32.mrb[0].mxu0
    %v4357 = vpop.f32.mrb[0].mxu0
    %v4358 = vadd.f32 %v4309, %v4357
    %v4359 = vpop.f32.mrb[0].mxu0
    %4360 = vmatprep.mubr.bf16.mxu0 %v2143
    %4361 = vmatmul.mubr.bf16.gmra.mrb[0].mxu0 %v2140
    %v4362 = vpop.f32.mrb[0].mxu0
    %v4363 = vadd.f32 %v4314, %v4362
    %v4364 = vpop.f32.mrb[0].mxu0
    %v4365 = vpop.f32.mrb[0].mxu0
    %v4366 = vadd.f32 %v4317, %v4365
    %v4367 = vpop.f32.mrb[0].mxu0
    %4368 = vdwg.mxu0
    %4369 = vmatprep.subr.bf16.mxu0 0
    %4370 = vmatpush1.bf16.msra.mxu0 %v3081
    %4371 = vmatprep.subr.bf16.mxu0 0
    %4372 = vmatpush1.bf16.msra.mxu0 %v3082
    %4373 = vmatprep.subr.bf16.mxu0 0
    %4374 = vmatpush1.bf16.msra.mxu0 %v3083
    %4375 = vmatprep.subr.bf16.mxu0 0
    %4376 = vmatpush1.bf16.msra.mxu0 %v3084
    %4377 = vmatprep.subr.bf16.mxu0 0
    %4378 = vmatpush1.bf16.msra.mxu0 %v3085
    %4379 = vmatprep.subr.bf16.mxu0 0
    %4380 = vmatpush1.bf16.msra.mxu0 %v3086
    %4381 = vmatprep.subr.bf16.mxu0 0
    %4382 = vmatpush1.bf16.msra.mxu0 %v3087
    %4383 = vmatprep.subr.bf16.mxu0 0
    %4384 = vmatpush1.bf16.msra.mxu0 %v3088
    %4385 = vmatprep.subr.bf16.mxu0 0
    %4386 = vmatpush1.bf16.msra.mxu0 %v3089
    %4387 = vmatprep.subr.bf16.mxu0 0
    %4388 = vmatpush1.bf16.msra.mxu0 %v3090
    %4389 = vmatprep.subr.bf16.mxu0 0
    %4390 = vmatpush1.bf16.msra.mxu0 %v3091
    %4391 = vmatprep.subr.bf16.mxu0 0
    %4392 = vmatpush1.bf16.msra.mxu0 %v3092
    %4393 = vmatprep.subr.bf16.mxu0 0
    %4394 = vmatpush1.bf16.msra.mxu0 %v3093
    %4395 = vmatprep.subr.bf16.mxu0 0
    %4396 = vmatpush1.bf16.msra.mxu0 %v3094
    %4397 = vmatprep.subr.bf16.mxu0 0
    %4398 = vmatpush1.bf16.msra.mxu0 %v3095
    %4399 = vmatprep.subr.bf16.mxu0 0
    %4400 = vmatpush1.bf16.msra.mxu0 %v3096
    %4401 = vmatprep.mubr.bf16.mxu0 %v2148
    %4402 = vmatmul.mubr.bf16.gmra.mrb[0].mxu0 %v4019
    %v4403 = vpop.f32.mrb[0].mxu0
    %v4404 = vadd.f32 %v4355, %v4403
    %v4405 = vpop.f32.mrb[0].mxu0
    %v4406 = vpop.f32.mrb[0].mxu0
    %v4407 = vadd.f32 %v4358, %v4406
    %v4408 = vpop.f32.mrb[0].mxu0
    %4409 = vmatprep.mubr.bf16.mxu0 %v2149
    %4410 = vmatmul.mubr.bf16.gmra.mrb[0].mxu0 %v4020
    %v4411 = vpop.f32.mrb[0].mxu0
    %v4412 = vadd.f32 %v4363, %v4411
    %v4413 = vpop.f32.mrb[0].mxu0
    %v4414 = vpop.f32.mrb[0].mxu0
    %v4415 = vadd.f32 %v4366, %v4414
    %v4416 = vpop.f32.mrb[0].mxu0
    %4417 = vdwg.mxu0
    %4418 = vmatprep.subr.bf16.mxu0 0
    %4419 = vmatpush1.bf16.msra.mxu0 %v3097
    %4420 = vmatprep.subr.bf16.mxu0 0
    %4421 = vmatpush1.bf16.msra.mxu0 %v3098
    %4422 = vmatprep.subr.bf16.mxu0 0
    %4423 = vmatpush1.bf16.msra.mxu0 %v3099
    %4424 = vmatprep.subr.bf16.mxu0 0
    %4425 = vmatpush1.bf16.msra.mxu0 %v3100
    %4426 = vmatprep.subr.bf16.mxu0 0
    %4427 = vmatpush1.bf16.msra.mxu0 %v3101
    %4428 = vmatprep.subr.bf16.mxu0 0
    %4429 = vmatpush1.bf16.msra.mxu0 %v3102
    %4430 = vmatprep.subr.bf16.mxu0 0
    %4431 = vmatpush1.bf16.msra.mxu0 %v3103
    %4432 = vmatprep.subr.bf16.mxu0 0
    %4433 = vmatpush1.bf16.msra.mxu0 %v3104
    %4434 = vmatprep.subr.bf16.mxu0 0
    %4435 = vmatpush1.bf16.msra.mxu0 %v3105
    %4436 = vmatprep.subr.bf16.mxu0 0
    %4437 = vmatpush1.bf16.msra.mxu0 %v3106
    %4438 = vmatprep.subr.bf16.mxu0 0
    %4439 = vmatpush1.bf16.msra.mxu0 %v3107
    %4440 = vmatprep.subr.bf16.mxu0 0
    %4441 = vmatpush1.bf16.msra.mxu0 %v3108
    %4442 = vmatprep.subr.bf16.mxu0 0
    %4443 = vmatpush1.bf16.msra.mxu0 %v3109
    %4444 = vmatprep.subr.bf16.mxu0 0
    %4445 = vmatpush1.bf16.msra.mxu0 %v3110
    %4446 = vmatprep.subr.bf16.mxu0 0
    %4447 = vmatpush1.bf16.msra.mxu0 %v3111
    %4448 = vmatprep.subr.bf16.mxu0 0
    %4449 = vmatpush1.bf16.msra.mxu0 %v3112
    %4450 = vmatprep.mubr.bf16.mxu0 %v2154
    %4451 = vmatmul.mubr.bf16.gmra.mrb[0].mxu0 %v2151
    %v4452 = vpop.f32.mrb[0].mxu0
    %v4453 = vadd.f32 %v4404, %v4452
    %v4454 = vpop.f32.mrb[0].mxu0
    %v4455 = vpop.f32.mrb[0].mxu0
    %v4456 = vadd.f32 %v4407, %v4455
    %v4457 = vpop.f32.mrb[0].mxu0
    %4458 = vmatprep.mubr.bf16.mxu0 %v2155
    %4459 = vmatmul.mubr.bf16.gmra.mrb[0].mxu0 %v2152
    %v4460 = vpop.f32.mrb[0].mxu0
    %v4461 = vadd.f32 %v4412, %v4460
    %v4462 = vpop.f32.mrb[0].mxu0
    %v4463 = vpop.f32.mrb[0].mxu0
    %v4464 = vadd.f32 %v4415, %v4463
    %v4465 = vpop.f32.mrb[0].mxu0
    %4466 = vdwg.mxu0
    %4467 = vmatprep.subr.bf16.mxu0 0
    %4468 = vmatpush1.bf16.msra.mxu0 %v3113
    %4469 = vmatprep.subr.bf16.mxu0 0
    %4470 = vmatpush1.bf16.msra.mxu0 %v3114
    %4471 = vmatprep.subr.bf16.mxu0 0
    %4472 = vmatpush1.bf16.msra.mxu0 %v3115
    %4473 = vmatprep.subr.bf16.mxu0 0
    %4474 = vmatpush1.bf16.msra.mxu0 %v3116
    %4475 = vmatprep.subr.bf16.mxu0 0
    %4476 = vmatpush1.bf16.msra.mxu0 %v3117
    %4477 = vmatprep.subr.bf16.mxu0 0
    %4478 = vmatpush1.bf16.msra.mxu0 %v3118
    %4479 = vmatprep.subr.bf16.mxu0 0
    %4480 = vmatpush1.bf16.msra.mxu0 %v3119
    %4481 = vmatprep.subr.bf16.mxu0 0
    %4482 = vmatpush1.bf16.msra.mxu0 %v3120
    %4483 = vmatprep.subr.bf16.mxu0 0
    %4484 = vmatpush1.bf16.msra.mxu0 %v3121
    %4485 = vmatprep.subr.bf16.mxu0 0
    %4486 = vmatpush1.bf16.msra.mxu0 %v3122
    %4487 = vmatprep.subr.bf16.mxu0 0
    %4488 = vmatpush1.bf16.msra.mxu0 %v3123
    %4489 = vmatprep.subr.bf16.mxu0 0
    %4490 = vmatpush1.bf16.msra.mxu0 %v3124
    %4491 = vmatprep.subr.bf16.mxu0 0
    %4492 = vmatpush1.bf16.msra.mxu0 %v3125
    %4493 = vmatprep.subr.bf16.mxu0 0
    %4494 = vmatpush1.bf16.msra.mxu0 %v3126
    %4495 = vmatprep.subr.bf16.mxu0 0
    %4496 = vmatpush1.bf16.msra.mxu0 %v3127
    %4497 = vmatprep.subr.bf16.mxu0 0
    %4498 = vmatpush1.bf16.msra.mxu0 %v3128
    %4499 = vmatprep.mubr.bf16.mxu0 %v4022
    %4500 = vmatmul.mubr.bf16.gmra.mrb[0].mxu0 %v2157
    %v4501 = vpop.f32.mrb[0].mxu0
    %v4502 = vadd.f32 %v4453, %v4501
    %v4503 = vpop.f32.mrb[0].mxu0
    %v4504 = vpop.f32.mrb[0].mxu0
    %v4505 = vadd.f32 %v4456, %v4504
    %v4506 = vpop.f32.mrb[0].mxu0
    %4507 = vmatprep.mubr.bf16.mxu0 %v4023
    %4508 = vmatmul.mubr.bf16.gmra.mrb[0].mxu0 %v2158
    %v4509 = vpop.f32.mrb[0].mxu0
    %v4510 = vadd.f32 %v4461, %v4509
    %v4511 = vpop.f32.mrb[0].mxu0
    %v4512 = vpop.f32.mrb[0].mxu0
    %v4513 = vadd.f32 %v4464, %v4512
    %v4514 = vpop.f32.mrb[0].mxu0
    %4515 = vdwg.mxu0
    %4516 = vmatprep.subr.bf16.mxu0 0
    %4517 = vmatpush1.bf16.msra.mxu0 %v3129
    %4518 = vmatprep.subr.bf16.mxu0 0
    %4519 = vmatpush1.bf16.msra.mxu0 %v3130
    %4520 = vmatprep.subr.bf16.mxu0 0
    %4521 = vmatpush1.bf16.msra.mxu0 %v3131
    %4522 = vmatprep.subr.bf16.mxu0 0
    %4523 = vmatpush1.bf16.msra.mxu0 %v3132
    %4524 = vmatprep.subr.bf16.mxu0 0
    %4525 = vmatpush1.bf16.msra.mxu0 %v3133
    %4526 = vmatprep.subr.bf16.mxu0 0
    %4527 = vmatpush1.bf16.msra.mxu0 %v3134
    %4528 = vmatprep.subr.bf16.mxu0 0
    %4529 = vmatpush1.bf16.msra.mxu0 %v3135
    %4530 = vmatprep.subr.bf16.mxu0 0
    %4531 = vmatpush1.bf16.msra.mxu0 %v3136
    %4532 = vmatprep.subr.bf16.mxu0 0
    %4533 = vmatpush1.bf16.msra.mxu0 %v3137
    %4534 = vmatprep.subr.bf16.mxu0 0
    %4535 = vmatpush1.bf16.msra.mxu0 %v3138
    %4536 = vmatprep.subr.bf16.mxu0 0
    %4537 = vmatpush1.bf16.msra.mxu0 %v3139
    %4538 = vmatprep.subr.bf16.mxu0 0
    %4539 = vmatpush1.bf16.msra.mxu0 %v3140
    %4540 = vmatprep.subr.bf16.mxu0 0
    %4541 = vmatpush1.bf16.msra.mxu0 %v3141
    %4542 = vmatprep.subr.bf16.mxu0 0
    %4543 = vmatpush1.bf16.msra.mxu0 %v3142
    %4544 = vmatprep.subr.bf16.mxu0 0
    %4545 = vmatpush1.bf16.msra.mxu0 %v3143
    %4546 = vmatprep.subr.bf16.mxu0 0
    %4547 = vmatpush1.bf16.msra.mxu0 %v3144
    %4548 = vmatprep.mubr.bf16.mxu0 %v2086
    %4549 = vmatmul.mubr.bf16.gmra.mrb[0].mxu0 %v2080
    %v4550 = vpop.f32.mrb[0].mxu0
    %v4551 = vadd.f32 %v4502, %v4550
    %v4552 = vpop.f32.mrb[0].mxu0
    %v4553 = vpop.f32.mrb[0].mxu0
    %v4554 = vadd.f32 %v4505, %v4553
    %v4555 = vpop.f32.mrb[0].mxu0
    %4556 = vmatprep.mubr.bf16.mxu0 %v2164
    %4557 = vmatmul.mubr.bf16.gmra.mrb[0].mxu0 %v2162
    %v4558 = vpop.f32.mrb[0].mxu0
    %v4559 = vadd.f32 %v4510, %v4558
    %v4560 = vpop.f32.mrb[0].mxu0
    %v4561 = vpop.f32.mrb[0].mxu0
    %v4562 = vadd.f32 %v4513, %v4561
    %v4563 = vpop.f32.mrb[0].mxu0
    %4564 = vdwg.mxu0
    %4565 = vmatprep.subr.bf16.mxu0 0
    %4566 = vmatpush1.bf16.msra.mxu0 %v3145
    %4567 = vmatprep.subr.bf16.mxu0 0
    %4568 = vmatpush1.bf16.msra.mxu0 %v3146
    %4569 = vmatprep.subr.bf16.mxu0 0
    %4570 = vmatpush1.bf16.msra.mxu0 %v3147
    %4571 = vmatprep.subr.bf16.mxu0 0
    %4572 = vmatpush1.bf16.msra.mxu0 %v3148
    %4573 = vmatprep.subr.bf16.mxu0 0
    %4574 = vmatpush1.bf16.msra.mxu0 %v3149
    %4575 = vmatprep.subr.bf16.mxu0 0
    %4576 = vmatpush1.bf16.msra.mxu0 %v3150
    %4577 = vmatprep.subr.bf16.mxu0 0
    %4578 = vmatpush1.bf16.msra.mxu0 %v3151
    %4579 = vmatprep.subr.bf16.mxu0 0
    %4580 = vmatpush1.bf16.msra.mxu0 %v3152
    %4581 = vmatprep.subr.bf16.mxu0 0
    %4582 = vmatpush1.bf16.msra.mxu0 %v3153
    %4583 = vmatprep.subr.bf16.mxu0 0
    %4584 = vmatpush1.bf16.msra.mxu0 %v3154
    %4585 = vmatprep.subr.bf16.mxu0 0
    %4586 = vmatpush1.bf16.msra.mxu0 %v3155
    %4587 = vmatprep.subr.bf16.mxu0 0
    %4588 = vmatpush1.bf16.msra.mxu0 %v3156
    %4589 = vmatprep.subr.bf16.mxu0 0
    %4590 = vmatpush1.bf16.msra.mxu0 %v3157
    %4591 = vmatprep.subr.bf16.mxu0 0
    %4592 = vmatpush1.bf16.msra.mxu0 %v3158
    %4593 = vmatprep.subr.bf16.mxu0 0
    %4594 = vmatpush1.bf16.msra.mxu0 %v3159
    %4595 = vmatprep.subr.bf16.mxu0 0
    %4596 = vmatpush1.bf16.msra.mxu0 %v3160
    %4597 = vmatprep.mubr.bf16.mxu0 %v2098
    %4598 = vmatmul.mubr.bf16.gmra.mrb[0].mxu0 %v2092
    %v4599 = vpop.f32.mrb[0].mxu0
    %v4600 = vadd.f32 %v4551, %v4599
    %v4601 = vpop.f32.mrb[0].mxu0
    %v4602 = vpop.f32.mrb[0].mxu0
    %v4603 = vadd.f32 %v4554, %v4602
    %v4604 = vpop.f32.mrb[0].mxu0
    %4605 = vmatprep.mubr.bf16.mxu0 %v2168
    %4606 = vmatmul.mubr.bf16.gmra.mrb[0].mxu0 %v2166
    %v4607 = vpop.f32.mrb[0].mxu0
    %v4608 = vadd.f32 %v4559, %v4607
    %v4609 = vpop.f32.mrb[0].mxu0
    %v4610 = vpop.f32.mrb[0].mxu0
    %v4611 = vadd.f32 %v4562, %v4610
    %v4612 = vpop.f32.mrb[0].mxu0
    %4613 = vdwg.mxu0
    %4614 = vmatprep.subr.bf16.mxu0 0
    %4615 = vmatpush1.bf16.msra.mxu0 %v3161
    %4616 = vmatprep.subr.bf16.mxu0 0
    %4617 = vmatpush1.bf16.msra.mxu0 %v3162
    %4618 = vmatprep.subr.bf16.mxu0 0
    %4619 = vmatpush1.bf16.msra.mxu0 %v3163
    %4620 = vmatprep.subr.bf16.mxu0 0
    %4621 = vmatpush1.bf16.msra.mxu0 %v3164
    %4622 = vmatprep.subr.bf16.mxu0 0
    %4623 = vmatpush1.bf16.msra.mxu0 %v3165
    %4624 = vmatprep.subr.bf16.mxu0 0
    %4625 = vmatpush1.bf16.msra.mxu0 %v3166
    %4626 = vmatprep.subr.bf16.mxu0 0
    %4627 = vmatpush1.bf16.msra.mxu0 %v3167
    %4628 = vmatprep.subr.bf16.mxu0 0
    %4629 = vmatpush1.bf16.msra.mxu0 %v3168
    %4630 = vmatprep.subr.bf16.mxu0 0
    %4631 = vmatpush1.bf16.msra.mxu0 0
    %4632 = vmatprep.subr.bf16.mxu0 0
    %4633 = vmatpush1.bf16.msra.mxu0 0
    %4634 = vmatprep.subr.bf16.mxu0 0
    %4635 = vmatpush1.bf16.msra.mxu0 0
    %4636 = vmatprep.subr.bf16.mxu0 0
    %4637 = vmatpush1.bf16.msra.mxu0 0
    %4638 = vmatprep.subr.bf16.mxu0 0
    %4639 = vmatpush1.bf16.msra.mxu0 0
    %4640 = vmatprep.subr.bf16.mxu0 0
    %4641 = vmatpush1.bf16.msra.mxu0 0
    %4642 = vmatprep.subr.bf16.mxu0 0
    %4643 = vmatpush1.bf16.msra.mxu0 0
    %4644 = vmatprep.subr.bf16.mxu0 0
    %4645 = vmatpush1.bf16.msra.mxu0 0
    %4646 = vmatprep.mubr.bf16.mxu0 0
    %4647 = vmatmul.mubr.bf16.gmra.mrb[0].mxu0 %v4011
    %v4648 = vpop.f32.mrb[0].mxu0
    %v4649 = vadd.f32 %v4600, %v4648
    %v4650 = vpop.f32.mrb[0].mxu0
    %v4651 = vpop.f32.mrb[0].mxu0
    %v4652 = vadd.f32 %v4603, %v4651
    %v4653 = vpop.f32.mrb[0].mxu0
    %4654 = vmatprep.mubr.bf16.mxu0 0
    %4655 = vmatmul.mubr.bf16.gmra.mrb[0].mxu0 %v4025
    %v4656 = vpop.f32.mrb[0].mxu0
    %v4657 = vadd.f32 %v4608, %v4656
    %v4658 = vpop.f32.mrb[0].mxu0
    %v4659 = vpop.f32.mrb[0].mxu0
    %v4660 = vadd.f32 %v4611, %v4659
    %v4661 = vpop.f32.mrb[0].mxu0
    %4662 = vdwg.mxu0
    %v4663 = vld [vmem:[#allocation2 + $0xcc] sm:$0xff]
    %v4664 = vpack.c.bf16 %v4663, %v2144
    %v4665 = vld [vmem:[#allocation2 + $0x114] sm:$0xff]
    %v4666 = vpack.c.bf16 %v4665, %v2147
    %v4667 = vld [vmem:[#allocation2 + $0xce] sm:$0xff]
    %v4668 = vpack.c.bf16 %v4667, %v2150
    %v4669 = vld [vmem:[#allocation2 + $0x116] sm:$0xff]
    %v4670 = vpack.c.bf16 %v4669, %v2153
    %v4671 = vld [vmem:[#allocation2 + $0xd0] sm:$0xff]
    %v4672 = vpack.c.bf16 %v4671, %v2156
    %4673 = vmatprep.subr.bf16.mxu0 0
    %4674 = vmatpush1.bf16.msra.mxu0 %v2969
    %4675 = vmatprep.subr.bf16.mxu0 0
    %4676 = vmatpush1.bf16.msra.mxu0 %v2970
    %4677 = vmatprep.subr.bf16.mxu0 0
    %4678 = vmatpush1.bf16.msra.mxu0 %v2971
    %4679 = vmatprep.subr.bf16.mxu0 0
    %4680 = vmatpush1.bf16.msra.mxu0 %v2972
    %4681 = vmatprep.subr.bf16.mxu0 0
    %4682 = vmatpush1.bf16.msra.mxu0 %v2973
    %4683 = vmatprep.subr.bf16.mxu0 0
    %4684 = vmatpush1.bf16.msra.mxu0 %v2974
    %4685 = vmatprep.subr.bf16.mxu0 0
    %4686 = vmatpush1.bf16.msra.mxu0 %v2975
    %4687 = vmatprep.subr.bf16.mxu0 0
    %4688 = vmatpush1.bf16.msra.mxu0 %v2976
    %4689 = vmatprep.subr.bf16.mxu0 0
    %4690 = vmatpush1.bf16.msra.mxu0 %v2977
    %4691 = vmatprep.subr.bf16.mxu0 0
    %4692 = vmatpush1.bf16.msra.mxu0 %v2978
    %4693 = vmatprep.subr.bf16.mxu0 0
    %4694 = vmatpush1.bf16.msra.mxu0 %v2979
    %4695 = vmatprep.subr.bf16.mxu0 0
    %4696 = vmatpush1.bf16.msra.mxu0 %v2980
    %4697 = vmatprep.subr.bf16.mxu0 0
    %4698 = vmatpush1.bf16.msra.mxu0 %v2981
    %4699 = vmatprep.subr.bf16.mxu0 0
    %4700 = vmatpush1.bf16.msra.mxu0 %v2982
    %4701 = vmatprep.subr.bf16.mxu0 0
    %4702 = vmatpush1.bf16.msra.mxu0 %v2983
    %4703 = vmatprep.subr.bf16.mxu0 0
    %4704 = vmatpush1.bf16.msra.mxu0 %v2984
    %4705 = vmatprep.mubr.bf16.mxu0 %v2109
    %4706 = vmatmul.mubr.bf16.gmra.mrb[0].mxu0 %v2103
    %v4707 = vpop.f32.mrb[0].mxu0
    %v4708 = vadd.f32 0.0, %v4707
    %v4709 = vpop.f32.mrb[0].mxu0
    %v4710 = vpop.f32.mrb[0].mxu0
    %v4711 = vadd.f32 0.0, %v4710
    %v4712 = vpop.f32.mrb[0].mxu0
    %4713 = vmatprep.mubr.bf16.mxu0 %v2110
    %4714 = vmatmul.mubr.bf16.gmra.mrb[0].mxu0 %v2104
    %v4715 = vpop.f32.mrb[0].mxu0
    %v4716 = vadd.f32 0.0, %v4715
    %v4717 = vpop.f32.mrb[0].mxu0
    %v4718 = vpop.f32.mrb[0].mxu0
    %v4719 = vadd.f32 0.0, %v4718
    %v4720 = vpop.f32.mrb[0].mxu0
    %4721 = vdwg.mxu0
    %4722 = vmatprep.subr.bf16.mxu0 0
    %4723 = vmatpush1.bf16.msra.mxu0 %v2985
    %4724 = vmatprep.subr.bf16.mxu0 0
    %4725 = vmatpush1.bf16.msra.mxu0 %v2986
    %4726 = vmatprep.subr.bf16.mxu0 0
    %4727 = vmatpush1.bf16.msra.mxu0 %v2987
    %4728 = vmatprep.subr.bf16.mxu0 0
    %4729 = vmatpush1.bf16.msra.mxu0 %v2988
    %4730 = vmatprep.subr.bf16.mxu0 0
    %4731 = vmatpush1.bf16.msra.mxu0 %v2989
    %4732 = vmatprep.subr.bf16.mxu0 0
    %4733 = vmatpush1.bf16.msra.mxu0 %v2990
    %4734 = vmatprep.subr.bf16.mxu0 0
    %4735 = vmatpush1.bf16.msra.mxu0 %v2991
    %4736 = vmatprep.subr.bf16.mxu0 0
    %4737 = vmatpush1.bf16.msra.mxu0 %v2992
    %4738 = vmatprep.subr.bf16.mxu0 0
    %4739 = vmatpush1.bf16.msra.mxu0 %v2993
    %4740 = vmatprep.subr.bf16.mxu0 0
    %4741 = vmatpush1.bf16.msra.mxu0 %v2994
    %4742 = vmatprep.subr.bf16.mxu0 0
    %4743 = vmatpush1.bf16.msra.mxu0 %v2995
    %4744 = vmatprep.subr.bf16.mxu0 0
    %4745 = vmatpush1.bf16.msra.mxu0 %v2996
    %4746 = vmatprep.subr.bf16.mxu0 0
    %4747 = vmatpush1.bf16.msra.mxu0 %v2997
    %4748 = vmatprep.subr.bf16.mxu0 0
    %4749 = vmatpush1.bf16.msra.mxu0 %v2998
    %4750 = vmatprep.subr.bf16.mxu0 0
    %4751 = vmatpush1.bf16.msra.mxu0 %v2999
    %4752 = vmatprep.subr.bf16.mxu0 0
    %4753 = vmatpush1.bf16.msra.mxu0 %v3000
    %4754 = vmatprep.mubr.bf16.mxu0 %v2121
    %4755 = vmatmul.mubr.bf16.gmra.mrb[0].mxu0 %v2115
    %v4756 = vpop.f32.mrb[0].mxu0
    %v4757 = vadd.f32 %v4708, %v4756
    %v4758 = vpop.f32.mrb[0].mxu0
    %v4759 = vpop.f32.mrb[0].mxu0
    %v4760 = vadd.f32 %v4711, %v4759
    %v4761 = vpop.f32.mrb[0].mxu0
    %4762 = vmatprep.mubr.bf16.mxu0 %v2122
    %4763 = vmatmul.mubr.bf16.gmra.mrb[0].mxu0 %v2116
    %v4764 = vpop.f32.mrb[0].mxu0
    %v4765 = vadd.f32 %v4716, %v4764
    %v4766 = vpop.f32.mrb[0].mxu0
    %v4767 = vpop.f32.mrb[0].mxu0
    %v4768 = vadd.f32 %v4719, %v4767
    %v4769 = vpop.f32.mrb[0].mxu0
    %4770 = vdwg.mxu0
    %4771 = vmatprep.subr.bf16.mxu0 0
    %4772 = vmatpush1.bf16.msra.mxu0 %v3001
    %4773 = vmatprep.subr.bf16.mxu0 0
    %4774 = vmatpush1.bf16.msra.mxu0 %v3002
    %4775 = vmatprep.subr.bf16.mxu0 0
    %4776 = vmatpush1.bf16.msra.mxu0 %v3003
    %4777 = vmatprep.subr.bf16.mxu0 0
    %4778 = vmatpush1.bf16.msra.mxu0 %v3004
    %4779 = vmatprep.subr.bf16.mxu0 0
    %4780 = vmatpush1.bf16.msra.mxu0 %v3005
    %4781 = vmatprep.subr.bf16.mxu0 0
    %4782 = vmatpush1.bf16.msra.mxu0 %v3006
    %4783 = vmatprep.subr.bf16.mxu0 0
    %4784 = vmatpush1.bf16.msra.mxu0 %v3007
    %4785 = vmatprep.subr.bf16.mxu0 0
    %4786 = vmatpush1.bf16.msra.mxu0 %v3008
    %4787 = vmatprep.subr.bf16.mxu0 0
    %4788 = vmatpush1.bf16.msra.mxu0 %v3009
    %4789 = vmatprep.subr.bf16.mxu0 0
    %4790 = vmatpush1.bf16.msra.mxu0 %v3010
    %4791 = vmatprep.subr.bf16.mxu0 0
    %4792 = vmatpush1.bf16.msra.mxu0 %v3011
    %4793 = vmatprep.subr.bf16.mxu0 0
    %4794 = vmatpush1.bf16.msra.mxu0 %v3012
    %4795 = vmatprep.subr.bf16.mxu0 0
    %4796 = vmatpush1.bf16.msra.mxu0 %v3013
    %4797 = vmatprep.subr.bf16.mxu0 0
    %4798 = vmatpush1.bf16.msra.mxu0 %v3014
    %4799 = vmatprep.subr.bf16.mxu0 0
    %4800 = vmatpush1.bf16.msra.mxu0 %v3015
    %4801 = vmatprep.subr.bf16.mxu0 0
    %4802 = vmatpush1.bf16.msra.mxu0 %v3016
    %4803 = vmatprep.mubr.bf16.mxu0 %v2130
    %4804 = vmatmul.mubr.bf16.gmra.mrb[0].mxu0 %v2127
    %v4805 = vpop.f32.mrb[0].mxu0
    %v4806 = vadd.f32 %v4757, %v4805
    %v4807 = vpop.f32.mrb[0].mxu0
    %v4808 = vpop.f32.mrb[0].mxu0
    %v4809 = vadd.f32 %v4760, %v4808
    %v4810 = vpop.f32.mrb[0].mxu0
    %4811 = vmatprep.mubr.bf16.mxu0 %v2131
    %4812 = vmatmul.mubr.bf16.gmra.mrb[0].mxu0 %v2128
    %v4813 = vpop.f32.mrb[0].mxu0
    %v4814 = vadd.f32 %v4765, %v4813
    %v4815 = vpop.f32.mrb[0].mxu0
    %v4816 = vpop.f32.mrb[0].mxu0
    %v4817 = vadd.f32 %v4768, %v4816
    %v4818 = vpop.f32.mrb[0].mxu0
    %4819 = vdwg.mxu0
    %4820 = vmatprep.subr.bf16.mxu0 0
    %4821 = vmatpush1.bf16.msra.mxu0 %v3017
    %4822 = vmatprep.subr.bf16.mxu0 0
    %4823 = vmatpush1.bf16.msra.mxu0 %v3018
    %4824 = vmatprep.subr.bf16.mxu0 0
    %4825 = vmatpush1.bf16.msra.mxu0 %v3019
    %4826 = vmatprep.subr.bf16.mxu0 0
    %4827 = vmatpush1.bf16.msra.mxu0 %v3020
    %4828 = vmatprep.subr.bf16.mxu0 0
    %4829 = vmatpush1.bf16.msra.mxu0 %v3021
    %4830 = vmatprep.subr.bf16.mxu0 0
    %4831 = vmatpush1.bf16.msra.mxu0 %v3022
    %4832 = vmatprep.subr.bf16.mxu0 0
    %4833 = vmatpush1.bf16.msra.mxu0 %v3023
    %4834 = vmatprep.subr.bf16.mxu0 0
    %4835 = vmatpush1.bf16.msra.mxu0 %v3024
    %4836 = vmatprep.subr.bf16.mxu0 0
    %4837 = vmatpush1.bf16.msra.mxu0 %v3025
    %4838 = vmatprep.subr.bf16.mxu0 0
    %4839 = vmatpush1.bf16.msra.mxu0 %v3026
    %4840 = vmatprep.subr.bf16.mxu0 0
    %4841 = vmatpush1.bf16.msra.mxu0 %v3027
    %4842 = vmatprep.subr.bf16.mxu0 0
    %4843 = vmatpush1.bf16.msra.mxu0 %v3028
    %4844 = vmatprep.subr.bf16.mxu0 0
    %4845 = vmatpush1.bf16.msra.mxu0 %v3029
    %4846 = vmatprep.subr.bf16.mxu0 0
    %4847 = vmatpush1.bf16.msra.mxu0 %v3030
    %4848 = vmatprep.subr.bf16.mxu0 0
    %4849 = vmatpush1.bf16.msra.mxu0 %v3031
    %4850 = vmatprep.subr.bf16.mxu0 0
    %4851 = vmatpush1.bf16.msra.mxu0 %v3032
    %4852 = vmatprep.mubr.bf16.mxu0 %v2136
    %4853 = vmatmul.mubr.bf16.gmra.mrb[0].mxu0 %v2133
    %v4854 = vpop.f32.mrb[0].mxu0
    %v4855 = vadd.f32 %v4806, %v4854
    %v4856 = vpop.f32.mrb[0].mxu0
    %v4857 = vpop.f32.mrb[0].mxu0
    %v4858 = vadd.f32 %v4809, %v4857
    %v4859 = vpop.f32.mrb[0].mxu0
    %4860 = vmatprep.mubr.bf16.mxu0 %v2137
    %4861 = vmatmul.mubr.bf16.gmra.mrb[0].mxu0 %v2134
    %v4862 = vpop.f32.mrb[0].mxu0
    %v4863 = vadd.f32 %v4814, %v4862
    %v4864 = vpop.f32.mrb[0].mxu0
    %v4865 = vpop.f32.mrb[0].mxu0
    %v4866 = vadd.f32 %v4817, %v4865
    %v4867 = vpop.f32.mrb[0].mxu0
    %4868 = vdwg.mxu0
    %4869 = vmatprep.subr.bf16.mxu0 0
    %4870 = vmatpush1.bf16.msra.mxu0 %v3033
    %4871 = vmatprep.subr.bf16.mxu0 0
    %4872 = vmatpush1.bf16.msra.mxu0 %v3034
    %4873 = vmatprep.subr.bf16.mxu0 0
    %4874 = vmatpush1.bf16.msra.mxu0 %v3035
    %4875 = vmatprep.subr.bf16.mxu0 0
    %4876 = vmatpush1.bf16.msra.mxu0 %v3036
    %4877 = vmatprep.subr.bf16.mxu0 0
    %4878 = vmatpush1.bf16.msra.mxu0 %v3037
    %4879 = vmatprep.subr.bf16.mxu0 0
    %4880 = vmatpush1.bf16.msra.mxu0 %v3038
    %4881 = vmatprep.subr.bf16.mxu0 0
    %4882 = vmatpush1.bf16.msra.mxu0 %v3039
    %4883 = vmatprep.subr.bf16.mxu0 0
    %4884 = vmatpush1.bf16.msra.mxu0 %v3040
    %4885 = vmatprep.subr.bf16.mxu0 0
    %4886 = vmatpush1.bf16.msra.mxu0 %v3041
    %4887 = vmatprep.subr.bf16.mxu0 0
    %4888 = vmatpush1.bf16.msra.mxu0 %v3042
    %4889 = vmatprep.subr.bf16.mxu0 0
    %4890 = vmatpush1.bf16.msra.mxu0 %v3043
    %4891 = vmatprep.subr.bf16.mxu0 0
    %4892 = vmatpush1.bf16.msra.mxu0 %v3044
    %4893 = vmatprep.subr.bf16.mxu0 0
    %4894 = vmatpush1.bf16.msra.mxu0 %v3045
    %4895 = vmatprep.subr.bf16.mxu0 0
    %4896 = vmatpush1.bf16.msra.mxu0 %v3046
    %4897 = vmatprep.subr.bf16.mxu0 0
    %4898 = vmatpush1.bf16.msra.mxu0 %v3047
    %4899 = vmatprep.subr.bf16.mxu0 0
    %4900 = vmatpush1.bf16.msra.mxu0 %v3048
    %4901 = vmatprep.mubr.bf16.mxu0 %v2142
    %4902 = vmatmul.mubr.bf16.gmra.mrb[0].mxu0 %v2139
    %v4903 = vpop.f32.mrb[0].mxu0
    %v4904 = vadd.f32 %v4855, %v4903
    %v4905 = vpop.f32.mrb[0].mxu0
    %v4906 = vpop.f32.mrb[0].mxu0
    %v4907 = vadd.f32 %v4858, %v4906
    %v4908 = vpop.f32.mrb[0].mxu0
    %4909 = vmatprep.mubr.bf16.mxu0 %v2143
    %4910 = vmatmul.mubr.bf16.gmra.mrb[0].mxu0 %v2140
    %v4911 = vpop.f32.mrb[0].mxu0
    %v4912 = vadd.f32 %v4863, %v4911
    %v4913 = vpop.f32.mrb[0].mxu0
    %v4914 = vpop.f32.mrb[0].mxu0
    %v4915 = vadd.f32 %v4866, %v4914
    %v4916 = vpop.f32.mrb[0].mxu0
    %4917 = vdwg.mxu0
    %4918 = vmatprep.subr.bf16.mxu0 0
    %4919 = vmatpush1.bf16.msra.mxu0 %v3049
    %4920 = vmatprep.subr.bf16.mxu0 0
    %4921 = vmatpush1.bf16.msra.mxu0 %v3050
    %4922 = vmatprep.subr.bf16.mxu0 0
    %4923 = vmatpush1.bf16.msra.mxu0 %v3051
    %4924 = vmatprep.subr.bf16.mxu0 0
    %4925 = vmatpush1.bf16.msra.mxu0 %v3052
    %4926 = vmatprep.subr.bf16.mxu0 0
    %4927 = vmatpush1.bf16.msra.mxu0 %v3053
    %4928 = vmatprep.subr.bf16.mxu0 0
    %4929 = vmatpush1.bf16.msra.mxu0 %v3054
    %4930 = vmatprep.subr.bf16.mxu0 0
    %4931 = vmatpush1.bf16.msra.mxu0 %v3055
    %4932 = vmatprep.subr.bf16.mxu0 0
    %4933 = vmatpush1.bf16.msra.mxu0 %v3056
    %4934 = vmatprep.subr.bf16.mxu0 0
    %4935 = vmatpush1.bf16.msra.mxu0 %v3057
    %4936 = vmatprep.subr.bf16.mxu0 0
    %4937 = vmatpush1.bf16.msra.mxu0 %v3058
    %4938 = vmatprep.subr.bf16.mxu0 0
    %4939 = vmatpush1.bf16.msra.mxu0 %v3059
    %4940 = vmatprep.subr.bf16.mxu0 0
    %4941 = vmatpush1.bf16.msra.mxu0 %v3060
    %4942 = vmatprep.subr.bf16.mxu0 0
    %4943 = vmatpush1.bf16.msra.mxu0 %v3061
    %4944 = vmatprep.subr.bf16.mxu0 0
    %4945 = vmatpush1.bf16.msra.mxu0 %v3062
    %4946 = vmatprep.subr.bf16.mxu0 0
    %4947 = vmatpush1.bf16.msra.mxu0 %v3063
    %4948 = vmatprep.subr.bf16.mxu0 0
    %4949 = vmatpush1.bf16.msra.mxu0 %v3064
    %4950 = vmatprep.mubr.bf16.mxu0 %v2148
    %4951 = vmatmul.mubr.bf16.gmra.mrb[0].mxu0 %v2145
    %v4952 = vpop.f32.mrb[0].mxu0
    %v4953 = vadd.f32 %v4904, %v4952
    %v4954 = vpop.f32.mrb[0].mxu0
    %v4955 = vpop.f32.mrb[0].mxu0
    %v4956 = vadd.f32 %v4907, %v4955
    %v4957 = vpop.f32.mrb[0].mxu0
    %4958 = vmatprep.mubr.bf16.mxu0 %v2149
    %4959 = vmatmul.mubr.bf16.gmra.mrb[0].mxu0 %v2146
    %v4960 = vpop.f32.mrb[0].mxu0
    %v4961 = vadd.f32 %v4912, %v4960
    %v4962 = vpop.f32.mrb[0].mxu0
    %v4963 = vpop.f32.mrb[0].mxu0
    %v4964 = vadd.f32 %v4915, %v4963
    %v4965 = vpop.f32.mrb[0].mxu0
    %4966 = vdwg.mxu0
    %4967 = vmatprep.subr.bf16.mxu0 0
    %4968 = vmatpush1.bf16.msra.mxu0 %v3065
    %4969 = vmatprep.subr.bf16.mxu0 0
    %4970 = vmatpush1.bf16.msra.mxu0 %v3066
    %4971 = vmatprep.subr.bf16.mxu0 0
    %4972 = vmatpush1.bf16.msra.mxu0 %v3067
    %4973 = vmatprep.subr.bf16.mxu0 0
    %4974 = vmatpush1.bf16.msra.mxu0 %v3068
    %4975 = vmatprep.subr.bf16.mxu0 0
    %4976 = vmatpush1.bf16.msra.mxu0 %v3069
    %4977 = vmatprep.subr.bf16.mxu0 0
    %4978 = vmatpush1.bf16.msra.mxu0 %v3070
    %4979 = vmatprep.subr.bf16.mxu0 0
    %4980 = vmatpush1.bf16.msra.mxu0 %v3071
    %4981 = vmatprep.subr.bf16.mxu0 0
    %4982 = vmatpush1.bf16.msra.mxu0 %v3072
    %4983 = vmatprep.subr.bf16.mxu0 0
    %4984 = vmatpush1.bf16.msra.mxu0 %v3073
    %4985 = vmatprep.subr.bf16.mxu0 0
    %4986 = vmatpush1.bf16.msra.mxu0 %v3074
    %4987 = vmatprep.subr.bf16.mxu0 0
    %4988 = vmatpush1.bf16.msra.mxu0 %v3075
    %4989 = vmatprep.subr.bf16.mxu0 0
    %4990 = vmatpush1.bf16.msra.mxu0 %v3076
    %4991 = vmatprep.subr.bf16.mxu0 0
    %4992 = vmatpush1.bf16.msra.mxu0 %v3077
    %4993 = vmatprep.subr.bf16.mxu0 0
    %4994 = vmatpush1.bf16.msra.mxu0 %v3078
    %4995 = vmatprep.subr.bf16.mxu0 0
    %4996 = vmatpush1.bf16.msra.mxu0 %v3079
    %4997 = vmatprep.subr.bf16.mxu0 0
    %4998 = vmatpush1.bf16.msra.mxu0 %v3080
    %4999 = vmatprep.mubr.bf16.mxu0 %v2154
    %5000 = vmatmul.mubr.bf16.gmra.mrb[0].mxu0 %v2151
    %v5001 = vpop.f32.mrb[0].mxu0
    %v5002 = vadd.f32 %v4953, %v5001
    %v5003 = vpop.f32.mrb[0].mxu0
    %v5004 = vpop.f32.mrb[0].mxu0
    %v5005 = vadd.f32 %v4956, %v5004
    %v5006 = vpop.f32.mrb[0].mxu0
    %5007 = vmatprep.mubr.bf16.mxu0 %v2155
    %5008 = vmatmul.mubr.bf16.gmra.mrb[0].mxu0 %v2152
    %v5009 = vpop.f32.mrb[0].mxu0
    %v5010 = vadd.f32 %v4961, %v5009
    %v5011 = vpop.f32.mrb[0].mxu0
    %v5012 = vpop.f32.mrb[0].mxu0
    %v5013 = vadd.f32 %v4964, %v5012
    %v5014 = vpop.f32.mrb[0].mxu0
    %5015 = vdwg.mxu0
    %5016 = vmatprep.subr.bf16.mxu0 0
    %5017 = vmatpush1.bf16.msra.mxu0 %v3081
    %5018 = vmatprep.subr.bf16.mxu0 0
    %5019 = vmatpush1.bf16.msra.mxu0 %v3082
    %5020 = vmatprep.subr.bf16.mxu0 0
    %5021 = vmatpush1.bf16.msra.mxu0 %v3083
    %5022 = vmatprep.subr.bf16.mxu0 0
    %5023 = vmatpush1.bf16.msra.mxu0 %v3084
    %5024 = vmatprep.subr.bf16.mxu0 0
    %5025 = vmatpush1.bf16.msra.mxu0 %v3085
    %5026 = vmatprep.subr.bf16.mxu0 0
    %5027 = vmatpush1.bf16.msra.mxu0 %v3086
    %5028 = vmatprep.subr.bf16.mxu0 0
    %5029 = vmatpush1.bf16.msra.mxu0 %v3087
    %5030 = vmatprep.subr.bf16.mxu0 0
    %5031 = vmatpush1.bf16.msra.mxu0 %v3088
    %5032 = vmatprep.subr.bf16.mxu0 0
    %5033 = vmatpush1.bf16.msra.mxu0 %v3089
    %5034 = vmatprep.subr.bf16.mxu0 0
    %5035 = vmatpush1.bf16.msra.mxu0 %v3090
    %5036 = vmatprep.subr.bf16.mxu0 0
    %5037 = vmatpush1.bf16.msra.mxu0 %v3091
    %5038 = vmatprep.subr.bf16.mxu0 0
    %5039 = vmatpush1.bf16.msra.mxu0 %v3092
    %5040 = vmatprep.subr.bf16.mxu0 0
    %5041 = vmatpush1.bf16.msra.mxu0 %v3093
    %5042 = vmatprep.subr.bf16.mxu0 0
    %5043 = vmatpush1.bf16.msra.mxu0 %v3094
    %5044 = vmatprep.subr.bf16.mxu0 0
    %5045 = vmatpush1.bf16.msra.mxu0 %v3095
    %5046 = vmatprep.subr.bf16.mxu0 0
    %5047 = vmatpush1.bf16.msra.mxu0 %v3096
    %5048 = vmatprep.mubr.bf16.mxu0 %v2074
    %5049 = vmatmul.mubr.bf16.gmra.mrb[0].mxu0 %v2157
    %v5050 = vpop.f32.mrb[0].mxu0
    %v5051 = vadd.f32 %v5002, %v5050
    %v5052 = vpop.f32.mrb[0].mxu0
    %v5053 = vpop.f32.mrb[0].mxu0
    %v5054 = vadd.f32 %v5005, %v5053
    %v5055 = vpop.f32.mrb[0].mxu0
    %5056 = vmatprep.mubr.bf16.mxu0 %v2160
    %5057 = vmatmul.mubr.bf16.gmra.mrb[0].mxu0 %v2158
    %v5058 = vpop.f32.mrb[0].mxu0
    %v5059 = vadd.f32 %v5010, %v5058
    %v5060 = vpop.f32.mrb[0].mxu0
    %v5061 = vpop.f32.mrb[0].mxu0
    %v5062 = vadd.f32 %v5013, %v5061
    %v5063 = vpop.f32.mrb[0].mxu0
    %5064 = vdwg.mxu0
    %5065 = vmatprep.subr.bf16.mxu0 0
    %5066 = vmatpush1.bf16.msra.mxu0 %v3097
    %5067 = vmatprep.subr.bf16.mxu0 0
    %5068 = vmatpush1.bf16.msra.mxu0 %v3098
    %5069 = vmatprep.subr.bf16.mxu0 0
    %5070 = vmatpush1.bf16.msra.mxu0 %v3099
    %5071 = vmatprep.subr.bf16.mxu0 0
    %5072 = vmatpush1.bf16.msra.mxu0 %v3100
    %5073 = vmatprep.subr.bf16.mxu0 0
    %5074 = vmatpush1.bf16.msra.mxu0 %v3101
    %5075 = vmatprep.subr.bf16.mxu0 0
    %5076 = vmatpush1.bf16.msra.mxu0 %v3102
    %5077 = vmatprep.subr.bf16.mxu0 0
    %5078 = vmatpush1.bf16.msra.mxu0 %v3103
    %5079 = vmatprep.subr.bf16.mxu0 0
    %5080 = vmatpush1.bf16.msra.mxu0 %v3104
    %5081 = vmatprep.subr.bf16.mxu0 0
    %5082 = vmatpush1.bf16.msra.mxu0 %v3105
    %5083 = vmatprep.subr.bf16.mxu0 0
    %5084 = vmatpush1.bf16.msra.mxu0 %v3106
    %5085 = vmatprep.subr.bf16.mxu0 0
    %5086 = vmatpush1.bf16.msra.mxu0 %v3107
    %5087 = vmatprep.subr.bf16.mxu0 0
    %5088 = vmatpush1.bf16.msra.mxu0 %v3108
    %5089 = vmatprep.subr.bf16.mxu0 0
    %5090 = vmatpush1.bf16.msra.mxu0 %v3109
    %5091 = vmatprep.subr.bf16.mxu0 0
    %5092 = vmatpush1.bf16.msra.mxu0 %v3110
    %5093 = vmatprep.subr.bf16.mxu0 0
    %5094 = vmatpush1.bf16.msra.mxu0 %v3111
    %5095 = vmatprep.subr.bf16.mxu0 0
    %5096 = vmatpush1.bf16.msra.mxu0 %v3112
    %5097 = vmatprep.mubr.bf16.mxu0 %v2086
    %5098 = vmatmul.mubr.bf16.gmra.mrb[0].mxu0 %v2080
    %v5099 = vpop.f32.mrb[0].mxu0
    %v5100 = vadd.f32 %v5051, %v5099
    %v5101 = vpop.f32.mrb[0].mxu0
    %v5102 = vpop.f32.mrb[0].mxu0
    %v5103 = vadd.f32 %v5054, %v5102
    %v5104 = vpop.f32.mrb[0].mxu0
    %5105 = vmatprep.mubr.bf16.mxu0 %v2164
    %5106 = vmatmul.mubr.bf16.gmra.mrb[0].mxu0 %v2162
    %v5107 = vpop.f32.mrb[0].mxu0
    %v5108 = vadd.f32 %v5059, %v5107
    %v5109 = vpop.f32.mrb[0].mxu0
    %v5110 = vpop.f32.mrb[0].mxu0
    %v5111 = vadd.f32 %v5062, %v5110
    %v5112 = vpop.f32.mrb[0].mxu0
    %5113 = vdwg.mxu0
    %5114 = vmatprep.subr.bf16.mxu0 0
    %5115 = vmatpush1.bf16.msra.mxu0 %v3113
    %5116 = vmatprep.subr.bf16.mxu0 0
    %5117 = vmatpush1.bf16.msra.mxu0 %v3114
    %5118 = vmatprep.subr.bf16.mxu0 0
    %5119 = vmatpush1.bf16.msra.mxu0 %v3115
    %5120 = vmatprep.subr.bf16.mxu0 0
    %5121 = vmatpush1.bf16.msra.mxu0 %v3116
    %5122 = vmatprep.subr.bf16.mxu0 0
    %5123 = vmatpush1.bf16.msra.mxu0 %v3117
    %5124 = vmatprep.subr.bf16.mxu0 0
    %5125 = vmatpush1.bf16.msra.mxu0 %v3118
    %5126 = vmatprep.subr.bf16.mxu0 0
    %5127 = vmatpush1.bf16.msra.mxu0 %v3119
    %5128 = vmatprep.subr.bf16.mxu0 0
    %5129 = vmatpush1.bf16.msra.mxu0 %v3120
    %5130 = vmatprep.subr.bf16.mxu0 0
    %5131 = vmatpush1.bf16.msra.mxu0 %v3121
    %5132 = vmatprep.subr.bf16.mxu0 0
    %5133 = vmatpush1.bf16.msra.mxu0 %v3122
    %5134 = vmatprep.subr.bf16.mxu0 0
    %5135 = vmatpush1.bf16.msra.mxu0 %v3123
    %5136 = vmatprep.subr.bf16.mxu0 0
    %5137 = vmatpush1.bf16.msra.mxu0 %v3124
    %5138 = vmatprep.subr.bf16.mxu0 0
    %5139 = vmatpush1.bf16.msra.mxu0 %v3125
    %5140 = vmatprep.subr.bf16.mxu0 0
    %5141 = vmatpush1.bf16.msra.mxu0 %v3126
    %5142 = vmatprep.subr.bf16.mxu0 0
    %5143 = vmatpush1.bf16.msra.mxu0 %v3127
    %5144 = vmatprep.subr.bf16.mxu0 0
    %5145 = vmatpush1.bf16.msra.mxu0 %v3128
    %5146 = vmatprep.mubr.bf16.mxu0 %v2098
    %5147 = vmatmul.mubr.bf16.gmra.mrb[0].mxu0 %v2092
    %v5148 = vpop.f32.mrb[0].mxu0
    %v5149 = vadd.f32 %v5100, %v5148
    %v5150 = vpop.f32.mrb[0].mxu0
    %v5151 = vpop.f32.mrb[0].mxu0
    %v5152 = vadd.f32 %v5103, %v5151
    %v5153 = vpop.f32.mrb[0].mxu0
    %5154 = vmatprep.mubr.bf16.mxu0 %v2168
    %5155 = vmatmul.mubr.bf16.gmra.mrb[0].mxu0 %v2166
    %v5156 = vpop.f32.mrb[0].mxu0
    %v5157 = vadd.f32 %v5108, %v5156
    %v5158 = vpop.f32.mrb[0].mxu0
    %v5159 = vpop.f32.mrb[0].mxu0
    %v5160 = vadd.f32 %v5111, %v5159
    %v5161 = vpop.f32.mrb[0].mxu0
    %5162 = vdwg.mxu0
    %5163 = vmatprep.subr.bf16.mxu0 0
    %5164 = vmatpush1.bf16.msra.mxu0 %v3129
    %5165 = vmatprep.subr.bf16.mxu0 0
    %5166 = vmatpush1.bf16.msra.mxu0 %v3130
    %5167 = vmatprep.subr.bf16.mxu0 0
    %5168 = vmatpush1.bf16.msra.mxu0 %v3131
    %5169 = vmatprep.subr.bf16.mxu0 0
    %5170 = vmatpush1.bf16.msra.mxu0 %v3132
    %5171 = vmatprep.subr.bf16.mxu0 0
    %5172 = vmatpush1.bf16.msra.mxu0 %v3133
    %5173 = vmatprep.subr.bf16.mxu0 0
    %5174 = vmatpush1.bf16.msra.mxu0 %v3134
    %5175 = vmatprep.subr.bf16.mxu0 0
    %5176 = vmatpush1.bf16.msra.mxu0 %v3135
    %5177 = vmatprep.subr.bf16.mxu0 0
    %5178 = vmatpush1.bf16.msra.mxu0 %v3136
    %5179 = vmatprep.subr.bf16.mxu0 0
    %5180 = vmatpush1.bf16.msra.mxu0 %v3137
    %5181 = vmatprep.subr.bf16.mxu0 0
    %5182 = vmatpush1.bf16.msra.mxu0 %v3138
    %5183 = vmatprep.subr.bf16.mxu0 0
    %5184 = vmatpush1.bf16.msra.mxu0 %v3139
    %5185 = vmatprep.subr.bf16.mxu0 0
    %5186 = vmatpush1.bf16.msra.mxu0 %v3140
    %5187 = vmatprep.subr.bf16.mxu0 0
    %5188 = vmatpush1.bf16.msra.mxu0 %v3141
    %5189 = vmatprep.subr.bf16.mxu0 0
    %5190 = vmatpush1.bf16.msra.mxu0 %v3142
    %5191 = vmatprep.subr.bf16.mxu0 0
    %5192 = vmatpush1.bf16.msra.mxu0 %v3143
    %5193 = vmatprep.subr.bf16.mxu0 0
    %5194 = vmatpush1.bf16.msra.mxu0 %v3144
    %5195 = vmatprep.mubr.bf16.mxu0 %v2110
    %5196 = vmatmul.mubr.bf16.gmra.mrb[0].mxu0 %v2104
    %v5197 = vpop.f32.mrb[0].mxu0
    %v5198 = vadd.f32 %v5149, %v5197
    %v5199 = vpop.f32.mrb[0].mxu0
    %v5200 = vpop.f32.mrb[0].mxu0
    %v5201 = vadd.f32 %v5152, %v5200
    %v5202 = vpop.f32.mrb[0].mxu0
    %5203 = vmatprep.mubr.bf16.mxu0 %v4666
    %5204 = vmatmul.mubr.bf16.gmra.mrb[0].mxu0 %v4664
    %v5205 = vpop.f32.mrb[0].mxu0
    %v5206 = vadd.f32 %v5157, %v5205
    %v5207 = vpop.f32.mrb[0].mxu0
    %v5208 = vpop.f32.mrb[0].mxu0
    %v5209 = vadd.f32 %v5160, %v5208
    %v5210 = vpop.f32.mrb[0].mxu0
    %5211 = vdwg.mxu0
    %5212 = vmatprep.subr.bf16.mxu0 0
    %5213 = vmatpush1.bf16.msra.mxu0 %v3145
    %5214 = vmatprep.subr.bf16.mxu0 0
    %5215 = vmatpush1.bf16.msra.mxu0 %v3146
    %5216 = vmatprep.subr.bf16.mxu0 0
    %5217 = vmatpush1.bf16.msra.mxu0 %v3147
    %5218 = vmatprep.subr.bf16.mxu0 0
    %5219 = vmatpush1.bf16.msra.mxu0 %v3148
    %5220 = vmatprep.subr.bf16.mxu0 0
    %5221 = vmatpush1.bf16.msra.mxu0 %v3149
    %5222 = vmatprep.subr.bf16.mxu0 0
    %5223 = vmatpush1.bf16.msra.mxu0 %v3150
    %5224 = vmatprep.subr.bf16.mxu0 0
    %5225 = vmatpush1.bf16.msra.mxu0 %v3151
    %5226 = vmatprep.subr.bf16.mxu0 0
    %5227 = vmatpush1.bf16.msra.mxu0 %v3152
    %5228 = vmatprep.subr.bf16.mxu0 0
    %5229 = vmatpush1.bf16.msra.mxu0 %v3153
    %5230 = vmatprep.subr.bf16.mxu0 0
    %5231 = vmatpush1.bf16.msra.mxu0 %v3154
    %5232 = vmatprep.subr.bf16.mxu0 0
    %5233 = vmatpush1.bf16.msra.mxu0 %v3155
    %5234 = vmatprep.subr.bf16.mxu0 0
    %5235 = vmatpush1.bf16.msra.mxu0 %v3156
    %5236 = vmatprep.subr.bf16.mxu0 0
    %5237 = vmatpush1.bf16.msra.mxu0 %v3157
    %5238 = vmatprep.subr.bf16.mxu0 0
    %5239 = vmatpush1.bf16.msra.mxu0 %v3158
    %5240 = vmatprep.subr.bf16.mxu0 0
    %5241 = vmatpush1.bf16.msra.mxu0 %v3159
    %5242 = vmatprep.subr.bf16.mxu0 0
    %5243 = vmatpush1.bf16.msra.mxu0 %v3160
    %5244 = vmatprep.mubr.bf16.mxu0 %v2122
    %5245 = vmatmul.mubr.bf16.gmra.mrb[0].mxu0 %v2116
    %v5246 = vpop.f32.mrb[0].mxu0
    %v5247 = vadd.f32 %v5198, %v5246
    %v5248 = vpop.f32.mrb[0].mxu0
    %v5249 = vpop.f32.mrb[0].mxu0
    %v5250 = vadd.f32 %v5201, %v5249
    %v5251 = vpop.f32.mrb[0].mxu0
    %5252 = vmatprep.mubr.bf16.mxu0 %v4670
    %5253 = vmatmul.mubr.bf16.gmra.mrb[0].mxu0 %v4668
    %v5254 = vpop.f32.mrb[0].mxu0
    %v5255 = vadd.f32 %v5206, %v5254
    %v5256 = vpop.f32.mrb[0].mxu0
    %v5257 = vpop.f32.mrb[0].mxu0
    %v5258 = vadd.f32 %v5209, %v5257
    %v5259 = vpop.f32.mrb[0].mxu0
    %5260 = vdwg.mxu0
    %5261 = vmatprep.subr.bf16.mxu0 0
    %5262 = vmatpush1.bf16.msra.mxu0 %v3161
    %5263 = vmatprep.subr.bf16.mxu0 0
    %5264 = vmatpush1.bf16.msra.mxu0 %v3162
    %5265 = vmatprep.subr.bf16.mxu0 0
    %5266 = vmatpush1.bf16.msra.mxu0 %v3163
    %5267 = vmatprep.subr.bf16.mxu0 0
    %5268 = vmatpush1.bf16.msra.mxu0 %v3164
    %5269 = vmatprep.subr.bf16.mxu0 0
    %5270 = vmatpush1.bf16.msra.mxu0 %v3165
    %5271 = vmatprep.subr.bf16.mxu0 0
    %5272 = vmatpush1.bf16.msra.mxu0 %v3166
    %5273 = vmatprep.subr.bf16.mxu0 0
    %5274 = vmatpush1.bf16.msra.mxu0 %v3167
    %5275 = vmatprep.subr.bf16.mxu0 0
    %5276 = vmatpush1.bf16.msra.mxu0 %v3168
    %5277 = vmatprep.subr.bf16.mxu0 0
    %5278 = vmatpush1.bf16.msra.mxu0 0
    %5279 = vmatprep.subr.bf16.mxu0 0
    %5280 = vmatpush1.bf16.msra.mxu0 0
    %5281 = vmatprep.subr.bf16.mxu0 0
    %5282 = vmatpush1.bf16.msra.mxu0 0
    %5283 = vmatprep.subr.bf16.mxu0 0
    %5284 = vmatpush1.bf16.msra.mxu0 0
    %5285 = vmatprep.subr.bf16.mxu0 0
    %5286 = vmatpush1.bf16.msra.mxu0 0
    %5287 = vmatprep.subr.bf16.mxu0 0
    %5288 = vmatpush1.bf16.msra.mxu0 0
    %5289 = vmatprep.subr.bf16.mxu0 0
    %5290 = vmatpush1.bf16.msra.mxu0 0
    %5291 = vmatprep.subr.bf16.mxu0 0
    %5292 = vmatpush1.bf16.msra.mxu0 0
    %5293 = vmatprep.mubr.bf16.mxu0 0
    %5294 = vmatmul.mubr.bf16.gmra.mrb[0].mxu0 %v2128
    %v5295 = vpop.f32.mrb[0].mxu0
    %v5296 = vadd.f32 %v5247, %v5295
    %v5297 = vpop.f32.mrb[0].mxu0
    %v5298 = vpop.f32.mrb[0].mxu0
    %v5299 = vadd.f32 %v5250, %v5298
    %v5300 = vpop.f32.mrb[0].mxu0
    %5301 = vmatprep.mubr.bf16.mxu0 0
    %5302 = vmatmul.mubr.bf16.gmra.mrb[0].mxu0 %v4672
    %v5303 = vpop.f32.mrb[0].mxu0
    %v5304 = vadd.f32 %v5255, %v5303
    %v5305 = vpop.f32.mrb[0].mxu0
    %v5306 = vpop.f32.mrb[0].mxu0
    %v5307 = vadd.f32 %v5258, %v5306
    %v5308 = vpop.f32.mrb[0].mxu0
    %5309 = vdwg.mxu0
    %v5310 = vld [vmem:[#allocation2 + $0x118] sm:$0xff]
    %v5311 = vpack.c.bf16 %v5310, %v4021
    %5312 = vmatprep.subr.bf16.mxu0 0
    %5313 = vmatpush1.bf16.msra.mxu0 %v2969
    %5314 = vmatprep.subr.bf16.mxu0 0
    %5315 = vmatpush1.bf16.msra.mxu0 %v2970
    %5316 = vmatprep.subr.bf16.mxu0 0
    %5317 = vmatpush1.bf16.msra.mxu0 %v2971
    %5318 = vmatprep.subr.bf16.mxu0 0
    %5319 = vmatpush1.bf16.msra.mxu0 %v2972
    %5320 = vmatprep.subr.bf16.mxu0 0
    %5321 = vmatpush1.bf16.msra.mxu0 %v2973
    %5322 = vmatprep.subr.bf16.mxu0 0
    %5323 = vmatpush1.bf16.msra.mxu0 %v2974
    %5324 = vmatprep.subr.bf16.mxu0 0
    %5325 = vmatpush1.bf16.msra.mxu0 %v2975
    %5326 = vmatprep.subr.bf16.mxu0 0
    %5327 = vmatpush1.bf16.msra.mxu0 %v2976
    %5328 = vmatprep.subr.bf16.mxu0 0
    %5329 = vmatpush1.bf16.msra.mxu0 %v2977
    %5330 = vmatprep.subr.bf16.mxu0 0
    %5331 = vmatpush1.bf16.msra.mxu0 %v2978
    %5332 = vmatprep.subr.bf16.mxu0 0
    %5333 = vmatpush1.bf16.msra.mxu0 %v2979
    %5334 = vmatprep.subr.bf16.mxu0 0
    %5335 = vmatpush1.bf16.msra.mxu0 %v2980
    %5336 = vmatprep.subr.bf16.mxu0 0
    %5337 = vmatpush1.bf16.msra.mxu0 %v2981
    %5338 = vmatprep.subr.bf16.mxu0 0
    %5339 = vmatpush1.bf16.msra.mxu0 %v2982
    %5340 = vmatprep.subr.bf16.mxu0 0
    %5341 = vmatpush1.bf16.msra.mxu0 %v2983
    %5342 = vmatprep.subr.bf16.mxu0 0
    %5343 = vmatpush1.bf16.msra.mxu0 %v2984
    %5344 = vmatprep.mubr.bf16.mxu0 %v2115
    %5345 = vmatmul.mubr.bf16.gmra.mrb[0].mxu0 %v2109
    %v5346 = vpop.f32.mrb[0].mxu0
    %v5347 = vadd.f32 0.0, %v5346
    %v5348 = vpop.f32.mrb[0].mxu0
    %v5349 = vpop.f32.mrb[0].mxu0
    %v5350 = vadd.f32 0.0, %v5349
    %v5351 = vpop.f32.mrb[0].mxu0
    %5352 = vmatprep.mubr.bf16.mxu0 %v2116
    %5353 = vmatmul.mubr.bf16.gmra.mrb[0].mxu0 %v2110
    %v5354 = vpop.f32.mrb[0].mxu0
    %v5355 = vadd.f32 0.0, %v5354
    %v5356 = vpop.f32.mrb[0].mxu0
    %v5357 = vpop.f32.mrb[0].mxu0
    %v5358 = vadd.f32 0.0, %v5357
    %v5359 = vpop.f32.mrb[0].mxu0
    %5360 = vdwg.mxu0
    %5361 = vmatprep.subr.bf16.mxu0 0
    %5362 = vmatpush1.bf16.msra.mxu0 %v2985
    %5363 = vmatprep.subr.bf16.mxu0 0
    %5364 = vmatpush1.bf16.msra.mxu0 %v2986
    %5365 = vmatprep.subr.bf16.mxu0 0
    %5366 = vmatpush1.bf16.msra.mxu0 %v2987
    %5367 = vmatprep.subr.bf16.mxu0 0
    %5368 = vmatpush1.bf16.msra.mxu0 %v2988
    %5369 = vmatprep.subr.bf16.mxu0 0
    %5370 = vmatpush1.bf16.msra.mxu0 %v2989
    %5371 = vmatprep.subr.bf16.mxu0 0
    %5372 = vmatpush1.bf16.msra.mxu0 %v2990
    %5373 = vmatprep.subr.bf16.mxu0 0
    %5374 = vmatpush1.bf16.msra.mxu0 %v2991
    %5375 = vmatprep.subr.bf16.mxu0 0
    %5376 = vmatpush1.bf16.msra.mxu0 %v2992
    %5377 = vmatprep.subr.bf16.mxu0 0
    %5378 = vmatpush1.bf16.msra.mxu0 %v2993
    %5379 = vmatprep.subr.bf16.mxu0 0
    %5380 = vmatpush1.bf16.msra.mxu0 %v2994
    %5381 = vmatprep.subr.bf16.mxu0 0
    %5382 = vmatpush1.bf16.msra.mxu0 %v2995
    %5383 = vmatprep.subr.bf16.mxu0 0
    %5384 = vmatpush1.bf16.msra.mxu0 %v2996
    %5385 = vmatprep.subr.bf16.mxu0 0
    %5386 = vmatpush1.bf16.msra.mxu0 %v2997
    %5387 = vmatprep.subr.bf16.mxu0 0
    %5388 = vmatpush1.bf16.msra.mxu0 %v2998
    %5389 = vmatprep.subr.bf16.mxu0 0
    %5390 = vmatpush1.bf16.msra.mxu0 %v2999
    %5391 = vmatprep.subr.bf16.mxu0 0
    %5392 = vmatpush1.bf16.msra.mxu0 %v3000
    %5393 = vmatprep.mubr.bf16.mxu0 %v2127
    %5394 = vmatmul.mubr.bf16.gmra.mrb[0].mxu0 %v2121
    %v5395 = vpop.f32.mrb[0].mxu0
    %v5396 = vadd.f32 %v5347, %v5395
    %v5397 = vpop.f32.mrb[0].mxu0
    %v5398 = vpop.f32.mrb[0].mxu0
    %v5399 = vadd.f32 %v5350, %v5398
    %v5400 = vpop.f32.mrb[0].mxu0
    %5401 = vmatprep.mubr.bf16.mxu0 %v2128
    %5402 = vmatmul.mubr.bf16.gmra.mrb[0].mxu0 %v2122
    %v5403 = vpop.f32.mrb[0].mxu0
    %v5404 = vadd.f32 %v5355, %v5403
    %v5405 = vpop.f32.mrb[0].mxu0
    %v5406 = vpop.f32.mrb[0].mxu0
    %v5407 = vadd.f32 %v5358, %v5406
    %v5408 = vpop.f32.mrb[0].mxu0
    %5409 = vdwg.mxu0
    %5410 = vmatprep.subr.bf16.mxu0 0
    %5411 = vmatpush1.bf16.msra.mxu0 %v3001
    %5412 = vmatprep.subr.bf16.mxu0 0
    %5413 = vmatpush1.bf16.msra.mxu0 %v3002
    %5414 = vmatprep.subr.bf16.mxu0 0
    %5415 = vmatpush1.bf16.msra.mxu0 %v3003
    %5416 = vmatprep.subr.bf16.mxu0 0
    %5417 = vmatpush1.bf16.msra.mxu0 %v3004
    %5418 = vmatprep.subr.bf16.mxu0 0
    %5419 = vmatpush1.bf16.msra.mxu0 %v3005
    %5420 = vmatprep.subr.bf16.mxu0 0
    %5421 = vmatpush1.bf16.msra.mxu0 %v3006
    %5422 = vmatprep.subr.bf16.mxu0 0
    %5423 = vmatpush1.bf16.msra.mxu0 %v3007
    %5424 = vmatprep.subr.bf16.mxu0 0
    %5425 = vmatpush1.bf16.msra.mxu0 %v3008
    %5426 = vmatprep.subr.bf16.mxu0 0
    %5427 = vmatpush1.bf16.msra.mxu0 %v3009
    %5428 = vmatprep.subr.bf16.mxu0 0
    %5429 = vmatpush1.bf16.msra.mxu0 %v3010
    %5430 = vmatprep.subr.bf16.mxu0 0
    %5431 = vmatpush1.bf16.msra.mxu0 %v3011
    %5432 = vmatprep.subr.bf16.mxu0 0
    %5433 = vmatpush1.bf16.msra.mxu0 %v3012
    %5434 = vmatprep.subr.bf16.mxu0 0
    %5435 = vmatpush1.bf16.msra.mxu0 %v3013
    %5436 = vmatprep.subr.bf16.mxu0 0
    %5437 = vmatpush1.bf16.msra.mxu0 %v3014
    %5438 = vmatprep.subr.bf16.mxu0 0
    %5439 = vmatpush1.bf16.msra.mxu0 %v3015
    %5440 = vmatprep.subr.bf16.mxu0 0
    %5441 = vmatpush1.bf16.msra.mxu0 %v3016
    %5442 = vmatprep.mubr.bf16.mxu0 %v2133
    %5443 = vmatmul.mubr.bf16.gmra.mrb[0].mxu0 %v4016
    %v5444 = vpop.f32.mrb[0].mxu0
    %v5445 = vadd.f32 %v5396, %v5444
    %v5446 = vpop.f32.mrb[0].mxu0
    %v5447 = vpop.f32.mrb[0].mxu0
    %v5448 = vadd.f32 %v5399, %v5447
    %v5449 = vpop.f32.mrb[0].mxu0
    %5450 = vmatprep.mubr.bf16.mxu0 %v2134
    %5451 = vmatmul.mubr.bf16.gmra.mrb[0].mxu0 %v4017
    %v5452 = vpop.f32.mrb[0].mxu0
    %v5453 = vadd.f32 %v5404, %v5452
    %v5454 = vpop.f32.mrb[0].mxu0
    %v5455 = vpop.f32.mrb[0].mxu0
    %v5456 = vadd.f32 %v5407, %v5455
    %v5457 = vpop.f32.mrb[0].mxu0
    %5458 = vdwg.mxu0
    %5459 = vmatprep.subr.bf16.mxu0 0
    %5460 = vmatpush1.bf16.msra.mxu0 %v3017
    %5461 = vmatprep.subr.bf16.mxu0 0
    %5462 = vmatpush1.bf16.msra.mxu0 %v3018
    %5463 = vmatprep.subr.bf16.mxu0 0
    %5464 = vmatpush1.bf16.msra.mxu0 %v3019
    %5465 = vmatprep.subr.bf16.mxu0 0
    %5466 = vmatpush1.bf16.msra.mxu0 %v3020
    %5467 = vmatprep.subr.bf16.mxu0 0
    %5468 = vmatpush1.bf16.msra.mxu0 %v3021
    %5469 = vmatprep.subr.bf16.mxu0 0
    %5470 = vmatpush1.bf16.msra.mxu0 %v3022
    %5471 = vmatprep.subr.bf16.mxu0 0
    %5472 = vmatpush1.bf16.msra.mxu0 %v3023
    %5473 = vmatprep.subr.bf16.mxu0 0
    %5474 = vmatpush1.bf16.msra.mxu0 %v3024
    %5475 = vmatprep.subr.bf16.mxu0 0
    %5476 = vmatpush1.bf16.msra.mxu0 %v3025
    %5477 = vmatprep.subr.bf16.mxu0 0
    %5478 = vmatpush1.bf16.msra.mxu0 %v3026
    %5479 = vmatprep.subr.bf16.mxu0 0
    %5480 = vmatpush1.bf16.msra.mxu0 %v3027
    %5481 = vmatprep.subr.bf16.mxu0 0
    %5482 = vmatpush1.bf16.msra.mxu0 %v3028
    %5483 = vmatprep.subr.bf16.mxu0 0
    %5484 = vmatpush1.bf16.msra.mxu0 %v3029
    %5485 = vmatprep.subr.bf16.mxu0 0
    %5486 = vmatpush1.bf16.msra.mxu0 %v3030
    %5487 = vmatprep.subr.bf16.mxu0 0
    %5488 = vmatpush1.bf16.msra.mxu0 %v3031
    %5489 = vmatprep.subr.bf16.mxu0 0
    %5490 = vmatpush1.bf16.msra.mxu0 %v3032
    %5491 = vmatprep.mubr.bf16.mxu0 %v2139
    %5492 = vmatmul.mubr.bf16.gmra.mrb[0].mxu0 %v2136
    %v5493 = vpop.f32.mrb[0].mxu0
    %v5494 = vadd.f32 %v5445, %v5493
    %v5495 = vpop.f32.mrb[0].mxu0
    %v5496 = vpop.f32.mrb[0].mxu0
    %v5497 = vadd.f32 %v5448, %v5496
    %v5498 = vpop.f32.mrb[0].mxu0
    %5499 = vmatprep.mubr.bf16.mxu0 %v2140
    %5500 = vmatmul.mubr.bf16.gmra.mrb[0].mxu0 %v2137
    %v5501 = vpop.f32.mrb[0].mxu0
    %v5502 = vadd.f32 %v5453, %v5501
    %v5503 = vpop.f32.mrb[0].mxu0
    %v5504 = vpop.f32.mrb[0].mxu0
    %v5505 = vadd.f32 %v5456, %v5504
    %v5506 = vpop.f32.mrb[0].mxu0
    %5507 = vdwg.mxu0
    %5508 = vmatprep.subr.bf16.mxu0 0
    %5509 = vmatpush1.bf16.msra.mxu0 %v3033
    %5510 = vmatprep.subr.bf16.mxu0 0
    %5511 = vmatpush1.bf16.msra.mxu0 %v3034
    %5512 = vmatprep.subr.bf16.mxu0 0
    %5513 = vmatpush1.bf16.msra.mxu0 %v3035
    %5514 = vmatprep.subr.bf16.mxu0 0
    %5515 = vmatpush1.bf16.msra.mxu0 %v3036
    %5516 = vmatprep.subr.bf16.mxu0 0
    %5517 = vmatpush1.bf16.msra.mxu0 %v3037
    %5518 = vmatprep.subr.bf16.mxu0 0
    %5519 = vmatpush1.bf16.msra.mxu0 %v3038
    %5520 = vmatprep.subr.bf16.mxu0 0
    %5521 = vmatpush1.bf16.msra.mxu0 %v3039
    %5522 = vmatprep.subr.bf16.mxu0 0
    %5523 = vmatpush1.bf16.msra.mxu0 %v3040
    %5524 = vmatprep.subr.bf16.mxu0 0
    %5525 = vmatpush1.bf16.msra.mxu0 %v3041
    %5526 = vmatprep.subr.bf16.mxu0 0
    %5527 = vmatpush1.bf16.msra.mxu0 %v3042
    %5528 = vmatprep.subr.bf16.mxu0 0
    %5529 = vmatpush1.bf16.msra.mxu0 %v3043
    %5530 = vmatprep.subr.bf16.mxu0 0
    %5531 = vmatpush1.bf16.msra.mxu0 %v3044
    %5532 = vmatprep.subr.bf16.mxu0 0
    %5533 = vmatpush1.bf16.msra.mxu0 %v3045
    %5534 = vmatprep.subr.bf16.mxu0 0
    %5535 = vmatpush1.bf16.msra.mxu0 %v3046
    %5536 = vmatprep.subr.bf16.mxu0 0
    %5537 = vmatpush1.bf16.msra.mxu0 %v3047
    %5538 = vmatprep.subr.bf16.mxu0 0
    %5539 = vmatpush1.bf16.msra.mxu0 %v3048
    %5540 = vmatprep.mubr.bf16.mxu0 %v4019
    %5541 = vmatmul.mubr.bf16.gmra.mrb[0].mxu0 %v2142
    %v5542 = vpop.f32.mrb[0].mxu0
    %v5543 = vadd.f32 %v5494, %v5542
    %v5544 = vpop.f32.mrb[0].mxu0
    %v5545 = vpop.f32.mrb[0].mxu0
    %v5546 = vadd.f32 %v5497, %v5545
    %v5547 = vpop.f32.mrb[0].mxu0
    %5548 = vmatprep.mubr.bf16.mxu0 %v4020
    %5549 = vmatmul.mubr.bf16.gmra.mrb[0].mxu0 %v2143
    %v5550 = vpop.f32.mrb[0].mxu0
    %v5551 = vadd.f32 %v5502, %v5550
    %v5552 = vpop.f32.mrb[0].mxu0
    %v5553 = vpop.f32.mrb[0].mxu0
    %v5554 = vadd.f32 %v5505, %v5553
    %v5555 = vpop.f32.mrb[0].mxu0
    %5556 = vdwg.mxu0
    %5557 = vmatprep.subr.bf16.mxu0 0
    %5558 = vmatpush1.bf16.msra.mxu0 %v3049
    %5559 = vmatprep.subr.bf16.mxu0 0
    %5560 = vmatpush1.bf16.msra.mxu0 %v3050
    %5561 = vmatprep.subr.bf16.mxu0 0
    %5562 = vmatpush1.bf16.msra.mxu0 %v3051
    %5563 = vmatprep.subr.bf16.mxu0 0
    %5564 = vmatpush1.bf16.msra.mxu0 %v3052
    %5565 = vmatprep.subr.bf16.mxu0 0
    %5566 = vmatpush1.bf16.msra.mxu0 %v3053
    %5567 = vmatprep.subr.bf16.mxu0 0
    %5568 = vmatpush1.bf16.msra.mxu0 %v3054
    %5569 = vmatprep.subr.bf16.mxu0 0
    %5570 = vmatpush1.bf16.msra.mxu0 %v3055
    %5571 = vmatprep.subr.bf16.mxu0 0
    %5572 = vmatpush1.bf16.msra.mxu0 %v3056
    %5573 = vmatprep.subr.bf16.mxu0 0
    %5574 = vmatpush1.bf16.msra.mxu0 %v3057
    %5575 = vmatprep.subr.bf16.mxu0 0
    %5576 = vmatpush1.bf16.msra.mxu0 %v3058
    %5577 = vmatprep.subr.bf16.mxu0 0
    %5578 = vmatpush1.bf16.msra.mxu0 %v3059
    %5579 = vmatprep.subr.bf16.mxu0 0
    %5580 = vmatpush1.bf16.msra.mxu0 %v3060
    %5581 = vmatprep.subr.bf16.mxu0 0
    %5582 = vmatpush1.bf16.msra.mxu0 %v3061
    %5583 = vmatprep.subr.bf16.mxu0 0
    %5584 = vmatpush1.bf16.msra.mxu0 %v3062
    %5585 = vmatprep.subr.bf16.mxu0 0
    %5586 = vmatpush1.bf16.msra.mxu0 %v3063
    %5587 = vmatprep.subr.bf16.mxu0 0
    %5588 = vmatpush1.bf16.msra.mxu0 %v3064
    %5589 = vmatprep.mubr.bf16.mxu0 %v2151
    %5590 = vmatmul.mubr.bf16.gmra.mrb[0].mxu0 %v2148
    %v5591 = vpop.f32.mrb[0].mxu0
    %v5592 = vadd.f32 %v5543, %v5591
    %v5593 = vpop.f32.mrb[0].mxu0
    %v5594 = vpop.f32.mrb[0].mxu0
    %v5595 = vadd.f32 %v5546, %v5594
    %v5596 = vpop.f32.mrb[0].mxu0
    %5597 = vmatprep.mubr.bf16.mxu0 %v2152
    %5598 = vmatmul.mubr.bf16.gmra.mrb[0].mxu0 %v2149
    %v5599 = vpop.f32.mrb[0].mxu0
    %v5600 = vadd.f32 %v5551, %v5599
    %v5601 = vpop.f32.mrb[0].mxu0
    %v5602 = vpop.f32.mrb[0].mxu0
    %v5603 = vadd.f32 %v5554, %v5602
    %v5604 = vpop.f32.mrb[0].mxu0
    %5605 = vdwg.mxu0
    %5606 = vmatprep.subr.bf16.mxu0 0
    %5607 = vmatpush1.bf16.msra.mxu0 %v3065
    %5608 = vmatprep.subr.bf16.mxu0 0
    %5609 = vmatpush1.bf16.msra.mxu0 %v3066
    %5610 = vmatprep.subr.bf16.mxu0 0
    %5611 = vmatpush1.bf16.msra.mxu0 %v3067
    %5612 = vmatprep.subr.bf16.mxu0 0
    %5613 = vmatpush1.bf16.msra.mxu0 %v3068
    %5614 = vmatprep.subr.bf16.mxu0 0
    %5615 = vmatpush1.bf16.msra.mxu0 %v3069
    %5616 = vmatprep.subr.bf16.mxu0 0
    %5617 = vmatpush1.bf16.msra.mxu0 %v3070
    %5618 = vmatprep.subr.bf16.mxu0 0
    %5619 = vmatpush1.bf16.msra.mxu0 %v3071
    %5620 = vmatprep.subr.bf16.mxu0 0
    %5621 = vmatpush1.bf16.msra.mxu0 %v3072
    %5622 = vmatprep.subr.bf16.mxu0 0
    %5623 = vmatpush1.bf16.msra.mxu0 %v3073
    %5624 = vmatprep.subr.bf16.mxu0 0
    %5625 = vmatpush1.bf16.msra.mxu0 %v3074
    %5626 = vmatprep.subr.bf16.mxu0 0
    %5627 = vmatpush1.bf16.msra.mxu0 %v3075
    %5628 = vmatprep.subr.bf16.mxu0 0
    %5629 = vmatpush1.bf16.msra.mxu0 %v3076
    %5630 = vmatprep.subr.bf16.mxu0 0
    %5631 = vmatpush1.bf16.msra.mxu0 %v3077
    %5632 = vmatprep.subr.bf16.mxu0 0
    %5633 = vmatpush1.bf16.msra.mxu0 %v3078
    %5634 = vmatprep.subr.bf16.mxu0 0
    %5635 = vmatpush1.bf16.msra.mxu0 %v3079
    %5636 = vmatprep.subr.bf16.mxu0 0
    %5637 = vmatpush1.bf16.msra.mxu0 %v3080
    %5638 = vmatprep.mubr.bf16.mxu0 %v2157
    %5639 = vmatmul.mubr.bf16.gmra.mrb[0].mxu0 %v2154
    %v5640 = vpop.f32.mrb[0].mxu0
    %v5641 = vadd.f32 %v5592, %v5640
    %v5642 = vpop.f32.mrb[0].mxu0
    %v5643 = vpop.f32.mrb[0].mxu0
    %v5644 = vadd.f32 %v5595, %v5643
    %v5645 = vpop.f32.mrb[0].mxu0
    %5646 = vmatprep.mubr.bf16.mxu0 %v2158
    %5647 = vmatmul.mubr.bf16.gmra.mrb[0].mxu0 %v2155
    %v5648 = vpop.f32.mrb[0].mxu0
    %v5649 = vadd.f32 %v5600, %v5648
    %v5650 = vpop.f32.mrb[0].mxu0
    %v5651 = vpop.f32.mrb[0].mxu0
    %v5652 = vadd.f32 %v5603, %v5651
    %v5653 = vpop.f32.mrb[0].mxu0
    %5654 = vdwg.mxu0
    %5655 = vmatprep.subr.bf16.mxu0 0
    %5656 = vmatpush1.bf16.msra.mxu0 %v3081
    %5657 = vmatprep.subr.bf16.mxu0 0
    %5658 = vmatpush1.bf16.msra.mxu0 %v3082
    %5659 = vmatprep.subr.bf16.mxu0 0
    %5660 = vmatpush1.bf16.msra.mxu0 %v3083
    %5661 = vmatprep.subr.bf16.mxu0 0
    %5662 = vmatpush1.bf16.msra.mxu0 %v3084
    %5663 = vmatprep.subr.bf16.mxu0 0
    %5664 = vmatpush1.bf16.msra.mxu0 %v3085
    %5665 = vmatprep.subr.bf16.mxu0 0
    %5666 = vmatpush1.bf16.msra.mxu0 %v3086
    %5667 = vmatprep.subr.bf16.mxu0 0
    %5668 = vmatpush1.bf16.msra.mxu0 %v3087
    %5669 = vmatprep.subr.bf16.mxu0 0
    %5670 = vmatpush1.bf16.msra.mxu0 %v3088
    %5671 = vmatprep.subr.bf16.mxu0 0
    %5672 = vmatpush1.bf16.msra.mxu0 %v3089
    %5673 = vmatprep.subr.bf16.mxu0 0
    %5674 = vmatpush1.bf16.msra.mxu0 %v3090
    %5675 = vmatprep.subr.bf16.mxu0 0
    %5676 = vmatpush1.bf16.msra.mxu0 %v3091
    %5677 = vmatprep.subr.bf16.mxu0 0
    %5678 = vmatpush1.bf16.msra.mxu0 %v3092
    %5679 = vmatprep.subr.bf16.mxu0 0
    %5680 = vmatpush1.bf16.msra.mxu0 %v3093
    %5681 = vmatprep.subr.bf16.mxu0 0
    %5682 = vmatpush1.bf16.msra.mxu0 %v3094
    %5683 = vmatprep.subr.bf16.mxu0 0
    %5684 = vmatpush1.bf16.msra.mxu0 %v3095
    %5685 = vmatprep.subr.bf16.mxu0 0
    %5686 = vmatpush1.bf16.msra.mxu0 %v3096
    %5687 = vmatprep.mubr.bf16.mxu0 %v2080
    %5688 = vmatmul.mubr.bf16.gmra.mrb[0].mxu0 %v4022
    %v5689 = vpop.f32.mrb[0].mxu0
    %v5690 = vadd.f32 %v5641, %v5689
    %v5691 = vpop.f32.mrb[0].mxu0
    %v5692 = vpop.f32.mrb[0].mxu0
    %v5693 = vadd.f32 %v5644, %v5692
    %v5694 = vpop.f32.mrb[0].mxu0
    %5695 = vmatprep.mubr.bf16.mxu0 %v2162
    %5696 = vmatmul.mubr.bf16.gmra.mrb[0].mxu0 %v4023
    %v5697 = vpop.f32.mrb[0].mxu0
    %v5698 = vadd.f32 %v5649, %v5697
    %v5699 = vpop.f32.mrb[0].mxu0
    %v5700 = vpop.f32.mrb[0].mxu0
    %v5701 = vadd.f32 %v5652, %v5700
    %v5702 = vpop.f32.mrb[0].mxu0
    %5703 = vdwg.mxu0
    %5704 = vmatprep.subr.bf16.mxu0 0
    %5705 = vmatpush1.bf16.msra.mxu0 %v3097
    %5706 = vmatprep.subr.bf16.mxu0 0
    %5707 = vmatpush1.bf16.msra.mxu0 %v3098
    %5708 = vmatprep.subr.bf16.mxu0 0
    %5709 = vmatpush1.bf16.msra.mxu0 %v3099
    %5710 = vmatprep.subr.bf16.mxu0 0
    %5711 = vmatpush1.bf16.msra.mxu0 %v3100
    %5712 = vmatprep.subr.bf16.mxu0 0
    %5713 = vmatpush1.bf16.msra.mxu0 %v3101
    %5714 = vmatprep.subr.bf16.mxu0 0
    %5715 = vmatpush1.bf16.msra.mxu0 %v3102
    %5716 = vmatprep.subr.bf16.mxu0 0
    %5717 = vmatpush1.bf16.msra.mxu0 %v3103
    %5718 = vmatprep.subr.bf16.mxu0 0
    %5719 = vmatpush1.bf16.msra.mxu0 %v3104
    %5720 = vmatprep.subr.bf16.mxu0 0
    %5721 = vmatpush1.bf16.msra.mxu0 %v3105
    %5722 = vmatprep.subr.bf16.mxu0 0
    %5723 = vmatpush1.bf16.msra.mxu0 %v3106
    %5724 = vmatprep.subr.bf16.mxu0 0
    %5725 = vmatpush1.bf16.msra.mxu0 %v3107
    %5726 = vmatprep.subr.bf16.mxu0 0
    %5727 = vmatpush1.bf16.msra.mxu0 %v3108
    %5728 = vmatprep.subr.bf16.mxu0 0
    %5729 = vmatpush1.bf16.msra.mxu0 %v3109
    %5730 = vmatprep.subr.bf16.mxu0 0
    %5731 = vmatpush1.bf16.msra.mxu0 %v3110
    %5732 = vmatprep.subr.bf16.mxu0 0
    %5733 = vmatpush1.bf16.msra.mxu0 %v3111
    %5734 = vmatprep.subr.bf16.mxu0 0
    %5735 = vmatpush1.bf16.msra.mxu0 %v3112
    %5736 = vmatprep.mubr.bf16.mxu0 %v2092
    %5737 = vmatmul.mubr.bf16.gmra.mrb[0].mxu0 %v2086
    %v5738 = vpop.f32.mrb[0].mxu0
    %v5739 = vadd.f32 %v5690, %v5738
    %v5740 = vpop.f32.mrb[0].mxu0
    %v5741 = vpop.f32.mrb[0].mxu0
    %v5742 = vadd.f32 %v5693, %v5741
    %v5743 = vpop.f32.mrb[0].mxu0
    %5744 = vmatprep.mubr.bf16.mxu0 %v2166
    %5745 = vmatmul.mubr.bf16.gmra.mrb[0].mxu0 %v2164
    %v5746 = vpop.f32.mrb[0].mxu0
    %v5747 = vadd.f32 %v5698, %v5746
    %v5748 = vpop.f32.mrb[0].mxu0
    %v5749 = vpop.f32.mrb[0].mxu0
    %v5750 = vadd.f32 %v5701, %v5749
    %v5751 = vpop.f32.mrb[0].mxu0
    %5752 = vdwg.mxu0
    %5753 = vmatprep.subr.bf16.mxu0 0
    %5754 = vmatpush1.bf16.msra.mxu0 %v3113
    %5755 = vmatprep.subr.bf16.mxu0 0
    %5756 = vmatpush1.bf16.msra.mxu0 %v3114
    %5757 = vmatprep.subr.bf16.mxu0 0
    %5758 = vmatpush1.bf16.msra.mxu0 %v3115
    %5759 = vmatprep.subr.bf16.mxu0 0
    %5760 = vmatpush1.bf16.msra.mxu0 %v3116
    %5761 = vmatprep.subr.bf16.mxu0 0
    %5762 = vmatpush1.bf16.msra.mxu0 %v3117
    %5763 = vmatprep.subr.bf16.mxu0 0
    %5764 = vmatpush1.bf16.msra.mxu0 %v3118
    %5765 = vmatprep.subr.bf16.mxu0 0
    %5766 = vmatpush1.bf16.msra.mxu0 %v3119
    %5767 = vmatprep.subr.bf16.mxu0 0
    %5768 = vmatpush1.bf16.msra.mxu0 %v3120
    %5769 = vmatprep.subr.bf16.mxu0 0
    %5770 = vmatpush1.bf16.msra.mxu0 %v3121
    %5771 = vmatprep.subr.bf16.mxu0 0
    %5772 = vmatpush1.bf16.msra.mxu0 %v3122
    %5773 = vmatprep.subr.bf16.mxu0 0
    %5774 = vmatpush1.bf16.msra.mxu0 %v3123
    %5775 = vmatprep.subr.bf16.mxu0 0
    %5776 = vmatpush1.bf16.msra.mxu0 %v3124
    %5777 = vmatprep.subr.bf16.mxu0 0
    %5778 = vmatpush1.bf16.msra.mxu0 %v3125
    %5779 = vmatprep.subr.bf16.mxu0 0
    %5780 = vmatpush1.bf16.msra.mxu0 %v3126
    %5781 = vmatprep.subr.bf16.mxu0 0
    %5782 = vmatpush1.bf16.msra.mxu0 %v3127
    %5783 = vmatprep.subr.bf16.mxu0 0
    %5784 = vmatpush1.bf16.msra.mxu0 %v3128
    %5785 = vmatprep.mubr.bf16.mxu0 %v4011
    %5786 = vmatmul.mubr.bf16.gmra.mrb[0].mxu0 %v2098
    %v5787 = vpop.f32.mrb[0].mxu0
    %v5788 = vadd.f32 %v5739, %v5787
    %v5789 = vpop.f32.mrb[0].mxu0
    %v5790 = vpop.f32.mrb[0].mxu0
    %v5791 = vadd.f32 %v5742, %v5790
    %v5792 = vpop.f32.mrb[0].mxu0
    %5793 = vmatprep.mubr.bf16.mxu0 %v4025
    %5794 = vmatmul.mubr.bf16.gmra.mrb[0].mxu0 %v2168
    %v5795 = vpop.f32.mrb[0].mxu0
    %v5796 = vadd.f32 %v5747, %v5795
    %v5797 = vpop.f32.mrb[0].mxu0
    %v5798 = vpop.f32.mrb[0].mxu0
    %v5799 = vadd.f32 %v5750, %v5798
    %v5800 = vpop.f32.mrb[0].mxu0
    %5801 = vdwg.mxu0
    %5802 = vmatprep.subr.bf16.mxu0 0
    %5803 = vmatpush1.bf16.msra.mxu0 %v3129
    %5804 = vmatprep.subr.bf16.mxu0 0
    %5805 = vmatpush1.bf16.msra.mxu0 %v3130
    %5806 = vmatprep.subr.bf16.mxu0 0
    %5807 = vmatpush1.bf16.msra.mxu0 %v3131
    %5808 = vmatprep.subr.bf16.mxu0 0
    %5809 = vmatpush1.bf16.msra.mxu0 %v3132
    %5810 = vmatprep.subr.bf16.mxu0 0
    %5811 = vmatpush1.bf16.msra.mxu0 %v3133
    %5812 = vmatprep.subr.bf16.mxu0 0
    %5813 = vmatpush1.bf16.msra.mxu0 %v3134
    %5814 = vmatprep.subr.bf16.mxu0 0
    %5815 = vmatpush1.bf16.msra.mxu0 %v3135
    %5816 = vmatprep.subr.bf16.mxu0 0
    %5817 = vmatpush1.bf16.msra.mxu0 %v3136
    %5818 = vmatprep.subr.bf16.mxu0 0
    %5819 = vmatpush1.bf16.msra.mxu0 %v3137
    %5820 = vmatprep.subr.bf16.mxu0 0
    %5821 = vmatpush1.bf16.msra.mxu0 %v3138
    %5822 = vmatprep.subr.bf16.mxu0 0
    %5823 = vmatpush1.bf16.msra.mxu0 %v3139
    %5824 = vmatprep.subr.bf16.mxu0 0
    %5825 = vmatpush1.bf16.msra.mxu0 %v3140
    %5826 = vmatprep.subr.bf16.mxu0 0
    %5827 = vmatpush1.bf16.msra.mxu0 %v3141
    %5828 = vmatprep.subr.bf16.mxu0 0
    %5829 = vmatpush1.bf16.msra.mxu0 %v3142
    %5830 = vmatprep.subr.bf16.mxu0 0
    %5831 = vmatpush1.bf16.msra.mxu0 %v3143
    %5832 = vmatprep.subr.bf16.mxu0 0
    %5833 = vmatpush1.bf16.msra.mxu0 %v3144
    %5834 = vmatprep.mubr.bf16.mxu0 %v2116
    %5835 = vmatmul.mubr.bf16.gmra.mrb[0].mxu0 %v2110
    %v5836 = vpop.f32.mrb[0].mxu0
    %v5837 = vadd.f32 %v5788, %v5836
    %v5838 = vpop.f32.mrb[0].mxu0
    %v5839 = vpop.f32.mrb[0].mxu0
    %v5840 = vadd.f32 %v5791, %v5839
    %v5841 = vpop.f32.mrb[0].mxu0
    %5842 = vmatprep.mubr.bf16.mxu0 %v4668
    %5843 = vmatmul.mubr.bf16.gmra.mrb[0].mxu0 %v4666
    %v5844 = vpop.f32.mrb[0].mxu0
    %v5845 = vadd.f32 %v5796, %v5844
    %v5846 = vpop.f32.mrb[0].mxu0
    %v5847 = vpop.f32.mrb[0].mxu0
    %v5848 = vadd.f32 %v5799, %v5847
    %v5849 = vpop.f32.mrb[0].mxu0
    %5850 = vdwg.mxu0
    %5851 = vmatprep.subr.bf16.mxu0 0
    %5852 = vmatpush1.bf16.msra.mxu0 %v3145
    %5853 = vmatprep.subr.bf16.mxu0 0
    %5854 = vmatpush1.bf16.msra.mxu0 %v3146
    %5855 = vmatprep.subr.bf16.mxu0 0
    %5856 = vmatpush1.bf16.msra.mxu0 %v3147
    %5857 = vmatprep.subr.bf16.mxu0 0
    %5858 = vmatpush1.bf16.msra.mxu0 %v3148
    %5859 = vmatprep.subr.bf16.mxu0 0
    %5860 = vmatpush1.bf16.msra.mxu0 %v3149
    %5861 = vmatprep.subr.bf16.mxu0 0
    %5862 = vmatpush1.bf16.msra.mxu0 %v3150
    %5863 = vmatprep.subr.bf16.mxu0 0
    %5864 = vmatpush1.bf16.msra.mxu0 %v3151
    %5865 = vmatprep.subr.bf16.mxu0 0
    %5866 = vmatpush1.bf16.msra.mxu0 %v3152
    %5867 = vmatprep.subr.bf16.mxu0 0
    %5868 = vmatpush1.bf16.msra.mxu0 %v3153
    %5869 = vmatprep.subr.bf16.mxu0 0
    %5870 = vmatpush1.bf16.msra.mxu0 %v3154
    %5871 = vmatprep.subr.bf16.mxu0 0
    %5872 = vmatpush1.bf16.msra.mxu0 %v3155
    %5873 = vmatprep.subr.bf16.mxu0 0
    %5874 = vmatpush1.bf16.msra.mxu0 %v3156
    %5875 = vmatprep.subr.bf16.mxu0 0
    %5876 = vmatpush1.bf16.msra.mxu0 %v3157
    %5877 = vmatprep.subr.bf16.mxu0 0
    %5878 = vmatpush1.bf16.msra.mxu0 %v3158
    %5879 = vmatprep.subr.bf16.mxu0 0
    %5880 = vmatpush1.bf16.msra.mxu0 %v3159
    %5881 = vmatprep.subr.bf16.mxu0 0
    %5882 = vmatpush1.bf16.msra.mxu0 %v3160
    %5883 = vmatprep.mubr.bf16.mxu0 %v2128
    %5884 = vmatmul.mubr.bf16.gmra.mrb[0].mxu0 %v2122
    %v5885 = vpop.f32.mrb[0].mxu0
    %v5886 = vadd.f32 %v5837, %v5885
    %v5887 = vpop.f32.mrb[0].mxu0
    %v5888 = vpop.f32.mrb[0].mxu0
    %v5889 = vadd.f32 %v5840, %v5888
    %v5890 = vpop.f32.mrb[0].mxu0
    %5891 = vmatprep.mubr.bf16.mxu0 %v4672
    %5892 = vmatmul.mubr.bf16.gmra.mrb[0].mxu0 %v4670
    %v5893 = vpop.f32.mrb[0].mxu0
    %v5894 = vadd.f32 %v5845, %v5893
    %v5895 = vpop.f32.mrb[0].mxu0
    %v5896 = vpop.f32.mrb[0].mxu0
    %v5897 = vadd.f32 %v5848, %v5896
    %v5898 = vpop.f32.mrb[0].mxu0
    %5899 = vdwg.mxu0
    %5900 = vmatprep.subr.bf16.mxu0 0
    %5901 = vmatpush1.bf16.msra.mxu0 %v3161
    %5902 = vmatprep.subr.bf16.mxu0 0
    %5903 = vmatpush1.bf16.msra.mxu0 %v3162
    %5904 = vmatprep.subr.bf16.mxu0 0
    %5905 = vmatpush1.bf16.msra.mxu0 %v3163
    %5906 = vmatprep.subr.bf16.mxu0 0
    %5907 = vmatpush1.bf16.msra.mxu0 %v3164
    %5908 = vmatprep.subr.bf16.mxu0 0
    %5909 = vmatpush1.bf16.msra.mxu0 %v3165
    %5910 = vmatprep.subr.bf16.mxu0 0
    %5911 = vmatpush1.bf16.msra.mxu0 %v3166
    %5912 = vmatprep.subr.bf16.mxu0 0
    %5913 = vmatpush1.bf16.msra.mxu0 %v3167
    %5914 = vmatprep.subr.bf16.mxu0 0
    %5915 = vmatpush1.bf16.msra.mxu0 %v3168
    %5916 = vmatprep.subr.bf16.mxu0 0
    %5917 = vmatpush1.bf16.msra.mxu0 0
    %5918 = vmatprep.subr.bf16.mxu0 0
    %5919 = vmatpush1.bf16.msra.mxu0 0
    %5920 = vmatprep.subr.bf16.mxu0 0
    %5921 = vmatpush1.bf16.msra.mxu0 0
    %5922 = vmatprep.subr.bf16.mxu0 0
    %5923 = vmatpush1.bf16.msra.mxu0 0
    %5924 = vmatprep.subr.bf16.mxu0 0
    %5925 = vmatpush1.bf16.msra.mxu0 0
    %5926 = vmatprep.subr.bf16.mxu0 0
    %5927 = vmatpush1.bf16.msra.mxu0 0
    %5928 = vmatprep.subr.bf16.mxu0 0
    %5929 = vmatpush1.bf16.msra.mxu0 0
    %5930 = vmatprep.subr.bf16.mxu0 0
    %5931 = vmatpush1.bf16.msra.mxu0 0
    %5932 = vmatprep.mubr.bf16.mxu0 0
    %5933 = vmatmul.mubr.bf16.gmra.mrb[0].mxu0 %v4017
    %v5934 = vpop.f32.mrb[0].mxu0
    %v5935 = vadd.f32 %v5886, %v5934
    %v5936 = vpop.f32.mrb[0].mxu0
    %v5937 = vpop.f32.mrb[0].mxu0
    %v5938 = vadd.f32 %v5889, %v5937
    %v5939 = vpop.f32.mrb[0].mxu0
    %5940 = vmatprep.mubr.bf16.mxu0 0
    %5941 = vmatmul.mubr.bf16.gmra.mrb[0].mxu0 %v5311
    %v5942 = vpop.f32.mrb[0].mxu0
    %v5943 = vadd.f32 %v5894, %v5942
    %v5944 = vpop.f32.mrb[0].mxu0
    %v5945 = vpop.f32.mrb[0].mxu0
    %v5946 = vadd.f32 %v5897, %v5945
    %v5947 = vpop.f32.mrb[0].mxu0
    %5948 = vdwg.mxu0
    %v5949 = vmax.f32 %v3992, %v4649
    %v5950 = vmax.f32 %v3995, %v4652
    %v5951 = vmax.f32 %v4000, %v4657
    %v5952 = vmax.f32 %v4003, %v4660
    %v5953 = vmax.f32 %v5296, %v5935
    %v5954 = vmax.f32 %v5299, %v5938
    %v5955 = vmax.f32 %v5304, %v5943
    %v5956 = vmax.f32 %v5307, %v5946
    %v5957 = vmax.f32 %v5949, %v5953
    %v5958 = vmax.f32 %v5950, %v5954
    %v5959 = vmax.f32 %v5951, %v5955
    %v5960 = vmax.f32 %v5952, %v5956
    %v5961 = vld [vmem:[%s4] sm:$0x1]
    %v5963 = vlaneseq
    %v5964 = vshrl.u32 %v5963, 7
    %v5965 = vsub.s32 0, %v5964
    %v5966 = vrot.slane %v5961, %v5965
    %v5968 = vadd.f32 %v5957, %v5966
    %v5969 = vadd.f32 %v5958, %v5966
    %v5970 = vadd.f32 %v5959, %v5966
    %v5971 = vadd.f32 %v5960, %v5966
    %5972 = vst [vmem:[#allocation3] sm:$0xff] %v5968
    %5973 = vst [vmem:[#allocation3 + $0x8] sm:$0xff] %v5969
    %5974 = vst [vmem:[#allocation3 + $0x10] sm:$0xff] %v5970
    %5975 = vst [vmem:[#allocation3 + $0x18] sm:$0xff] %v5971
    %v5976 = vld [vmem:[#allocation3] sm:$0x3]
    %v5977 = vld [vmem:[#allocation3 + $0x2] sm:$0x3]
    %v5978 = vld [vmem:[#allocation3 + $0x4] sm:$0x3]
    %v5979 = vld [vmem:[#allocation3 + $0x6] sm:$0x3]
    %v5980 = vld [vmem:[#allocation3 + $0x8] sm:$0x3]
    %v5981 = vld [vmem:[#allocation3 + $0xa] sm:$0x3]
    %v5982 = vld [vmem:[#allocation3 + $0xc] sm:$0x3]
    %v5983 = vld [vmem:[#allocation3 + $0xe] sm:$0x3]
    %v5984 = vld [vmem:[#allocation3 + $0x10] sm:$0x3]
    %v5985 = vld [vmem:[#allocation3 + $0x12] sm:$0x3]
    %v5986 = vld [vmem:[#allocation3 + $0x14] sm:$0x3]
    %v5987 = vld [vmem:[#allocation3 + $0x16] sm:$0x3]
    %v5988 = vld [vmem:[#allocation3 + $0x18] sm:$0x3]
    %v5989 = vld [vmem:[#allocation3 + $0x1a] sm:$0x3]
    %v5990 = vld [vmem:[#allocation3 + $0x1c] sm:$0x3]
    %v5991 = vld [vmem:[#allocation3 + $0x1e] sm:$0x3]
    %v5992 = vpack.c.bf16 %v5976, %v5976
    %v5993 = vpack.c.bf16 %v5977, %v5977
    %v5994 = vpack.c.bf16 %v5978, %v5978
    %v5995 = vpack.c.bf16 %v5979, %v5979
    %v5996 = vpack.c.bf16 %v5980, %v5980
    %v5997 = vpack.c.bf16 %v5981, %v5981
    %v5998 = vpack.c.bf16 %v5982, %v5982
    %v5999 = vpack.c.bf16 %v5983, %v5983
    %v6000 = vpack.c.bf16 %v5984, %v5984
    %v6001 = vpack.c.bf16 %v5985, %v5985
    %v6002 = vpack.c.bf16 %v5986, %v5986
    %v6003 = vpack.c.bf16 %v5987, %v5987
    %v6004 = vpack.c.bf16 %v5988, %v5988
    %v6005 = vpack.c.bf16 %v5989, %v5989
    %v6006 = vpack.c.bf16 %v5990, %v5990
    %v6007 = vpack.c.bf16 %v5991, %v5991
    %v6008 = vld [vmem:[%s5] sm:$0xff]
    %v6009 = vld [vmem:[%s5 + $0x8] sm:$0xff]
    %v6010 = vld [vmem:[%s5 + $0x10] sm:$0xff]
    %v6011 = vld [vmem:[%s5 + $0x18] sm:$0xff]
    %v6012 = vld [vmem:[%s5 + $0x20] sm:$0xff]
    %v6013 = vld [vmem:[%s5 + $0x28] sm:$0xff]
    %v6014 = vld [vmem:[%s5 + $0x30] sm:$0xff]
    %v6015 = vld [vmem:[%s5 + $0x38] sm:$0xff]
    %v6016 = vld [vmem:[%s5 + $0x40] sm:$0xff]
    %v6017 = vld [vmem:[%s5 + $0x48] sm:$0xff]
    %v6018 = vld [vmem:[%s5 + $0x50] sm:$0xff]
    %v6019 = vld [vmem:[%s5 + $0x58] sm:$0xff]
    %v6020 = vld [vmem:[%s5 + $0x60] sm:$0xff]
    %v6021 = vld [vmem:[%s5 + $0x68] sm:$0xff]
    %v6022 = vld [vmem:[%s5 + $0x70] sm:$0xff]
    %v6023 = vld [vmem:[%s5 + $0x78] sm:$0xff]
    %v6024 = vld [vmem:[%s5 + $0x80] sm:$0xff]
    %v6025 = vld [vmem:[%s5 + $0x88] sm:$0xff]
    %v6026 = vld [vmem:[%s5 + $0x90] sm:$0xff]
    %v6027 = vld [vmem:[%s5 + $0x98] sm:$0xff]
    %v6028 = vld [vmem:[%s5 + $0xa0] sm:$0xff]
    %v6029 = vld [vmem:[%s5 + $0xa8] sm:$0xff]
    %v6030 = vld [vmem:[%s5 + $0xb0] sm:$0xff]
    %v6031 = vld [vmem:[%s5 + $0xb8] sm:$0xff]
    %v6032 = vld [vmem:[%s5 + $0xc0] sm:$0xff]
    %v6033 = vld [vmem:[%s5 + $0xc8] sm:$0xff]
    %v6034 = vld [vmem:[%s5 + $0xd0] sm:$0xff]
    %v6035 = vld [vmem:[%s5 + $0xd8] sm:$0xff]
    %v6036 = vld [vmem:[%s5 + $0xe0] sm:$0xff]
    %v6037 = vld [vmem:[%s5 + $0xe8] sm:$0xff]
    %v6038 = vld [vmem:[%s5 + $0xf0] sm:$0xff]
    %v6039 = vld [vmem:[%s5 + $0xf8] sm:$0xff]
    %v6040 = vld [vmem:[%s5 + $0x100] sm:$0xff]
    %v6041 = vld [vmem:[%s5 + $0x108] sm:$0xff]
    %v6042 = vld [vmem:[%s5 + $0x110] sm:$0xff]
    %v6043 = vld [vmem:[%s5 + $0x118] sm:$0xff]
    %v6044 = vld [vmem:[%s5 + $0x120] sm:$0xff]
    %v6045 = vld [vmem:[%s5 + $0x128] sm:$0xff]
    %v6046 = vld [vmem:[%s5 + $0x130] sm:$0xff]
    %v6047 = vld [vmem:[%s5 + $0x138] sm:$0xff]
    %v6048 = vld [vmem:[%s5 + $0x140] sm:$0xff]
    %v6049 = vld [vmem:[%s5 + $0x148] sm:$0xff]
    %v6050 = vld [vmem:[%s5 + $0x150] sm:$0xff]
    %v6051 = vld [vmem:[%s5 + $0x158] sm:$0xff]
    %v6052 = vld [vmem:[%s5 + $0x160] sm:$0xff]
    %v6053 = vld [vmem:[%s5 + $0x168] sm:$0xff]
    %v6054 = vld [vmem:[%s5 + $0x170] sm:$0xff]
    %v6055 = vld [vmem:[%s5 + $0x178] sm:$0xff]
    %v6056 = vld [vmem:[%s5 + $0x180] sm:$0xff]
    %v6057 = vld [vmem:[%s5 + $0x188] sm:$0xff]
    %v6058 = vld [vmem:[%s5 + $0x190] sm:$0xff]
    %v6059 = vld [vmem:[%s5 + $0x198] sm:$0xff]
    %v6060 = vld [vmem:[%s5 + $0x1a0] sm:$0xff]
    %v6061 = vld [vmem:[%s5 + $0x1a8] sm:$0xff]
    %v6062 = vld [vmem:[%s5 + $0x1b0] sm:$0xff]
    %v6063 = vld [vmem:[%s5 + $0x1b8] sm:$0xff]
    %v6064 = vld [vmem:[%s5 + $0x1c0] sm:$0xff]
    %v6065 = vld [vmem:[%s5 + $0x1c8] sm:$0xff]
    %v6066 = vld [vmem:[%s5 + $0x1d0] sm:$0xff]
    %v6067 = vld [vmem:[%s5 + $0x1d8] sm:$0xff]
    %v6068 = vld [vmem:[%s5 + $0x1e0] sm:$0xff]
    %v6069 = vld [vmem:[%s5 + $0x1e8] sm:$0xff]
    %v6070 = vld [vmem:[%s5 + $0x1f0] sm:$0xff]
    %v6071 = vld [vmem:[%s5 + $0x1f8] sm:$0xff]
    %v6072 = vld [vmem:[%s5 + $0x200] sm:$0xff]
    %v6073 = vld [vmem:[%s5 + $0x208] sm:$0xff]
    %v6074 = vld [vmem:[%s5 + $0x210] sm:$0xff]
    %v6075 = vld [vmem:[%s5 + $0x218] sm:$0xff]
    %v6076 = vld [vmem:[%s5 + $0x220] sm:$0xff]
    %v6077 = vld [vmem:[%s5 + $0x228] sm:$0xff]
    %v6078 = vld [vmem:[%s5 + $0x230] sm:$0xff]
    %v6079 = vld [vmem:[%s5 + $0x238] sm:$0xff]
    %v6080 = vld [vmem:[%s5 + $0x240] sm:$0xff]
    %v6081 = vld [vmem:[%s5 + $0x248] sm:$0xff]
    %v6082 = vld [vmem:[%s5 + $0x250] sm:$0xff]
    %v6083 = vld [vmem:[%s5 + $0x258] sm:$0xff]
    %v6084 = vld [vmem:[%s5 + $0x260] sm:$0xff]
    %v6085 = vld [vmem:[%s5 + $0x268] sm:$0xff]
    %v6086 = vld [vmem:[%s5 + $0x270] sm:$0xff]
    %v6087 = vld [vmem:[%s5 + $0x278] sm:$0xff]
    %v6088 = vld [vmem:[%s5 + $0x280] sm:$0xff]
    %v6089 = vld [vmem:[%s5 + $0x288] sm:$0xff]
    %v6090 = vld [vmem:[%s5 + $0x290] sm:$0xff]
    %v6091 = vld [vmem:[%s5 + $0x298] sm:$0xff]
    %v6092 = vld [vmem:[%s5 + $0x2a0] sm:$0xff]
    %v6093 = vld [vmem:[%s5 + $0x2a8] sm:$0xff]
    %v6094 = vld [vmem:[%s5 + $0x2b0] sm:$0xff]
    %v6095 = vld [vmem:[%s5 + $0x2b8] sm:$0xff]
    %v6096 = vld [vmem:[%s5 + $0x2c0] sm:$0xff]
    %v6097 = vld [vmem:[%s5 + $0x2c8] sm:$0xff]
    %v6098 = vld [vmem:[%s5 + $0x2d0] sm:$0xff]
    %v6099 = vld [vmem:[%s5 + $0x2d8] sm:$0xff]
    %v6100 = vld [vmem:[%s5 + $0x2e0] sm:$0xff]
    %v6101 = vld [vmem:[%s5 + $0x2e8] sm:$0xff]
    %v6102 = vld [vmem:[%s5 + $0x2f0] sm:$0xff]
    %v6103 = vld [vmem:[%s5 + $0x2f8] sm:$0xff]
    %v6104 = vld [vmem:[%s5 + $0x300] sm:$0xff]
    %v6105 = vld [vmem:[%s5 + $0x308] sm:$0xff]
    %v6106 = vld [vmem:[%s5 + $0x310] sm:$0xff]
    %v6107 = vld [vmem:[%s5 + $0x318] sm:$0xff]
    %v6108 = vld [vmem:[%s5 + $0x320] sm:$0xff]
    %v6109 = vld [vmem:[%s5 + $0x328] sm:$0xff]
    %v6110 = vld [vmem:[%s5 + $0x330] sm:$0xff]
    %v6111 = vld [vmem:[%s5 + $0x338] sm:$0xff]
    %v6112 = vld [vmem:[%s5 + $0x340] sm:$0xff]
    %v6113 = vld [vmem:[%s5 + $0x348] sm:$0xff]
    %v6114 = vld [vmem:[%s5 + $0x350] sm:$0xff]
    %v6115 = vld [vmem:[%s5 + $0x358] sm:$0xff]
    %v6116 = vld [vmem:[%s5 + $0x360] sm:$0xff]
    %v6117 = vld [vmem:[%s5 + $0x368] sm:$0xff]
    %v6118 = vld [vmem:[%s5 + $0x370] sm:$0xff]
    %v6119 = vld [vmem:[%s5 + $0x378] sm:$0xff]
    %v6120 = vld [vmem:[%s5 + $0x380] sm:$0xff]
    %v6121 = vld [vmem:[%s5 + $0x388] sm:$0xff]
    %v6122 = vld [vmem:[%s5 + $0x390] sm:$0xff]
    %v6123 = vld [vmem:[%s5 + $0x398] sm:$0xff]
    %v6124 = vld [vmem:[%s5 + $0x3a0] sm:$0xff]
    %v6125 = vld [vmem:[%s5 + $0x3a8] sm:$0xff]
    %v6126 = vld [vmem:[%s5 + $0x3b0] sm:$0xff]
    %v6127 = vld [vmem:[%s5 + $0x3b8] sm:$0xff]
    %v6128 = vld [vmem:[%s5 + $0x3c0] sm:$0xff]
    %v6129 = vld [vmem:[%s5 + $0x3c8] sm:$0xff]
    %v6130 = vld [vmem:[%s5 + $0x3d0] sm:$0xff]
    %v6131 = vld [vmem:[%s5 + $0x3d8] sm:$0xff]
    %v6132 = vld [vmem:[%s5 + $0x3e0] sm:$0xff]
    %v6133 = vld [vmem:[%s5 + $0x3e8] sm:$0xff]
    %v6134 = vld [vmem:[%s5 + $0x3f0] sm:$0xff]
    %v6135 = vld [vmem:[%s5 + $0x3f8] sm:$0xff]
    %v6136 = vld [vmem:[%s5 + $0x400] sm:$0xff]
    %v6137 = vld [vmem:[%s5 + $0x408] sm:$0xff]
    %v6138 = vld [vmem:[%s5 + $0x410] sm:$0xff]
    %v6139 = vld [vmem:[%s5 + $0x418] sm:$0xff]
    %v6140 = vld [vmem:[%s5 + $0x420] sm:$0xff]
    %v6141 = vld [vmem:[%s5 + $0x428] sm:$0xff]
    %v6142 = vld [vmem:[%s5 + $0x430] sm:$0xff]
    %v6143 = vld [vmem:[%s5 + $0x438] sm:$0xff]
    %v6144 = vld [vmem:[%s5 + $0x440] sm:$0xff]
    %v6145 = vld [vmem:[%s5 + $0x448] sm:$0xff]
    %v6146 = vld [vmem:[%s5 + $0x450] sm:$0xff]
    %v6147 = vld [vmem:[%s5 + $0x458] sm:$0xff]
    %v6148 = vld [vmem:[%s5 + $0x460] sm:$0xff]
    %v6149 = vld [vmem:[%s5 + $0x468] sm:$0xff]
    %v6150 = vld [vmem:[%s5 + $0x470] sm:$0xff]
    %v6151 = vld [vmem:[%s5 + $0x478] sm:$0xff]
    %v6152 = vld [vmem:[%s5 + $0x480] sm:$0xff]
    %v6153 = vld [vmem:[%s5 + $0x488] sm:$0xff]
    %v6154 = vld [vmem:[%s5 + $0x490] sm:$0xff]
    %v6155 = vld [vmem:[%s5 + $0x498] sm:$0xff]
    %v6156 = vld [vmem:[%s5 + $0x4a0] sm:$0xff]
    %v6157 = vld [vmem:[%s5 + $0x4a8] sm:$0xff]
    %v6158 = vld [vmem:[%s5 + $0x4b0] sm:$0xff]
    %v6159 = vld [vmem:[%s5 + $0x4b8] sm:$0xff]
    %v6160 = vld [vmem:[%s5 + $0x4c0] sm:$0xff]
    %v6161 = vld [vmem:[%s5 + $0x4c8] sm:$0xff]
    %v6162 = vld [vmem:[%s5 + $0x4d0] sm:$0xff]
    %v6163 = vld [vmem:[%s5 + $0x4d8] sm:$0xff]
    %v6164 = vld [vmem:[%s5 + $0x4e0] sm:$0xff]
    %v6165 = vld [vmem:[%s5 + $0x4e8] sm:$0xff]
    %v6166 = vld [vmem:[%s5 + $0x4f0] sm:$0xff]
    %v6167 = vld [vmem:[%s5 + $0x4f8] sm:$0xff]
    %v6168 = vld [vmem:[%s5 + $0x500] sm:$0xff]
    %v6169 = vld [vmem:[%s5 + $0x508] sm:$0xff]
    %v6170 = vld [vmem:[%s5 + $0x510] sm:$0xff]
    %v6171 = vld [vmem:[%s5 + $0x518] sm:$0xff]
    %v6172 = vld [vmem:[%s5 + $0x520] sm:$0xff]
    %v6173 = vld [vmem:[%s5 + $0x528] sm:$0xff]
    %v6174 = vld [vmem:[%s5 + $0x530] sm:$0xff]
    %v6175 = vld [vmem:[%s5 + $0x538] sm:$0xff]
    %v6176 = vld [vmem:[%s5 + $0x540] sm:$0xff]
    %v6177 = vld [vmem:[%s5 + $0x548] sm:$0xff]
    %v6178 = vld [vmem:[%s5 + $0x550] sm:$0xff]
    %v6179 = vld [vmem:[%s5 + $0x558] sm:$0xff]
    %v6180 = vld [vmem:[%s5 + $0x560] sm:$0xff]
    %v6181 = vld [vmem:[%s5 + $0x568] sm:$0xff]
    %v6182 = vld [vmem:[%s5 + $0x570] sm:$0xff]
    %v6183 = vld [vmem:[%s5 + $0x578] sm:$0xff]
    %v6184 = vld [vmem:[%s5 + $0x580] sm:$0xff]
    %v6185 = vld [vmem:[%s5 + $0x588] sm:$0xff]
    %v6186 = vld [vmem:[%s5 + $0x590] sm:$0xff]
    %v6187 = vld [vmem:[%s5 + $0x598] sm:$0xff]
    %v6188 = vld [vmem:[%s5 + $0x5a0] sm:$0xff]
    %v6189 = vld [vmem:[%s5 + $0x5a8] sm:$0xff]
    %v6190 = vld [vmem:[%s5 + $0x5b0] sm:$0xff]
    %v6191 = vld [vmem:[%s5 + $0x5b8] sm:$0xff]
    %v6192 = vld [vmem:[%s5 + $0x5c0] sm:$0xff]
    %v6193 = vld [vmem:[%s5 + $0x5c8] sm:$0xff]
    %v6194 = vld [vmem:[%s5 + $0x5d0] sm:$0xff]
    %v6195 = vld [vmem:[%s5 + $0x5d8] sm:$0xff]
    %v6196 = vld [vmem:[%s5 + $0x5e0] sm:$0xff]
    %v6197 = vld [vmem:[%s5 + $0x5e8] sm:$0xff]
    %v6198 = vld [vmem:[%s5 + $0x5f0] sm:$0xff]
    %v6199 = vld [vmem:[%s5 + $0x5f8] sm:$0xff]
    %v6200 = vld [vmem:[%s5 + $0x600] sm:$0xff]
    %v6201 = vld [vmem:[%s5 + $0x608] sm:$0xff]
    %v6202 = vld [vmem:[%s5 + $0x610] sm:$0xff]
    %v6203 = vld [vmem:[%s5 + $0x618] sm:$0xff]
    %v6204 = vld [vmem:[%s5 + $0x620] sm:$0xff]
    %v6205 = vld [vmem:[%s5 + $0x628] sm:$0xff]
    %v6206 = vld [vmem:[%s5 + $0x630] sm:$0xff]
    %v6207 = vld [vmem:[%s5 + $0x638] sm:$0xff]
    %v6208 = vld [vmem:[%s5 + $0x640] sm:$0xff]
    %v6209 = vld [vmem:[%s5 + $0x648] sm:$0xff]
    %v6210 = vld [vmem:[%s5 + $0x650] sm:$0xff]
    %v6211 = vld [vmem:[%s5 + $0x658] sm:$0xff]
    %v6212 = vld [vmem:[%s5 + $0x660] sm:$0xff]
    %v6213 = vld [vmem:[%s5 + $0x668] sm:$0xff]
    %v6214 = vld [vmem:[%s5 + $0x670] sm:$0xff]
    %v6215 = vld [vmem:[%s5 + $0x678] sm:$0xff]
    %v6216 = vld [vmem:[%s5 + $0x680] sm:$0xff]
    %v6217 = vld [vmem:[%s5 + $0x688] sm:$0xff]
    %v6218 = vld [vmem:[%s5 + $0x690] sm:$0xff]
    %v6219 = vld [vmem:[%s5 + $0x698] sm:$0xff]
    %v6220 = vld [vmem:[%s5 + $0x6a0] sm:$0xff]
    %v6221 = vld [vmem:[%s5 + $0x6a8] sm:$0xff]
    %v6222 = vld [vmem:[%s5 + $0x6b0] sm:$0xff]
    %v6223 = vld [vmem:[%s5 + $0x6b8] sm:$0xff]
    %v6224 = vld [vmem:[%s5 + $0x6c0] sm:$0xff]
    %v6225 = vld [vmem:[%s5 + $0x6c8] sm:$0xff]
    %v6226 = vld [vmem:[%s5 + $0x6d0] sm:$0xff]
    %v6227 = vld [vmem:[%s5 + $0x6d8] sm:$0xff]
    %v6228 = vld [vmem:[%s5 + $0x6e0] sm:$0xff]
    %v6229 = vld [vmem:[%s5 + $0x6e8] sm:$0xff]
    %v6230 = vld [vmem:[%s5 + $0x6f0] sm:$0xff]
    %v6231 = vld [vmem:[%s5 + $0x6f8] sm:$0xff]
    %v6232 = vld [vmem:[%s5 + $0x700] sm:$0xff]
    %v6233 = vld [vmem:[%s5 + $0x708] sm:$0xff]
    %v6234 = vld [vmem:[%s5 + $0x710] sm:$0xff]
    %v6235 = vld [vmem:[%s5 + $0x718] sm:$0xff]
    %v6236 = vld [vmem:[%s5 + $0x720] sm:$0xff]
    %v6237 = vld [vmem:[%s5 + $0x728] sm:$0xff]
    %v6238 = vld [vmem:[%s5 + $0x730] sm:$0xff]
    %v6239 = vld [vmem:[%s5 + $0x738] sm:$0xff]
    %v6240 = vld [vmem:[%s5 + $0x740] sm:$0xff]
    %v6241 = vld [vmem:[%s5 + $0x748] sm:$0xff]
    %v6242 = vld [vmem:[%s5 + $0x750] sm:$0xff]
    %v6243 = vld [vmem:[%s5 + $0x758] sm:$0xff]
    %v6244 = vld [vmem:[%s5 + $0x760] sm:$0xff]
    %v6245 = vld [vmem:[%s5 + $0x768] sm:$0xff]
    %v6246 = vld [vmem:[%s5 + $0x770] sm:$0xff]
    %v6247 = vld [vmem:[%s5 + $0x778] sm:$0xff]
    %v6248 = vld [vmem:[%s5 + $0x780] sm:$0xff]
    %v6249 = vld [vmem:[%s5 + $0x788] sm:$0xff]
    %v6250 = vld [vmem:[%s5 + $0x790] sm:$0xff]
    %v6251 = vld [vmem:[%s5 + $0x798] sm:$0xff]
    %v6252 = vld [vmem:[%s5 + $0x7a0] sm:$0xff]
    %v6253 = vld [vmem:[%s5 + $0x7a8] sm:$0xff]
    %v6254 = vld [vmem:[%s5 + $0x7b0] sm:$0xff]
    %v6255 = vld [vmem:[%s5 + $0x7b8] sm:$0xff]
    %v6256 = vld [vmem:[%s5 + $0x7c0] sm:$0xff]
    %v6257 = vld [vmem:[%s5 + $0x7c8] sm:$0xff]
    %v6258 = vld [vmem:[%s5 + $0x7d0] sm:$0xff]
    %v6259 = vld [vmem:[%s5 + $0x7d8] sm:$0xff]
    %v6260 = vld [vmem:[%s5 + $0x7e0] sm:$0xff]
    %v6261 = vld [vmem:[%s5 + $0x7e8] sm:$0xff]
    %v6262 = vld [vmem:[%s5 + $0x7f0] sm:$0xff]
    %v6263 = vld [vmem:[%s5 + $0x7f8] sm:$0xff]
    %v6264 = vld [vmem:[%s5 + $0x800] sm:$0xff]
    %v6265 = vld [vmem:[%s5 + $0x808] sm:$0xff]
    %v6266 = vld [vmem:[%s5 + $0x810] sm:$0xff]
    %v6267 = vld [vmem:[%s5 + $0x818] sm:$0xff]
    %v6268 = vld [vmem:[%s5 + $0x820] sm:$0xff]
    %v6269 = vld [vmem:[%s5 + $0x828] sm:$0xff]
    %v6270 = vld [vmem:[%s5 + $0x830] sm:$0xff]
    %v6271 = vld [vmem:[%s5 + $0x838] sm:$0xff]
    %v6272 = vld [vmem:[%s5 + $0x840] sm:$0xff]
    %v6273 = vld [vmem:[%s5 + $0x848] sm:$0xff]
    %v6274 = vld [vmem:[%s5 + $0x850] sm:$0xff]
    %v6275 = vld [vmem:[%s5 + $0x858] sm:$0xff]
    %v6276 = vld [vmem:[%s5 + $0x860] sm:$0xff]
    %v6277 = vld [vmem:[%s5 + $0x868] sm:$0xff]
    %v6278 = vld [vmem:[%s5 + $0x870] sm:$0xff]
    %v6279 = vld [vmem:[%s5 + $0x878] sm:$0xff]
    %v6280 = vld [vmem:[%s5 + $0x880] sm:$0xff]
    %v6281 = vld [vmem:[%s5 + $0x888] sm:$0xff]
    %v6282 = vld [vmem:[%s5 + $0x890] sm:$0xff]
    %v6283 = vld [vmem:[%s5 + $0x898] sm:$0xff]
    %v6284 = vld [vmem:[%s5 + $0x8a0] sm:$0xff]
    %v6285 = vld [vmem:[%s5 + $0x8a8] sm:$0xff]
    %v6286 = vld [vmem:[%s5 + $0x8b0] sm:$0xff]
    %v6287 = vld [vmem:[%s5 + $0x8b8] sm:$0xff]
    %v6288 = vld [vmem:[%s5 + $0x8c0] sm:$0xff]
    %v6289 = vld [vmem:[%s5 + $0x8c8] sm:$0xff]
    %v6290 = vld [vmem:[%s5 + $0x8d0] sm:$0xff]
    %v6291 = vld [vmem:[%s5 + $0x8d8] sm:$0xff]
    %v6292 = vld [vmem:[%s5 + $0x8e0] sm:$0xff]
    %v6293 = vld [vmem:[%s5 + $0x8e8] sm:$0xff]
    %v6294 = vld [vmem:[%s5 + $0x8f0] sm:$0xff]
    %v6295 = vld [vmem:[%s5 + $0x8f8] sm:$0xff]
    %v6296 = vld [vmem:[%s5 + $0x900] sm:$0xff]
    %v6297 = vld [vmem:[%s5 + $0x908] sm:$0xff]
    %v6298 = vld [vmem:[%s5 + $0x910] sm:$0xff]
    %v6299 = vld [vmem:[%s5 + $0x918] sm:$0xff]
    %v6300 = vld [vmem:[%s5 + $0x920] sm:$0xff]
    %v6301 = vld [vmem:[%s5 + $0x928] sm:$0xff]
    %v6302 = vld [vmem:[%s5 + $0x930] sm:$0xff]
    %v6303 = vld [vmem:[%s5 + $0x938] sm:$0xff]
    %v6304 = vld [vmem:[%s5 + $0x940] sm:$0xff]
    %v6305 = vld [vmem:[%s5 + $0x948] sm:$0xff]
    %v6306 = vld [vmem:[%s5 + $0x950] sm:$0xff]
    %v6307 = vld [vmem:[%s5 + $0x958] sm:$0xff]
    %v6308 = vld [vmem:[%s5 + $0x960] sm:$0xff]
    %v6309 = vld [vmem:[%s5 + $0x968] sm:$0xff]
    %v6310 = vld [vmem:[%s5 + $0x970] sm:$0xff]
    %v6311 = vld [vmem:[%s5 + $0x978] sm:$0xff]
    %v6312 = vld [vmem:[%s5 + $0x980] sm:$0xff]
    %v6313 = vld [vmem:[%s5 + $0x988] sm:$0xff]
    %v6314 = vld [vmem:[%s5 + $0x990] sm:$0xff]
    %v6315 = vld [vmem:[%s5 + $0x998] sm:$0xff]
    %v6316 = vld [vmem:[%s5 + $0x9a0] sm:$0xff]
    %v6317 = vld [vmem:[%s5 + $0x9a8] sm:$0xff]
    %v6318 = vld [vmem:[%s5 + $0x9b0] sm:$0xff]
    %v6319 = vld [vmem:[%s5 + $0x9b8] sm:$0xff]
    %v6320 = vld [vmem:[%s5 + $0x9c0] sm:$0xff]
    %v6321 = vld [vmem:[%s5 + $0x9c8] sm:$0xff]
    %v6322 = vld [vmem:[%s5 + $0x9d0] sm:$0xff]
    %v6323 = vld [vmem:[%s5 + $0x9d8] sm:$0xff]
    %v6324 = vld [vmem:[%s5 + $0x9e0] sm:$0xff]
    %v6325 = vld [vmem:[%s5 + $0x9e8] sm:$0xff]
    %v6326 = vld [vmem:[%s5 + $0x9f0] sm:$0xff]
    %v6327 = vld [vmem:[%s5 + $0x9f8] sm:$0xff]
    %v6328 = vld [vmem:[%s5 + $0xa00] sm:$0xff]
    %v6329 = vld [vmem:[%s5 + $0xa08] sm:$0xff]
    %v6330 = vld [vmem:[%s5 + $0xa10] sm:$0xff]
    %v6331 = vld [vmem:[%s5 + $0xa18] sm:$0xff]
    %v6332 = vld [vmem:[%s5 + $0xa20] sm:$0xff]
    %v6333 = vld [vmem:[%s5 + $0xa28] sm:$0xff]
    %v6334 = vld [vmem:[%s5 + $0xa30] sm:$0xff]
    %v6335 = vld [vmem:[%s5 + $0xa38] sm:$0xff]
    %v6336 = vld [vmem:[%s5 + $0xa40] sm:$0xff]
    %v6337 = vld [vmem:[%s5 + $0xa48] sm:$0xff]
    %v6338 = vld [vmem:[%s5 + $0xa50] sm:$0xff]
    %v6339 = vld [vmem:[%s5 + $0xa58] sm:$0xff]
    %v6340 = vld [vmem:[%s5 + $0xa60] sm:$0xff]
    %v6341 = vld [vmem:[%s5 + $0xa68] sm:$0xff]
    %v6342 = vld [vmem:[%s5 + $0xa70] sm:$0xff]
    %v6343 = vld [vmem:[%s5 + $0xa78] sm:$0xff]
    %v6344 = vld [vmem:[%s5 + $0xa80] sm:$0xff]
    %v6345 = vld [vmem:[%s5 + $0xa88] sm:$0xff]
    %v6346 = vld [vmem:[%s5 + $0xa90] sm:$0xff]
    %v6347 = vld [vmem:[%s5 + $0xa98] sm:$0xff]
    %v6348 = vld [vmem:[%s5 + $0xaa0] sm:$0xff]
    %v6349 = vld [vmem:[%s5 + $0xaa8] sm:$0xff]
    %v6350 = vld [vmem:[%s5 + $0xab0] sm:$0xff]
    %v6351 = vld [vmem:[%s5 + $0xab8] sm:$0xff]
    %v6352 = vld [vmem:[%s5 + $0xac0] sm:$0xff]
    %v6353 = vld [vmem:[%s5 + $0xac8] sm:$0xff]
    %v6354 = vld [vmem:[%s5 + $0xad0] sm:$0xff]
    %v6355 = vld [vmem:[%s5 + $0xad8] sm:$0xff]
    %v6356 = vld [vmem:[%s5 + $0xae0] sm:$0xff]
    %v6357 = vld [vmem:[%s5 + $0xae8] sm:$0xff]
    %v6358 = vld [vmem:[%s5 + $0xaf0] sm:$0xff]
    %v6359 = vld [vmem:[%s5 + $0xaf8] sm:$0xff]
    %v6360 = vld [vmem:[%s5 + $0xb00] sm:$0xff]
    %v6361 = vld [vmem:[%s5 + $0xb08] sm:$0xff]
    %v6362 = vld [vmem:[%s5 + $0xb10] sm:$0xff]
    %v6363 = vld [vmem:[%s5 + $0xb18] sm:$0xff]
    %v6364 = vld [vmem:[%s5 + $0xb20] sm:$0xff]
    %v6365 = vld [vmem:[%s5 + $0xb28] sm:$0xff]
    %v6366 = vld [vmem:[%s5 + $0xb30] sm:$0xff]
    %v6367 = vld [vmem:[%s5 + $0xb38] sm:$0xff]
    %v6368 = vld [vmem:[%s5 + $0xb40] sm:$0xff]
    %v6369 = vld [vmem:[%s5 + $0xb48] sm:$0xff]
    %v6370 = vld [vmem:[%s5 + $0xb50] sm:$0xff]
    %v6371 = vld [vmem:[%s5 + $0xb58] sm:$0xff]
    %v6372 = vld [vmem:[%s5 + $0xb60] sm:$0xff]
    %v6373 = vld [vmem:[%s5 + $0xb68] sm:$0xff]
    %v6374 = vld [vmem:[%s5 + $0xb70] sm:$0xff]
    %v6375 = vld [vmem:[%s5 + $0xb78] sm:$0xff]
    %v6376 = vld [vmem:[%s5 + $0xb80] sm:$0xff]
    %v6377 = vld [vmem:[%s5 + $0xb88] sm:$0xff]
    %v6378 = vld [vmem:[%s5 + $0xb90] sm:$0xff]
    %v6379 = vld [vmem:[%s5 + $0xb98] sm:$0xff]
    %v6380 = vld [vmem:[%s5 + $0xba0] sm:$0xff]
    %v6381 = vld [vmem:[%s5 + $0xba8] sm:$0xff]
    %v6382 = vld [vmem:[%s5 + $0xbb0] sm:$0xff]
    %v6383 = vld [vmem:[%s5 + $0xbb8] sm:$0xff]
    %v6384 = vld [vmem:[%s5 + $0xbc0] sm:$0xff]
    %v6385 = vld [vmem:[%s5 + $0xbc8] sm:$0xff]
    %v6386 = vld [vmem:[%s5 + $0xbd0] sm:$0xff]
    %v6387 = vld [vmem:[%s5 + $0xbd8] sm:$0xff]
    %v6388 = vld [vmem:[%s5 + $0xbe0] sm:$0xff]
    %v6389 = vld [vmem:[%s5 + $0xbe8] sm:$0xff]
    %v6390 = vld [vmem:[%s5 + $0xbf0] sm:$0xff]
    %v6391 = vld [vmem:[%s5 + $0xbf8] sm:$0xff]
    %v6392 = vld [vmem:[%s5 + $0xc00] sm:$0xff]
    %v6393 = vld [vmem:[%s5 + $0xc08] sm:$0xff]
    %v6394 = vld [vmem:[%s5 + $0xc10] sm:$0xff]
    %v6395 = vld [vmem:[%s5 + $0xc18] sm:$0xff]
    %v6396 = vld [vmem:[%s5 + $0xc20] sm:$0xff]
    %v6397 = vld [vmem:[%s5 + $0xc28] sm:$0xff]
    %v6398 = vld [vmem:[%s5 + $0xc30] sm:$0xff]
    %v6399 = vld [vmem:[%s5 + $0xc38] sm:$0xff]
    %v6400 = vld [vmem:[%s5 + $0xc40] sm:$0xff]
    %v6401 = vld [vmem:[%s5 + $0xc48] sm:$0xff]
    %v6402 = vld [vmem:[%s5 + $0xc50] sm:$0xff]
    %v6403 = vld [vmem:[%s5 + $0xc58] sm:$0xff]
    %v6404 = vld [vmem:[%s5 + $0xc60] sm:$0xff]
    %v6405 = vld [vmem:[%s5 + $0xc68] sm:$0xff]
    %v6406 = vld [vmem:[%s5 + $0xc70] sm:$0xff]
    %v6407 = vld [vmem:[%s5 + $0xc78] sm:$0xff]
    %v6408 = vld [vmem:[%s5 + $0xc80] sm:$0xff]
    %v6409 = vld [vmem:[%s5 + $0xc88] sm:$0xff]
    %v6410 = vld [vmem:[%s5 + $0xc90] sm:$0xff]
    %v6411 = vld [vmem:[%s5 + $0xc98] sm:$0xff]
    %v6412 = vld [vmem:[%s5 + $0xca0] sm:$0xff]
    %v6413 = vld [vmem:[%s5 + $0xca8] sm:$0xff]
    %v6414 = vld [vmem:[%s5 + $0xcb0] sm:$0xff]
    %v6415 = vld [vmem:[%s5 + $0xcb8] sm:$0xff]
    %v6416 = vld [vmem:[%s5 + $0xcc0] sm:$0xff]
    %v6417 = vld [vmem:[%s5 + $0xcc8] sm:$0xff]
    %v6418 = vld [vmem:[%s5 + $0xcd0] sm:$0xff]
    %v6419 = vld [vmem:[%s5 + $0xcd8] sm:$0xff]
    %v6420 = vld [vmem:[%s5 + $0xce0] sm:$0xff]
    %v6421 = vld [vmem:[%s5 + $0xce8] sm:$0xff]
    %v6422 = vld [vmem:[%s5 + $0xcf0] sm:$0xff]
    %v6423 = vld [vmem:[%s5 + $0xcf8] sm:$0xff]
    %v6424 = vld [vmem:[%s5 + $0xd00] sm:$0xff]
    %v6425 = vld [vmem:[%s5 + $0xd08] sm:$0xff]
    %v6426 = vld [vmem:[%s5 + $0xd10] sm:$0xff]
    %v6427 = vld [vmem:[%s5 + $0xd18] sm:$0xff]
    %v6428 = vld [vmem:[%s5 + $0xd20] sm:$0xff]
    %v6429 = vld [vmem:[%s5 + $0xd28] sm:$0xff]
    %v6430 = vld [vmem:[%s5 + $0xd30] sm:$0xff]
    %v6431 = vld [vmem:[%s5 + $0xd38] sm:$0xff]
    %v6432 = vld [vmem:[%s5 + $0xd40] sm:$0xff]
    %v6433 = vld [vmem:[%s5 + $0xd48] sm:$0xff]
    %v6434 = vld [vmem:[%s5 + $0xd50] sm:$0xff]
    %v6435 = vld [vmem:[%s5 + $0xd58] sm:$0xff]
    %v6436 = vld [vmem:[%s5 + $0xd60] sm:$0xff]
    %v6437 = vld [vmem:[%s5 + $0xd68] sm:$0xff]
    %v6438 = vld [vmem:[%s5 + $0xd70] sm:$0xff]
    %v6439 = vld [vmem:[%s5 + $0xd78] sm:$0xff]
    %v6440 = vld [vmem:[%s5 + $0xd80] sm:$0xff]
    %v6441 = vld [vmem:[%s5 + $0xd88] sm:$0xff]
    %v6442 = vld [vmem:[%s5 + $0xd90] sm:$0xff]
    %v6443 = vld [vmem:[%s5 + $0xd98] sm:$0xff]
    %v6444 = vld [vmem:[%s5 + $0xda0] sm:$0xff]
    %v6445 = vld [vmem:[%s5 + $0xda8] sm:$0xff]
    %v6446 = vld [vmem:[%s5 + $0xdb0] sm:$0xff]
    %v6447 = vld [vmem:[%s5 + $0xdb8] sm:$0xff]
    %v6448 = vld [vmem:[%s5 + $0xdc0] sm:$0xff]
    %v6449 = vld [vmem:[%s5 + $0xdc8] sm:$0xff]
    %v6450 = vld [vmem:[%s5 + $0xdd0] sm:$0xff]
    %v6451 = vld [vmem:[%s5 + $0xdd8] sm:$0xff]
    %v6452 = vld [vmem:[%s5 + $0xde0] sm:$0xff]
    %v6453 = vld [vmem:[%s5 + $0xde8] sm:$0xff]
    %v6454 = vld [vmem:[%s5 + $0xdf0] sm:$0xff]
    %v6455 = vld [vmem:[%s5 + $0xdf8] sm:$0xff]
    %v6456 = vld [vmem:[%s5 + $0xe00] sm:$0xff]
    %v6457 = vld [vmem:[%s5 + $0xe08] sm:$0xff]
    %v6458 = vld [vmem:[%s5 + $0xe10] sm:$0xff]
    %v6459 = vld [vmem:[%s5 + $0xe18] sm:$0xff]
    %v6460 = vld [vmem:[%s5 + $0xe20] sm:$0xff]
    %v6461 = vld [vmem:[%s5 + $0xe28] sm:$0xff]
    %v6462 = vld [vmem:[%s5 + $0xe30] sm:$0xff]
    %v6463 = vld [vmem:[%s5 + $0xe38] sm:$0xff]
    %v6464 = vld [vmem:[%s5 + $0xe40] sm:$0xff]
    %v6465 = vld [vmem:[%s5 + $0xe48] sm:$0xff]
    %v6466 = vld [vmem:[%s5 + $0xe50] sm:$0xff]
    %v6467 = vld [vmem:[%s5 + $0xe58] sm:$0xff]
    %v6468 = vld [vmem:[%s5 + $0xe60] sm:$0xff]
    %v6469 = vld [vmem:[%s5 + $0xe68] sm:$0xff]
    %v6470 = vld [vmem:[%s5 + $0xe70] sm:$0xff]
    %v6471 = vld [vmem:[%s5 + $0xe78] sm:$0xff]
    %v6472 = vld [vmem:[%s5 + $0xe80] sm:$0xff]
    %v6473 = vld [vmem:[%s5 + $0xe88] sm:$0xff]
    %v6474 = vld [vmem:[%s5 + $0xe90] sm:$0xff]
    %v6475 = vld [vmem:[%s5 + $0xe98] sm:$0xff]
    %v6476 = vld [vmem:[%s5 + $0xea0] sm:$0xff]
    %v6477 = vld [vmem:[%s5 + $0xea8] sm:$0xff]
    %v6478 = vld [vmem:[%s5 + $0xeb0] sm:$0xff]
    %v6479 = vld [vmem:[%s5 + $0xeb8] sm:$0xff]
    %v6480 = vld [vmem:[%s5 + $0xec0] sm:$0xff]
    %v6481 = vld [vmem:[%s5 + $0xec8] sm:$0xff]
    %v6482 = vld [vmem:[%s5 + $0xed0] sm:$0xff]
    %v6483 = vld [vmem:[%s5 + $0xed8] sm:$0xff]
    %v6484 = vld [vmem:[%s5 + $0xee0] sm:$0xff]
    %v6485 = vld [vmem:[%s5 + $0xee8] sm:$0xff]
    %v6486 = vld [vmem:[%s5 + $0xef0] sm:$0xff]
    %v6487 = vld [vmem:[%s5 + $0xef8] sm:$0xff]
    %v6488 = vld [vmem:[%s5 + $0xf00] sm:$0xff]
    %v6489 = vld [vmem:[%s5 + $0xf08] sm:$0xff]
    %v6490 = vld [vmem:[%s5 + $0xf10] sm:$0xff]
    %v6491 = vld [vmem:[%s5 + $0xf18] sm:$0xff]
    %v6492 = vld [vmem:[%s5 + $0xf20] sm:$0xff]
    %v6493 = vld [vmem:[%s5 + $0xf28] sm:$0xff]
    %v6494 = vld [vmem:[%s5 + $0xf30] sm:$0xff]
    %v6495 = vld [vmem:[%s5 + $0xf38] sm:$0xff]
    %v6496 = vld [vmem:[%s5 + $0xf40] sm:$0xff]
    %v6497 = vld [vmem:[%s5 + $0xf48] sm:$0xff]
    %v6498 = vld [vmem:[%s5 + $0xf50] sm:$0xff]
    %v6499 = vld [vmem:[%s5 + $0xf58] sm:$0xff]
    %v6500 = vld [vmem:[%s5 + $0xf60] sm:$0xff]
    %v6501 = vld [vmem:[%s5 + $0xf68] sm:$0xff]
    %v6502 = vld [vmem:[%s5 + $0xf70] sm:$0xff]
    %v6503 = vld [vmem:[%s5 + $0xf78] sm:$0xff]
    %v6504 = vld [vmem:[%s5 + $0xf80] sm:$0xff]
    %v6505 = vld [vmem:[%s5 + $0xf88] sm:$0xff]
    %v6506 = vld [vmem:[%s5 + $0xf90] sm:$0xff]
    %v6507 = vld [vmem:[%s5 + $0xf98] sm:$0xff]
    %v6508 = vld [vmem:[%s5 + $0xfa0] sm:$0xff]
    %v6509 = vld [vmem:[%s5 + $0xfa8] sm:$0xff]
    %v6510 = vld [vmem:[%s5 + $0xfb0] sm:$0xff]
    %v6511 = vld [vmem:[%s5 + $0xfb8] sm:$0xff]
    %v6512 = vld [vmem:[%s5 + $0xfc0] sm:$0xff]
    %v6513 = vld [vmem:[%s5 + $0xfc8] sm:$0xff]
    %v6514 = vld [vmem:[%s5 + $0xfd0] sm:$0xff]
    %v6515 = vld [vmem:[%s5 + $0xfd8] sm:$0xff]
    %v6516 = vld [vmem:[%s5 + $0xfe0] sm:$0xff]
    %v6517 = vld [vmem:[%s5 + $0xfe8] sm:$0xff]
    %v6518 = vld [vmem:[%s5 + $0xff0] sm:$0xff]
    %v6519 = vld [vmem:[%s5 + $0xff8] sm:$0xff]
    %v6520 = vld [vmem:[%s6] sm:$0xf]
    %v6522 = vlaneseq
    %v6523 = vshrl.u32 %v6522, 7
    %v6524 = vsub.s32 0, %v6523
    %v6525 = vrot.slane %v6520, %v6524
    %v6526 = vlaneseq
    %v6527 = vshrl.u32 %v6526, 7
    %v6528 = vsub.s32 1, %v6527
    %v6529 = vrot.slane %v6520, %v6528
    %v6530 = vlaneseq
    %v6531 = vshrl.u32 %v6530, 7
    %v6532 = vsub.s32 2, %v6531
    %v6533 = vrot.slane %v6520, %v6532
    %v6534 = vlaneseq
    %v6535 = vshrl.u32 %v6534, 7
    %v6536 = vsub.s32 3, %v6535
    %v6537 = vrot.slane %v6520, %v6536
    %v7054 = vunpack.c.l.b16 %v6008
    %v7055 = vunpack.c.h.b16 %v6008
    %v7056 = vunpack.c.l.b16 %v6009
    %v7057 = vunpack.c.h.b16 %v6009
    %v7058 = vunpack.c.l.b16 %v6010
    %v7059 = vunpack.c.h.b16 %v6010
    %v7060 = vunpack.c.l.b16 %v6011
    %v7061 = vunpack.c.h.b16 %v6011
    %v7062 = vunpack.c.l.b16 %v6012
    %v7063 = vunpack.c.h.b16 %v6012
    %v7064 = vunpack.c.l.b16 %v6013
    %v7065 = vunpack.c.h.b16 %v6013
    %v7066 = vunpack.c.l.b16 %v6014
    %v7067 = vunpack.c.h.b16 %v6014
    %v7068 = vunpack.c.l.b16 %v6015
    %v7069 = vunpack.c.h.b16 %v6015
    %v7070 = vunpack.c.l.b16 %v6016
    %v7071 = vunpack.c.h.b16 %v6016
    %v7072 = vunpack.c.l.b16 %v6017
    %v7073 = vunpack.c.h.b16 %v6017
    %v7074 = vunpack.c.l.b16 %v6018
    %v7075 = vunpack.c.h.b16 %v6018
    %v7076 = vunpack.c.l.b16 %v6019
    %v7077 = vunpack.c.h.b16 %v6019
    %v7078 = vunpack.c.l.b16 %v6020
    %v7079 = vunpack.c.h.b16 %v6020
    %v7080 = vunpack.c.l.b16 %v6021
    %v7081 = vunpack.c.h.b16 %v6021
    %v7082 = vunpack.c.l.b16 %v6022
    %v7083 = vunpack.c.h.b16 %v6022
    %v7084 = vunpack.c.l.b16 %v6023
    %v7085 = vunpack.c.h.b16 %v6023
    %v7086 = vunpack.c.l.b16 %v6024
    %v7087 = vunpack.c.h.b16 %v6024
    %v7088 = vunpack.c.l.b16 %v6025
    %v7089 = vunpack.c.h.b16 %v6025
    %v7090 = vunpack.c.l.b16 %v6026
    %v7091 = vunpack.c.h.b16 %v6026
    %v7092 = vunpack.c.l.b16 %v6027
    %v7093 = vunpack.c.h.b16 %v6027
    %v7094 = vunpack.c.l.b16 %v6028
    %v7095 = vunpack.c.h.b16 %v6028
    %v7096 = vunpack.c.l.b16 %v6029
    %v7097 = vunpack.c.h.b16 %v6029
    %v7098 = vunpack.c.l.b16 %v6030
    %v7099 = vunpack.c.h.b16 %v6030
    %v7100 = vunpack.c.l.b16 %v6031
    %v7101 = vunpack.c.h.b16 %v6031
    %v7102 = vunpack.c.l.b16 %v6032
    %v7103 = vunpack.c.h.b16 %v6032
    %v7104 = vunpack.c.l.b16 %v6033
    %v7105 = vunpack.c.h.b16 %v6033
    %v7106 = vunpack.c.l.b16 %v6034
    %v7107 = vunpack.c.h.b16 %v6034
    %v7108 = vunpack.c.l.b16 %v6035
    %v7109 = vunpack.c.h.b16 %v6035
    %v7110 = vunpack.c.l.b16 %v6036
    %v7111 = vunpack.c.h.b16 %v6036
    %v7112 = vunpack.c.l.b16 %v6037
    %v7113 = vunpack.c.h.b16 %v6037
    %v7114 = vunpack.c.l.b16 %v6038
    %v7115 = vunpack.c.h.b16 %v6038
    %v7116 = vunpack.c.l.b16 %v6039
    %v7117 = vunpack.c.h.b16 %v6039
    %v7118 = vunpack.c.l.b16 %v6040
    %v7119 = vunpack.c.h.b16 %v6040
    %v7120 = vunpack.c.l.b16 %v6041
    %v7121 = vunpack.c.h.b16 %v6041
    %v7122 = vunpack.c.l.b16 %v6042
    %v7123 = vunpack.c.h.b16 %v6042
    %v7124 = vunpack.c.l.b16 %v6043
    %v7125 = vunpack.c.h.b16 %v6043
    %v7126 = vunpack.c.l.b16 %v6044
    %v7127 = vunpack.c.h.b16 %v6044
    %v7128 = vunpack.c.l.b16 %v6045
    %v7129 = vunpack.c.h.b16 %v6045
    %v7130 = vunpack.c.l.b16 %v6046
    %v7131 = vunpack.c.h.b16 %v6046
    %v7132 = vunpack.c.l.b16 %v6047
    %v7133 = vunpack.c.h.b16 %v6047
    %v7134 = vunpack.c.l.b16 %v6048
    %v7135 = vunpack.c.h.b16 %v6048
    %v7136 = vunpack.c.l.b16 %v6049
    %v7137 = vunpack.c.h.b16 %v6049
    %v7138 = vunpack.c.l.b16 %v6050
    %v7139 = vunpack.c.h.b16 %v6050
    %v7140 = vunpack.c.l.b16 %v6051
    %v7141 = vunpack.c.h.b16 %v6051
    %v7142 = vunpack.c.l.b16 %v6052
    %v7143 = vunpack.c.h.b16 %v6052
    %v7144 = vunpack.c.l.b16 %v6053
    %v7145 = vunpack.c.h.b16 %v6053
    %v7146 = vunpack.c.l.b16 %v6054
    %v7147 = vunpack.c.h.b16 %v6054
    %v7148 = vunpack.c.l.b16 %v6055
    %v7149 = vunpack.c.h.b16 %v6055
    %v7150 = vunpack.c.l.b16 %v6056
    %v7151 = vunpack.c.h.b16 %v6056
    %v7152 = vunpack.c.l.b16 %v6057
    %v7153 = vunpack.c.h.b16 %v6057
    %v7154 = vunpack.c.l.b16 %v6058
    %v7155 = vunpack.c.h.b16 %v6058
    %v7156 = vunpack.c.l.b16 %v6059
    %v7157 = vunpack.c.h.b16 %v6059
    %v7158 = vunpack.c.l.b16 %v6060
    %v7159 = vunpack.c.h.b16 %v6060
    %v7160 = vunpack.c.l.b16 %v6061
    %v7161 = vunpack.c.h.b16 %v6061
    %v7162 = vunpack.c.l.b16 %v6062
    %v7163 = vunpack.c.h.b16 %v6062
    %v7164 = vunpack.c.l.b16 %v6063
    %v7165 = vunpack.c.h.b16 %v6063
    %v7166 = vunpack.c.l.b16 %v6064
    %v7167 = vunpack.c.h.b16 %v6064
    %v7168 = vunpack.c.l.b16 %v6065
    %v7169 = vunpack.c.h.b16 %v6065
    %v7170 = vunpack.c.l.b16 %v6066
    %v7171 = vunpack.c.h.b16 %v6066
    %v7172 = vunpack.c.l.b16 %v6067
    %v7173 = vunpack.c.h.b16 %v6067
    %v7174 = vunpack.c.l.b16 %v6068
    %v7175 = vunpack.c.h.b16 %v6068
    %v7176 = vunpack.c.l.b16 %v6069
    %v7177 = vunpack.c.h.b16 %v6069
    %v7178 = vunpack.c.l.b16 %v6070
    %v7179 = vunpack.c.h.b16 %v6070
    %v7180 = vunpack.c.l.b16 %v6071
    %v7181 = vunpack.c.h.b16 %v6071
    %v7182 = vunpack.c.l.b16 %v6072
    %v7183 = vunpack.c.h.b16 %v6072
    %v7184 = vunpack.c.l.b16 %v6073
    %v7185 = vunpack.c.h.b16 %v6073
    %v7186 = vunpack.c.l.b16 %v6074
    %v7187 = vunpack.c.h.b16 %v6074
    %v7188 = vunpack.c.l.b16 %v6075
    %v7189 = vunpack.c.h.b16 %v6075
    %v7190 = vunpack.c.l.b16 %v6076
    %v7191 = vunpack.c.h.b16 %v6076
    %v7192 = vunpack.c.l.b16 %v6077
    %v7193 = vunpack.c.h.b16 %v6077
    %v7194 = vunpack.c.l.b16 %v6078
    %v7195 = vunpack.c.h.b16 %v6078
    %v7196 = vunpack.c.l.b16 %v6079
    %v7197 = vunpack.c.h.b16 %v6079
    %v7198 = vunpack.c.l.b16 %v6080
    %v7199 = vunpack.c.h.b16 %v6080
    %v7200 = vunpack.c.l.b16 %v6081
    %v7201 = vunpack.c.h.b16 %v6081
    %v7202 = vunpack.c.l.b16 %v6082
    %v7203 = vunpack.c.h.b16 %v6082
    %v7204 = vunpack.c.l.b16 %v6083
    %v7205 = vunpack.c.h.b16 %v6083
    %v7206 = vunpack.c.l.b16 %v6084
    %v7207 = vunpack.c.h.b16 %v6084
    %v7208 = vunpack.c.l.b16 %v6085
    %v7209 = vunpack.c.h.b16 %v6085
    %v7210 = vunpack.c.l.b16 %v6086
    %v7211 = vunpack.c.h.b16 %v6086
    %v7212 = vunpack.c.l.b16 %v6087
    %v7213 = vunpack.c.h.b16 %v6087
    %v7214 = vunpack.c.l.b16 %v6088
    %v7215 = vunpack.c.h.b16 %v6088
    %v7216 = vunpack.c.l.b16 %v6089
    %v7217 = vunpack.c.h.b16 %v6089
    %v7218 = vunpack.c.l.b16 %v6090
    %v7219 = vunpack.c.h.b16 %v6090
    %v7220 = vunpack.c.l.b16 %v6091
    %v7221 = vunpack.c.h.b16 %v6091
    %v7222 = vunpack.c.l.b16 %v6092
    %v7223 = vunpack.c.h.b16 %v6092
    %v7224 = vunpack.c.l.b16 %v6093
    %v7225 = vunpack.c.h.b16 %v6093
    %v7226 = vunpack.c.l.b16 %v6094
    %v7227 = vunpack.c.h.b16 %v6094
    %v7228 = vunpack.c.l.b16 %v6095
    %v7229 = vunpack.c.h.b16 %v6095
    %v7230 = vunpack.c.l.b16 %v6096
    %v7231 = vunpack.c.h.b16 %v6096
    %v7232 = vunpack.c.l.b16 %v6097
    %v7233 = vunpack.c.h.b16 %v6097
    %v7234 = vunpack.c.l.b16 %v6098
    %v7235 = vunpack.c.h.b16 %v6098
    %v7236 = vunpack.c.l.b16 %v6099
    %v7237 = vunpack.c.h.b16 %v6099
    %v7238 = vunpack.c.l.b16 %v6100
    %v7239 = vunpack.c.h.b16 %v6100
    %v7240 = vunpack.c.l.b16 %v6101
    %v7241 = vunpack.c.h.b16 %v6101
    %v7242 = vunpack.c.l.b16 %v6102
    %v7243 = vunpack.c.h.b16 %v6102
    %v7244 = vunpack.c.l.b16 %v6103
    %v7245 = vunpack.c.h.b16 %v6103
    %v7246 = vunpack.c.l.b16 %v6104
    %v7247 = vunpack.c.h.b16 %v6104
    %v7248 = vunpack.c.l.b16 %v6105
    %v7249 = vunpack.c.h.b16 %v6105
    %v7250 = vunpack.c.l.b16 %v6106
    %v7251 = vunpack.c.h.b16 %v6106
    %v7252 = vunpack.c.l.b16 %v6107
    %v7253 = vunpack.c.h.b16 %v6107
    %v7254 = vunpack.c.l.b16 %v6108
    %v7255 = vunpack.c.h.b16 %v6108
    %v7256 = vunpack.c.l.b16 %v6109
    %v7257 = vunpack.c.h.b16 %v6109
    %v7258 = vunpack.c.l.b16 %v6110
    %v7259 = vunpack.c.h.b16 %v6110
    %v7260 = vunpack.c.l.b16 %v6111
    %v7261 = vunpack.c.h.b16 %v6111
    %v7262 = vunpack.c.l.b16 %v6112
    %v7263 = vunpack.c.h.b16 %v6112
    %v7264 = vunpack.c.l.b16 %v6113
    %v7265 = vunpack.c.h.b16 %v6113
    %v7266 = vunpack.c.l.b16 %v6114
    %v7267 = vunpack.c.h.b16 %v6114
    %v7268 = vunpack.c.l.b16 %v6115
    %v7269 = vunpack.c.h.b16 %v6115
    %v7270 = vunpack.c.l.b16 %v6116
    %v7271 = vunpack.c.h.b16 %v6116
    %v7272 = vunpack.c.l.b16 %v6117
    %v7273 = vunpack.c.h.b16 %v6117
    %v7274 = vunpack.c.l.b16 %v6118
    %v7275 = vunpack.c.h.b16 %v6118
    %v7276 = vunpack.c.l.b16 %v6119
    %v7277 = vunpack.c.h.b16 %v6119
    %v7278 = vunpack.c.l.b16 %v6120
    %v7279 = vunpack.c.h.b16 %v6120
    %v7280 = vunpack.c.l.b16 %v6121
    %v7281 = vunpack.c.h.b16 %v6121
    %v7282 = vunpack.c.l.b16 %v6122
    %v7283 = vunpack.c.h.b16 %v6122
    %v7284 = vunpack.c.l.b16 %v6123
    %v7285 = vunpack.c.h.b16 %v6123
    %v7286 = vunpack.c.l.b16 %v6124
    %v7287 = vunpack.c.h.b16 %v6124
    %v7288 = vunpack.c.l.b16 %v6125
    %v7289 = vunpack.c.h.b16 %v6125
    %v7290 = vunpack.c.l.b16 %v6126
    %v7291 = vunpack.c.h.b16 %v6126
    %v7292 = vunpack.c.l.b16 %v6127
    %v7293 = vunpack.c.h.b16 %v6127
    %v7294 = vunpack.c.l.b16 %v6128
    %v7295 = vunpack.c.h.b16 %v6128
    %v7296 = vunpack.c.l.b16 %v6129
    %v7297 = vunpack.c.h.b16 %v6129
    %v7298 = vunpack.c.l.b16 %v6130
    %v7299 = vunpack.c.h.b16 %v6130
    %v7300 = vunpack.c.l.b16 %v6131
    %v7301 = vunpack.c.h.b16 %v6131
    %v7302 = vunpack.c.l.b16 %v6132
    %v7303 = vunpack.c.h.b16 %v6132
    %v7304 = vunpack.c.l.b16 %v6133
    %v7305 = vunpack.c.h.b16 %v6133
    %v7306 = vunpack.c.l.b16 %v6134
    %v7307 = vunpack.c.h.b16 %v6134
    %v7308 = vunpack.c.l.b16 %v6135
    %v7309 = vunpack.c.h.b16 %v6135
    %v7310 = vunpack.c.l.b16 %v6136
    %v7311 = vunpack.c.h.b16 %v6136
    %v7312 = vunpack.c.l.b16 %v6137
    %v7313 = vunpack.c.h.b16 %v6137
    %v7314 = vunpack.c.l.b16 %v6138
    %v7315 = vunpack.c.h.b16 %v6138
    %v7316 = vunpack.c.l.b16 %v6139
    %v7317 = vunpack.c.h.b16 %v6139
    %v7318 = vunpack.c.l.b16 %v6140
    %v7319 = vunpack.c.h.b16 %v6140
    %v7320 = vunpack.c.l.b16 %v6141
    %v7321 = vunpack.c.h.b16 %v6141
    %v7322 = vunpack.c.l.b16 %v6142
    %v7323 = vunpack.c.h.b16 %v6142
    %v7324 = vunpack.c.l.b16 %v6143
    %v7325 = vunpack.c.h.b16 %v6143
    %v7326 = vunpack.c.l.b16 %v6144
    %v7327 = vunpack.c.h.b16 %v6144
    %v7328 = vunpack.c.l.b16 %v6145
    %v7329 = vunpack.c.h.b16 %v6145
    %v7330 = vunpack.c.l.b16 %v6146
    %v7331 = vunpack.c.h.b16 %v6146
    %v7332 = vunpack.c.l.b16 %v6147
    %v7333 = vunpack.c.h.b16 %v6147
    %v7334 = vunpack.c.l.b16 %v6148
    %v7335 = vunpack.c.h.b16 %v6148
    %v7336 = vunpack.c.l.b16 %v6149
    %v7337 = vunpack.c.h.b16 %v6149
    %v7338 = vunpack.c.l.b16 %v6150
    %v7339 = vunpack.c.h.b16 %v6150
    %v7340 = vunpack.c.l.b16 %v6151
    %v7341 = vunpack.c.h.b16 %v6151
    %v7342 = vunpack.c.l.b16 %v6152
    %v7343 = vunpack.c.h.b16 %v6152
    %v7344 = vunpack.c.l.b16 %v6153
    %v7345 = vunpack.c.h.b16 %v6153
    %v7346 = vunpack.c.l.b16 %v6154
    %v7347 = vunpack.c.h.b16 %v6154
    %v7348 = vunpack.c.l.b16 %v6155
    %v7349 = vunpack.c.h.b16 %v6155
    %v7350 = vunpack.c.l.b16 %v6156
    %v7351 = vunpack.c.h.b16 %v6156
    %v7352 = vunpack.c.l.b16 %v6157
    %v7353 = vunpack.c.h.b16 %v6157
    %v7354 = vunpack.c.l.b16 %v6158
    %v7355 = vunpack.c.h.b16 %v6158
    %v7356 = vunpack.c.l.b16 %v6159
    %v7357 = vunpack.c.h.b16 %v6159
    %v7358 = vunpack.c.l.b16 %v6160
    %v7359 = vunpack.c.h.b16 %v6160
    %v7360 = vunpack.c.l.b16 %v6161
    %v7361 = vunpack.c.h.b16 %v6161
    %v7362 = vunpack.c.l.b16 %v6162
    %v7363 = vunpack.c.h.b16 %v6162
    %v7364 = vunpack.c.l.b16 %v6163
    %v7365 = vunpack.c.h.b16 %v6163
    %v7366 = vunpack.c.l.b16 %v6164
    %v7367 = vunpack.c.h.b16 %v6164
    %v7368 = vunpack.c.l.b16 %v6165
    %v7369 = vunpack.c.h.b16 %v6165
    %v7370 = vunpack.c.l.b16 %v6166
    %v7371 = vunpack.c.h.b16 %v6166
    %v7372 = vunpack.c.l.b16 %v6167
    %v7373 = vunpack.c.h.b16 %v6167
    %v7374 = vunpack.c.l.b16 %v6168
    %v7375 = vunpack.c.h.b16 %v6168
    %v7376 = vunpack.c.l.b16 %v6169
    %v7377 = vunpack.c.h.b16 %v6169
    %v7378 = vunpack.c.l.b16 %v6170
    %v7379 = vunpack.c.h.b16 %v6170
    %v7380 = vunpack.c.l.b16 %v6171
    %v7381 = vunpack.c.h.b16 %v6171
    %v7382 = vunpack.c.l.b16 %v6172
    %v7383 = vunpack.c.h.b16 %v6172
    %v7384 = vunpack.c.l.b16 %v6173
    %v7385 = vunpack.c.h.b16 %v6173
    %v7386 = vunpack.c.l.b16 %v6174
    %v7387 = vunpack.c.h.b16 %v6174
    %v7388 = vunpack.c.l.b16 %v6175
    %v7389 = vunpack.c.h.b16 %v6175
    %v7390 = vunpack.c.l.b16 %v6176
    %v7391 = vunpack.c.h.b16 %v6176
    %v7392 = vunpack.c.l.b16 %v6177
    %v7393 = vunpack.c.h.b16 %v6177
    %v7394 = vunpack.c.l.b16 %v6178
    %v7395 = vunpack.c.h.b16 %v6178
    %v7396 = vunpack.c.l.b16 %v6179
    %v7397 = vunpack.c.h.b16 %v6179
    %v7398 = vunpack.c.l.b16 %v6180
    %v7399 = vunpack.c.h.b16 %v6180
    %v7400 = vunpack.c.l.b16 %v6181
    %v7401 = vunpack.c.h.b16 %v6181
    %v7402 = vunpack.c.l.b16 %v6182
    %v7403 = vunpack.c.h.b16 %v6182
    %v7404 = vunpack.c.l.b16 %v6183
    %v7405 = vunpack.c.h.b16 %v6183
    %v7406 = vunpack.c.l.b16 %v6184
    %v7407 = vunpack.c.h.b16 %v6184
    %v7408 = vunpack.c.l.b16 %v6185
    %v7409 = vunpack.c.h.b16 %v6185
    %v7410 = vunpack.c.l.b16 %v6186
    %v7411 = vunpack.c.h.b16 %v6186
    %v7412 = vunpack.c.l.b16 %v6187
    %v7413 = vunpack.c.h.b16 %v6187
    %v7414 = vunpack.c.l.b16 %v6188
    %v7415 = vunpack.c.h.b16 %v6188
    %v7416 = vunpack.c.l.b16 %v6189
    %v7417 = vunpack.c.h.b16 %v6189
    %v7418 = vunpack.c.l.b16 %v6190
    %v7419 = vunpack.c.h.b16 %v6190
    %v7420 = vunpack.c.l.b16 %v6191
    %v7421 = vunpack.c.h.b16 %v6191
    %v7422 = vunpack.c.l.b16 %v6192
    %v7423 = vunpack.c.h.b16 %v6192
    %v7424 = vunpack.c.l.b16 %v6193
    %v7425 = vunpack.c.h.b16 %v6193
    %v7426 = vunpack.c.l.b16 %v6194
    %v7427 = vunpack.c.h.b16 %v6194
    %v7428 = vunpack.c.l.b16 %v6195
    %v7429 = vunpack.c.h.b16 %v6195
    %v7430 = vunpack.c.l.b16 %v6196
    %v7431 = vunpack.c.h.b16 %v6196
    %v7432 = vunpack.c.l.b16 %v6197
    %v7433 = vunpack.c.h.b16 %v6197
    %v7434 = vunpack.c.l.b16 %v6198
    %v7435 = vunpack.c.h.b16 %v6198
    %v7436 = vunpack.c.l.b16 %v6199
    %v7437 = vunpack.c.h.b16 %v6199
    %v7438 = vunpack.c.l.b16 %v6200
    %v7439 = vunpack.c.h.b16 %v6200
    %v7440 = vunpack.c.l.b16 %v6201
    %v7441 = vunpack.c.h.b16 %v6201
    %v7442 = vunpack.c.l.b16 %v6202
    %v7443 = vunpack.c.h.b16 %v6202
    %v7444 = vunpack.c.l.b16 %v6203
    %v7445 = vunpack.c.h.b16 %v6203
    %v7446 = vunpack.c.l.b16 %v6204
    %v7447 = vunpack.c.h.b16 %v6204
    %v7448 = vunpack.c.l.b16 %v6205
    %v7449 = vunpack.c.h.b16 %v6205
    %v7450 = vunpack.c.l.b16 %v6206
    %v7451 = vunpack.c.h.b16 %v6206
    %v7452 = vunpack.c.l.b16 %v6207
    %v7453 = vunpack.c.h.b16 %v6207
    %v7454 = vunpack.c.l.b16 %v6208
    %v7455 = vunpack.c.h.b16 %v6208
    %v7456 = vunpack.c.l.b16 %v6209
    %v7457 = vunpack.c.h.b16 %v6209
    %v7458 = vunpack.c.l.b16 %v6210
    %v7459 = vunpack.c.h.b16 %v6210
    %v7460 = vunpack.c.l.b16 %v6211
    %v7461 = vunpack.c.h.b16 %v6211
    %v7462 = vunpack.c.l.b16 %v6212
    %v7463 = vunpack.c.h.b16 %v6212
    %v7464 = vunpack.c.l.b16 %v6213
    %v7465 = vunpack.c.h.b16 %v6213
    %v7466 = vunpack.c.l.b16 %v6214
    %v7467 = vunpack.c.h.b16 %v6214
    %v7468 = vunpack.c.l.b16 %v6215
    %v7469 = vunpack.c.h.b16 %v6215
    %v7470 = vunpack.c.l.b16 %v6216
    %v7471 = vunpack.c.h.b16 %v6216
    %v7472 = vunpack.c.l.b16 %v6217
    %v7473 = vunpack.c.h.b16 %v6217
    %v7474 = vunpack.c.l.b16 %v6218
    %v7475 = vunpack.c.h.b16 %v6218
    %v7476 = vunpack.c.l.b16 %v6219
    %v7477 = vunpack.c.h.b16 %v6219
    %v7478 = vunpack.c.l.b16 %v6220
    %v7479 = vunpack.c.h.b16 %v6220
    %v7480 = vunpack.c.l.b16 %v6221
    %v7481 = vunpack.c.h.b16 %v6221
    %v7482 = vunpack.c.l.b16 %v6222
    %v7483 = vunpack.c.h.b16 %v6222
    %v7484 = vunpack.c.l.b16 %v6223
    %v7485 = vunpack.c.h.b16 %v6223
    %v7486 = vunpack.c.l.b16 %v6224
    %v7487 = vunpack.c.h.b16 %v6224
    %v7488 = vunpack.c.l.b16 %v6225
    %v7489 = vunpack.c.h.b16 %v6225
    %v7490 = vunpack.c.l.b16 %v6226
    %v7491 = vunpack.c.h.b16 %v6226
    %v7492 = vunpack.c.l.b16 %v6227
    %v7493 = vunpack.c.h.b16 %v6227
    %v7494 = vunpack.c.l.b16 %v6228
    %v7495 = vunpack.c.h.b16 %v6228
    %v7496 = vunpack.c.l.b16 %v6229
    %v7497 = vunpack.c.h.b16 %v6229
    %v7498 = vunpack.c.l.b16 %v6230
    %v7499 = vunpack.c.h.b16 %v6230
    %v7500 = vunpack.c.l.b16 %v6231
    %v7501 = vunpack.c.h.b16 %v6231
    %v7502 = vunpack.c.l.b16 %v6232
    %v7503 = vunpack.c.h.b16 %v6232
    %v7504 = vunpack.c.l.b16 %v6233
    %v7505 = vunpack.c.h.b16 %v6233
    %v7506 = vunpack.c.l.b16 %v6234
    %v7507 = vunpack.c.h.b16 %v6234
    %v7508 = vunpack.c.l.b16 %v6235
    %v7509 = vunpack.c.h.b16 %v6235
    %v7510 = vunpack.c.l.b16 %v6236
    %v7511 = vunpack.c.h.b16 %v6236
    %v7512 = vunpack.c.l.b16 %v6237
    %v7513 = vunpack.c.h.b16 %v6237
    %v7514 = vunpack.c.l.b16 %v6238
    %v7515 = vunpack.c.h.b16 %v6238
    %v7516 = vunpack.c.l.b16 %v6239
    %v7517 = vunpack.c.h.b16 %v6239
    %v7518 = vunpack.c.l.b16 %v6240
    %v7519 = vunpack.c.h.b16 %v6240
    %v7520 = vunpack.c.l.b16 %v6241
    %v7521 = vunpack.c.h.b16 %v6241
    %v7522 = vunpack.c.l.b16 %v6242
    %v7523 = vunpack.c.h.b16 %v6242
    %v7524 = vunpack.c.l.b16 %v6243
    %v7525 = vunpack.c.h.b16 %v6243
    %v7526 = vunpack.c.l.b16 %v6244
    %v7527 = vunpack.c.h.b16 %v6244
    %v7528 = vunpack.c.l.b16 %v6245
    %v7529 = vunpack.c.h.b16 %v6245
    %v7530 = vunpack.c.l.b16 %v6246
    %v7531 = vunpack.c.h.b16 %v6246
    %v7532 = vunpack.c.l.b16 %v6247
    %v7533 = vunpack.c.h.b16 %v6247
    %v7534 = vunpack.c.l.b16 %v6248
    %v7535 = vunpack.c.h.b16 %v6248
    %v7536 = vunpack.c.l.b16 %v6249
    %v7537 = vunpack.c.h.b16 %v6249
    %v7538 = vunpack.c.l.b16 %v6250
    %v7539 = vunpack.c.h.b16 %v6250
    %v7540 = vunpack.c.l.b16 %v6251
    %v7541 = vunpack.c.h.b16 %v6251
    %v7542 = vunpack.c.l.b16 %v6252
    %v7543 = vunpack.c.h.b16 %v6252
    %v7544 = vunpack.c.l.b16 %v6253
    %v7545 = vunpack.c.h.b16 %v6253
    %v7546 = vunpack.c.l.b16 %v6254
    %v7547 = vunpack.c.h.b16 %v6254
    %v7548 = vunpack.c.l.b16 %v6255
    %v7549 = vunpack.c.h.b16 %v6255
    %v7550 = vunpack.c.l.b16 %v6256
    %v7551 = vunpack.c.h.b16 %v6256
    %v7552 = vunpack.c.l.b16 %v6257
    %v7553 = vunpack.c.h.b16 %v6257
    %v7554 = vunpack.c.l.b16 %v6258
    %v7555 = vunpack.c.h.b16 %v6258
    %v7556 = vunpack.c.l.b16 %v6259
    %v7557 = vunpack.c.h.b16 %v6259
    %v7558 = vunpack.c.l.b16 %v6260
    %v7559 = vunpack.c.h.b16 %v6260
    %v7560 = vunpack.c.l.b16 %v6261
    %v7561 = vunpack.c.h.b16 %v6261
    %v7562 = vunpack.c.l.b16 %v6262
    %v7563 = vunpack.c.h.b16 %v6262
    %v7564 = vunpack.c.l.b16 %v6263
    %v7565 = vunpack.c.h.b16 %v6263
    %v7566 = vunpack.c.l.b16 %v6264
    %v7567 = vunpack.c.h.b16 %v6264
    %v7568 = vunpack.c.l.b16 %v6265
    %v7569 = vunpack.c.h.b16 %v6265
    %v7570 = vunpack.c.l.b16 %v6266
    %v7571 = vunpack.c.h.b16 %v6266
    %v7572 = vunpack.c.l.b16 %v6267
    %v7573 = vunpack.c.h.b16 %v6267
    %v7574 = vunpack.c.l.b16 %v6268
    %v7575 = vunpack.c.h.b16 %v6268
    %v7576 = vunpack.c.l.b16 %v6269
    %v7577 = vunpack.c.h.b16 %v6269
    %v7578 = vunpack.c.l.b16 %v6270
    %v7579 = vunpack.c.h.b16 %v6270
    %v7580 = vunpack.c.l.b16 %v6271
    %v7581 = vunpack.c.h.b16 %v6271
    %v7582 = vunpack.c.l.b16 %v6272
    %v7583 = vunpack.c.h.b16 %v6272
    %v7584 = vunpack.c.l.b16 %v6273
    %v7585 = vunpack.c.h.b16 %v6273
    %v7586 = vunpack.c.l.b16 %v6274
    %v7587 = vunpack.c.h.b16 %v6274
    %v7588 = vunpack.c.l.b16 %v6275
    %v7589 = vunpack.c.h.b16 %v6275
    %v7590 = vunpack.c.l.b16 %v6276
    %v7591 = vunpack.c.h.b16 %v6276
    %v7592 = vunpack.c.l.b16 %v6277
    %v7593 = vunpack.c.h.b16 %v6277
    %v7594 = vunpack.c.l.b16 %v6278
    %v7595 = vunpack.c.h.b16 %v6278
    %v7596 = vunpack.c.l.b16 %v6279
    %v7597 = vunpack.c.h.b16 %v6279
    %v7598 = vunpack.c.l.b16 %v6280
    %v7599 = vunpack.c.h.b16 %v6280
    %v7600 = vunpack.c.l.b16 %v6281
    %v7601 = vunpack.c.h.b16 %v6281
    %v7602 = vunpack.c.l.b16 %v6282
    %v7603 = vunpack.c.h.b16 %v6282
    %v7604 = vunpack.c.l.b16 %v6283
    %v7605 = vunpack.c.h.b16 %v6283
    %v7606 = vunpack.c.l.b16 %v6284
    %v7607 = vunpack.c.h.b16 %v6284
    %v7608 = vunpack.c.l.b16 %v6285
    %v7609 = vunpack.c.h.b16 %v6285
    %v7610 = vunpack.c.l.b16 %v6286
    %v7611 = vunpack.c.h.b16 %v6286
    %v7612 = vunpack.c.l.b16 %v6287
    %v7613 = vunpack.c.h.b16 %v6287
    %v7614 = vunpack.c.l.b16 %v6288
    %v7615 = vunpack.c.h.b16 %v6288
    %v7616 = vunpack.c.l.b16 %v6289
    %v7617 = vunpack.c.h.b16 %v6289
    %v7618 = vunpack.c.l.b16 %v6290
    %v7619 = vunpack.c.h.b16 %v6290
    %v7620 = vunpack.c.l.b16 %v6291
    %v7621 = vunpack.c.h.b16 %v6291
    %v7622 = vunpack.c.l.b16 %v6292
    %v7623 = vunpack.c.h.b16 %v6292
    %v7624 = vunpack.c.l.b16 %v6293
    %v7625 = vunpack.c.h.b16 %v6293
    %v7626 = vunpack.c.l.b16 %v6294
    %v7627 = vunpack.c.h.b16 %v6294
    %v7628 = vunpack.c.l.b16 %v6295
    %v7629 = vunpack.c.h.b16 %v6295
    %v7630 = vunpack.c.l.b16 %v6296
    %v7631 = vunpack.c.h.b16 %v6296
    %v7632 = vunpack.c.l.b16 %v6297
    %v7633 = vunpack.c.h.b16 %v6297
    %v7634 = vunpack.c.l.b16 %v6298
    %v7635 = vunpack.c.h.b16 %v6298
    %v7636 = vunpack.c.l.b16 %v6299
    %v7637 = vunpack.c.h.b16 %v6299
    %v7638 = vunpack.c.l.b16 %v6300
    %v7639 = vunpack.c.h.b16 %v6300
    %v7640 = vunpack.c.l.b16 %v6301
    %v7641 = vunpack.c.h.b16 %v6301
    %v7642 = vunpack.c.l.b16 %v6302
    %v7643 = vunpack.c.h.b16 %v6302
    %v7644 = vunpack.c.l.b16 %v6303
    %v7645 = vunpack.c.h.b16 %v6303
    %v7646 = vunpack.c.l.b16 %v6304
    %v7647 = vunpack.c.h.b16 %v6304
    %v7648 = vunpack.c.l.b16 %v6305
    %v7649 = vunpack.c.h.b16 %v6305
    %v7650 = vunpack.c.l.b16 %v6306
    %v7651 = vunpack.c.h.b16 %v6306
    %v7652 = vunpack.c.l.b16 %v6307
    %v7653 = vunpack.c.h.b16 %v6307
    %v7654 = vunpack.c.l.b16 %v6308
    %v7655 = vunpack.c.h.b16 %v6308
    %v7656 = vunpack.c.l.b16 %v6309
    %v7657 = vunpack.c.h.b16 %v6309
    %v7658 = vunpack.c.l.b16 %v6310
    %v7659 = vunpack.c.h.b16 %v6310
    %v7660 = vunpack.c.l.b16 %v6311
    %v7661 = vunpack.c.h.b16 %v6311
    %v7662 = vunpack.c.l.b16 %v6312
    %v7663 = vunpack.c.h.b16 %v6312
    %v7664 = vunpack.c.l.b16 %v6313
    %v7665 = vunpack.c.h.b16 %v6313
    %v7666 = vunpack.c.l.b16 %v6314
    %v7667 = vunpack.c.h.b16 %v6314
    %v7668 = vunpack.c.l.b16 %v6315
    %v7669 = vunpack.c.h.b16 %v6315
    %v7670 = vunpack.c.l.b16 %v6316
    %v7671 = vunpack.c.h.b16 %v6316
    %v7672 = vunpack.c.l.b16 %v6317
    %v7673 = vunpack.c.h.b16 %v6317
    %v7674 = vunpack.c.l.b16 %v6318
    %v7675 = vunpack.c.h.b16 %v6318
    %v7676 = vunpack.c.l.b16 %v6319
    %v7677 = vunpack.c.h.b16 %v6319
    %v7678 = vunpack.c.l.b16 %v6320
    %v7679 = vunpack.c.h.b16 %v6320
    %v7680 = vunpack.c.l.b16 %v6321
    %v7681 = vunpack.c.h.b16 %v6321
    %v7682 = vunpack.c.l.b16 %v6322
    %v7683 = vunpack.c.h.b16 %v6322
    %v7684 = vunpack.c.l.b16 %v6323
    %v7685 = vunpack.c.h.b16 %v6323
    %v7686 = vunpack.c.l.b16 %v6324
    %v7687 = vunpack.c.h.b16 %v6324
    %v7688 = vunpack.c.l.b16 %v6325
    %v7689 = vunpack.c.h.b16 %v6325
    %v7690 = vunpack.c.l.b16 %v6326
    %v7691 = vunpack.c.h.b16 %v6326
    %v7692 = vunpack.c.l.b16 %v6327
    %v7693 = vunpack.c.h.b16 %v6327
    %v7694 = vunpack.c.l.b16 %v6328
    %v7695 = vunpack.c.h.b16 %v6328
    %v7696 = vunpack.c.l.b16 %v6329
    %v7697 = vunpack.c.h.b16 %v6329
    %v7698 = vunpack.c.l.b16 %v6330
    %v7699 = vunpack.c.h.b16 %v6330
    %v7700 = vunpack.c.l.b16 %v6331
    %v7701 = vunpack.c.h.b16 %v6331
    %v7702 = vunpack.c.l.b16 %v6332
    %v7703 = vunpack.c.h.b16 %v6332
    %v7704 = vunpack.c.l.b16 %v6333
    %v7705 = vunpack.c.h.b16 %v6333
    %v7706 = vunpack.c.l.b16 %v6334
    %v7707 = vunpack.c.h.b16 %v6334
    %v7708 = vunpack.c.l.b16 %v6335
    %v7709 = vunpack.c.h.b16 %v6335
    %v7710 = vunpack.c.l.b16 %v6336
    %v7711 = vunpack.c.h.b16 %v6336
    %v7712 = vunpack.c.l.b16 %v6337
    %v7713 = vunpack.c.h.b16 %v6337
    %v7714 = vunpack.c.l.b16 %v6338
    %v7715 = vunpack.c.h.b16 %v6338
    %v7716 = vunpack.c.l.b16 %v6339
    %v7717 = vunpack.c.h.b16 %v6339
    %v7718 = vunpack.c.l.b16 %v6340
    %v7719 = vunpack.c.h.b16 %v6340
    %v7720 = vunpack.c.l.b16 %v6341
    %v7721 = vunpack.c.h.b16 %v6341
    %v7722 = vunpack.c.l.b16 %v6342
    %v7723 = vunpack.c.h.b16 %v6342
    %v7724 = vunpack.c.l.b16 %v6343
    %v7725 = vunpack.c.h.b16 %v6343
    %v7726 = vunpack.c.l.b16 %v6344
    %v7727 = vunpack.c.h.b16 %v6344
    %v7728 = vunpack.c.l.b16 %v6345
    %v7729 = vunpack.c.h.b16 %v6345
    %v7730 = vunpack.c.l.b16 %v6346
    %v7731 = vunpack.c.h.b16 %v6346
    %v7732 = vunpack.c.l.b16 %v6347
    %v7733 = vunpack.c.h.b16 %v6347
    %v7734 = vunpack.c.l.b16 %v6348
    %v7735 = vunpack.c.h.b16 %v6348
    %v7736 = vunpack.c.l.b16 %v6349
    %v7737 = vunpack.c.h.b16 %v6349
    %v7738 = vunpack.c.l.b16 %v6350
    %v7739 = vunpack.c.h.b16 %v6350
    %v7740 = vunpack.c.l.b16 %v6351
    %v7741 = vunpack.c.h.b16 %v6351
    %v7742 = vunpack.c.l.b16 %v6352
    %v7743 = vunpack.c.h.b16 %v6352
    %v7744 = vunpack.c.l.b16 %v6353
    %v7745 = vunpack.c.h.b16 %v6353
    %v7746 = vunpack.c.l.b16 %v6354
    %v7747 = vunpack.c.h.b16 %v6354
    %v7748 = vunpack.c.l.b16 %v6355
    %v7749 = vunpack.c.h.b16 %v6355
    %v7750 = vunpack.c.l.b16 %v6356
    %v7751 = vunpack.c.h.b16 %v6356
    %v7752 = vunpack.c.l.b16 %v6357
    %v7753 = vunpack.c.h.b16 %v6357
    %v7754 = vunpack.c.l.b16 %v6358
    %v7755 = vunpack.c.h.b16 %v6358
    %v7756 = vunpack.c.l.b16 %v6359
    %v7757 = vunpack.c.h.b16 %v6359
    %v7758 = vunpack.c.l.b16 %v6360
    %v7759 = vunpack.c.h.b16 %v6360
    %v7760 = vunpack.c.l.b16 %v6361
    %v7761 = vunpack.c.h.b16 %v6361
    %v7762 = vunpack.c.l.b16 %v6362
    %v7763 = vunpack.c.h.b16 %v6362
    %v7764 = vunpack.c.l.b16 %v6363
    %v7765 = vunpack.c.h.b16 %v6363
    %v7766 = vunpack.c.l.b16 %v6364
    %v7767 = vunpack.c.h.b16 %v6364
    %v7768 = vunpack.c.l.b16 %v6365
    %v7769 = vunpack.c.h.b16 %v6365
    %v7770 = vunpack.c.l.b16 %v6366
    %v7771 = vunpack.c.h.b16 %v6366
    %v7772 = vunpack.c.l.b16 %v6367
    %v7773 = vunpack.c.h.b16 %v6367
    %v7774 = vunpack.c.l.b16 %v6368
    %v7775 = vunpack.c.h.b16 %v6368
    %v7776 = vunpack.c.l.b16 %v6369
    %v7777 = vunpack.c.h.b16 %v6369
    %v7778 = vunpack.c.l.b16 %v6370
    %v7779 = vunpack.c.h.b16 %v6370
    %v7780 = vunpack.c.l.b16 %v6371
    %v7781 = vunpack.c.h.b16 %v6371
    %v7782 = vunpack.c.l.b16 %v6372
    %v7783 = vunpack.c.h.b16 %v6372
    %v7784 = vunpack.c.l.b16 %v6373
    %v7785 = vunpack.c.h.b16 %v6373
    %v7786 = vunpack.c.l.b16 %v6374
    %v7787 = vunpack.c.h.b16 %v6374
    %v7788 = vunpack.c.l.b16 %v6375
    %v7789 = vunpack.c.h.b16 %v6375
    %v7790 = vunpack.c.l.b16 %v6376
    %v7791 = vunpack.c.h.b16 %v6376
    %v7792 = vunpack.c.l.b16 %v6377
    %v7793 = vunpack.c.h.b16 %v6377
    %v7794 = vunpack.c.l.b16 %v6378
    %v7795 = vunpack.c.h.b16 %v6378
    %v7796 = vunpack.c.l.b16 %v6379
    %v7797 = vunpack.c.h.b16 %v6379
    %v7798 = vunpack.c.l.b16 %v6380
    %v7799 = vunpack.c.h.b16 %v6380
    %v7800 = vunpack.c.l.b16 %v6381
    %v7801 = vunpack.c.h.b16 %v6381
    %v7802 = vunpack.c.l.b16 %v6382
    %v7803 = vunpack.c.h.b16 %v6382
    %v7804 = vunpack.c.l.b16 %v6383
    %v7805 = vunpack.c.h.b16 %v6383
    %v7806 = vunpack.c.l.b16 %v6384
    %v7807 = vunpack.c.h.b16 %v6384
    %v7808 = vunpack.c.l.b16 %v6385
    %v7809 = vunpack.c.h.b16 %v6385
    %v7810 = vunpack.c.l.b16 %v6386
    %v7811 = vunpack.c.h.b16 %v6386
    %v7812 = vunpack.c.l.b16 %v6387
    %v7813 = vunpack.c.h.b16 %v6387
    %v7814 = vunpack.c.l.b16 %v6388
    %v7815 = vunpack.c.h.b16 %v6388
    %v7816 = vunpack.c.l.b16 %v6389
    %v7817 = vunpack.c.h.b16 %v6389
    %v7818 = vunpack.c.l.b16 %v6390
    %v7819 = vunpack.c.h.b16 %v6390
    %v7820 = vunpack.c.l.b16 %v6391
    %v7821 = vunpack.c.h.b16 %v6391
    %v7822 = vunpack.c.l.b16 %v6392
    %v7823 = vunpack.c.h.b16 %v6392
    %v7824 = vunpack.c.l.b16 %v6393
    %v7825 = vunpack.c.h.b16 %v6393
    %v7826 = vunpack.c.l.b16 %v6394
    %v7827 = vunpack.c.h.b16 %v6394
    %v7828 = vunpack.c.l.b16 %v6395
    %v7829 = vunpack.c.h.b16 %v6395
    %v7830 = vunpack.c.l.b16 %v6396
    %v7831 = vunpack.c.h.b16 %v6396
    %v7832 = vunpack.c.l.b16 %v6397
    %v7833 = vunpack.c.h.b16 %v6397
    %v7834 = vunpack.c.l.b16 %v6398
    %v7835 = vunpack.c.h.b16 %v6398
    %v7836 = vunpack.c.l.b16 %v6399
    %v7837 = vunpack.c.h.b16 %v6399
    %v7838 = vunpack.c.l.b16 %v6400
    %v7839 = vunpack.c.h.b16 %v6400
    %v7840 = vunpack.c.l.b16 %v6401
    %v7841 = vunpack.c.h.b16 %v6401
    %v7842 = vunpack.c.l.b16 %v6402
    %v7843 = vunpack.c.h.b16 %v6402
    %v7844 = vunpack.c.l.b16 %v6403
    %v7845 = vunpack.c.h.b16 %v6403
    %v7846 = vunpack.c.l.b16 %v6404
    %v7847 = vunpack.c.h.b16 %v6404
    %v7848 = vunpack.c.l.b16 %v6405
    %v7849 = vunpack.c.h.b16 %v6405
    %v7850 = vunpack.c.l.b16 %v6406
    %v7851 = vunpack.c.h.b16 %v6406
    %v7852 = vunpack.c.l.b16 %v6407
    %v7853 = vunpack.c.h.b16 %v6407
    %v7854 = vunpack.c.l.b16 %v6408
    %v7855 = vunpack.c.h.b16 %v6408
    %v7856 = vunpack.c.l.b16 %v6409
    %v7857 = vunpack.c.h.b16 %v6409
    %v7858 = vunpack.c.l.b16 %v6410
    %v7859 = vunpack.c.h.b16 %v6410
    %v7860 = vunpack.c.l.b16 %v6411
    %v7861 = vunpack.c.h.b16 %v6411
    %v7862 = vunpack.c.l.b16 %v6412
    %v7863 = vunpack.c.h.b16 %v6412
    %v7864 = vunpack.c.l.b16 %v6413
    %v7865 = vunpack.c.h.b16 %v6413
    %v7866 = vunpack.c.l.b16 %v6414
    %v7867 = vunpack.c.h.b16 %v6414
    %v7868 = vunpack.c.l.b16 %v6415
    %v7869 = vunpack.c.h.b16 %v6415
    %v7870 = vunpack.c.l.b16 %v6416
    %v7871 = vunpack.c.h.b16 %v6416
    %v7872 = vunpack.c.l.b16 %v6417
    %v7873 = vunpack.c.h.b16 %v6417
    %v7874 = vunpack.c.l.b16 %v6418
    %v7875 = vunpack.c.h.b16 %v6418
    %v7876 = vunpack.c.l.b16 %v6419
    %v7877 = vunpack.c.h.b16 %v6419
    %v7878 = vunpack.c.l.b16 %v6420
    %v7879 = vunpack.c.h.b16 %v6420
    %v7880 = vunpack.c.l.b16 %v6421
    %v7881 = vunpack.c.h.b16 %v6421
    %v7882 = vunpack.c.l.b16 %v6422
    %v7883 = vunpack.c.h.b16 %v6422
    %v7884 = vunpack.c.l.b16 %v6423
    %v7885 = vunpack.c.h.b16 %v6423
    %v7886 = vunpack.c.l.b16 %v6424
    %v7887 = vunpack.c.h.b16 %v6424
    %v7888 = vunpack.c.l.b16 %v6425
    %v7889 = vunpack.c.h.b16 %v6425
    %v7890 = vunpack.c.l.b16 %v6426
    %v7891 = vunpack.c.h.b16 %v6426
    %v7892 = vunpack.c.l.b16 %v6427
    %v7893 = vunpack.c.h.b16 %v6427
    %v7894 = vunpack.c.l.b16 %v6428
    %v7895 = vunpack.c.h.b16 %v6428
    %v7896 = vunpack.c.l.b16 %v6429
    %v7897 = vunpack.c.h.b16 %v6429
    %v7898 = vunpack.c.l.b16 %v6430
    %v7899 = vunpack.c.h.b16 %v6430
    %v7900 = vunpack.c.l.b16 %v6431
    %v7901 = vunpack.c.h.b16 %v6431
    %v7902 = vunpack.c.l.b16 %v6432
    %v7903 = vunpack.c.h.b16 %v6432
    %v7904 = vunpack.c.l.b16 %v6433
    %v7905 = vunpack.c.h.b16 %v6433
    %v7906 = vunpack.c.l.b16 %v6434
    %v7907 = vunpack.c.h.b16 %v6434
    %v7908 = vunpack.c.l.b16 %v6435
    %v7909 = vunpack.c.h.b16 %v6435
    %v7910 = vunpack.c.l.b16 %v6436
    %v7911 = vunpack.c.h.b16 %v6436
    %v7912 = vunpack.c.l.b16 %v6437
    %v7913 = vunpack.c.h.b16 %v6437
    %v7914 = vunpack.c.l.b16 %v6438
    %v7915 = vunpack.c.h.b16 %v6438
    %v7916 = vunpack.c.l.b16 %v6439
    %v7917 = vunpack.c.h.b16 %v6439
    %v7918 = vunpack.c.l.b16 %v6440
    %v7919 = vunpack.c.h.b16 %v6440
    %v7920 = vunpack.c.l.b16 %v6441
    %v7921 = vunpack.c.h.b16 %v6441
    %v7922 = vunpack.c.l.b16 %v6442
    %v7923 = vunpack.c.h.b16 %v6442
    %v7924 = vunpack.c.l.b16 %v6443
    %v7925 = vunpack.c.h.b16 %v6443
    %v7926 = vunpack.c.l.b16 %v6444
    %v7927 = vunpack.c.h.b16 %v6444
    %v7928 = vunpack.c.l.b16 %v6445
    %v7929 = vunpack.c.h.b16 %v6445
    %v7930 = vunpack.c.l.b16 %v6446
    %v7931 = vunpack.c.h.b16 %v6446
    %v7932 = vunpack.c.l.b16 %v6447
    %v7933 = vunpack.c.h.b16 %v6447
    %v7934 = vunpack.c.l.b16 %v6448
    %v7935 = vunpack.c.h.b16 %v6448
    %v7936 = vunpack.c.l.b16 %v6449
    %v7937 = vunpack.c.h.b16 %v6449
    %v7938 = vunpack.c.l.b16 %v6450
    %v7939 = vunpack.c.h.b16 %v6450
    %v7940 = vunpack.c.l.b16 %v6451
    %v7941 = vunpack.c.h.b16 %v6451
    %v7942 = vunpack.c.l.b16 %v6452
    %v7943 = vunpack.c.h.b16 %v6452
    %v7944 = vunpack.c.l.b16 %v6453
    %v7945 = vunpack.c.h.b16 %v6453
    %v7946 = vunpack.c.l.b16 %v6454
    %v7947 = vunpack.c.h.b16 %v6454
    %v7948 = vunpack.c.l.b16 %v6455
    %v7949 = vunpack.c.h.b16 %v6455
    %v7950 = vunpack.c.l.b16 %v6456
    %v7951 = vunpack.c.h.b16 %v6456
    %v7952 = vunpack.c.l.b16 %v6457
    %v7953 = vunpack.c.h.b16 %v6457
    %v7954 = vunpack.c.l.b16 %v6458
    %v7955 = vunpack.c.h.b16 %v6458
    %v7956 = vunpack.c.l.b16 %v6459
    %v7957 = vunpack.c.h.b16 %v6459
    %v7958 = vunpack.c.l.b16 %v6460
    %v7959 = vunpack.c.h.b16 %v6460
    %v7960 = vunpack.c.l.b16 %v6461
    %v7961 = vunpack.c.h.b16 %v6461
    %v7962 = vunpack.c.l.b16 %v6462
    %v7963 = vunpack.c.h.b16 %v6462
    %v7964 = vunpack.c.l.b16 %v6463
    %v7965 = vunpack.c.h.b16 %v6463
    %v7966 = vunpack.c.l.b16 %v6464
    %v7967 = vunpack.c.h.b16 %v6464
    %v7968 = vunpack.c.l.b16 %v6465
    %v7969 = vunpack.c.h.b16 %v6465
    %v7970 = vunpack.c.l.b16 %v6466
    %v7971 = vunpack.c.h.b16 %v6466
    %v7972 = vunpack.c.l.b16 %v6467
    %v7973 = vunpack.c.h.b16 %v6467
    %v7974 = vunpack.c.l.b16 %v6468
    %v7975 = vunpack.c.h.b16 %v6468
    %v7976 = vunpack.c.l.b16 %v6469
    %v7977 = vunpack.c.h.b16 %v6469
    %v7978 = vunpack.c.l.b16 %v6470
    %v7979 = vunpack.c.h.b16 %v6470
    %v7980 = vunpack.c.l.b16 %v6471
    %v7981 = vunpack.c.h.b16 %v6471
    %v7982 = vunpack.c.l.b16 %v6472
    %v7983 = vunpack.c.h.b16 %v6472
    %v7984 = vunpack.c.l.b16 %v6473
    %v7985 = vunpack.c.h.b16 %v6473
    %v7986 = vunpack.c.l.b16 %v6474
    %v7987 = vunpack.c.h.b16 %v6474
    %v7988 = vunpack.c.l.b16 %v6475
    %v7989 = vunpack.c.h.b16 %v6475
    %v7990 = vunpack.c.l.b16 %v6476
    %v7991 = vunpack.c.h.b16 %v6476
    %v7992 = vunpack.c.l.b16 %v6477
    %v7993 = vunpack.c.h.b16 %v6477
    %v7994 = vunpack.c.l.b16 %v6478
    %v7995 = vunpack.c.h.b16 %v6478
    %v7996 = vunpack.c.l.b16 %v6479
    %v7997 = vunpack.c.h.b16 %v6479
    %v7998 = vunpack.c.l.b16 %v6480
    %v7999 = vunpack.c.h.b16 %v6480
    %v8000 = vunpack.c.l.b16 %v6481
    %v8001 = vunpack.c.h.b16 %v6481
    %v8002 = vunpack.c.l.b16 %v6482
    %v8003 = vunpack.c.h.b16 %v6482
    %v8004 = vunpack.c.l.b16 %v6483
    %v8005 = vunpack.c.h.b16 %v6483
    %v8006 = vunpack.c.l.b16 %v6484
    %v8007 = vunpack.c.h.b16 %v6484
    %v8008 = vunpack.c.l.b16 %v6485
    %v8009 = vunpack.c.h.b16 %v6485
    %v8010 = vunpack.c.l.b16 %v6486
    %v8011 = vunpack.c.h.b16 %v6486
    %v8012 = vunpack.c.l.b16 %v6487
    %v8013 = vunpack.c.h.b16 %v6487
    %v8014 = vunpack.c.l.b16 %v6488
    %v8015 = vunpack.c.h.b16 %v6488
    %v8016 = vunpack.c.l.b16 %v6489
    %v8017 = vunpack.c.h.b16 %v6489
    %v8018 = vunpack.c.l.b16 %v6490
    %v8019 = vunpack.c.h.b16 %v6490
    %v8020 = vunpack.c.l.b16 %v6491
    %v8021 = vunpack.c.h.b16 %v6491
    %v8022 = vunpack.c.l.b16 %v6492
    %v8023 = vunpack.c.h.b16 %v6492
    %v8024 = vunpack.c.l.b16 %v6493
    %v8025 = vunpack.c.h.b16 %v6493
    %v8026 = vunpack.c.l.b16 %v6494
    %v8027 = vunpack.c.h.b16 %v6494
    %v8028 = vunpack.c.l.b16 %v6495
    %v8029 = vunpack.c.h.b16 %v6495
    %v8030 = vunpack.c.l.b16 %v6496
    %v8031 = vunpack.c.h.b16 %v6496
    %v8032 = vunpack.c.l.b16 %v6497
    %v8033 = vunpack.c.h.b16 %v6497
    %v8034 = vunpack.c.l.b16 %v6498
    %v8035 = vunpack.c.h.b16 %v6498
    %v8036 = vunpack.c.l.b16 %v6499
    %v8037 = vunpack.c.h.b16 %v6499
    %v8038 = vunpack.c.l.b16 %v6500
    %v8039 = vunpack.c.h.b16 %v6500
    %v8040 = vunpack.c.l.b16 %v6501
    %v8041 = vunpack.c.h.b16 %v6501
    %v8042 = vunpack.c.l.b16 %v6502
    %v8043 = vunpack.c.h.b16 %v6502
    %v8044 = vunpack.c.l.b16 %v6503
    %v8045 = vunpack.c.h.b16 %v6503
    %v8046 = vunpack.c.l.b16 %v6504
    %v8047 = vunpack.c.h.b16 %v6504
    %v8048 = vunpack.c.l.b16 %v6505
    %v8049 = vunpack.c.h.b16 %v6505
    %v8050 = vunpack.c.l.b16 %v6506
    %v8051 = vunpack.c.h.b16 %v6506
    %v8052 = vunpack.c.l.b16 %v6507
    %v8053 = vunpack.c.h.b16 %v6507
    %v8054 = vunpack.c.l.b16 %v6508
    %v8055 = vunpack.c.h.b16 %v6508
    %v8056 = vunpack.c.l.b16 %v6509
    %v8057 = vunpack.c.h.b16 %v6509
    %v8058 = vunpack.c.l.b16 %v6510
    %v8059 = vunpack.c.h.b16 %v6510
    %v8060 = vunpack.c.l.b16 %v6511
    %v8061 = vunpack.c.h.b16 %v6511
    %v8062 = vunpack.c.l.b16 %v6512
    %v8063 = vunpack.c.h.b16 %v6512
    %v8064 = vunpack.c.l.b16 %v6513
    %v8065 = vunpack.c.h.b16 %v6513
    %v8066 = vunpack.c.l.b16 %v6514
    %v8067 = vunpack.c.h.b16 %v6514
    %v8068 = vunpack.c.l.b16 %v6515
    %v8069 = vunpack.c.h.b16 %v6515
    %v8070 = vunpack.c.l.b16 %v6516
    %v8071 = vunpack.c.h.b16 %v6516
    %v8072 = vunpack.c.l.b16 %v6517
    %v8073 = vunpack.c.h.b16 %v6517
    %v8074 = vunpack.c.l.b16 %v6518
    %v8075 = vunpack.c.h.b16 %v6518
    %v8076 = vunpack.c.l.b16 %v6519
    %v8077 = vunpack.c.h.b16 %v6519
    %v8078 = vpack.c.b16 %v7058, %v7054
    %v8079 = vpack.c.b16 %v7059, %v7055
    %v8080 = vpack.c.b16 %v7060, %v7056
    %v8081 = vpack.c.b16 %v7061, %v7057
    %v8082 = vpack.c.b16 %v7066, %v7062
    %v8083 = vpack.c.b16 %v7067, %v7063
    %v8084 = vpack.c.b16 %v7068, %v7064
    %v8085 = vpack.c.b16 %v7069, %v7065
    %v8086 = vpack.c.b16 %v7074, %v7070
    %v8087 = vpack.c.b16 %v7075, %v7071
    %v8088 = vpack.c.b16 %v7076, %v7072
    %v8089 = vpack.c.b16 %v7077, %v7073
    %v8090 = vpack.c.b16 %v7082, %v7078
    %v8091 = vpack.c.b16 %v7083, %v7079
    %v8092 = vpack.c.b16 %v7084, %v7080
    %v8093 = vpack.c.b16 %v7085, %v7081
    %v8094 = vpack.c.b16 %v7090, %v7086
    %v8095 = vpack.c.b16 %v7091, %v7087
    %v8096 = vpack.c.b16 %v7092, %v7088
    %v8097 = vpack.c.b16 %v7093, %v7089
    %v8098 = vpack.c.b16 %v7098, %v7094
    %v8099 = vpack.c.b16 %v7099, %v7095
    %v8100 = vpack.c.b16 %v7100, %v7096
    %v8101 = vpack.c.b16 %v7101, %v7097
    %v8102 = vpack.c.b16 %v7106, %v7102
    %v8103 = vpack.c.b16 %v7107, %v7103
    %v8104 = vpack.c.b16 %v7108, %v7104
    %v8105 = vpack.c.b16 %v7109, %v7105
    %v8106 = vpack.c.b16 %v7114, %v7110
    %v8107 = vpack.c.b16 %v7115, %v7111
    %v8108 = vpack.c.b16 %v7116, %v7112
    %v8109 = vpack.c.b16 %v7117, %v7113
    %v8110 = vpack.c.b16 %v7122, %v7118
    %v8111 = vpack.c.b16 %v7123, %v7119
    %v8112 = vpack.c.b16 %v7124, %v7120
    %v8113 = vpack.c.b16 %v7125, %v7121
    %v8114 = vpack.c.b16 %v7130, %v7126
    %v8115 = vpack.c.b16 %v7131, %v7127
    %v8116 = vpack.c.b16 %v7132, %v7128
    %v8117 = vpack.c.b16 %v7133, %v7129
    %v8118 = vpack.c.b16 %v7138, %v7134
    %v8119 = vpack.c.b16 %v7139, %v7135
    %v8120 = vpack.c.b16 %v7140, %v7136
    %v8121 = vpack.c.b16 %v7141, %v7137
    %v8122 = vpack.c.b16 %v7146, %v7142
    %v8123 = vpack.c.b16 %v7147, %v7143
    %v8124 = vpack.c.b16 %v7148, %v7144
    %v8125 = vpack.c.b16 %v7149, %v7145
    %v8126 = vpack.c.b16 %v7154, %v7150
    %v8127 = vpack.c.b16 %v7155, %v7151
    %v8128 = vpack.c.b16 %v7156, %v7152
    %v8129 = vpack.c.b16 %v7157, %v7153
    %v8130 = vpack.c.b16 %v7162, %v7158
    %v8131 = vpack.c.b16 %v7163, %v7159
    %v8132 = vpack.c.b16 %v7164, %v7160
    %v8133 = vpack.c.b16 %v7165, %v7161
    %v8134 = vpack.c.b16 %v7170, %v7166
    %v8135 = vpack.c.b16 %v7171, %v7167
    %v8136 = vpack.c.b16 %v7172, %v7168
    %v8137 = vpack.c.b16 %v7173, %v7169
    %v8138 = vpack.c.b16 %v7178, %v7174
    %v8139 = vpack.c.b16 %v7179, %v7175
    %v8140 = vpack.c.b16 %v7180, %v7176
    %v8141 = vpack.c.b16 %v7181, %v7177
    %v8142 = vpack.c.b16 %v7186, %v7182
    %v8143 = vpack.c.b16 %v7187, %v7183
    %v8144 = vpack.c.b16 %v7188, %v7184
    %v8145 = vpack.c.b16 %v7189, %v7185
    %v8146 = vpack.c.b16 %v7194, %v7190
    %v8147 = vpack.c.b16 %v7195, %v7191
    %v8148 = vpack.c.b16 %v7196, %v7192
    %v8149 = vpack.c.b16 %v7197, %v7193
    %v8150 = vpack.c.b16 %v7202, %v7198
    %v8151 = vpack.c.b16 %v7203, %v7199
    %v8152 = vpack.c.b16 %v7204, %v7200
    %v8153 = vpack.c.b16 %v7205, %v7201
    %v8154 = vpack.c.b16 %v7210, %v7206
    %v8155 = vpack.c.b16 %v7211, %v7207
    %v8156 = vpack.c.b16 %v7212, %v7208
    %v8157 = vpack.c.b16 %v7213, %v7209
    %v8158 = vpack.c.b16 %v7218, %v7214
    %v8159 = vpack.c.b16 %v7219, %v7215
    %v8160 = vpack.c.b16 %v7220, %v7216
    %v8161 = vpack.c.b16 %v7221, %v7217
    %v8162 = vpack.c.b16 %v7226, %v7222
    %v8163 = vpack.c.b16 %v7227, %v7223
    %v8164 = vpack.c.b16 %v7228, %v7224
    %v8165 = vpack.c.b16 %v7229, %v7225
    %v8166 = vpack.c.b16 %v7234, %v7230
    %v8167 = vpack.c.b16 %v7235, %v7231
    %v8168 = vpack.c.b16 %v7236, %v7232
    %v8169 = vpack.c.b16 %v7237, %v7233
    %v8170 = vpack.c.b16 %v7242, %v7238
    %v8171 = vpack.c.b16 %v7243, %v7239
    %v8172 = vpack.c.b16 %v7244, %v7240
    %v8173 = vpack.c.b16 %v7245, %v7241
    %v8174 = vpack.c.b16 %v7250, %v7246
    %v8175 = vpack.c.b16 %v7251, %v7247
    %v8176 = vpack.c.b16 %v7252, %v7248
    %v8177 = vpack.c.b16 %v7253, %v7249
    %v8178 = vpack.c.b16 %v7258, %v7254
    %v8179 = vpack.c.b16 %v7259, %v7255
    %v8180 = vpack.c.b16 %v7260, %v7256
    %v8181 = vpack.c.b16 %v7261, %v7257
    %v8182 = vpack.c.b16 %v7266, %v7262
    %v8183 = vpack.c.b16 %v7267, %v7263
    %v8184 = vpack.c.b16 %v7268, %v7264
    %v8185 = vpack.c.b16 %v7269, %v7265
    %v8186 = vpack.c.b16 %v7274, %v7270
    %v8187 = vpack.c.b16 %v7275, %v7271
    %v8188 = vpack.c.b16 %v7276, %v7272
    %v8189 = vpack.c.b16 %v7277, %v7273
    %v8190 = vpack.c.b16 %v7282, %v7278
    %v8191 = vpack.c.b16 %v7283, %v7279
    %v8192 = vpack.c.b16 %v7284, %v7280
    %v8193 = vpack.c.b16 %v7285, %v7281
    %v8194 = vpack.c.b16 %v7290, %v7286
    %v8195 = vpack.c.b16 %v7291, %v7287
    %v8196 = vpack.c.b16 %v7292, %v7288
    %v8197 = vpack.c.b16 %v7293, %v7289
    %v8198 = vpack.c.b16 %v7298, %v7294
    %v8199 = vpack.c.b16 %v7299, %v7295
    %v8200 = vpack.c.b16 %v7300, %v7296
    %v8201 = vpack.c.b16 %v7301, %v7297
    %v8202 = vpack.c.b16 %v7306, %v7302
    %v8203 = vpack.c.b16 %v7307, %v7303
    %v8204 = vpack.c.b16 %v7308, %v7304
    %v8205 = vpack.c.b16 %v7309, %v7305
    %v8206 = vpack.c.b16 %v7314, %v7310
    %v8207 = vpack.c.b16 %v7315, %v7311
    %v8208 = vpack.c.b16 %v7316, %v7312
    %v8209 = vpack.c.b16 %v7317, %v7313
    %v8210 = vpack.c.b16 %v7322, %v7318
    %v8211 = vpack.c.b16 %v7323, %v7319
    %v8212 = vpack.c.b16 %v7324, %v7320
    %v8213 = vpack.c.b16 %v7325, %v7321
    %v8214 = vpack.c.b16 %v7330, %v7326
    %v8215 = vpack.c.b16 %v7331, %v7327
    %v8216 = vpack.c.b16 %v7332, %v7328
    %v8217 = vpack.c.b16 %v7333, %v7329
    %v8218 = vpack.c.b16 %v7338, %v7334
    %v8219 = vpack.c.b16 %v7339, %v7335
    %v8220 = vpack.c.b16 %v7340, %v7336
    %v8221 = vpack.c.b16 %v7341, %v7337
    %v8222 = vpack.c.b16 %v7346, %v7342
    %v8223 = vpack.c.b16 %v7347, %v7343
    %v8224 = vpack.c.b16 %v7348, %v7344
    %v8225 = vpack.c.b16 %v7349, %v7345
    %v8226 = vpack.c.b16 %v7354, %v7350
    %v8227 = vpack.c.b16 %v7355, %v7351
    %v8228 = vpack.c.b16 %v7356, %v7352
    %v8229 = vpack.c.b16 %v7357, %v7353
    %v8230 = vpack.c.b16 %v7362, %v7358
    %v8231 = vpack.c.b16 %v7363, %v7359
    %v8232 = vpack.c.b16 %v7364, %v7360
    %v8233 = vpack.c.b16 %v7365, %v7361
    %v8234 = vpack.c.b16 %v7370, %v7366
    %v8235 = vpack.c.b16 %v7371, %v7367
    %v8236 = vpack.c.b16 %v7372, %v7368
    %v8237 = vpack.c.b16 %v7373, %v7369
    %v8238 = vpack.c.b16 %v7378, %v7374
    %v8239 = vpack.c.b16 %v7379, %v7375
    %v8240 = vpack.c.b16 %v7380, %v7376
    %v8241 = vpack.c.b16 %v7381, %v7377
    %v8242 = vpack.c.b16 %v7386, %v7382
    %v8243 = vpack.c.b16 %v7387, %v7383
    %v8244 = vpack.c.b16 %v7388, %v7384
    %v8245 = vpack.c.b16 %v7389, %v7385
    %v8246 = vpack.c.b16 %v7394, %v7390
    %v8247 = vpack.c.b16 %v7395, %v7391
    %v8248 = vpack.c.b16 %v7396, %v7392
    %v8249 = vpack.c.b16 %v7397, %v7393
    %v8250 = vpack.c.b16 %v7402, %v7398
    %v8251 = vpack.c.b16 %v7403, %v7399
    %v8252 = vpack.c.b16 %v7404, %v7400
    %v8253 = vpack.c.b16 %v7405, %v7401
    %v8254 = vpack.c.b16 %v7410, %v7406
    %v8255 = vpack.c.b16 %v7411, %v7407
    %v8256 = vpack.c.b16 %v7412, %v7408
    %v8257 = vpack.c.b16 %v7413, %v7409
    %v8258 = vpack.c.b16 %v7418, %v7414
    %v8259 = vpack.c.b16 %v7419, %v7415
    %v8260 = vpack.c.b16 %v7420, %v7416
    %v8261 = vpack.c.b16 %v7421, %v7417
    %v8262 = vpack.c.b16 %v7426, %v7422
    %v8263 = vpack.c.b16 %v7427, %v7423
    %v8264 = vpack.c.b16 %v7428, %v7424
    %v8265 = vpack.c.b16 %v7429, %v7425
    %v8266 = vpack.c.b16 %v7434, %v7430
    %v8267 = vpack.c.b16 %v7435, %v7431
    %v8268 = vpack.c.b16 %v7436, %v7432
    %v8269 = vpack.c.b16 %v7437, %v7433
    %v8270 = vpack.c.b16 %v7442, %v7438
    %v8271 = vpack.c.b16 %v7443, %v7439
    %v8272 = vpack.c.b16 %v7444, %v7440
    %v8273 = vpack.c.b16 %v7445, %v7441
    %v8274 = vpack.c.b16 %v7450, %v7446
    %v8275 = vpack.c.b16 %v7451, %v7447
    %v8276 = vpack.c.b16 %v7452, %v7448
    %v8277 = vpack.c.b16 %v7453, %v7449
    %v8278 = vpack.c.b16 %v7458, %v7454
    %v8279 = vpack.c.b16 %v7459, %v7455
    %v8280 = vpack.c.b16 %v7460, %v7456
    %v8281 = vpack.c.b16 %v7461, %v7457
    %v8282 = vpack.c.b16 %v7466, %v7462
    %v8283 = vpack.c.b16 %v7467, %v7463
    %v8284 = vpack.c.b16 %v7468, %v7464
    %v8285 = vpack.c.b16 %v7469, %v7465
    %v8286 = vpack.c.b16 %v7474, %v7470
    %v8287 = vpack.c.b16 %v7475, %v7471
    %v8288 = vpack.c.b16 %v7476, %v7472
    %v8289 = vpack.c.b16 %v7477, %v7473
    %v8290 = vpack.c.b16 %v7482, %v7478
    %v8291 = vpack.c.b16 %v7483, %v7479
    %v8292 = vpack.c.b16 %v7484, %v7480
    %v8293 = vpack.c.b16 %v7485, %v7481
    %v8294 = vpack.c.b16 %v7490, %v7486
    %v8295 = vpack.c.b16 %v7491, %v7487
    %v8296 = vpack.c.b16 %v7492, %v7488
    %v8297 = vpack.c.b16 %v7493, %v7489
    %v8298 = vpack.c.b16 %v7498, %v7494
    %v8299 = vpack.c.b16 %v7499, %v7495
    %v8300 = vpack.c.b16 %v7500, %v7496
    %v8301 = vpack.c.b16 %v7501, %v7497
    %v8302 = vpack.c.b16 %v7506, %v7502
    %v8303 = vpack.c.b16 %v7507, %v7503
    %v8304 = vpack.c.b16 %v7508, %v7504
    %v8305 = vpack.c.b16 %v7509, %v7505
    %v8306 = vpack.c.b16 %v7514, %v7510
    %v8307 = vpack.c.b16 %v7515, %v7511
    %v8308 = vpack.c.b16 %v7516, %v7512
    %v8309 = vpack.c.b16 %v7517, %v7513
    %v8310 = vpack.c.b16 %v7522, %v7518
    %v8311 = vpack.c.b16 %v7523, %v7519
    %v8312 = vpack.c.b16 %v7524, %v7520
    %v8313 = vpack.c.b16 %v7525, %v7521
    %v8314 = vpack.c.b16 %v7530, %v7526
    %v8315 = vpack.c.b16 %v7531, %v7527
    %v8316 = vpack.c.b16 %v7532, %v7528
    %v8317 = vpack.c.b16 %v7533, %v7529
    %v8318 = vpack.c.b16 %v7538, %v7534
    %v8319 = vpack.c.b16 %v7539, %v7535
    %v8320 = vpack.c.b16 %v7540, %v7536
    %v8321 = vpack.c.b16 %v7541, %v7537
    %v8322 = vpack.c.b16 %v7546, %v7542
    %v8323 = vpack.c.b16 %v7547, %v7543
    %v8324 = vpack.c.b16 %v7548, %v7544
    %v8325 = vpack.c.b16 %v7549, %v7545
    %v8326 = vpack.c.b16 %v7554, %v7550
    %v8327 = vpack.c.b16 %v7555, %v7551
    %v8328 = vpack.c.b16 %v7556, %v7552
    %v8329 = vpack.c.b16 %v7557, %v7553
    %v8330 = vpack.c.b16 %v7562, %v7558
    %v8331 = vpack.c.b16 %v7563, %v7559
    %v8332 = vpack.c.b16 %v7564, %v7560
    %v8333 = vpack.c.b16 %v7565, %v7561
    %v8334 = vpack.c.b16 %v7570, %v7566
    %v8335 = vpack.c.b16 %v7571, %v7567
    %v8336 = vpack.c.b16 %v7572, %v7568
    %v8337 = vpack.c.b16 %v7573, %v7569
    %v8338 = vpack.c.b16 %v7578, %v7574
    %v8339 = vpack.c.b16 %v7579, %v7575
    %v8340 = vpack.c.b16 %v7580, %v7576
    %v8341 = vpack.c.b16 %v7581, %v7577
    %v8342 = vpack.c.b16 %v7586, %v7582
    %v8343 = vpack.c.b16 %v7587, %v7583
    %v8344 = vpack.c.b16 %v7588, %v7584
    %v8345 = vpack.c.b16 %v7589, %v7585
    %v8346 = vpack.c.b16 %v7594, %v7590
    %v8347 = vpack.c.b16 %v7595, %v7591
    %v8348 = vpack.c.b16 %v7596, %v7592
    %v8349 = vpack.c.b16 %v7597, %v7593
    %v8350 = vpack.c.b16 %v7602, %v7598
    %v8351 = vpack.c.b16 %v7603, %v7599
    %v8352 = vpack.c.b16 %v7604, %v7600
    %v8353 = vpack.c.b16 %v7605, %v7601
    %v8354 = vpack.c.b16 %v7610, %v7606
    %v8355 = vpack.c.b16 %v7611, %v7607
    %v8356 = vpack.c.b16 %v7612, %v7608
    %v8357 = vpack.c.b16 %v7613, %v7609
    %v8358 = vpack.c.b16 %v7618, %v7614
    %v8359 = vpack.c.b16 %v7619, %v7615
    %v8360 = vpack.c.b16 %v7620, %v7616
    %v8361 = vpack.c.b16 %v7621, %v7617
    %v8362 = vpack.c.b16 %v7626, %v7622
    %v8363 = vpack.c.b16 %v7627, %v7623
    %v8364 = vpack.c.b16 %v7628, %v7624
    %v8365 = vpack.c.b16 %v7629, %v7625
    %v8366 = vpack.c.b16 %v7634, %v7630
    %v8367 = vpack.c.b16 %v7635, %v7631
    %v8368 = vpack.c.b16 %v7636, %v7632
    %v8369 = vpack.c.b16 %v7637, %v7633
    %v8370 = vpack.c.b16 %v7642, %v7638
    %v8371 = vpack.c.b16 %v7643, %v7639
    %v8372 = vpack.c.b16 %v7644, %v7640
    %v8373 = vpack.c.b16 %v7645, %v7641
    %v8374 = vpack.c.b16 %v7650, %v7646
    %v8375 = vpack.c.b16 %v7651, %v7647
    %v8376 = vpack.c.b16 %v7652, %v7648
    %v8377 = vpack.c.b16 %v7653, %v7649
    %v8378 = vpack.c.b16 %v7658, %v7654
    %v8379 = vpack.c.b16 %v7659, %v7655
    %v8380 = vpack.c.b16 %v7660, %v7656
    %v8381 = vpack.c.b16 %v7661, %v7657
    %v8382 = vpack.c.b16 %v7666, %v7662
    %v8383 = vpack.c.b16 %v7667, %v7663
    %v8384 = vpack.c.b16 %v7668, %v7664
    %v8385 = vpack.c.b16 %v7669, %v7665
    %v8386 = vpack.c.b16 %v7674, %v7670
    %v8387 = vpack.c.b16 %v7675, %v7671
    %v8388 = vpack.c.b16 %v7676, %v7672
    %v8389 = vpack.c.b16 %v7677, %v7673
    %v8390 = vpack.c.b16 %v7682, %v7678
    %v8391 = vpack.c.b16 %v7683, %v7679
    %v8392 = vpack.c.b16 %v7684, %v7680
    %v8393 = vpack.c.b16 %v7685, %v7681
    %v8394 = vpack.c.b16 %v7690, %v7686
    %v8395 = vpack.c.b16 %v7691, %v7687
    %v8396 = vpack.c.b16 %v7692, %v7688
    %v8397 = vpack.c.b16 %v7693, %v7689
    %v8398 = vpack.c.b16 %v7698, %v7694
    %v8399 = vpack.c.b16 %v7699, %v7695
    %v8400 = vpack.c.b16 %v7700, %v7696
    %v8401 = vpack.c.b16 %v7701, %v7697
    %v8402 = vpack.c.b16 %v7706, %v7702
    %v8403 = vpack.c.b16 %v7707, %v7703
    %v8404 = vpack.c.b16 %v7708, %v7704
    %v8405 = vpack.c.b16 %v7709, %v7705
    %v8406 = vpack.c.b16 %v7714, %v7710
    %v8407 = vpack.c.b16 %v7715, %v7711
    %v8408 = vpack.c.b16 %v7716, %v7712
    %v8409 = vpack.c.b16 %v7717, %v7713
    %v8410 = vpack.c.b16 %v7722, %v7718
    %v8411 = vpack.c.b16 %v7723, %v7719
    %v8412 = vpack.c.b16 %v7724, %v7720
    %v8413 = vpack.c.b16 %v7725, %v7721
    %v8414 = vpack.c.b16 %v7730, %v7726
    %v8415 = vpack.c.b16 %v7731, %v7727
    %v8416 = vpack.c.b16 %v7732, %v7728
    %v8417 = vpack.c.b16 %v7733, %v7729
    %v8418 = vpack.c.b16 %v7738, %v7734
    %v8419 = vpack.c.b16 %v7739, %v7735
    %v8420 = vpack.c.b16 %v7740, %v7736
    %v8421 = vpack.c.b16 %v7741, %v7737
    %v8422 = vpack.c.b16 %v7746, %v7742
    %v8423 = vpack.c.b16 %v7747, %v7743
    %v8424 = vpack.c.b16 %v7748, %v7744
    %v8425 = vpack.c.b16 %v7749, %v7745
    %v8426 = vpack.c.b16 %v7754, %v7750
    %v8427 = vpack.c.b16 %v7755, %v7751
    %v8428 = vpack.c.b16 %v7756, %v7752
    %v8429 = vpack.c.b16 %v7757, %v7753
    %v8430 = vpack.c.b16 %v7762, %v7758
    %v8431 = vpack.c.b16 %v7763, %v7759
    %v8432 = vpack.c.b16 %v7764, %v7760
    %v8433 = vpack.c.b16 %v7765, %v7761
    %v8434 = vpack.c.b16 %v7770, %v7766
    %v8435 = vpack.c.b16 %v7771, %v7767
    %v8436 = vpack.c.b16 %v7772, %v7768
    %v8437 = vpack.c.b16 %v7773, %v7769
    %v8438 = vpack.c.b16 %v7778, %v7774
    %v8439 = vpack.c.b16 %v7779, %v7775
    %v8440 = vpack.c.b16 %v7780, %v7776
    %v8441 = vpack.c.b16 %v7781, %v7777
    %v8442 = vpack.c.b16 %v7786, %v7782
    %v8443 = vpack.c.b16 %v7787, %v7783
    %v8444 = vpack.c.b16 %v7788, %v7784
    %v8445 = vpack.c.b16 %v7789, %v7785
    %v8446 = vpack.c.b16 %v7794, %v7790
    %v8447 = vpack.c.b16 %v7795, %v7791
    %v8448 = vpack.c.b16 %v7796, %v7792
    %v8449 = vpack.c.b16 %v7797, %v7793
    %v8450 = vpack.c.b16 %v7802, %v7798
    %v8451 = vpack.c.b16 %v7803, %v7799
    %v8452 = vpack.c.b16 %v7804, %v7800
    %v8453 = vpack.c.b16 %v7805, %v7801
    %v8454 = vpack.c.b16 %v7810, %v7806
    %v8455 = vpack.c.b16 %v7811, %v7807
    %v8456 = vpack.c.b16 %v7812, %v7808
    %v8457 = vpack.c.b16 %v7813, %v7809
    %v8458 = vpack.c.b16 %v7818, %v7814
    %v8459 = vpack.c.b16 %v7819, %v7815
    %v8460 = vpack.c.b16 %v7820, %v7816
    %v8461 = vpack.c.b16 %v7821, %v7817
    %v8462 = vpack.c.b16 %v7826, %v7822
    %v8463 = vpack.c.b16 %v7827, %v7823
    %v8464 = vpack.c.b16 %v7828, %v7824
    %v8465 = vpack.c.b16 %v7829, %v7825
    %v8466 = vpack.c.b16 %v7834, %v7830
    %v8467 = vpack.c.b16 %v7835, %v7831
    %v8468 = vpack.c.b16 %v7836, %v7832
    %v8469 = vpack.c.b16 %v7837, %v7833
    %v8470 = vpack.c.b16 %v7842, %v7838
    %v8471 = vpack.c.b16 %v7843, %v7839
    %v8472 = vpack.c.b16 %v7844, %v7840
    %v8473 = vpack.c.b16 %v7845, %v7841
    %v8474 = vpack.c.b16 %v7850, %v7846
    %v8475 = vpack.c.b16 %v7851, %v7847
    %v8476 = vpack.c.b16 %v7852, %v7848
    %v8477 = vpack.c.b16 %v7853, %v7849
    %v8478 = vpack.c.b16 %v7858, %v7854
    %v8479 = vpack.c.b16 %v7859, %v7855
    %v8480 = vpack.c.b16 %v7860, %v7856
    %v8481 = vpack.c.b16 %v7861, %v7857
    %v8482 = vpack.c.b16 %v7866, %v7862
    %v8483 = vpack.c.b16 %v7867, %v7863
    %v8484 = vpack.c.b16 %v7868, %v7864
    %v8485 = vpack.c.b16 %v7869, %v7865
    %v8486 = vpack.c.b16 %v7874, %v7870
    %v8487 = vpack.c.b16 %v7875, %v7871
    %v8488 = vpack.c.b16 %v7876, %v7872
    %v8489 = vpack.c.b16 %v7877, %v7873
    %v8490 = vpack.c.b16 %v7882, %v7878
    %v8491 = vpack.c.b16 %v7883, %v7879
    %v8492 = vpack.c.b16 %v7884, %v7880
    %v8493 = vpack.c.b16 %v7885, %v7881
    %v8494 = vpack.c.b16 %v7890, %v7886
    %v8495 = vpack.c.b16 %v7891, %v7887
    %v8496 = vpack.c.b16 %v7892, %v7888
    %v8497 = vpack.c.b16 %v7893, %v7889
    %v8498 = vpack.c.b16 %v7898, %v7894
    %v8499 = vpack.c.b16 %v7899, %v7895
    %v8500 = vpack.c.b16 %v7900, %v7896
    %v8501 = vpack.c.b16 %v7901, %v7897
    %v8502 = vpack.c.b16 %v7906, %v7902
    %v8503 = vpack.c.b16 %v7907, %v7903
    %v8504 = vpack.c.b16 %v7908, %v7904
    %v8505 = vpack.c.b16 %v7909, %v7905
    %v8506 = vpack.c.b16 %v7914, %v7910
    %v8507 = vpack.c.b16 %v7915, %v7911
    %v8508 = vpack.c.b16 %v7916, %v7912
    %v8509 = vpack.c.b16 %v7917, %v7913
    %v8510 = vpack.c.b16 %v7922, %v7918
    %v8511 = vpack.c.b16 %v7923, %v7919
    %v8512 = vpack.c.b16 %v7924, %v7920
    %v8513 = vpack.c.b16 %v7925, %v7921
    %v8514 = vpack.c.b16 %v7930, %v7926
    %v8515 = vpack.c.b16 %v7931, %v7927
    %v8516 = vpack.c.b16 %v7932, %v7928
    %v8517 = vpack.c.b16 %v7933, %v7929
    %v8518 = vpack.c.b16 %v7938, %v7934
    %v8519 = vpack.c.b16 %v7939, %v7935
    %v8520 = vpack.c.b16 %v7940, %v7936
    %v8521 = vpack.c.b16 %v7941, %v7937
    %v8522 = vpack.c.b16 %v7946, %v7942
    %v8523 = vpack.c.b16 %v7947, %v7943
    %v8524 = vpack.c.b16 %v7948, %v7944
    %v8525 = vpack.c.b16 %v7949, %v7945
    %v8526 = vpack.c.b16 %v7954, %v7950
    %v8527 = vpack.c.b16 %v7955, %v7951
    %v8528 = vpack.c.b16 %v7956, %v7952
    %v8529 = vpack.c.b16 %v7957, %v7953
    %v8530 = vpack.c.b16 %v7962, %v7958
    %v8531 = vpack.c.b16 %v7963, %v7959
    %v8532 = vpack.c.b16 %v7964, %v7960
    %v8533 = vpack.c.b16 %v7965, %v7961
    %v8534 = vpack.c.b16 %v7970, %v7966
    %v8535 = vpack.c.b16 %v7971, %v7967
    %v8536 = vpack.c.b16 %v7972, %v7968
    %v8537 = vpack.c.b16 %v7973, %v7969
    %v8538 = vpack.c.b16 %v7978, %v7974
    %v8539 = vpack.c.b16 %v7979, %v7975
    %v8540 = vpack.c.b16 %v7980, %v7976
    %v8541 = vpack.c.b16 %v7981, %v7977
    %v8542 = vpack.c.b16 %v7986, %v7982
    %v8543 = vpack.c.b16 %v7987, %v7983
    %v8544 = vpack.c.b16 %v7988, %v7984
    %v8545 = vpack.c.b16 %v7989, %v7985
    %v8546 = vpack.c.b16 %v7994, %v7990
    %v8547 = vpack.c.b16 %v7995, %v7991
    %v8548 = vpack.c.b16 %v7996, %v7992
    %v8549 = vpack.c.b16 %v7997, %v7993
    %v8550 = vpack.c.b16 %v8002, %v7998
    %v8551 = vpack.c.b16 %v8003, %v7999
    %v8552 = vpack.c.b16 %v8004, %v8000
    %v8553 = vpack.c.b16 %v8005, %v8001
    %v8554 = vpack.c.b16 %v8010, %v8006
    %v8555 = vpack.c.b16 %v8011, %v8007
    %v8556 = vpack.c.b16 %v8012, %v8008
    %v8557 = vpack.c.b16 %v8013, %v8009
    %v8558 = vpack.c.b16 %v8018, %v8014
    %v8559 = vpack.c.b16 %v8019, %v8015
    %v8560 = vpack.c.b16 %v8020, %v8016
    %v8561 = vpack.c.b16 %v8021, %v8017
    %v8562 = vpack.c.b16 %v8026, %v8022
    %v8563 = vpack.c.b16 %v8027, %v8023
    %v8564 = vpack.c.b16 %v8028, %v8024
    %v8565 = vpack.c.b16 %v8029, %v8025
    %v8566 = vpack.c.b16 %v8034, %v8030
    %v8567 = vpack.c.b16 %v8035, %v8031
    %v8568 = vpack.c.b16 %v8036, %v8032
    %v8569 = vpack.c.b16 %v8037, %v8033
    %v8570 = vpack.c.b16 %v8042, %v8038
    %v8571 = vpack.c.b16 %v8043, %v8039
    %v8572 = vpack.c.b16 %v8044, %v8040
    %v8573 = vpack.c.b16 %v8045, %v8041
    %v8574 = vpack.c.b16 %v8050, %v8046
    %v8575 = vpack.c.b16 %v8051, %v8047
    %v8576 = vpack.c.b16 %v8052, %v8048
    %v8577 = vpack.c.b16 %v8053, %v8049
    %v8578 = vpack.c.b16 %v8058, %v8054
    %v8579 = vpack.c.b16 %v8059, %v8055
    %v8580 = vpack.c.b16 %v8060, %v8056
    %v8581 = vpack.c.b16 %v8061, %v8057
    %v8582 = vpack.c.b16 %v8066, %v8062
    %v8583 = vpack.c.b16 %v8067, %v8063
    %v8584 = vpack.c.b16 %v8068, %v8064
    %v8585 = vpack.c.b16 %v8069, %v8065
    %v8586 = vpack.c.b16 %v8074, %v8070
    %v8587 = vpack.c.b16 %v8075, %v8071
    %v8588 = vpack.c.b16 %v8076, %v8072
    %v8589 = vpack.c.b16 %v8077, %v8073
    %9102 = vmatprep.subr.bf16.mxu0 %v8079
    %9103 = vmatpush1.bf16.msra.mxu0 %v8078
    %9104 = vmatprep.subr.bf16.mxu0 %v8083
    %9105 = vmatpush1.bf16.msra.mxu0 %v8082
    %9106 = vmatprep.subr.bf16.mxu0 %v8087
    %9107 = vmatpush1.bf16.msra.mxu0 %v8086
    %9108 = vmatprep.subr.bf16.mxu0 %v8091
    %9109 = vmatpush1.bf16.msra.mxu0 %v8090
    %9110 = vmatprep.subr.bf16.mxu0 %v8095
    %9111 = vmatpush1.bf16.msra.mxu0 %v8094
    %9112 = vmatprep.subr.bf16.mxu0 %v8099
    %9113 = vmatpush1.bf16.msra.mxu0 %v8098
    %9114 = vmatprep.subr.bf16.mxu0 %v8103
    %9115 = vmatpush1.bf16.msra.mxu0 %v8102
    %9116 = vmatprep.subr.bf16.mxu0 %v8107
    %9117 = vmatpush1.bf16.msra.mxu0 %v8106
    %9118 = vmatprep.subr.bf16.mxu0 %v8111
    %9119 = vmatpush1.bf16.msra.mxu0 %v8110
    %9120 = vmatprep.subr.bf16.mxu0 %v8115
    %9121 = vmatpush1.bf16.msra.mxu0 %v8114
    %9122 = vmatprep.subr.bf16.mxu0 %v8119
    %9123 = vmatpush1.bf16.msra.mxu0 %v8118
    %9124 = vmatprep.subr.bf16.mxu0 %v8123
    %9125 = vmatpush1.bf16.msra.mxu0 %v8122
    %9126 = vmatprep.subr.bf16.mxu0 %v8127
    %9127 = vmatpush1.bf16.msra.mxu0 %v8126
    %9128 = vmatprep.subr.bf16.mxu0 %v8131
    %9129 = vmatpush1.bf16.msra.mxu0 %v8130
    %9130 = vmatprep.subr.bf16.mxu0 %v8135
    %9131 = vmatpush1.bf16.msra.mxu0 %v8134
    %9132 = vmatprep.subr.bf16.mxu0 %v8139
    %9133 = vmatpush1.bf16.msra.mxu0 %v8138
    %9134 = vmatprep.mubr.bf16.mxu0 %v5993
    %9135 = vmatmul.mubr.bf16.gmra.mrb[0].mxu0 %v5992
    %v9136 = vpop.f32.mrb[0].mxu0
    %v9137 = vadd.f32 %v6525, %v9136
    %v9138 = vpop.f32.mrb[0].mxu0
    %v9139 = vadd.f32 %v6529, %v9138
    %v9140 = vpop.f32.mrb[0].mxu0
    %v9141 = vpop.f32.mrb[0].mxu0
    %9142 = vdwg.mxu0
    %9143 = vmatprep.subr.bf16.mxu0 %v8143
    %9144 = vmatpush1.bf16.msra.mxu0 %v8142
    %9145 = vmatprep.subr.bf16.mxu0 %v8147
    %9146 = vmatpush1.bf16.msra.mxu0 %v8146
    %9147 = vmatprep.subr.bf16.mxu0 %v8151
    %9148 = vmatpush1.bf16.msra.mxu0 %v8150
    %9149 = vmatprep.subr.bf16.mxu0 %v8155
    %9150 = vmatpush1.bf16.msra.mxu0 %v8154
    %9151 = vmatprep.subr.bf16.mxu0 %v8159
    %9152 = vmatpush1.bf16.msra.mxu0 %v8158
    %9153 = vmatprep.subr.bf16.mxu0 %v8163
    %9154 = vmatpush1.bf16.msra.mxu0 %v8162
    %9155 = vmatprep.subr.bf16.mxu0 %v8167
    %9156 = vmatpush1.bf16.msra.mxu0 %v8166
    %9157 = vmatprep.subr.bf16.mxu0 %v8171
    %9158 = vmatpush1.bf16.msra.mxu0 %v8170
    %9159 = vmatprep.subr.bf16.mxu0 %v8175
    %9160 = vmatpush1.bf16.msra.mxu0 %v8174
    %9161 = vmatprep.subr.bf16.mxu0 %v8179
    %9162 = vmatpush1.bf16.msra.mxu0 %v8178
    %9163 = vmatprep.subr.bf16.mxu0 %v8183
    %9164 = vmatpush1.bf16.msra.mxu0 %v8182
    %9165 = vmatprep.subr.bf16.mxu0 %v8187
    %9166 = vmatpush1.bf16.msra.mxu0 %v8186
    %9167 = vmatprep.subr.bf16.mxu0 %v8191
    %9168 = vmatpush1.bf16.msra.mxu0 %v8190
    %9169 = vmatprep.subr.bf16.mxu0 %v8195
    %9170 = vmatpush1.bf16.msra.mxu0 %v8194
    %9171 = vmatprep.subr.bf16.mxu0 %v8199
    %9172 = vmatpush1.bf16.msra.mxu0 %v8198
    %9173 = vmatprep.subr.bf16.mxu0 %v8203
    %9174 = vmatpush1.bf16.msra.mxu0 %v8202
    %9175 = vmatprep.mubr.bf16.mxu0 %v5995
    %9176 = vmatmul.mubr.bf16.gmra.mrb[0].mxu0 %v5994
    %v9177 = vpop.f32.mrb[0].mxu0
    %v9178 = vadd.f32 %v9137, %v9177
    %v9179 = vpop.f32.mrb[0].mxu0
    %v9180 = vadd.f32 %v9139, %v9179
    %v9181 = vpop.f32.mrb[0].mxu0
    %v9182 = vpop.f32.mrb[0].mxu0
    %9183 = vdwg.mxu0
    %9184 = vmatprep.subr.bf16.mxu0 %v8207
    %9185 = vmatpush1.bf16.msra.mxu0 %v8206
    %9186 = vmatprep.subr.bf16.mxu0 %v8211
    %9187 = vmatpush1.bf16.msra.mxu0 %v8210
    %9188 = vmatprep.subr.bf16.mxu0 %v8215
    %9189 = vmatpush1.bf16.msra.mxu0 %v8214
    %9190 = vmatprep.subr.bf16.mxu0 %v8219
    %9191 = vmatpush1.bf16.msra.mxu0 %v8218
    %9192 = vmatprep.subr.bf16.mxu0 %v8223
    %9193 = vmatpush1.bf16.msra.mxu0 %v8222
    %9194 = vmatprep.subr.bf16.mxu0 %v8227
    %9195 = vmatpush1.bf16.msra.mxu0 %v8226
    %9196 = vmatprep.subr.bf16.mxu0 %v8231
    %9197 = vmatpush1.bf16.msra.mxu0 %v8230
    %9198 = vmatprep.subr.bf16.mxu0 %v8235
    %9199 = vmatpush1.bf16.msra.mxu0 %v8234
    %9200 = vmatprep.subr.bf16.mxu0 %v8239
    %9201 = vmatpush1.bf16.msra.mxu0 %v8238
    %9202 = vmatprep.subr.bf16.mxu0 %v8243
    %9203 = vmatpush1.bf16.msra.mxu0 %v8242
    %9204 = vmatprep.subr.bf16.mxu0 %v8247
    %9205 = vmatpush1.bf16.msra.mxu0 %v8246
    %9206 = vmatprep.subr.bf16.mxu0 %v8251
    %9207 = vmatpush1.bf16.msra.mxu0 %v8250
    %9208 = vmatprep.subr.bf16.mxu0 %v8255
    %9209 = vmatpush1.bf16.msra.mxu0 %v8254
    %9210 = vmatprep.subr.bf16.mxu0 %v8259
    %9211 = vmatpush1.bf16.msra.mxu0 %v8258
    %9212 = vmatprep.subr.bf16.mxu0 %v8263
    %9213 = vmatpush1.bf16.msra.mxu0 %v8262
    %9214 = vmatprep.subr.bf16.mxu0 %v8267
    %9215 = vmatpush1.bf16.msra.mxu0 %v8266
    %9216 = vmatprep.mubr.bf16.mxu0 %v5997
    %9217 = vmatmul.mubr.bf16.gmra.mrb[0].mxu0 %v5996
    %v9218 = vpop.f32.mrb[0].mxu0
    %v9219 = vadd.f32 %v9178, %v9218
    %v9220 = vpop.f32.mrb[0].mxu0
    %v9221 = vadd.f32 %v9180, %v9220
    %v9222 = vpop.f32.mrb[0].mxu0
    %v9223 = vpop.f32.mrb[0].mxu0
    %9224 = vdwg.mxu0
    %9225 = vmatprep.subr.bf16.mxu0 %v8271
    %9226 = vmatpush1.bf16.msra.mxu0 %v8270
    %9227 = vmatprep.subr.bf16.mxu0 %v8275
    %9228 = vmatpush1.bf16.msra.mxu0 %v8274
    %9229 = vmatprep.subr.bf16.mxu0 %v8279
    %9230 = vmatpush1.bf16.msra.mxu0 %v8278
    %9231 = vmatprep.subr.bf16.mxu0 %v8283
    %9232 = vmatpush1.bf16.msra.mxu0 %v8282
    %9233 = vmatprep.subr.bf16.mxu0 %v8287
    %9234 = vmatpush1.bf16.msra.mxu0 %v8286
    %9235 = vmatprep.subr.bf16.mxu0 %v8291
    %9236 = vmatpush1.bf16.msra.mxu0 %v8290
    %9237 = vmatprep.subr.bf16.mxu0 %v8295
    %9238 = vmatpush1.bf16.msra.mxu0 %v8294
    %9239 = vmatprep.subr.bf16.mxu0 %v8299
    %9240 = vmatpush1.bf16.msra.mxu0 %v8298
    %9241 = vmatprep.subr.bf16.mxu0 %v8303
    %9242 = vmatpush1.bf16.msra.mxu0 %v8302
    %9243 = vmatprep.subr.bf16.mxu0 %v8307
    %9244 = vmatpush1.bf16.msra.mxu0 %v8306
    %9245 = vmatprep.subr.bf16.mxu0 %v8311
    %9246 = vmatpush1.bf16.msra.mxu0 %v8310
    %9247 = vmatprep.subr.bf16.mxu0 %v8315
    %9248 = vmatpush1.bf16.msra.mxu0 %v8314
    %9249 = vmatprep.subr.bf16.mxu0 %v8319
    %9250 = vmatpush1.bf16.msra.mxu0 %v8318
    %9251 = vmatprep.subr.bf16.mxu0 %v8323
    %9252 = vmatpush1.bf16.msra.mxu0 %v8322
    %9253 = vmatprep.subr.bf16.mxu0 %v8327
    %9254 = vmatpush1.bf16.msra.mxu0 %v8326
    %9255 = vmatprep.subr.bf16.mxu0 %v8331
    %9256 = vmatpush1.bf16.msra.mxu0 %v8330
    %9257 = vmatprep.mubr.bf16.mxu0 %v5999
    %9258 = vmatmul.mubr.bf16.gmra.mrb[0].mxu0 %v5998
    %v9259 = vpop.f32.mrb[0].mxu0
    %v9260 = vadd.f32 %v9219, %v9259
    %v9261 = vpop.f32.mrb[0].mxu0
    %v9262 = vadd.f32 %v9221, %v9261
    %v9263 = vpop.f32.mrb[0].mxu0
    %v9264 = vpop.f32.mrb[0].mxu0
    %9265 = vdwg.mxu0
    %9266 = vmatprep.subr.bf16.mxu0 %v8335
    %9267 = vmatpush1.bf16.msra.mxu0 %v8334
    %9268 = vmatprep.subr.bf16.mxu0 %v8339
    %9269 = vmatpush1.bf16.msra.mxu0 %v8338
    %9270 = vmatprep.subr.bf16.mxu0 %v8343
    %9271 = vmatpush1.bf16.msra.mxu0 %v8342
    %9272 = vmatprep.subr.bf16.mxu0 %v8347
    %9273 = vmatpush1.bf16.msra.mxu0 %v8346
    %9274 = vmatprep.subr.bf16.mxu0 %v8351
    %9275 = vmatpush1.bf16.msra.mxu0 %v8350
    %9276 = vmatprep.subr.bf16.mxu0 %v8355
    %9277 = vmatpush1.bf16.msra.mxu0 %v8354
    %9278 = vmatprep.subr.bf16.mxu0 %v8359
    %9279 = vmatpush1.bf16.msra.mxu0 %v8358
    %9280 = vmatprep.subr.bf16.mxu0 %v8363
    %9281 = vmatpush1.bf16.msra.mxu0 %v8362
    %9282 = vmatprep.subr.bf16.mxu0 %v8367
    %9283 = vmatpush1.bf16.msra.mxu0 %v8366
    %9284 = vmatprep.subr.bf16.mxu0 %v8371
    %9285 = vmatpush1.bf16.msra.mxu0 %v8370
    %9286 = vmatprep.subr.bf16.mxu0 %v8375
    %9287 = vmatpush1.bf16.msra.mxu0 %v8374
    %9288 = vmatprep.subr.bf16.mxu0 %v8379
    %9289 = vmatpush1.bf16.msra.mxu0 %v8378
    %9290 = vmatprep.subr.bf16.mxu0 %v8383
    %9291 = vmatpush1.bf16.msra.mxu0 %v8382
    %9292 = vmatprep.subr.bf16.mxu0 %v8387
    %9293 = vmatpush1.bf16.msra.mxu0 %v8386
    %9294 = vmatprep.subr.bf16.mxu0 %v8391
    %9295 = vmatpush1.bf16.msra.mxu0 %v8390
    %9296 = vmatprep.subr.bf16.mxu0 %v8395
    %9297 = vmatpush1.bf16.msra.mxu0 %v8394
    %9298 = vmatprep.mubr.bf16.mxu0 %v6001
    %9299 = vmatmul.mubr.bf16.gmra.mrb[0].mxu0 %v6000
    %v9300 = vpop.f32.mrb[0].mxu0
    %v9301 = vadd.f32 %v9260, %v9300
    %v9302 = vpop.f32.mrb[0].mxu0
    %v9303 = vadd.f32 %v9262, %v9302
    %v9304 = vpop.f32.mrb[0].mxu0
    %v9305 = vpop.f32.mrb[0].mxu0
    %9306 = vdwg.mxu0
    %9307 = vmatprep.subr.bf16.mxu0 %v8399
    %9308 = vmatpush1.bf16.msra.mxu0 %v8398
    %9309 = vmatprep.subr.bf16.mxu0 %v8403
    %9310 = vmatpush1.bf16.msra.mxu0 %v8402
    %9311 = vmatprep.subr.bf16.mxu0 %v8407
    %9312 = vmatpush1.bf16.msra.mxu0 %v8406
    %9313 = vmatprep.subr.bf16.mxu0 %v8411
    %9314 = vmatpush1.bf16.msra.mxu0 %v8410
    %9315 = vmatprep.subr.bf16.mxu0 %v8415
    %9316 = vmatpush1.bf16.msra.mxu0 %v8414
    %9317 = vmatprep.subr.bf16.mxu0 %v8419
    %9318 = vmatpush1.bf16.msra.mxu0 %v8418
    %9319 = vmatprep.subr.bf16.mxu0 %v8423
    %9320 = vmatpush1.bf16.msra.mxu0 %v8422
    %9321 = vmatprep.subr.bf16.mxu0 %v8427
    %9322 = vmatpush1.bf16.msra.mxu0 %v8426
    %9323 = vmatprep.subr.bf16.mxu0 %v8431
    %9324 = vmatpush1.bf16.msra.mxu0 %v8430
    %9325 = vmatprep.subr.bf16.mxu0 %v8435
    %9326 = vmatpush1.bf16.msra.mxu0 %v8434
    %9327 = vmatprep.subr.bf16.mxu0 %v8439
    %9328 = vmatpush1.bf16.msra.mxu0 %v8438
    %9329 = vmatprep.subr.bf16.mxu0 %v8443
    %9330 = vmatpush1.bf16.msra.mxu0 %v8442
    %9331 = vmatprep.subr.bf16.mxu0 %v8447
    %9332 = vmatpush1.bf16.msra.mxu0 %v8446
    %9333 = vmatprep.subr.bf16.mxu0 %v8451
    %9334 = vmatpush1.bf16.msra.mxu0 %v8450
    %9335 = vmatprep.subr.bf16.mxu0 %v8455
    %9336 = vmatpush1.bf16.msra.mxu0 %v8454
    %9337 = vmatprep.subr.bf16.mxu0 %v8459
    %9338 = vmatpush1.bf16.msra.mxu0 %v8458
    %9339 = vmatprep.mubr.bf16.mxu0 %v6003
    %9340 = vmatmul.mubr.bf16.gmra.mrb[0].mxu0 %v6002
    %v9341 = vpop.f32.mrb[0].mxu0
    %v9342 = vadd.f32 %v9301, %v9341
    %v9343 = vpop.f32.mrb[0].mxu0
    %v9344 = vadd.f32 %v9303, %v9343
    %v9345 = vpop.f32.mrb[0].mxu0
    %v9346 = vpop.f32.mrb[0].mxu0
    %9347 = vdwg.mxu0
    %9348 = vmatprep.subr.bf16.mxu0 %v8463
    %9349 = vmatpush1.bf16.msra.mxu0 %v8462
    %9350 = vmatprep.subr.bf16.mxu0 %v8467
    %9351 = vmatpush1.bf16.msra.mxu0 %v8466
    %9352 = vmatprep.subr.bf16.mxu0 %v8471
    %9353 = vmatpush1.bf16.msra.mxu0 %v8470
    %9354 = vmatprep.subr.bf16.mxu0 %v8475
    %9355 = vmatpush1.bf16.msra.mxu0 %v8474
    %9356 = vmatprep.subr.bf16.mxu0 %v8479
    %9357 = vmatpush1.bf16.msra.mxu0 %v8478
    %9358 = vmatprep.subr.bf16.mxu0 %v8483
    %9359 = vmatpush1.bf16.msra.mxu0 %v8482
    %9360 = vmatprep.subr.bf16.mxu0 %v8487
    %9361 = vmatpush1.bf16.msra.mxu0 %v8486
    %9362 = vmatprep.subr.bf16.mxu0 %v8491
    %9363 = vmatpush1.bf16.msra.mxu0 %v8490
    %9364 = vmatprep.subr.bf16.mxu0 %v8495
    %9365 = vmatpush1.bf16.msra.mxu0 %v8494
    %9366 = vmatprep.subr.bf16.mxu0 %v8499
    %9367 = vmatpush1.bf16.msra.mxu0 %v8498
    %9368 = vmatprep.subr.bf16.mxu0 %v8503
    %9369 = vmatpush1.bf16.msra.mxu0 %v8502
    %9370 = vmatprep.subr.bf16.mxu0 %v8507
    %9371 = vmatpush1.bf16.msra.mxu0 %v8506
    %9372 = vmatprep.subr.bf16.mxu0 %v8511
    %9373 = vmatpush1.bf16.msra.mxu0 %v8510
    %9374 = vmatprep.subr.bf16.mxu0 %v8515
    %9375 = vmatpush1.bf16.msra.mxu0 %v8514
    %9376 = vmatprep.subr.bf16.mxu0 %v8519
    %9377 = vmatpush1.bf16.msra.mxu0 %v8518
    %9378 = vmatprep.subr.bf16.mxu0 %v8523
    %9379 = vmatpush1.bf16.msra.mxu0 %v8522
    %9380 = vmatprep.mubr.bf16.mxu0 %v6005
    %9381 = vmatmul.mubr.bf16.gmra.mrb[0].mxu0 %v6004
    %v9382 = vpop.f32.mrb[0].mxu0
    %v9383 = vadd.f32 %v9342, %v9382
    %v9384 = vpop.f32.mrb[0].mxu0
    %v9385 = vadd.f32 %v9344, %v9384
    %v9386 = vpop.f32.mrb[0].mxu0
    %v9387 = vpop.f32.mrb[0].mxu0
    %9388 = vdwg.mxu0
    %9389 = vmatprep.subr.bf16.mxu0 %v8527
    %9390 = vmatpush1.bf16.msra.mxu0 %v8526
    %9391 = vmatprep.subr.bf16.mxu0 %v8531
    %9392 = vmatpush1.bf16.msra.mxu0 %v8530
    %9393 = vmatprep.subr.bf16.mxu0 %v8535
    %9394 = vmatpush1.bf16.msra.mxu0 %v8534
    %9395 = vmatprep.subr.bf16.mxu0 %v8539
    %9396 = vmatpush1.bf16.msra.mxu0 %v8538
    %9397 = vmatprep.subr.bf16.mxu0 %v8543
    %9398 = vmatpush1.bf16.msra.mxu0 %v8542
    %9399 = vmatprep.subr.bf16.mxu0 %v8547
    %9400 = vmatpush1.bf16.msra.mxu0 %v8546
    %9401 = vmatprep.subr.bf16.mxu0 %v8551
    %9402 = vmatpush1.bf16.msra.mxu0 %v8550
    %9403 = vmatprep.subr.bf16.mxu0 %v8555
    %9404 = vmatpush1.bf16.msra.mxu0 %v8554
    %9405 = vmatprep.subr.bf16.mxu0 %v8559
    %9406 = vmatpush1.bf16.msra.mxu0 %v8558
    %9407 = vmatprep.subr.bf16.mxu0 %v8563
    %9408 = vmatpush1.bf16.msra.mxu0 %v8562
    %9409 = vmatprep.subr.bf16.mxu0 %v8567
    %9410 = vmatpush1.bf16.msra.mxu0 %v8566
    %9411 = vmatprep.subr.bf16.mxu0 %v8571
    %9412 = vmatpush1.bf16.msra.mxu0 %v8570
    %9413 = vmatprep.subr.bf16.mxu0 %v8575
    %9414 = vmatpush1.bf16.msra.mxu0 %v8574
    %9415 = vmatprep.subr.bf16.mxu0 %v8579
    %9416 = vmatpush1.bf16.msra.mxu0 %v8578
    %9417 = vmatprep.subr.bf16.mxu0 %v8583
    %9418 = vmatpush1.bf16.msra.mxu0 %v8582
    %9419 = vmatprep.subr.bf16.mxu0 %v8587
    %9420 = vmatpush1.bf16.msra.mxu0 %v8586
    %9421 = vmatprep.mubr.bf16.mxu0 %v6007
    %9422 = vmatmul.mubr.bf16.gmra.mrb[0].mxu0 %v6006
    %v9423 = vpop.f32.mrb[0].mxu0
    %v9424 = vadd.f32 %v9383, %v9423
    %v9425 = vpop.f32.mrb[0].mxu0
    %v9426 = vadd.f32 %v9385, %v9425
    %v9427 = vpop.f32.mrb[0].mxu0
    %v9428 = vpop.f32.mrb[0].mxu0
    %9429 = vdwg.mxu0
    %9430 = vmatprep.subr.bf16.mxu0 %v8081
    %9431 = vmatpush1.bf16.msra.mxu0 %v8080
    %9432 = vmatprep.subr.bf16.mxu0 %v8085
    %9433 = vmatpush1.bf16.msra.mxu0 %v8084
    %9434 = vmatprep.subr.bf16.mxu0 %v8089
    %9435 = vmatpush1.bf16.msra.mxu0 %v8088
    %9436 = vmatprep.subr.bf16.mxu0 %v8093
    %9437 = vmatpush1.bf16.msra.mxu0 %v8092
    %9438 = vmatprep.subr.bf16.mxu0 %v8097
    %9439 = vmatpush1.bf16.msra.mxu0 %v8096
    %9440 = vmatprep.subr.bf16.mxu0 %v8101
    %9441 = vmatpush1.bf16.msra.mxu0 %v8100
    %9442 = vmatprep.subr.bf16.mxu0 %v8105
    %9443 = vmatpush1.bf16.msra.mxu0 %v8104
    %9444 = vmatprep.subr.bf16.mxu0 %v8109
    %9445 = vmatpush1.bf16.msra.mxu0 %v8108
    %9446 = vmatprep.subr.bf16.mxu0 %v8113
    %9447 = vmatpush1.bf16.msra.mxu0 %v8112
    %9448 = vmatprep.subr.bf16.mxu0 %v8117
    %9449 = vmatpush1.bf16.msra.mxu0 %v8116
    %9450 = vmatprep.subr.bf16.mxu0 %v8121
    %9451 = vmatpush1.bf16.msra.mxu0 %v8120
    %9452 = vmatprep.subr.bf16.mxu0 %v8125
    %9453 = vmatpush1.bf16.msra.mxu0 %v8124
    %9454 = vmatprep.subr.bf16.mxu0 %v8129
    %9455 = vmatpush1.bf16.msra.mxu0 %v8128
    %9456 = vmatprep.subr.bf16.mxu0 %v8133
    %9457 = vmatpush1.bf16.msra.mxu0 %v8132
    %9458 = vmatprep.subr.bf16.mxu0 %v8137
    %9459 = vmatpush1.bf16.msra.mxu0 %v8136
    %9460 = vmatprep.subr.bf16.mxu0 %v8141
    %9461 = vmatpush1.bf16.msra.mxu0 %v8140
    %9462 = vmatprep.mubr.bf16.mxu0 %v5993
    %9463 = vmatmul.mubr.bf16.gmra.mrb[0].mxu0 %v5992
    %v9464 = vpop.f32.mrb[0].mxu0
    %v9465 = vadd.f32 %v6533, %v9464
    %v9466 = vpop.f32.mrb[0].mxu0
    %v9467 = vadd.f32 %v6537, %v9466
    %v9468 = vpop.f32.mrb[0].mxu0
    %v9469 = vpop.f32.mrb[0].mxu0
    %9470 = vdwg.mxu0
    %9471 = vmatprep.subr.bf16.mxu0 %v8145
    %9472 = vmatpush1.bf16.msra.mxu0 %v8144
    %9473 = vmatprep.subr.bf16.mxu0 %v8149
    %9474 = vmatpush1.bf16.msra.mxu0 %v8148
    %9475 = vmatprep.subr.bf16.mxu0 %v8153
    %9476 = vmatpush1.bf16.msra.mxu0 %v8152
    %9477 = vmatprep.subr.bf16.mxu0 %v8157
    %9478 = vmatpush1.bf16.msra.mxu0 %v8156
    %9479 = vmatprep.subr.bf16.mxu0 %v8161
    %9480 = vmatpush1.bf16.msra.mxu0 %v8160
    %9481 = vmatprep.subr.bf16.mxu0 %v8165
    %9482 = vmatpush1.bf16.msra.mxu0 %v8164
    %9483 = vmatprep.subr.bf16.mxu0 %v8169
    %9484 = vmatpush1.bf16.msra.mxu0 %v8168
    %9485 = vmatprep.subr.bf16.mxu0 %v8173
    %9486 = vmatpush1.bf16.msra.mxu0 %v8172
    %9487 = vmatprep.subr.bf16.mxu0 %v8177
    %9488 = vmatpush1.bf16.msra.mxu0 %v8176
    %9489 = vmatprep.subr.bf16.mxu0 %v8181
    %9490 = vmatpush1.bf16.msra.mxu0 %v8180
    %9491 = vmatprep.subr.bf16.mxu0 %v8185
    %9492 = vmatpush1.bf16.msra.mxu0 %v8184
    %9493 = vmatprep.subr.bf16.mxu0 %v8189
    %9494 = vmatpush1.bf16.msra.mxu0 %v8188
    %9495 = vmatprep.subr.bf16.mxu0 %v8193
    %9496 = vmatpush1.bf16.msra.mxu0 %v8192
    %9497 = vmatprep.subr.bf16.mxu0 %v8197
    %9498 = vmatpush1.bf16.msra.mxu0 %v8196
    %9499 = vmatprep.subr.bf16.mxu0 %v8201
    %9500 = vmatpush1.bf16.msra.mxu0 %v8200
    %9501 = vmatprep.subr.bf16.mxu0 %v8205
    %9502 = vmatpush1.bf16.msra.mxu0 %v8204
    %9503 = vmatprep.mubr.bf16.mxu0 %v5995
    %9504 = vmatmul.mubr.bf16.gmra.mrb[0].mxu0 %v5994
    %v9505 = vpop.f32.mrb[0].mxu0
    %v9506 = vadd.f32 %v9465, %v9505
    %v9507 = vpop.f32.mrb[0].mxu0
    %v9508 = vadd.f32 %v9467, %v9507
    %v9509 = vpop.f32.mrb[0].mxu0
    %v9510 = vpop.f32.mrb[0].mxu0
    %9511 = vdwg.mxu0
    %9512 = vmatprep.subr.bf16.mxu0 %v8209
    %9513 = vmatpush1.bf16.msra.mxu0 %v8208
    %9514 = vmatprep.subr.bf16.mxu0 %v8213
    %9515 = vmatpush1.bf16.msra.mxu0 %v8212
    %9516 = vmatprep.subr.bf16.mxu0 %v8217
    %9517 = vmatpush1.bf16.msra.mxu0 %v8216
    %9518 = vmatprep.subr.bf16.mxu0 %v8221
    %9519 = vmatpush1.bf16.msra.mxu0 %v8220
    %9520 = vmatprep.subr.bf16.mxu0 %v8225
    %9521 = vmatpush1.bf16.msra.mxu0 %v8224
    %9522 = vmatprep.subr.bf16.mxu0 %v8229
    %9523 = vmatpush1.bf16.msra.mxu0 %v8228
    %9524 = vmatprep.subr.bf16.mxu0 %v8233
    %9525 = vmatpush1.bf16.msra.mxu0 %v8232
    %9526 = vmatprep.subr.bf16.mxu0 %v8237
    %9527 = vmatpush1.bf16.msra.mxu0 %v8236
    %9528 = vmatprep.subr.bf16.mxu0 %v8241
    %9529 = vmatpush1.bf16.msra.mxu0 %v8240
    %9530 = vmatprep.subr.bf16.mxu0 %v8245
    %9531 = vmatpush1.bf16.msra.mxu0 %v8244
    %9532 = vmatprep.subr.bf16.mxu0 %v8249
    %9533 = vmatpush1.bf16.msra.mxu0 %v8248
    %9534 = vmatprep.subr.bf16.mxu0 %v8253
    %9535 = vmatpush1.bf16.msra.mxu0 %v8252
    %9536 = vmatprep.subr.bf16.mxu0 %v8257
    %9537 = vmatpush1.bf16.msra.mxu0 %v8256
    %9538 = vmatprep.subr.bf16.mxu0 %v8261
    %9539 = vmatpush1.bf16.msra.mxu0 %v8260
    %9540 = vmatprep.subr.bf16.mxu0 %v8265
    %9541 = vmatpush1.bf16.msra.mxu0 %v8264
    %9542 = vmatprep.subr.bf16.mxu0 %v8269
    %9543 = vmatpush1.bf16.msra.mxu0 %v8268
    %9544 = vmatprep.mubr.bf16.mxu0 %v5997
    %9545 = vmatmul.mubr.bf16.gmra.mrb[0].mxu0 %v5996
    %v9546 = vpop.f32.mrb[0].mxu0
    %v9547 = vadd.f32 %v9506, %v9546
    %v9548 = vpop.f32.mrb[0].mxu0
    %v9549 = vadd.f32 %v9508, %v9548
    %v9550 = vpop.f32.mrb[0].mxu0
    %v9551 = vpop.f32.mrb[0].mxu0
    %9552 = vdwg.mxu0
    %9553 = vmatprep.subr.bf16.mxu0 %v8273
    %9554 = vmatpush1.bf16.msra.mxu0 %v8272
    %9555 = vmatprep.subr.bf16.mxu0 %v8277
    %9556 = vmatpush1.bf16.msra.mxu0 %v8276
    %9557 = vmatprep.subr.bf16.mxu0 %v8281
    %9558 = vmatpush1.bf16.msra.mxu0 %v8280
    %9559 = vmatprep.subr.bf16.mxu0 %v8285
    %9560 = vmatpush1.bf16.msra.mxu0 %v8284
    %9561 = vmatprep.subr.bf16.mxu0 %v8289
    %9562 = vmatpush1.bf16.msra.mxu0 %v8288
    %9563 = vmatprep.subr.bf16.mxu0 %v8293
    %9564 = vmatpush1.bf16.msra.mxu0 %v8292
    %9565 = vmatprep.subr.bf16.mxu0 %v8297
    %9566 = vmatpush1.bf16.msra.mxu0 %v8296
    %9567 = vmatprep.subr.bf16.mxu0 %v8301
    %9568 = vmatpush1.bf16.msra.mxu0 %v8300
    %9569 = vmatprep.subr.bf16.mxu0 %v8305
    %9570 = vmatpush1.bf16.msra.mxu0 %v8304
    %9571 = vmatprep.subr.bf16.mxu0 %v8309
    %9572 = vmatpush1.bf16.msra.mxu0 %v8308
    %9573 = vmatprep.subr.bf16.mxu0 %v8313
    %9574 = vmatpush1.bf16.msra.mxu0 %v8312
    %9575 = vmatprep.subr.bf16.mxu0 %v8317
    %9576 = vmatpush1.bf16.msra.mxu0 %v8316
    %9577 = vmatprep.subr.bf16.mxu0 %v8321
    %9578 = vmatpush1.bf16.msra.mxu0 %v8320
    %9579 = vmatprep.subr.bf16.mxu0 %v8325
    %9580 = vmatpush1.bf16.msra.mxu0 %v8324
    %9581 = vmatprep.subr.bf16.mxu0 %v8329
    %9582 = vmatpush1.bf16.msra.mxu0 %v8328
    %9583 = vmatprep.subr.bf16.mxu0 %v8333
    %9584 = vmatpush1.bf16.msra.mxu0 %v8332
    %9585 = vmatprep.mubr.bf16.mxu0 %v5999
    %9586 = vmatmul.mubr.bf16.gmra.mrb[0].mxu0 %v5998
    %v9587 = vpop.f32.mrb[0].mxu0
    %v9588 = vadd.f32 %v9547, %v9587
    %v9589 = vpop.f32.mrb[0].mxu0
    %v9590 = vadd.f32 %v9549, %v9589
    %v9591 = vpop.f32.mrb[0].mxu0
    %v9592 = vpop.f32.mrb[0].mxu0
    %9593 = vdwg.mxu0
    %9594 = vmatprep.subr.bf16.mxu0 %v8337
    %9595 = vmatpush1.bf16.msra.mxu0 %v8336
    %9596 = vmatprep.subr.bf16.mxu0 %v8341
    %9597 = vmatpush1.bf16.msra.mxu0 %v8340
    %9598 = vmatprep.subr.bf16.mxu0 %v8345
    %9599 = vmatpush1.bf16.msra.mxu0 %v8344
    %9600 = vmatprep.subr.bf16.mxu0 %v8349
    %9601 = vmatpush1.bf16.msra.mxu0 %v8348
    %9602 = vmatprep.subr.bf16.mxu0 %v8353
    %9603 = vmatpush1.bf16.msra.mxu0 %v8352
    %9604 = vmatprep.subr.bf16.mxu0 %v8357
    %9605 = vmatpush1.bf16.msra.mxu0 %v8356
    %9606 = vmatprep.subr.bf16.mxu0 %v8361
    %9607 = vmatpush1.bf16.msra.mxu0 %v8360
    %9608 = vmatprep.subr.bf16.mxu0 %v8365
    %9609 = vmatpush1.bf16.msra.mxu0 %v8364
    %9610 = vmatprep.subr.bf16.mxu0 %v8369
    %9611 = vmatpush1.bf16.msra.mxu0 %v8368
    %9612 = vmatprep.subr.bf16.mxu0 %v8373
    %9613 = vmatpush1.bf16.msra.mxu0 %v8372
    %9614 = vmatprep.subr.bf16.mxu0 %v8377
    %9615 = vmatpush1.bf16.msra.mxu0 %v8376
    %9616 = vmatprep.subr.bf16.mxu0 %v8381
    %9617 = vmatpush1.bf16.msra.mxu0 %v8380
    %9618 = vmatprep.subr.bf16.mxu0 %v8385
    %9619 = vmatpush1.bf16.msra.mxu0 %v8384
    %9620 = vmatprep.subr.bf16.mxu0 %v8389
    %9621 = vmatpush1.bf16.msra.mxu0 %v8388
    %9622 = vmatprep.subr.bf16.mxu0 %v8393
    %9623 = vmatpush1.bf16.msra.mxu0 %v8392
    %9624 = vmatprep.subr.bf16.mxu0 %v8397
    %9625 = vmatpush1.bf16.msra.mxu0 %v8396
    %9626 = vmatprep.mubr.bf16.mxu0 %v6001
    %9627 = vmatmul.mubr.bf16.gmra.mrb[0].mxu0 %v6000
    %v9628 = vpop.f32.mrb[0].mxu0
    %v9629 = vadd.f32 %v9588, %v9628
    %v9630 = vpop.f32.mrb[0].mxu0
    %v9631 = vadd.f32 %v9590, %v9630
    %v9632 = vpop.f32.mrb[0].mxu0
    %v9633 = vpop.f32.mrb[0].mxu0
    %9634 = vdwg.mxu0
    %9635 = vmatprep.subr.bf16.mxu0 %v8401
    %9636 = vmatpush1.bf16.msra.mxu0 %v8400
    %9637 = vmatprep.subr.bf16.mxu0 %v8405
    %9638 = vmatpush1.bf16.msra.mxu0 %v8404
    %9639 = vmatprep.subr.bf16.mxu0 %v8409
    %9640 = vmatpush1.bf16.msra.mxu0 %v8408
    %9641 = vmatprep.subr.bf16.mxu0 %v8413
    %9642 = vmatpush1.bf16.msra.mxu0 %v8412
    %9643 = vmatprep.subr.bf16.mxu0 %v8417
    %9644 = vmatpush1.bf16.msra.mxu0 %v8416
    %9645 = vmatprep.subr.bf16.mxu0 %v8421
    %9646 = vmatpush1.bf16.msra.mxu0 %v8420
    %9647 = vmatprep.subr.bf16.mxu0 %v8425
    %9648 = vmatpush1.bf16.msra.mxu0 %v8424
    %9649 = vmatprep.subr.bf16.mxu0 %v8429
    %9650 = vmatpush1.bf16.msra.mxu0 %v8428
    %9651 = vmatprep.subr.bf16.mxu0 %v8433
    %9652 = vmatpush1.bf16.msra.mxu0 %v8432
    %9653 = vmatprep.subr.bf16.mxu0 %v8437
    %9654 = vmatpush1.bf16.msra.mxu0 %v8436
    %9655 = vmatprep.subr.bf16.mxu0 %v8441
    %9656 = vmatpush1.bf16.msra.mxu0 %v8440
    %9657 = vmatprep.subr.bf16.mxu0 %v8445
    %9658 = vmatpush1.bf16.msra.mxu0 %v8444
    %9659 = vmatprep.subr.bf16.mxu0 %v8449
    %9660 = vmatpush1.bf16.msra.mxu0 %v8448
    %9661 = vmatprep.subr.bf16.mxu0 %v8453
    %9662 = vmatpush1.bf16.msra.mxu0 %v8452
    %9663 = vmatprep.subr.bf16.mxu0 %v8457
    %9664 = vmatpush1.bf16.msra.mxu0 %v8456
    %9665 = vmatprep.subr.bf16.mxu0 %v8461
    %9666 = vmatpush1.bf16.msra.mxu0 %v8460
    %9667 = vmatprep.mubr.bf16.mxu0 %v6003
    %9668 = vmatmul.mubr.bf16.gmra.mrb[0].mxu0 %v6002
    %v9669 = vpop.f32.mrb[0].mxu0
    %v9670 = vadd.f32 %v9629, %v9669
    %v9671 = vpop.f32.mrb[0].mxu0
    %v9672 = vadd.f32 %v9631, %v9671
    %v9673 = vpop.f32.mrb[0].mxu0
    %v9674 = vpop.f32.mrb[0].mxu0
    %9675 = vdwg.mxu0
    %9676 = vmatprep.subr.bf16.mxu0 %v8465
    %9677 = vmatpush1.bf16.msra.mxu0 %v8464
    %9678 = vmatprep.subr.bf16.mxu0 %v8469
    %9679 = vmatpush1.bf16.msra.mxu0 %v8468
    %9680 = vmatprep.subr.bf16.mxu0 %v8473
    %9681 = vmatpush1.bf16.msra.mxu0 %v8472
    %9682 = vmatprep.subr.bf16.mxu0 %v8477
    %9683 = vmatpush1.bf16.msra.mxu0 %v8476
    %9684 = vmatprep.subr.bf16.mxu0 %v8481
    %9685 = vmatpush1.bf16.msra.mxu0 %v8480
    %9686 = vmatprep.subr.bf16.mxu0 %v8485
    %9687 = vmatpush1.bf16.msra.mxu0 %v8484
    %9688 = vmatprep.subr.bf16.mxu0 %v8489
    %9689 = vmatpush1.bf16.msra.mxu0 %v8488
    %9690 = vmatprep.subr.bf16.mxu0 %v8493
    %9691 = vmatpush1.bf16.msra.mxu0 %v8492
    %9692 = vmatprep.subr.bf16.mxu0 %v8497
    %9693 = vmatpush1.bf16.msra.mxu0 %v8496
    %9694 = vmatprep.subr.bf16.mxu0 %v8501
    %9695 = vmatpush1.bf16.msra.mxu0 %v8500
    %9696 = vmatprep.subr.bf16.mxu0 %v8505
    %9697 = vmatpush1.bf16.msra.mxu0 %v8504
    %9698 = vmatprep.subr.bf16.mxu0 %v8509
    %9699 = vmatpush1.bf16.msra.mxu0 %v8508
    %9700 = vmatprep.subr.bf16.mxu0 %v8513
    %9701 = vmatpush1.bf16.msra.mxu0 %v8512
    %9702 = vmatprep.subr.bf16.mxu0 %v8517
    %9703 = vmatpush1.bf16.msra.mxu0 %v8516
    %9704 = vmatprep.subr.bf16.mxu0 %v8521
    %9705 = vmatpush1.bf16.msra.mxu0 %v8520
    %9706 = vmatprep.subr.bf16.mxu0 %v8525
    %9707 = vmatpush1.bf16.msra.mxu0 %v8524
    %9708 = vmatprep.mubr.bf16.mxu0 %v6005
    %9709 = vmatmul.mubr.bf16.gmra.mrb[0].mxu0 %v6004
    %v9710 = vpop.f32.mrb[0].mxu0
    %v9711 = vadd.f32 %v9670, %v9710
    %v9712 = vpop.f32.mrb[0].mxu0
    %v9713 = vadd.f32 %v9672, %v9712
    %v9714 = vpop.f32.mrb[0].mxu0
    %v9715 = vpop.f32.mrb[0].mxu0
    %9716 = vdwg.mxu0
    %9717 = vmatprep.subr.bf16.mxu0 %v8529
    %9718 = vmatpush1.bf16.msra.mxu0 %v8528
    %9719 = vmatprep.subr.bf16.mxu0 %v8533
    %9720 = vmatpush1.bf16.msra.mxu0 %v8532
    %9721 = vmatprep.subr.bf16.mxu0 %v8537
    %9722 = vmatpush1.bf16.msra.mxu0 %v8536
    %9723 = vmatprep.subr.bf16.mxu0 %v8541
    %9724 = vmatpush1.bf16.msra.mxu0 %v8540
    %9725 = vmatprep.subr.bf16.mxu0 %v8545
    %9726 = vmatpush1.bf16.msra.mxu0 %v8544
    %9727 = vmatprep.subr.bf16.mxu0 %v8549
    %9728 = vmatpush1.bf16.msra.mxu0 %v8548
    %9729 = vmatprep.subr.bf16.mxu0 %v8553
    %9730 = vmatpush1.bf16.msra.mxu0 %v8552
    %9731 = vmatprep.subr.bf16.mxu0 %v8557
    %9732 = vmatpush1.bf16.msra.mxu0 %v8556
    %9733 = vmatprep.subr.bf16.mxu0 %v8561
    %9734 = vmatpush1.bf16.msra.mxu0 %v8560
    %9735 = vmatprep.subr.bf16.mxu0 %v8565
    %9736 = vmatpush1.bf16.msra.mxu0 %v8564
    %9737 = vmatprep.subr.bf16.mxu0 %v8569
    %9738 = vmatpush1.bf16.msra.mxu0 %v8568
    %9739 = vmatprep.subr.bf16.mxu0 %v8573
    %9740 = vmatpush1.bf16.msra.mxu0 %v8572
    %9741 = vmatprep.subr.bf16.mxu0 %v8577
    %9742 = vmatpush1.bf16.msra.mxu0 %v8576
    %9743 = vmatprep.subr.bf16.mxu0 %v8581
    %9744 = vmatpush1.bf16.msra.mxu0 %v8580
    %9745 = vmatprep.subr.bf16.mxu0 %v8585
    %9746 = vmatpush1.bf16.msra.mxu0 %v8584
    %9747 = vmatprep.subr.bf16.mxu0 %v8589
    %9748 = vmatpush1.bf16.msra.mxu0 %v8588
    %9749 = vmatprep.mubr.bf16.mxu0 %v6007
    %9750 = vmatmul.mubr.bf16.gmra.mrb[0].mxu0 %v6006
    %v9751 = vpop.f32.mrb[0].mxu0
    %v9752 = vadd.f32 %v9711, %v9751
    %v9753 = vpop.f32.mrb[0].mxu0
    %v9754 = vadd.f32 %v9713, %v9753
    %v9755 = vpop.f32.mrb[0].mxu0
    %v9756 = vpop.f32.mrb[0].mxu0
    %9757 = vdwg.mxu0
    %v9758 = vmax.f32 %v9424, 0.0
    %v9759 = vmax.f32 %v9426, 0.0
    %v9760 = vmax.f32 %v9752, 0.0
    %v9761 = vmax.f32 %v9754, 0.0
    %v9762 = vpack.c.bf16 %v9758, %v9758
    %v9763 = vpack.c.bf16 %v9759, %v9759
    %v9764 = vpack.c.bf16 %v9760, %v9760
    %v9765 = vpack.c.bf16 %v9761, %v9761
    %v9766 = vld [vmem:[%s7] sm:$0xf]
    %v9767 = vld [vmem:[%s7 + $0x4] sm:$0xf]
    %v9768 = vld [vmem:[%s7 + $0x8] sm:$0xf]
    %v9769 = vld [vmem:[%s7 + $0xc] sm:$0xf]
    %v9770 = vld [vmem:[%s7 + $0x10] sm:$0xf]
    %v9771 = vld [vmem:[%s7 + $0x14] sm:$0xf]
    %v9772 = vld [vmem:[%s7 + $0x18] sm:$0xf]
    %v9773 = vld [vmem:[%s7 + $0x1c] sm:$0xf]
    %v9774 = vld [vmem:[%s7 + $0x20] sm:$0xf]
    %v9775 = vld [vmem:[%s7 + $0x24] sm:$0xf]
    %v9776 = vld [vmem:[%s7 + $0x28] sm:$0xf]
    %v9777 = vld [vmem:[%s7 + $0x2c] sm:$0xf]
    %v9778 = vld [vmem:[%s7 + $0x30] sm:$0xf]
    %v9779 = vld [vmem:[%s7 + $0x34] sm:$0xf]
    %v9780 = vld [vmem:[%s7 + $0x38] sm:$0xf]
    %v9781 = vld [vmem:[%s7 + $0x3c] sm:$0xf]
    %v9782 = vld [vmem:[%s7 + $0x40] sm:$0xf]
    %v9783 = vld [vmem:[%s7 + $0x44] sm:$0xf]
    %v9784 = vld [vmem:[%s7 + $0x48] sm:$0xf]
    %v9785 = vld [vmem:[%s7 + $0x4c] sm:$0xf]
    %v9786 = vld [vmem:[%s7 + $0x50] sm:$0xf]
    %v9787 = vld [vmem:[%s7 + $0x54] sm:$0xf]
    %v9788 = vld [vmem:[%s7 + $0x58] sm:$0xf]
    %v9789 = vld [vmem:[%s7 + $0x5c] sm:$0xf]
    %v9790 = vld [vmem:[%s7 + $0x60] sm:$0xf]
    %v9791 = vld [vmem:[%s7 + $0x64] sm:$0xf]
    %v9792 = vld [vmem:[%s7 + $0x68] sm:$0xf]
    %v9793 = vld [vmem:[%s7 + $0x6c] sm:$0xf]
    %v9794 = vld [vmem:[%s7 + $0x70] sm:$0xf]
    %v9795 = vld [vmem:[%s7 + $0x74] sm:$0xf]
    %v9796 = vld [vmem:[%s7 + $0x78] sm:$0xf]
    %v9797 = vld [vmem:[%s7 + $0x7c] sm:$0xf]
    %v9798 = vld [vmem:[%s7 + $0x80] sm:$0xf]
    %v9799 = vld [vmem:[%s7 + $0x84] sm:$0xf]
    %v9800 = vld [vmem:[%s7 + $0x88] sm:$0xf]
    %v9801 = vld [vmem:[%s7 + $0x8c] sm:$0xf]
    %v9802 = vld [vmem:[%s7 + $0x90] sm:$0xf]
    %v9803 = vld [vmem:[%s7 + $0x94] sm:$0xf]
    %v9804 = vld [vmem:[%s7 + $0x98] sm:$0xf]
    %v9805 = vld [vmem:[%s7 + $0x9c] sm:$0xf]
    %v9806 = vld [vmem:[%s7 + $0xa0] sm:$0xf]
    %v9807 = vld [vmem:[%s7 + $0xa4] sm:$0xf]
    %v9808 = vld [vmem:[%s7 + $0xa8] sm:$0xf]
    %v9809 = vld [vmem:[%s7 + $0xac] sm:$0xf]
    %v9810 = vld [vmem:[%s7 + $0xb0] sm:$0xf]
    %v9811 = vld [vmem:[%s7 + $0xb4] sm:$0xf]
    %v9812 = vld [vmem:[%s7 + $0xb8] sm:$0xf]
    %v9813 = vld [vmem:[%s7 + $0xbc] sm:$0xf]
    %v9814 = vld [vmem:[%s7 + $0xc0] sm:$0xf]
    %v9815 = vld [vmem:[%s7 + $0xc4] sm:$0xf]
    %v9816 = vld [vmem:[%s7 + $0xc8] sm:$0xf]
    %v9817 = vld [vmem:[%s7 + $0xcc] sm:$0xf]
    %v9818 = vld [vmem:[%s7 + $0xd0] sm:$0xf]
    %v9819 = vld [vmem:[%s7 + $0xd4] sm:$0xf]
    %v9820 = vld [vmem:[%s7 + $0xd8] sm:$0xf]
    %v9821 = vld [vmem:[%s7 + $0xdc] sm:$0xf]
    %v9822 = vld [vmem:[%s7 + $0xe0] sm:$0xf]
    %v9823 = vld [vmem:[%s7 + $0xe4] sm:$0xf]
    %v9824 = vld [vmem:[%s7 + $0xe8] sm:$0xf]
    %v9825 = vld [vmem:[%s7 + $0xec] sm:$0xf]
    %v9826 = vld [vmem:[%s7 + $0xf0] sm:$0xf]
    %v9827 = vld [vmem:[%s7 + $0xf4] sm:$0xf]
    %v9828 = vld [vmem:[%s7 + $0xf8] sm:$0xf]
    %v9829 = vld [vmem:[%s7 + $0xfc] sm:$0xf]
    %v9830 = vld [vmem:[%s8] sm:$0x1]
    %v9832 = vlaneseq
    %v9833 = vshrl.u32 %v9832, 7
    %v9834 = vsub.s32 0, %v9833
    %v9835 = vrot.slane %v9830, %v9834
    %v9901 = vunpack.c.l.b16 %v9766
    %v9902 = vunpack.c.l.b16 %v9767
    %v9903 = vunpack.c.l.b16 %v9768
    %v9904 = vunpack.c.l.b16 %v9769
    %v9905 = vunpack.c.l.b16 %v9770
    %v9906 = vunpack.c.l.b16 %v9771
    %v9907 = vunpack.c.l.b16 %v9772
    %v9908 = vunpack.c.l.b16 %v9773
    %v9909 = vunpack.c.l.b16 %v9774
    %v9910 = vunpack.c.l.b16 %v9775
    %v9911 = vunpack.c.l.b16 %v9776
    %v9912 = vunpack.c.l.b16 %v9777
    %v9913 = vunpack.c.l.b16 %v9778
    %v9914 = vunpack.c.l.b16 %v9779
    %v9915 = vunpack.c.l.b16 %v9780
    %v9916 = vunpack.c.l.b16 %v9781
    %v9917 = vunpack.c.l.b16 %v9782
    %v9918 = vunpack.c.l.b16 %v9783
    %v9919 = vunpack.c.l.b16 %v9784
    %v9920 = vunpack.c.l.b16 %v9785
    %v9921 = vunpack.c.l.b16 %v9786
    %v9922 = vunpack.c.l.b16 %v9787
    %v9923 = vunpack.c.l.b16 %v9788
    %v9924 = vunpack.c.l.b16 %v9789
    %v9925 = vunpack.c.l.b16 %v9790
    %v9926 = vunpack.c.l.b16 %v9791
    %v9927 = vunpack.c.l.b16 %v9792
    %v9928 = vunpack.c.l.b16 %v9793
    %v9929 = vunpack.c.l.b16 %v9794
    %v9930 = vunpack.c.l.b16 %v9795
    %v9931 = vunpack.c.l.b16 %v9796
    %v9932 = vunpack.c.l.b16 %v9797
    %v9933 = vunpack.c.l.b16 %v9798
    %v9934 = vunpack.c.l.b16 %v9799
    %v9935 = vunpack.c.l.b16 %v9800
    %v9936 = vunpack.c.l.b16 %v9801
    %v9937 = vunpack.c.l.b16 %v9802
    %v9938 = vunpack.c.l.b16 %v9803
    %v9939 = vunpack.c.l.b16 %v9804
    %v9940 = vunpack.c.l.b16 %v9805
    %v9941 = vunpack.c.l.b16 %v9806
    %v9942 = vunpack.c.l.b16 %v9807
    %v9943 = vunpack.c.l.b16 %v9808
    %v9944 = vunpack.c.l.b16 %v9809
    %v9945 = vunpack.c.l.b16 %v9810
    %v9946 = vunpack.c.l.b16 %v9811
    %v9947 = vunpack.c.l.b16 %v9812
    %v9948 = vunpack.c.l.b16 %v9813
    %v9949 = vunpack.c.l.b16 %v9814
    %v9950 = vunpack.c.l.b16 %v9815
    %v9951 = vunpack.c.l.b16 %v9816
    %v9952 = vunpack.c.l.b16 %v9817
    %v9953 = vunpack.c.l.b16 %v9818
    %v9954 = vunpack.c.l.b16 %v9819
    %v9955 = vunpack.c.l.b16 %v9820
    %v9956 = vunpack.c.l.b16 %v9821
    %v9957 = vunpack.c.l.b16 %v9822
    %v9958 = vunpack.c.l.b16 %v9823
    %v9959 = vunpack.c.l.b16 %v9824
    %v9960 = vunpack.c.l.b16 %v9825
    %v9961 = vunpack.c.l.b16 %v9826
    %v9962 = vunpack.c.l.b16 %v9827
    %v9963 = vunpack.c.l.b16 %v9828
    %v9964 = vunpack.c.l.b16 %v9829
    %v9965 = vpack.c.b16 %v9902, %v9901
    %v9966 = vpack.c.b16 %v9904, %v9903
    %v9967 = vpack.c.b16 %v9906, %v9905
    %v9968 = vpack.c.b16 %v9908, %v9907
    %v9969 = vpack.c.b16 %v9910, %v9909
    %v9970 = vpack.c.b16 %v9912, %v9911
    %v9971 = vpack.c.b16 %v9914, %v9913
    %v9972 = vpack.c.b16 %v9916, %v9915
    %v9973 = vpack.c.b16 %v9918, %v9917
    %v9974 = vpack.c.b16 %v9920, %v9919
    %v9975 = vpack.c.b16 %v9922, %v9921
    %v9976 = vpack.c.b16 %v9924, %v9923
    %v9977 = vpack.c.b16 %v9926, %v9925
    %v9978 = vpack.c.b16 %v9928, %v9927
    %v9979 = vpack.c.b16 %v9930, %v9929
    %v9980 = vpack.c.b16 %v9932, %v9931
    %v9981 = vpack.c.b16 %v9934, %v9933
    %v9982 = vpack.c.b16 %v9936, %v9935
    %v9983 = vpack.c.b16 %v9938, %v9937
    %v9984 = vpack.c.b16 %v9940, %v9939
    %v9985 = vpack.c.b16 %v9942, %v9941
    %v9986 = vpack.c.b16 %v9944, %v9943
    %v9987 = vpack.c.b16 %v9946, %v9945
    %v9988 = vpack.c.b16 %v9948, %v9947
    %v9989 = vpack.c.b16 %v9950, %v9949
    %v9990 = vpack.c.b16 %v9952, %v9951
    %v9991 = vpack.c.b16 %v9954, %v9953
    %v9992 = vpack.c.b16 %v9956, %v9955
    %v9993 = vpack.c.b16 %v9958, %v9957
    %v9994 = vpack.c.b16 %v9960, %v9959
    %v9995 = vpack.c.b16 %v9962, %v9961
    %v9996 = vpack.c.b16 %v9964, %v9963
    %10029 = vmatprep.subr.bf16.mxu0 0
    %10030 = vmatpush1.bf16.msra.mxu0 %v9965
    %10031 = vmatprep.subr.bf16.mxu0 0
    %10032 = vmatpush1.bf16.msra.mxu0 %v9966
    %10033 = vmatprep.subr.bf16.mxu0 0
    %10034 = vmatpush1.bf16.msra.mxu0 %v9967
    %10035 = vmatprep.subr.bf16.mxu0 0
    %10036 = vmatpush1.bf16.msra.mxu0 %v9968
    %10037 = vmatprep.subr.bf16.mxu0 0
    %10038 = vmatpush1.bf16.msra.mxu0 %v9969
    %10039 = vmatprep.subr.bf16.mxu0 0
    %10040 = vmatpush1.bf16.msra.mxu0 %v9970
    %10041 = vmatprep.subr.bf16.mxu0 0
    %10042 = vmatpush1.bf16.msra.mxu0 %v9971
    %10043 = vmatprep.subr.bf16.mxu0 0
    %10044 = vmatpush1.bf16.msra.mxu0 %v9972
    %10045 = vmatprep.subr.bf16.mxu0 0
    %10046 = vmatpush1.bf16.msra.mxu0 %v9973
    %10047 = vmatprep.subr.bf16.mxu0 0
    %10048 = vmatpush1.bf16.msra.mxu0 %v9974
    %10049 = vmatprep.subr.bf16.mxu0 0
    %10050 = vmatpush1.bf16.msra.mxu0 %v9975
    %10051 = vmatprep.subr.bf16.mxu0 0
    %10052 = vmatpush1.bf16.msra.mxu0 %v9976
    %10053 = vmatprep.subr.bf16.mxu0 0
    %10054 = vmatpush1.bf16.msra.mxu0 %v9977
    %10055 = vmatprep.subr.bf16.mxu0 0
    %10056 = vmatpush1.bf16.msra.mxu0 %v9978
    %10057 = vmatprep.subr.bf16.mxu0 0
    %10058 = vmatpush1.bf16.msra.mxu0 %v9979
    %10059 = vmatprep.subr.bf16.mxu0 0
    %10060 = vmatpush1.bf16.msra.mxu0 %v9980
    %10061 = vmatprep.mubr.bf16.mxu0 %v9763
    %10062 = vmatmul.mubr.bf16.gmra.mrb[0].mxu0 %v9762
    %v10063 = vpop.f32.mrb[0].mxu0
    %v10064 = vadd.f32 %v9835, %v10063
    %v10065 = vpop.f32.mrb[0].mxu0
    %v10066 = vpop.f32.mrb[0].mxu0
    %v10067 = vpop.f32.mrb[0].mxu0
    %10068 = vdwg.mxu0
    %10069 = vmatprep.subr.bf16.mxu0 0
    %10070 = vmatpush1.bf16.msra.mxu0 %v9981
    %10071 = vmatprep.subr.bf16.mxu0 0
    %10072 = vmatpush1.bf16.msra.mxu0 %v9982
    %10073 = vmatprep.subr.bf16.mxu0 0
    %10074 = vmatpush1.bf16.msra.mxu0 %v9983
    %10075 = vmatprep.subr.bf16.mxu0 0
    %10076 = vmatpush1.bf16.msra.mxu0 %v9984
    %10077 = vmatprep.subr.bf16.mxu0 0
    %10078 = vmatpush1.bf16.msra.mxu0 %v9985
    %10079 = vmatprep.subr.bf16.mxu0 0
    %10080 = vmatpush1.bf16.msra.mxu0 %v9986
    %10081 = vmatprep.subr.bf16.mxu0 0
    %10082 = vmatpush1.bf16.msra.mxu0 %v9987
    %10083 = vmatprep.subr.bf16.mxu0 0
    %10084 = vmatpush1.bf16.msra.mxu0 %v9988
    %10085 = vmatprep.subr.bf16.mxu0 0
    %10086 = vmatpush1.bf16.msra.mxu0 %v9989
    %10087 = vmatprep.subr.bf16.mxu0 0
    %10088 = vmatpush1.bf16.msra.mxu0 %v9990
    %10089 = vmatprep.subr.bf16.mxu0 0
    %10090 = vmatpush1.bf16.msra.mxu0 %v9991
    %10091 = vmatprep.subr.bf16.mxu0 0
    %10092 = vmatpush1.bf16.msra.mxu0 %v9992
    %10093 = vmatprep.subr.bf16.mxu0 0
    %10094 = vmatpush1.bf16.msra.mxu0 %v9993
    %10095 = vmatprep.subr.bf16.mxu0 0
    %10096 = vmatpush1.bf16.msra.mxu0 %v9994
    %10097 = vmatprep.subr.bf16.mxu0 0
    %10098 = vmatpush1.bf16.msra.mxu0 %v9995
    %10099 = vmatprep.subr.bf16.mxu0 0
    %10100 = vmatpush1.bf16.msra.mxu0 %v9996
    %10101 = vmatprep.mubr.bf16.mxu0 %v9765
    %10102 = vmatmul.mubr.bf16.gmra.mrb[0].mxu0 %v9764
    %v10103 = vpop.f32.mrb[0].mxu0
    %v10104 = vadd.f32 %v10064, %v10103
    %v10105 = vpop.f32.mrb[0].mxu0
    %v10106 = vpop.f32.mrb[0].mxu0
    %v10107 = vpop.f32.mrb[0].mxu0
    %10108 = vdwg.mxu0
    %v10109 = vlaneseq
    %v10110 = vand.u32 %v10109, 127
    %vm10111 = vcmp.lt.s32.totalorder %v10110, 10
    %v10112 = vsel %vm10111, %v10104, -1e+30
    %vm10113 = vcmask 1041408
    %v10114 = vsel %vm10113, %v10112, -inf
    %10115 = vmax.xlane.f32.xlu0 %v10114
    %v10116 = vpop.xlane.xlu0 %10115
    %v10117 = vsub.f32 %v10112, %v10116
    %v10118 = vmul.f32 %v10117, 1.442695
    %v10119 = vpow.pop %v10118
    %v10120 = vsel %vm10113, %v10119, 0.0
    %10121 = vadd.xlane.f32.xlu0 %v10120
    %v10122 = vpop.xlane.xlu0 %10121
    %v10123 = vlog2.pop %v10122
    %v10124 = vmul.f32 %v10123, 0.6931472
    %v10125 = vsub.f32 %v10117, %v10124
    %10126 = vst [vmem:[#allocation4] sm:$0x3] %v10125
    // Predicated region
    $region38: #{net_forward.1} parent=1 // pred_check
      _
    $region39: #{net_forward.1} parent=1 // pred_check_branch
      %10128 = sbr.rel (0) target = $region41
    $region40: #{net_forward.1} parent=1 // pred_region
      %s10130 = ssub.s32 32, 32
      %10131 = vsyncadd [#allocation5], %s10130
      %s10133 = sshll.u32 [#allocation4], 4
      %s10134 = int_to_ptr.vmem [resolvable:$true] %s10133
      %10136 = dma.vmem_to_hbm [thread:$0]  %s10134, 32, %s9, [#allocation5]
    $region41: #{net_forward.1} parent=1 // pred_fallthru
      _
    // Predicated region
    $region42: #{net_forward.1} parent=1 // pred_check
      _
    $region43: #{net_forward.1} parent=1 // pred_check_branch
      %10138 = sbr.rel (0) target = $region45
    $region44: #{net_forward.1} parent=1 // pred_region
      %10139 = dma.done [#allocation5], 32
    $region45: #{net_forward.1} parent=1 // pred_fallthru
      _
    %10140 = vsyncpa [#allocation5], 1

</llo_original>
